<compile_context>
chip_gen: v7x
topology: tpu7x:2x2x1
jax: 0.10.0
libtpu: 0.0.40
codegen_flags: <defaults>
</compile_context>

<pallas_src>
import functools

import jax
import jax.numpy as jnp
from jax import lax
from jax.experimental import pallas as pl
from jax.experimental.pallas import tpu as pltpu

LANE = 128                    # all channel axes padded to the 128-lane width
ACT = jnp.bfloat16            # bf16 operands / activations, f32 accumulate
_EPS = 1e-5


def _round_up(x, m):
    return (x + m - 1) // m * m


def _cparams():
    return pltpu.CompilerParams(
        dimension_semantics=("parallel",),
        vmem_limit_bytes=32 * 1024 * 1024,
    )


# ---------------------------------------------------------------------------
# Kernel 1: stem conv7x7/s2 (one K=256 matmul over a pre-built im2col tile)
#           + folded BN + ReLU + 3x3/s2/p1 maxpool, fused.
#           Emits the zero-padded flat slab consumed by the BasicBlock kernels.
# ---------------------------------------------------------------------------
def _stem_pool_kernel(a_ref, w_ref, t_ref, o_ref, *, Ho, Wo, P):
    C = o_ref.shape[-1]
    y = jnp.dot(a_ref[0], w_ref[...], preferred_element_type=jnp.float32)
    y = jnp.maximum(y + t_ref[...], 0.0)                       # (Ho*Wo, C)
    y = y.reshape(Ho, Wo, C)

    # maxpool 3x3 stride 2 pad 1 (zero padding == -inf here since y >= 0)
    Hp, Wp = Ho // 2, Wo // 2
    z = y.reshape(Hp, 2, Wo, C)
    ztop, zbot = z[:, 0], z[:, 1]                              # rows 2h, 2h+1
    prev = jnp.concatenate([jnp.zeros_like(zbot[0:1]), zbot[:-1]], axis=0)  # row 2h-1
    r = jnp.maximum(jnp.maximum(ztop, zbot), prev)             # (Hp, Wo, C)
    rc = r.reshape(Hp, Wp, 2, C)
    ca, cb = rc[:, :, 0], rc[:, :, 1]                          # cols 2w, 2w+1
    prevc = jnp.concatenate([jnp.zeros_like(cb[:, 0:1]), cb[:, :-1]], axis=1)  # col 2w-1
    pooled = jnp.maximum(jnp.maximum(ca, cb), prevc)           # (Hp, Wp, C)

    # zero-padded slab rows: [0 | valid | 0], one zero row on top,
    # two zero rows below (the second is the flat-shift safety row).
    rows = jnp.concatenate(
        [jnp.zeros((Hp, 1, C), pooled.dtype), pooled,
         jnp.zeros((Hp, P - 1 - Wp, C), pooled.dtype)], axis=1)    # (Hp, P, C)
    slab = jnp.concatenate(
        [jnp.zeros((1, P, C), pooled.dtype), rows,
         jnp.zeros((2, P, C), pooled.dtype)], axis=0)              # (Hp+3, P, C)
    o_ref[...] = jnp.zeros_like(o_ref)
    o_ref[0, 0:(Hp + 3) * P, :] = slab.reshape((Hp + 3) * P, C).astype(o_ref.dtype)


def stem_maxpool(a_im2col, w, t, Ho, Wo, P, S):
    N, _, K = a_im2col.shape
    return pl.pallas_call(
        functools.partial(_stem_pool_kernel, Ho=Ho, Wo=Wo, P=P),
        out_shape=jax.ShapeDtypeStruct((N, S, LANE), ACT),
        grid=(N,),
        in_specs=[
            pl.BlockSpec((1, Ho * Wo, K), lambda i: (i, 0, 0)),
            pl.BlockSpec((K, LANE), lambda i: (0, 0)),
            pl.BlockSpec((1, LANE), lambda i: (0, 0)),
        ],
        out_specs=pl.BlockSpec((1, S, LANE), lambda i: (i, 0, 0)),
        compiler_params=_cparams(),
    )(a_im2col, w, t)


# ---------------------------------------------------------------------------
# Kernel 2: fused BasicBlock.
#   Input/output are flat zero-padded slabs (1, S, 128), S >= (H+3)*P, P = W+2.
#   Flat-shift conv: tap (di,dj) of output q = h*P+w reads slab[q + di*P + dj];
#   the residual is slab[q + P + 1].  Output columns w >= W are garbage and are
#   masked to zero so the emitted slab is again a valid zero-padded slab.
# ---------------------------------------------------------------------------
def _basic_block_kernel(x_ref, w1_ref, w2_ref, t1_ref, t2_ref, m_ref, o_ref,
                        b_ref, *, P):
    C = x_ref.shape[-1]
    M = m_ref.shape[0]
    mask = m_ref[...]                                          # (M, 1): 1.0 on valid cols

    # conv1 (3x3, zero pad, BN folded into w1) + ReLU -> VMEM scratch slab
    acc = jnp.zeros((M, C), jnp.float32)
    for di in range(3):
        for dj in range(3):
            off = di * P + dj
            acc = acc + jnp.dot(x_ref[0, off:off + M, :], w1_ref[3 * di + dj],
                                preferred_element_type=jnp.float32)
    h1 = jnp.maximum(acc + t1_ref[...], 0.0) * mask
    b_ref[...] = jnp.zeros_like(b_ref)
    b_ref[P + 1:P + 1 + M, :] = h1.astype(b_ref.dtype)

    # conv2 (3x3, zero pad, BN folded into w2) + residual + ReLU
    acc2 = jnp.zeros((M, C), jnp.float32)
    for di in range(3):
        for dj in range(3):
            off = di * P + dj
            acc2 = acc2 + jnp.dot(b_ref[off:off + M, :], w2_ref[3 * di + dj],
                                  preferred_element_type=jnp.float32)
    res = x_ref[0, P + 1:P + 1 + M, :].astype(jnp.float32)
    y = jnp.maximum(acc2 + t2_ref[...] + res, 0.0) * mask
    o_ref[...] = jnp.zeros_like(o_ref)
    o_ref[0, P + 1:P + 1 + M, :] = y.astype(o_ref.dtype)


def basic_block(x_slab, w1, w2, t1, t2, colmask, P):
    N, S, C = x_slab.shape
    M = colmask.shape[0]
    return pl.pallas_call(
        functools.partial(_basic_block_kernel, P=P),
        out_shape=jax.ShapeDtypeStruct((N, S, C), ACT),
        grid=(N,),
        in_specs=[
            pl.BlockSpec((1, S, C), lambda i: (i, 0, 0)),
            pl.BlockSpec((9, C, C), lambda i: (0, 0, 0)),
            pl.BlockSpec((9, C, C), lambda i: (0, 0, 0)),
            pl.BlockSpec((1, C), lambda i: (0, 0)),
            pl.BlockSpec((1, C), lambda i: (0, 0)),
            pl.BlockSpec((M, 1), lambda i: (0, 0)),
        ],
        out_specs=pl.BlockSpec((1, S, C), lambda i: (i, 0, 0)),
        scratch_shapes=[pltpu.VMEM((S, C), ACT)],
        compiler_params=_cparams(),
    )(x_slab, w1, w2, t1, t2, colmask)


# ---------------------------------------------------------------------------
# Kernel 3: fused head.
#   conv1x1 -> InstanceNorm -> LeakyReLU(0.2) -> replicate-pad (in VMEM) ->
#   conv3x3 -> InstanceNorm.  Conv biases are omitted: a constant per-channel
#   bias is exactly cancelled by the affine-free InstanceNorm mean subtraction.
# ---------------------------------------------------------------------------
def _head_kernel(x_ref, w1_ref, w2_ref, m_ref, o_ref, s_ref, *, H, W, P,
                 slope, eps):
    C = x_ref.shape[-1]
    M = H * P
    cnt = float(H * W)
    mask = m_ref[...]

    # conv1x1 + IN + LeakyReLU (statistics over the H*W valid pixels only)
    a = x_ref[0, P + 1:P + 1 + M, :]
    z = jnp.dot(a, w1_ref[...], preferred_element_type=jnp.float32)     # (M, C)
    mean = jnp.sum(z * mask, axis=0, keepdims=True) / cnt
    zc = (z - mean) * mask
    var = jnp.sum(zc * zc, axis=0, keepdims=True) / cnt                 # biased
    zn = zc * lax.rsqrt(var + eps)
    zn = jnp.where(zn >= 0.0, zn, slope * zn)

    # in-VMEM replicate padding (padding_mode='replicate') for the 3x3 conv
    z3 = zn.reshape(H, P, C)
    hmid = z3[:, 0:W, :]
    rp = jnp.concatenate([hmid[:, 0:1], hmid, hmid[:, W - 1:W]], axis=1)  # (H, P, C)
    rp = jnp.concatenate([rp[0:1], rp, rp[H - 1:H]], axis=0)              # (H+2, P, C)
    s_ref[...] = jnp.zeros_like(s_ref)
    s_ref[0:(H + 2) * P, :] = rp.reshape((H + 2) * P, C).astype(s_ref.dtype)

    # conv3x3 (replicate pad) + IN
    acc = jnp.zeros((M, C), jnp.float32)
    for di in range(3):
        for dj in range(3):
            off = di * P + dj
            acc = acc + jnp.dot(s_ref[off:off + M, :], w2_ref[3 * di + dj],
                                preferred_element_type=jnp.float32)
    mean2 = jnp.sum(acc * mask, axis=0, keepdims=True) / cnt
    c2 = (acc - mean2) * mask
    var2 = jnp.sum(c2 * c2, axis=0, keepdims=True) / cnt
    out = c2 * lax.rsqrt(var2 + eps)
    o_ref[0] = out.astype(o_ref.dtype)


def head_forward(x_slab, w1, w2, colmask, H, W, P, slope=0.2, eps=_EPS):
    N, S, C = x_slab.shape
    M = H * P
    return pl.pallas_call(
        functools.partial(_head_kernel, H=H, W=W, P=P, slope=slope, eps=eps),
        out_shape=jax.ShapeDtypeStruct((N, M, C), jnp.float32),
        grid=(N,),
        in_specs=[
            pl.BlockSpec((1, S, C), lambda i: (i, 0, 0)),
            pl.BlockSpec((C, C), lambda i: (0, 0)),
            pl.BlockSpec((9, C, C), lambda i: (0, 0, 0)),
            pl.BlockSpec((M, 1), lambda i: (0, 0)),
        ],
        out_specs=pl.BlockSpec((1, M, C), lambda i: (i, 0, 0)),
        scratch_shapes=[pltpu.VMEM((S, C), ACT)],
        compiler_params=_cparams(),
    )(x_slab, w1, w2, colmask)


# ---------------------------------------------------------------------------
# Plain-JAX glue: BN folding, weight prep (run once, outside jit), stem im2col
# ---------------------------------------------------------------------------
def _bn_fold(bn, eps=_EPS):
    gamma, beta, mean, var = bn
    s = gamma / jnp.sqrt(var + eps)
    t = beta - mean * s
    return s, t


def _pad_vec(v, n=LANE):
    return jnp.pad(v.astype(jnp.float32), (0, n - v.shape[0])).reshape(1, n)


def _prep_w3x3(w, scale=None, cin_pad=LANE, cout_pad=LANE):
    """torch (Cout,Cin,3,3) -> (9, cin_pad, cout_pad) bf16, BN scale folded in."""
    cout, cin, _, _ = w.shape
    wt = jnp.transpose(w, (2, 3, 1, 0)).astype(jnp.float32)
    if scale is not None:
        wt = wt * scale.reshape(1, 1, 1, cout)
    w9 = wt.reshape(9, cin, cout)
    w9 = jnp.pad(w9, ((0, 0), (0, cin_pad - cin), (0, cout_pad - cout)))
    return w9.astype(ACT)


def _prep_stem_w(w, scale, k_pad=256, cout_pad=LANE):
    cout, cin, kh, kw = w.shape
    wt = jnp.transpose(w, (2, 3, 1, 0)).astype(jnp.float32) * scale.reshape(1, 1, 1, cout)
    b = wt.reshape(kh * kw * cin, cout)
    b = jnp.pad(b, ((0, k_pad - kh * kw * cin), (0, cout_pad - cout)))
    return b.astype(ACT)


def prepare_params(params):
    """Fold BN into conv weights, pad lane-dense. Runs once, outside jit."""
    pp = {}
    s, t = _bn_fold(params["bn1"])
    pp["stem_w"], pp["stem_t"] = _prep_stem_w(params["conv1_w"], s), _pad_vec(t)
    for name in ("block0", "block1"):
        bp = params[name]
        s1, t1 = _bn_fold(bp["bn1"])
        s2, t2 = _bn_fold(bp["bn2"])
        pp[name] = {"w1": _prep_w3x3(bp["conv1_w"], s1), "t1": _pad_vec(t1),
                    "w2": _prep_w3x3(bp["conv2_w"], s2), "t2": _pad_vec(t2)}
    hd = params["head"]
    w1 = hd["conv1_w"][:, :, 0, 0].T.astype(jnp.float32)
    w1 = jnp.pad(w1, ((0, LANE - w1.shape[0]), (0, LANE - w1.shape[1])))
    # head conv biases dropped: exactly cancelled by the affine-free IN.
    pp["head"] = {"w1": w1.astype(ACT), "w2": _prep_w3x3(hd["conv2_w"])}
    return pp


def _stem_im2col(x_nhwc, kh=7, kw=7, stride=2, pad=3, k_pad=256):
    # TODO(synk): build these tiles in-kernel from the padded image slab
    # (strided tap reads in VMEM) to avoid the HBM im2col expansion of the stem.
    N, H, W, Cin = x_nhwc.shape
    xp = jnp.pad(x_nhwc, ((0, 0), (pad, pad), (pad, pad), (0, 0)))
    Ho = (H + 2 * pad - kh) // stride + 1
    Wo = (W + 2 * pad - kw) // stride + 1
    taps = [xp[:, i:i + stride * Ho:stride, j:j + stride * Wo:stride, :]
            for i in range(kh) for j in range(kw)]
    a = jnp.stack(taps, axis=3).reshape(N, Ho * Wo, kh * kw * Cin)
    a = jnp.pad(a, ((0, 0), (0, 0), (0, k_pad - kh * kw * Cin)))
    return a.astype(ACT), Ho, Wo


# ---------------------------------------------------------------------------
# Model: ResnetMatchingEncoder forward (matching_scale=1, multiscale=1)
# ---------------------------------------------------------------------------
def resnet_matching_encoder_forward(x_nchw, pp, num_ch_out):
    N = x_nchw.shape[0]
    x = jnp.transpose(x_nchw, (0, 2, 3, 1)).astype(jnp.float32)      # NCHW -> NHWC

    # stem conv7x7/s2 + BN + ReLU + maxpool3x3/s2, fused into one kernel
    a, Ho, Wo = _stem_im2col(x)
    assert Ho % 2 == 0 and Wo % 2 == 0, "stem/maxpool fusion assumes even sizes"
    Hp, Wp = Ho // 2, Wo // 2
    P = Wp + 2                          # padded row width of the activation slabs
    S = _round_up((Hp + 3) * P, 8)      # flat slab length
    M = Hp * P                          # flat conv-output length (incl. garbage cols)
    h = stem_maxpool(a, pp["stem_w"], pp["stem_t"], Ho, Wo, P, S)     # (N, S, 128)

    # 1.0 on valid output columns of the flat grid, 0.0 on the 2 garbage cols/row
    colmask = (jnp.where((jnp.arange(M) % P) < Wp, 1.0, 0.0)
               .reshape(M, 1).astype(jnp.float32))

    # layer1: two fused BasicBlocks (64 -> 64, carried as 128 padded lanes)
    for name in ("block0", "block1"):
        bp = pp[name]
        h = basic_block(h, bp["w1"], bp["w2"], bp["t1"], bp["t2"], colmask, P)

    # head (matching_scale=1, multiscale=1 -> head(x) twice, computed once)
    y = head_forward(h, pp["head"]["w1"], pp["head"]["w2"], colmask, Hp, Wp, P)
    y = y.reshape(N, Hp, P, LANE)[:, :, :Wp, :num_ch_out]
    y = jnp.transpose(y, (0, 3, 1, 2)).astype(jnp.float32)
    return [y, y]


# ---------------------------------------------------------------------------
# Deterministic synthetic parameters (torch layouts)
# ---------------------------------------------------------------------------
def init_params(key, num_ch_out):
    keys = list(jax.random.split(key, 16))
    ki = iter(keys)

    def conv(shape, k):
        return 0.05 * jax.random.normal(k, shape, jnp.float32)

    def bn(c, k):
        k1, k2, k3, k4 = jax.random.split(k, 4)
        gamma = 1.0 + 0.1 * jax.random.normal(k1, (c,), jnp.float32)
        beta = 0.1 * jax.random.normal(k2, (c,), jnp.float32)
        mean = 0.1 * jax.random.normal(k3, (c,), jnp.float32)
        var = jax.random.uniform(k4, (c,), jnp.float32, minval=0.5, maxval=1.5)
        return (gamma, beta, mean, var)

    def block(k):
        k1, k2, k3, k4 = jax.random.split(k, 4)
        return {"conv1_w": conv((64, 64, 3, 3), k1), "bn1": bn(64, k2),
                "conv2_w": conv((64, 64, 3, 3), k3), "bn2": bn(64, k4)}

    return {
        "conv1_w": conv((64, 3, 7, 7), next(ki)),
        "bn1": bn(64, next(ki)),
        "block0": block(next(ki)),
        "block1": block(next(ki)),
        "head": {
            "conv1_w": conv((64, 64, 1, 1), next(ki)),
            "conv1_b": 0.05 * jax.random.normal(next(ki), (64,), jnp.float32),
            "conv2_w": conv((num_ch_out, 64, 3, 3), next(ki)),
            "conv2_b": 0.05 * jax.random.normal(next(ki), (num_ch_out,), jnp.float32),
        },
    }


if __name__ == "__main__":
    key = jax.random.PRNGKey(0)
    k_params, k_input = jax.random.split(key)

    N, Cin, H, W = 2, 3, 32, 32          # resnet stem expects 3 input channels
    num_ch_out = 16

    params = init_params(k_params, num_ch_out)
    x = jax.random.normal(k_input, (N, Cin, H, W), jnp.float32)

    prepared = prepare_params(params)    # hoisted out of the jitted forward
    fwd = jax.jit(functools.partial(resnet_matching_encoder_forward,
                                    num_ch_out=num_ch_out))
    out = fwd(x, prepared)
    out = [jax.block_until_ready(o) for o in out]

    assert len(out) == 2
    assert out[0].shape == (N, num_ch_out, H // 4, W // 4)
    assert out[1].shape == (N, num_ch_out, H // 4, W // 4)
    assert all(bool(jnp.isfinite(o).all()) for o in out)
    print("KERNEL_OK")
</pallas_src>

<mosaic_0001>
module attributes {stable_mosaic.version = 11 : i64} {
  func.func @_stem_pool_kernel(%arg0: i32, %arg1: memref<1x256x256xbf16, #tpu.memory_space<vmem>>, %arg2: memref<256x128xbf16, #tpu.memory_space<vmem>>, %arg3: memref<1x128xf32, #tpu.memory_space<vmem>>, %arg4: memref<1x112x128xbf16, #tpu.memory_space<vmem>>) attributes {dimension_semantics = [#tpu.dimension_semantics<parallel>], iteration_bounds = array<i64: 2>, scalar_prefetch = 0 : i64, scratch_operands = 0 : i64, tpu.core_type = #tpu.core_type<tc>, window_params = [{transform_indices = @transform_0, window_bounds = array<i64: 1, 256, 256>}, {pipeline_mode = #tpu.pipeline_mode<synchronous>, transform_indices = @transform_1, window_bounds = array<i64: 256, 128>}, {pipeline_mode = #tpu.pipeline_mode<synchronous>, transform_indices = @transform_2, window_bounds = array<i64: 1, 128>}, {transform_indices = @transform_3, window_bounds = array<i64: 1, 112, 128>}]} {
    %c0 = arith.constant 0 : index
    %c0_0 = arith.constant 0 : index
    %c0_1 = arith.constant 0 : index
    %0 = vector.load %arg1[%c0, %c0_0, %c0_1] : memref<1x256x256xbf16, #tpu.memory_space<vmem>>, vector<1x256x256xbf16>
    %1 = vector.shape_cast %0 : vector<1x256x256xbf16> to vector<256x256xbf16>
    %c0_2 = arith.constant 0 : index
    %c0_3 = arith.constant 0 : index
    %2 = vector.load %arg2[%c0_2, %c0_3] : memref<256x128xbf16, #tpu.memory_space<vmem>>, vector<256x128xbf16>
    %cst = arith.constant dense<0.000000e+00> : vector<256x128xf32>
    %3 = tpu.matmul %1, %2, %cst {dimension_numbers = #tpu.dot_dimension_numbers<[1], [0], [0], [1], [0, 0, 1, 1], [], []>} : vector<256x256xbf16>, vector<256x128xbf16>, vector<256x128xf32> -> vector<256x128xf32>
    %c0_4 = arith.constant 0 : index
    %c0_5 = arith.constant 0 : index
    %4 = vector.load %arg3[%c0_4, %c0_5] : memref<1x128xf32, #tpu.memory_space<vmem>>, vector<1x128xf32>
    %5 = vector.broadcast %4 : vector<1x128xf32> to vector<256x128xf32>
    %6 = arith.addf %3, %5 : vector<256x128xf32>
    %cst_6 = arith.constant 0.000000e+00 : f32
    %7 = vector.broadcast %cst_6 : f32 to vector<256x128xf32>
    %8 = arith.maximumf %6, %7 : vector<256x128xf32>
    %9 = vector.shape_cast %8 : vector<256x128xf32> to vector<16x16x128xf32>
    %10 = vector.shape_cast %9 : vector<16x16x128xf32> to vector<8x2x16x128xf32>
    %11 = vector.extract_strided_slice %10 {offsets = [0, 0, 0, 0], sizes = [8, 1, 16, 128], strides = [1, 1, 1, 1]} : vector<8x2x16x128xf32> to vector<8x1x16x128xf32>
    %12 = vector.shape_cast %11 : vector<8x1x16x128xf32> to vector<8x16x128xf32>
    %13 = vector.extract_strided_slice %10 {offsets = [0, 1, 0, 0], sizes = [8, 1, 16, 128], strides = [1, 1, 1, 1]} : vector<8x2x16x128xf32> to vector<8x1x16x128xf32>
    %14 = vector.shape_cast %13 : vector<8x1x16x128xf32> to vector<8x16x128xf32>
    %cst_7 = arith.constant 0.000000e+00 : f32
    %15 = vector.broadcast %cst_7 : f32 to vector<1x16x128xf32>
    %16 = vector.extract_strided_slice %14 {offsets = [0, 0, 0], sizes = [7, 16, 128], strides = [1, 1, 1]} : vector<8x16x128xf32> to vector<7x16x128xf32>
    %17 = tpu.concatenate %15, %16 in 0 : vector<1x16x128xf32>, vector<7x16x128xf32> -> vector<8x16x128xf32>
    %18 = arith.maximumf %12, %14 : vector<8x16x128xf32>
    %19 = arith.maximumf %18, %17 : vector<8x16x128xf32>
    %20 = vector.shape_cast %19 : vector<8x16x128xf32> to vector<8x8x2x128xf32>
    %21 = vector.extract_strided_slice %20 {offsets = [0, 0, 0, 0], sizes = [8, 8, 1, 128], strides = [1, 1, 1, 1]} : vector<8x8x2x128xf32> to vector<8x8x1x128xf32>
    %22 = vector.shape_cast %21 : vector<8x8x1x128xf32> to vector<8x8x128xf32>
    %23 = vector.extract_strided_slice %20 {offsets = [0, 0, 1, 0], sizes = [8, 8, 1, 128], strides = [1, 1, 1, 1]} : vector<8x8x2x128xf32> to vector<8x8x1x128xf32>
    %24 = vector.shape_cast %23 : vector<8x8x1x128xf32> to vector<8x8x128xf32>
    %cst_8 = arith.constant 0.000000e+00 : f32
    %25 = vector.broadcast %cst_8 : f32 to vector<8x1x128xf32>
    %26 = vector.extract_strided_slice %24 {offsets = [0, 0, 0], sizes = [8, 7, 128], strides = [1, 1, 1]} : vector<8x8x128xf32> to vector<8x7x128xf32>
    %27 = tpu.concatenate %25, %26 in 1 : vector<8x1x128xf32>, vector<8x7x128xf32> -> vector<8x8x128xf32>
    %28 = arith.maximumf %22, %24 : vector<8x8x128xf32>
    %29 = arith.maximumf %28, %27 : vector<8x8x128xf32>
    %cst_9 = arith.constant 0.000000e+00 : f32
    %30 = vector.broadcast %cst_9 : f32 to vector<8x1x128xf32>
    %cst_10 = arith.constant 0.000000e+00 : f32
    %31 = vector.broadcast %cst_10 : f32 to vector<8x1x128xf32>
    %32 = tpu.concatenate %30, %29, %31 in 1 : vector<8x1x128xf32>, vector<8x8x128xf32>, vector<8x1x128xf32> -> vector<8x10x128xf32>
    %cst_11 = arith.constant 0.000000e+00 : f32
    %33 = vector.broadcast %cst_11 : f32 to vector<1x10x128xf32>
    %cst_12 = arith.constant 0.000000e+00 : f32
    %34 = vector.broadcast %cst_12 : f32 to vector<2x10x128xf32>
    %35 = tpu.concatenate %33, %32, %34 in 0 : vector<1x10x128xf32>, vector<8x10x128xf32>, vector<2x10x128xf32> -> vector<11x10x128xf32>
    %cst_13 = arith.constant 0.000000e+00 : bf16
    %36 = vector.broadcast %cst_13 : bf16 to vector<1x112x128xbf16>
    %c0_14 = arith.constant 0 : index
    %c0_15 = arith.constant 0 : index
    %c0_16 = arith.constant 0 : index
    %37 = vector.load %arg4[%c0_14, %c0_15, %c0_16] : memref<1x112x128xbf16, #tpu.memory_space<vmem>>, vector<1x112x128xbf16>
    tpu.vector_store %arg4[%c0_14, %c0_15, %c0_16], %36 {strides = array<i32>} : memref<1x112x128xbf16, #tpu.memory_space<vmem>>, vector<1x112x128xbf16>,
    %38 = vector.shape_cast %35 : vector<11x10x128xf32> to vector<110x128xf32>
    %39 = arith.truncf %38 : vector<110x128xf32> to vector<110x128xbf16>
    %c0_17 = arith.constant 0 : index
    %c0_18 = arith.constant 0 : index
    %c0_19 = arith.constant 0 : index
    %40 = vector.load %arg4[%c0_17, %c0_18, %c0_19] : memref<1x112x128xbf16, #tpu.memory_space<vmem>>, vector<1x110x128xbf16>
    %41 = vector.shape_cast %40 : vector<1x110x128xbf16> to vector<110x128xbf16>
    %42 = vector.shape_cast %39 : vector<110x128xbf16> to vector<1x110x128xbf16>
    tpu.vector_store %arg4[%c0_17, %c0_18, %c0_19], %42 {strides = array<i32>} : memref<1x112x128xbf16, #tpu.memory_space<vmem>>, vector<1x110x128xbf16>,
    return
  }
  func.func @transform_0(%arg0: i32) -> (i32, i32, i32) {
    %c0_i32 = arith.constant 0 : i32
    %c0_i32_0 = arith.constant 0 : i32
    %c0_i32_1 = arith.constant 0 : i32
    return %arg0, %c0_i32, %c0_i32_0 : i32, i32, i32
  }
  func.func @transform_1(%arg0: i32) -> (i32, i32) {
    %c0_i32 = arith.constant 0 : i32
    %c0_i32_0 = arith.constant 0 : i32
    %c0_i32_1 = arith.constant 0 : i32
    return %c0_i32, %c0_i32_0 : i32, i32
  }
  func.func @transform_2(%arg0: i32) -> (i32, i32) {
    %c0_i32 = arith.constant 0 : i32
    %c0_i32_0 = arith.constant 0 : i32
    %c0_i32_1 = arith.constant 0 : i32
    return %c0_i32, %c0_i32_0 : i32, i32
  }
  func.func @transform_3(%arg0: i32) -> (i32, i32, i32) {
    %c0_i32 = arith.constant 0 : i32
    %c0_i32_0 = arith.constant 0 : i32
    %c0_i32_1 = arith.constant 0 : i32
    return %arg0, %c0_i32, %c0_i32_0 : i32, i32, i32
  }
}

module attributes {stable_mosaic.version = 11 : i64} {
  func.func @_basic_block_kernel(%arg0: i32, %arg1: memref<1x112x128xbf16, #tpu.memory_space<vmem>>, %arg2: memref<9x128x128xbf16, #tpu.memory_space<vmem>>, %arg3: memref<9x128x128xbf16, #tpu.memory_space<vmem>>, %arg4: memref<1x128xf32, #tpu.memory_space<vmem>>, %arg5: memref<1x128xf32, #tpu.memory_space<vmem>>, %arg6: memref<80x1xf32, #tpu.memory_space<vmem>>, %arg7: memref<1x112x128xbf16, #tpu.memory_space<vmem>>, %arg8: memref<112x128xbf16, #tpu.memory_space<vmem>>) attributes {dimension_semantics = [#tpu.dimension_semantics<parallel>], iteration_bounds = array<i64: 2>, scalar_prefetch = 0 : i64, scratch_operands = 1 : i64, tpu.core_type = #tpu.core_type<tc>, window_params = [{transform_indices = @transform_0, window_bounds = array<i64: 1, 112, 128>}, {pipeline_mode = #tpu.pipeline_mode<synchronous>, transform_indices = @transform_1, window_bounds = array<i64: 9, 128, 128>}, {pipeline_mode = #tpu.pipeline_mode<synchronous>, transform_indices = @transform_2, window_bounds = array<i64: 9, 128, 128>}, {pipeline_mode = #tpu.pipeline_mode<synchronous>, transform_indices = @transform_3, window_bounds = array<i64: 1, 128>}, {pipeline_mode = #tpu.pipeline_mode<synchronous>, transform_indices = @transform_4, window_bounds = array<i64: 1, 128>}, {pipeline_mode = #tpu.pipeline_mode<synchronous>, transform_indices = @transform_5, window_bounds = array<i64: 80, 1>}, {transform_indices = @transform_6, window_bounds = array<i64: 1, 112, 128>}]} {
    %c0 = arith.constant 0 : index
    %c0_0 = arith.constant 0 : index
    %0 = vector.load %arg6[%c0, %c0_0] : memref<80x1xf32, #tpu.memory_space<vmem>>, vector<80x1xf32>
    %cst = arith.constant 0.000000e+00 : f32
    %1 = vector.broadcast %cst : f32 to vector<80x128xf32>
    %c0_1 = arith.constant 0 : index
    %c0_2 = arith.constant 0 : index
    %c0_3 = arith.constant 0 : index
    %2 = vector.load %arg1[%c0_1, %c0_2, %c0_3] : memref<1x112x128xbf16, #tpu.memory_space<vmem>>, vector<1x80x128xbf16>
    %3 = vector.shape_cast %2 : vector<1x80x128xbf16> to vector<80x128xbf16>
    %c0_4 = arith.constant 0 : index
    %c0_5 = arith.constant 0 : index
    %c0_6 = arith.constant 0 : index
    %4 = vector.load %arg2[%c0_4, %c0_5, %c0_6] : memref<9x128x128xbf16, #tpu.memory_space<vmem>>, vector<1x128x128xbf16>
    %5 = vector.shape_cast %4 : vector<1x128x128xbf16> to vector<128x128xbf16>
    %cst_7 = arith.constant dense<0.000000e+00> : vector<80x128xf32>
    %6 = tpu.matmul %3, %5, %cst_7 {dimension_numbers = #tpu.dot_dimension_numbers<[1], [0], [0], [1], [0, 0, 1, 1], [], []>} : vector<80x128xbf16>, vector<128x128xbf16>, vector<80x128xf32> -> vector<80x128xf32>
    %7 = arith.addf %1, %6 : vector<80x128xf32>
    %c0_8 = arith.constant 0 : index
    %c1 = arith.constant 1 : index
    %c0_9 = arith.constant 0 : index
    %8 = vector.load %arg1[%c0_8, %c1, %c0_9] : memref<1x112x128xbf16, #tpu.memory_space<vmem>>, vector<1x80x128xbf16>
    %9 = vector.shape_cast %8 : vector<1x80x128xbf16> to vector<80x128xbf16>
    %c1_10 = arith.constant 1 : index
    %c0_11 = arith.constant 0 : index
    %c0_12 = arith.constant 0 : index
    %10 = vector.load %arg2[%c1_10, %c0_11, %c0_12] : memref<9x128x128xbf16, #tpu.memory_space<vmem>>, vector<1x128x128xbf16>
    %11 = vector.shape_cast %10 : vector<1x128x128xbf16> to vector<128x128xbf16>
    %cst_13 = arith.constant dense<0.000000e+00> : vector<80x128xf32>
    %12 = tpu.matmul %9, %11, %cst_13 {dimension_numbers = #tpu.dot_dimension_numbers<[1], [0], [0], [1], [0, 0, 1, 1], [], []>} : vector<80x128xbf16>, vector<128x128xbf16>, vector<80x128xf32> -> vector<80x128xf32>
    %13 = arith.addf %7, %12 : vector<80x128xf32>
    %c0_14 = arith.constant 0 : index
    %c2 = arith.constant 2 : index
    %c0_15 = arith.constant 0 : index
    %14 = vector.load %arg1[%c0_14, %c2, %c0_15] : memref<1x112x128xbf16, #tpu.memory_space<vmem>>, vector<1x80x128xbf16>
    %15 = vector.shape_cast %14 : vector<1x80x128xbf16> to vector<80x128xbf16>
    %c2_16 = arith.constant 2 : index
    %c0_17 = arith.constant 0 : index
    %c0_18 = arith.constant 0 : index
    %16 = vector.load %arg2[%c2_16, %c0_17, %c0_18] : memref<9x128x128xbf16, #tpu.memory_space<vmem>>, vector<1x128x128xbf16>
    %17 = vector.shape_cast %16 : vector<1x128x128xbf16> to vector<128x128xbf16>
    %cst_19 = arith.constant dense<0.000000e+00> : vector<80x128xf32>
    %18 = tpu.matmul %15, %17, %cst_19 {dimension_numbers = #tpu.dot_dimension_numbers<[1], [0], [0], [1], [0, 0, 1, 1], [], []>} : vector<80x128xbf16>, vector<128x128xbf16>, vector<80x128xf32> -> vector<80x128xf32>
    %19 = arith.addf %13, %18 : vector<80x128xf32>
    %c0_20 = arith.constant 0 : index
    %c10 = arith.constant 10 : index
    %c0_21 = arith.constant 0 : index
    %20 = vector.load %arg1[%c0_20, %c10, %c0_21] : memref<1x112x128xbf16, #tpu.memory_space<vmem>>, vector<1x80x128xbf16>
    %21 = vector.shape_cast %20 : vector<1x80x128xbf16> to vector<80x128xbf16>
    %c3 = arith.constant 3 : index
    %c0_22 = arith.constant 0 : index
    %c0_23 = arith.constant 0 : index
    %22 = vector.load %arg2[%c3, %c0_22, %c0_23] : memref<9x128x128xbf16, #tpu.memory_space<vmem>>, vector<1x128x128xbf16>
    %23 = vector.shape_cast %22 : vector<1x128x128xbf16> to vector<128x128xbf16>
    %cst_24 = arith.constant dense<0.000000e+00> : vector<80x128xf32>
    %24 = tpu.matmul %21, %23, %cst_24 {dimension_numbers = #tpu.dot_dimension_numbers<[1], [0], [0], [1], [0, 0, 1, 1], [], []>} : vector<80x128xbf16>, vector<128x128xbf16>, vector<80x128xf32> -> vector<80x128xf32>
    %25 = arith.addf %19, %24 : vector<80x128xf32>
    %c0_25 = arith.constant 0 : index
    %c11 = arith.constant 11 : index
    %c0_26 = arith.constant 0 : index
    %26 = vector.load %arg1[%c0_25, %c11, %c0_26] : memref<1x112x128xbf16, #tpu.memory_space<vmem>>, vector<1x80x128xbf16>
    %27 = vector.shape_cast %26 : vector<1x80x128xbf16> to vector<80x128xbf16>
    %c4 = arith.constant 4 : index
    %c0_27 = arith.constant 0 : index
    %c0_28 = arith.constant 0 : index
    %28 = vector.load %arg2[%c4, %c0_27, %c0_28] : memref<9x128x128xbf16, #tpu.memory_space<vmem>>, vector<1x128x128xbf16>
    %29 = vector.shape_cast %28 : vector<1x128x128xbf16> to vector<128x128xbf16>
    %cst_29 = arith.constant dense<0.000000e+00> : vector<80x128xf32>
    %30 = tpu.matmul %27, %29, %cst_29 {dimension_numbers = #tpu.dot_dimension_numbers<[1], [0], [0], [1], [0, 0, 1, 1], [], []>} : vector<80x128xbf16>, vector<128x128xbf16>, vector<80x128xf32> -> vector<80x128xf32>
    %31 = arith.addf %25, %30 : vector<80x128xf32>
    %c0_30 = arith.constant 0 : index
    %c12 = arith.constant 12 : index
    %c0_31 = arith.constant 0 : index
    %32 = vector.load %arg1[%c0_30, %c12, %c0_31] : memref<1x112x128xbf16, #tpu.memory_space<vmem>>, vector<1x80x128xbf16>
    %33 = vector.shape_cast %32 : vector<1x80x128xbf16> to vector<80x128xbf16>
    %c5 = arith.constant 5 : index
    %c0_32 = arith.constant 0 : index
    %c0_33 = arith.constant 0 : index
    %34 = vector.load %arg2[%c5, %c0_32, %c0_33] : memref<9x128x128xbf16, #tpu.memory_space<vmem>>, vector<1x128x128xbf16>
    %35 = vector.shape_cast %34 : vector<1x128x128xbf16> to vector<128x128xbf16>
    %cst_34 = arith.constant dense<0.000000e+00> : vector<80x128xf32>
    %36 = tpu.matmul %33, %35, %cst_34 {dimension_numbers = #tpu.dot_dimension_numbers<[1], [0], [0], [1], [0, 0, 1, 1], [], []>} : vector<80x128xbf16>, vector<128x128xbf16>, vector<80x128xf32> -> vector<80x128xf32>
    %37 = arith.addf %31, %36 : vector<80x128xf32>
    %c0_35 = arith.constant 0 : index
    %c20 = arith.constant 20 : index
    %c0_36 = arith.constant 0 : index
    %38 = vector.load %arg1[%c0_35, %c20, %c0_36] : memref<1x112x128xbf16, #tpu.memory_space<vmem>>, vector<1x80x128xbf16>
    %39 = vector.shape_cast %38 : vector<1x80x128xbf16> to vector<80x128xbf16>
    %c6 = arith.constant 6 : index
    %c0_37 = arith.constant 0 : index
    %c0_38 = arith.constant 0 : index
    %40 = vector.load %arg2[%c6, %c0_37, %c0_38] : memref<9x128x128xbf16, #tpu.memory_space<vmem>>, vector<1x128x128xbf16>
    %41 = vector.shape_cast %40 : vector<1x128x128xbf16> to vector<128x128xbf16>
    %cst_39 = arith.constant dense<0.000000e+00> : vector<80x128xf32>
    %42 = tpu.matmul %39, %41, %cst_39 {dimension_numbers = #tpu.dot_dimension_numbers<[1], [0], [0], [1], [0, 0, 1, 1], [], []>} : vector<80x128xbf16>, vector<128x128xbf16>, vector<80x128xf32> -> vector<80x128xf32>
    %43 = arith.addf %37, %42 : vector<80x128xf32>
    %c0_40 = arith.constant 0 : index
    %c21 = arith.constant 21 : index
    %c0_41 = arith.constant 0 : index
    %44 = vector.load %arg1[%c0_40, %c21, %c0_41] : memref<1x112x128xbf16, #tpu.memory_space<vmem>>, vector<1x80x128xbf16>
    %45 = vector.shape_cast %44 : vector<1x80x128xbf16> to vector<80x128xbf16>
    %c7 = arith.constant 7 : index
    %c0_42 = arith.constant 0 : index
    %c0_43 = arith.constant 0 : index
    %46 = vector.load %arg2[%c7, %c0_42, %c0_43] : memref<9x128x128xbf16, #tpu.memory_space<vmem>>, vector<1x128x128xbf16>
    %47 = vector.shape_cast %46 : vector<1x128x128xbf16> to vector<128x128xbf16>
    %cst_44 = arith.constant dense<0.000000e+00> : vector<80x128xf32>
    %48 = tpu.matmul %45, %47, %cst_44 {dimension_numbers = #tpu.dot_dimension_numbers<[1], [0], [0], [1], [0, 0, 1, 1], [], []>} : vector<80x128xbf16>, vector<128x128xbf16>, vector<80x128xf32> -> vector<80x128xf32>
    %49 = arith.addf %43, %48 : vector<80x128xf32>
    %c0_45 = arith.constant 0 : index
    %c22 = arith.constant 22 : index
    %c0_46 = arith.constant 0 : index
    %50 = vector.load %arg1[%c0_45, %c22, %c0_46] : memref<1x112x128xbf16, #tpu.memory_space<vmem>>, vector<1x80x128xbf16>
    %51 = vector.shape_cast %50 : vector<1x80x128xbf16> to vector<80x128xbf16>
    %c8 = arith.constant 8 : index
    %c0_47 = arith.constant 0 : index
    %c0_48 = arith.constant 0 : index
    %52 = vector.load %arg2[%c8, %c0_47, %c0_48] : memref<9x128x128xbf16, #tpu.memory_space<vmem>>, vector<1x128x128xbf16>
    %53 = vector.shape_cast %52 : vector<1x128x128xbf16> to vector<128x128xbf16>
    %cst_49 = arith.constant dense<0.000000e+00> : vector<80x128xf32>
    %54 = tpu.matmul %51, %53, %cst_49 {dimension_numbers = #tpu.dot_dimension_numbers<[1], [0], [0], [1], [0, 0, 1, 1], [], []>} : vector<80x128xbf16>, vector<128x128xbf16>, vector<80x128xf32> -> vector<80x128xf32>
    %55 = arith.addf %49, %54 : vector<80x128xf32>
    %c0_50 = arith.constant 0 : index
    %c0_51 = arith.constant 0 : index
    %56 = vector.load %arg4[%c0_50, %c0_51] : memref<1x128xf32, #tpu.memory_space<vmem>>, vector<1x128xf32>
    %57 = vector.broadcast %56 : vector<1x128xf32> to vector<80x128xf32>
    %58 = arith.addf %55, %57 : vector<80x128xf32>
    %cst_52 = arith.constant 0.000000e+00 : f32
    %59 = vector.broadcast %cst_52 : f32 to vector<80x128xf32>
    %60 = arith.maximumf %58, %59 : vector<80x128xf32>
    %61 = vector.broadcast %0 : vector<80x1xf32> to vector<80x128xf32>
    %62 = arith.mulf %60, %61 : vector<80x128xf32>
    %cst_53 = arith.constant 0.000000e+00 : bf16
    %63 = vector.broadcast %cst_53 : bf16 to vector<112x128xbf16>
    %c0_54 = arith.constant 0 : index
    %c0_55 = arith.constant 0 : index
    %64 = vector.load %arg8[%c0_54, %c0_55] : memref<112x128xbf16, #tpu.memory_space<vmem>>, vector<112x128xbf16>
    tpu.vector_store %arg8[%c0_54, %c0_55], %63 {strides = array<i32>} : memref<112x128xbf16, #tpu.memory_space<vmem>>, vector<112x128xbf16>,
    %65 = arith.truncf %62 : vector<80x128xf32> to vector<80x128xbf16>
    %c11_56 = arith.constant 11 : index
    %c0_57 = arith.constant 0 : index
    %66 = vector.load %arg8[%c11_56, %c0_57] : memref<112x128xbf16, #tpu.memory_space<vmem>>, vector<80x128xbf16>
    tpu.vector_store %arg8[%c11_56, %c0_57], %65 {strides = array<i32>} : memref<112x128xbf16, #tpu.memory_space<vmem>>, vector<80x128xbf16>,
    %cst_58 = arith.constant 0.000000e+00 : f32
    %67 = vector.broadcast %cst_58 : f32 to vector<80x128xf32>
    %c0_59 = arith.constant 0 : index
    %c0_60 = arith.constant 0 : index
    %68 = vector.load %arg8[%c0_59, %c0_60] : memref<112x128xbf16, #tpu.memory_space<vmem>>, vector<80x128xbf16>
    %c0_61 = arith.constant 0 : index
    %c0_62 = arith.constant 0 : index
    %c0_63 = arith.constant 0 : index
    %69 = vector.load %arg3[%c0_61, %c0_62, %c0_63] : memref<9x128x128xbf16, #tpu.memory_space<vmem>>, vector<1x128x128xbf16>
    %70 = vector.shape_cast %69 : vector<1x128x128xbf16> to vector<128x128xbf16>
    %cst_64 = arith.constant dense<0.000000e+00> : vector<80x128xf32>
    %71 = tpu.matmul %68, %70, %cst_64 {dimension_numbers = #tpu.dot_dimension_numbers<[1], [0], [0], [1], [0, 0, 1, 1], [], []>} : vector<80x128xbf16>, vector<128x128xbf16>, vector<80x128xf32> -> vector<80x128xf32>
    %72 = arith.addf %67, %71 : vector<80x128xf32>
    %c1_65 = arith.constant 1 : index
    %c0_66 = arith.constant 0 : index
    %73 = vector.load %arg8[%c1_65, %c0_66] : memref<112x128xbf16, #tpu.memory_space<vmem>>, vector<80x128xbf16>
    %c1_67 = arith.constant 1 : index
    %c0_68 = arith.constant 0 : index
    %c0_69 = arith.constant 0 : index
    %74 = vector.load %arg3[%c1_67, %c0_68, %c0_69] : memref<9x128x128xbf16, #tpu.memory_space<vmem>>, vector<1x128x128xbf16>
    %75 = vector.shape_cast %74 : vector<1x128x128xbf16> to vector<128x128xbf16>
    %cst_70 = arith.constant dense<0.000000e+00> : vector<80x128xf32>
    %76 = tpu.matmul %73, %75, %cst_70 {dimension_numbers = #tpu.dot_dimension_numbers<[1], [0], [0], [1], [0, 0, 1, 1], [], []>} : vector<80x128xbf16>, vector<128x128xbf16>, vector<80x128xf32> -> vector<80x128xf32>
    %77 = arith.addf %72, %76 : vector<80x128xf32>
    %c2_71 = arith.constant 2 : index
    %c0_72 = arith.constant 0 : index
    %78 = vector.load %arg8[%c2_71, %c0_72] : memref<112x128xbf16, #tpu.memory_space<vmem>>, vector<80x128xbf16>
    %c2_73 = arith.constant 2 : index
    %c0_74 = arith.constant 0 : index
    %c0_75 = arith.constant 0 : index
    %79 = vector.load %arg3[%c2_73, %c0_74, %c0_75] : memref<9x128x128xbf16, #tpu.memory_space<vmem>>, vector<1x128x128xbf16>
    %80 = vector.shape_cast %79 : vector<1x128x128xbf16> to vector<128x128xbf16>
    %cst_76 = arith.constant dense<0.000000e+00> : vector<80x128xf32>
    %81 = tpu.matmul %78, %80, %cst_76 {dimension_numbers = #tpu.dot_dimension_numbers<[1], [0], [0], [1], [0, 0, 1, 1], [], []>} : vector<80x128xbf16>, vector<128x128xbf16>, vector<80x128xf32> -> vector<80x128xf32>
    %82 = arith.addf %77, %81 : vector<80x128xf32>
    %c10_77 = arith.constant 10 : index
    %c0_78 = arith.constant 0 : index
    %83 = vector.load %arg8[%c10_77, %c0_78] : memref<112x128xbf16, #tpu.memory_space<vmem>>, vector<80x128xbf16>
    %c3_79 = arith.constant 3 : index
    %c0_80 = arith.constant 0 : index
    %c0_81 = arith.constant 0 : index
    %84 = vector.load %arg3[%c3_79, %c0_80, %c0_81] : memref<9x128x128xbf16, #tpu.memory_space<vmem>>, vector<1x128x128xbf16>
    %85 = vector.shape_cast %84 : vector<1x128x128xbf16> to vector<128x128xbf16>
    %cst_82 = arith.constant dense<0.000000e+00> : vector<80x128xf32>
    %86 = tpu.matmul %83, %85, %cst_82 {dimension_numbers = #tpu.dot_dimension_numbers<[1], [0], [0], [1], [0, 0, 1, 1], [], []>} : vector<80x128xbf16>, vector<128x128xbf16>, vector<80x128xf32> -> vector<80x128xf32>
    %87 = arith.addf %82, %86 : vector<80x128xf32>
    %c11_83 = arith.constant 11 : index
    %c0_84 = arith.constant 0 : index
    %88 = vector.load %arg8[%c11_83, %c0_84] : memref<112x128xbf16, #tpu.memory_space<vmem>>, vector<80x128xbf16>
    %c4_85 = arith.constant 4 : index
    %c0_86 = arith.constant 0 : index
    %c0_87 = arith.constant 0 : index
    %89 = vector.load %arg3[%c4_85, %c0_86, %c0_87] : memref<9x128x128xbf16, #tpu.memory_space<vmem>>, vector<1x128x128xbf16>
    %90 = vector.shape_cast %89 : vector<1x128x128xbf16> to vector<128x128xbf16>
    %cst_88 = arith.constant dense<0.000000e+00> : vector<80x128xf32>
    %91 = tpu.matmul %88, %90, %cst_88 {dimension_numbers = #tpu.dot_dimension_numbers<[1], [0], [0], [1], [0, 0, 1, 1], [], []>} : vector<80x128xbf16>, vector<128x128xbf16>, vector<80x128xf32> -> vector<80x128xf32>
    %92 = arith.addf %87, %91 : vector<80x128xf32>
    %c12_89 = arith.constant 12 : index
    %c0_90 = arith.constant 0 : index
    %93 = vector.load %arg8[%c12_89, %c0_90] : memref<112x128xbf16, #tpu.memory_space<vmem>>, vector<80x128xbf16>
    %c5_91 = arith.constant 5 : index
    %c0_92 = arith.constant 0 : index
    %c0_93 = arith.constant 0 : index
    %94 = vector.load %arg3[%c5_91, %c0_92, %c0_93] : memref<9x128x128xbf16, #tpu.memory_space<vmem>>, vector<1x128x128xbf16>
    %95 = vector.shape_cast %94 : vector<1x128x128xbf16> to vector<128x128xbf16>
    %cst_94 = arith.constant dense<0.000000e+00> : vector<80x128xf32>
    %96 = tpu.matmul %93, %95, %cst_94 {dimension_numbers = #tpu.dot_dimension_numbers<[1], [0], [0], [1], [0, 0, 1, 1], [], []>} : vector<80x128xbf16>, vector<128x128xbf16>, vector<80x128xf32> -> vector<80x128xf32>
    %97 = arith.addf %92, %96 : vector<80x128xf32>
    %c20_95 = arith.constant 20 : index
    %c0_96 = arith.constant 0 : index
    %98 = vector.load %arg8[%c20_95, %c0_96] : memref<112x128xbf16, #tpu.memory_space<vmem>>, vector<80x128xbf16>
    %c6_97 = arith.constant 6 : index
    %c0_98 = arith.constant 0 : index
    %c0_99 = arith.constant 0 : index
    %99 = vector.load %arg3[%c6_97, %c0_98, %c0_99] : memref<9x128x128xbf16, #tpu.memory_space<vmem>>, vector<1x128x128xbf16>
    %100 = vector.shape_cast %99 : vector<1x128x128xbf16> to vector<128x128xbf16>
    %cst_100 = arith.constant dense<0.000000e+00> : vector<80x128xf32>
    %101 = tpu.matmul %98, %100, %cst_100 {dimension_numbers = #tpu.dot_dimension_numbers<[1], [0], [0], [1], [0, 0, 1, 1], [], []>} : vector<80x128xbf16>, vector<128x128xbf16>, vector<80x128xf32> -> vector<80x128xf32>
    %102 = arith.addf %97, %101 : vector<80x128xf32>
    %c21_101 = arith.constant 21 : index
    %c0_102 = arith.constant 0 : index
    %103 = vector.load %arg8[%c21_101, %c0_102] : memref<112x128xbf16, #tpu.memory_space<vmem>>, vector<80x128xbf16>
    %c7_103 = arith.constant 7 : index
    %c0_104 = arith.constant 0 : index
    %c0_105 = arith.constant 0 : index
    %104 = vector.load %arg3[%c7_103, %c0_104, %c0_105] : memref<9x128x128xbf16, #tpu.memory_space<vmem>>, vector<1x128x128xbf16>
    %105 = vector.shape_cast %104 : vector<1x128x128xbf16> to vector<128x128xbf16>
    %cst_106 = arith.constant dense<0.000000e+00> : vector<80x128xf32>
    %106 = tpu.matmul %103, %105, %cst_106 {dimension_numbers = #tpu.dot_dimension_numbers<[1], [0], [0], [1], [0, 0, 1, 1], [], []>} : vector<80x128xbf16>, vector<128x128xbf16>, vector<80x128xf32> -> vector<80x128xf32>
    %107 = arith.addf %102, %106 : vector<80x128xf32>
    %c22_107 = arith.constant 22 : index
    %c0_108 = arith.constant 0 : index
    %108 = vector.load %arg8[%c22_107, %c0_108] : memref<112x128xbf16, #tpu.memory_space<vmem>>, vector<80x128xbf16>
    %c8_109 = arith.constant 8 : index
    %c0_110 = arith.constant 0 : index
    %c0_111 = arith.constant 0 : index
    %109 = vector.load %arg3[%c8_109, %c0_110, %c0_111] : memref<9x128x128xbf16, #tpu.memory_space<vmem>>, vector<1x128x128xbf16>
    %110 = vector.shape_cast %109 : vector<1x128x128xbf16> to vector<128x128xbf16>
    %cst_112 = arith.constant dense<0.000000e+00> : vector<80x128xf32>
    %111 = tpu.matmul %108, %110, %cst_112 {dimension_numbers = #tpu.dot_dimension_numbers<[1], [0], [0], [1], [0, 0, 1, 1], [], []>} : vector<80x128xbf16>, vector<128x128xbf16>, vector<80x128xf32> -> vector<80x128xf32>
    %112 = arith.addf %107, %111 : vector<80x128xf32>
    %c0_113 = arith.constant 0 : index
    %c11_114 = arith.constant 11 : index
    %c0_115 = arith.constant 0 : index
    %113 = vector.load %arg1[%c0_113, %c11_114, %c0_115] : memref<1x112x128xbf16, #tpu.memory_space<vmem>>, vector<1x80x128xbf16>
    %114 = vector.shape_cast %113 : vector<1x80x128xbf16> to vector<80x128xbf16>
    %115 = arith.extf %114 : vector<80x128xbf16> to vector<80x128xf32>
    %c0_116 = arith.constant 0 : index
    %c0_117 = arith.constant 0 : index
    %116 = vector.load %arg5[%c0_116, %c0_117] : memref<1x128xf32, #tpu.memory_space<vmem>>, vector<1x128xf32>
    %117 = vector.broadcast %116 : vector<1x128xf32> to vector<80x128xf32>
    %118 = arith.addf %112, %117 : vector<80x128xf32>
    %119 = arith.addf %118, %115 : vector<80x128xf32>
    %cst_118 = arith.constant 0.000000e+00 : f32
    %120 = vector.broadcast %cst_118 : f32 to vector<80x128xf32>
    %121 = arith.maximumf %119, %120 : vector<80x128xf32>
    %122 = vector.broadcast %0 : vector<80x1xf32> to vector<80x128xf32>
    %123 = arith.mulf %121, %122 : vector<80x128xf32>
    %cst_119 = arith.constant 0.000000e+00 : bf16
    %124 = vector.broadcast %cst_119 : bf16 to vector<1x112x128xbf16>
    %c0_120 = arith.constant 0 : index
    %c0_121 = arith.constant 0 : index
    %c0_122 = arith.constant 0 : index
    %125 = vector.load %arg7[%c0_120, %c0_121, %c0_122] : memref<1x112x128xbf16, #tpu.memory_space<vmem>>, vector<1x112x128xbf16>
    tpu.vector_store %arg7[%c0_120, %c0_121, %c0_122], %124 {strides = array<i32>} : memref<1x112x128xbf16, #tpu.memory_space<vmem>>, vector<1x112x128xbf16>,
    %126 = arith.truncf %123 : vector<80x128xf32> to vector<80x128xbf16>
    %c0_123 = arith.constant 0 : index
    %c11_124 = arith.constant 11 : index
    %c0_125 = arith.constant 0 : index
    %127 = vector.load %arg7[%c0_123, %c11_124, %c0_125] : memref<1x112x128xbf16, #tpu.memory_space<vmem>>, vector<1x80x128xbf16>
    %128 = vector.shape_cast %127 : vector<1x80x128xbf16> to vector<80x128xbf16>
    %129 = vector.shape_cast %126 : vector<80x128xbf16> to vector<1x80x128xbf16>
    tpu.vector_store %arg7[%c0_123, %c11_124, %c0_125], %129 {strides = array<i32>} : memref<1x112x128xbf16, #tpu.memory_space<vmem>>, vector<1x80x128xbf16>,
    return
  }
  func.func @transform_0(%arg0: i32) -> (i32, i32, i32) {
    %c0_i32 = arith.constant 0 : i32
    %c0_i32_0 = arith.constant 0 : i32
    %c0_i32_1 = arith.constant 0 : i32
    return %arg0, %c0_i32, %c0_i32_0 : i32, i32, i32
  }
  func.func @transform_1(%arg0: i32) -> (i32, i32, i32) {
    %c0_i32 = arith.constant 0 : i32
    %c0_i32_0 = arith.constant 0 : i32
    %c0_i32_1 = arith.constant 0 : i32
    %c0_i32_2 = arith.constant 0 : i32
    return %c0_i32, %c0_i32_0, %c0_i32_1 : i32, i32, i32
  }
  func.func @transform_2(%arg0: i32) -> (i32, i32, i32) {
    %c0_i32 = arith.constant 0 : i32
    %c0_i32_0 = arith.constant 0 : i32
    %c0_i32_1 = arith.constant 0 : i32
    %c0_i32_2 = arith.constant 0 : i32
    return %c0_i32, %c0_i32_0, %c0_i32_1 : i32, i32, i32
  }
  func.func @transform_3(%arg0: i32) -> (i32, i32) {
    %c0_i32 = arith.constant 0 : i32
    %c0_i32_0 = arith.constant 0 : i32
    %c0_i32_1 = arith.constant 0 : i32
    return %c0_i32, %c0_i32_0 : i32, i32
  }
  func.func @transform_4(%arg0: i32) -> (i32, i32) {
    %c0_i32 = arith.constant 0 : i32
    %c0_i32_0 = arith.constant 0 : i32
    %c0_i32_1 = arith.constant 0 : i32
    return %c0_i32, %c0_i32_0 : i32, i32
  }
  func.func @transform_5(%arg0: i32) -> (i32, i32) {
    %c0_i32 = arith.constant 0 : i32
    %c0_i32_0 = arith.constant 0 : i32
    %c0_i32_1 = arith.constant 0 : i32
    return %c0_i32, %c0_i32_0 : i32, i32
  }
  func.func @transform_6(%arg0: i32) -> (i32, i32, i32) {
    %c0_i32 = arith.constant 0 : i32
    %c0_i32_0 = arith.constant 0 : i32
    %c0_i32_1 = arith.constant 0 : i32
    return %arg0, %c0_i32, %c0_i32_0 : i32, i32, i32
  }
}

module attributes {stable_mosaic.version = 11 : i64} {
  func.func @_head_kernel(%arg0: i32, %arg1: memref<1x112x128xbf16, #tpu.memory_space<vmem>>, %arg2: memref<128x128xbf16, #tpu.memory_space<vmem>>, %arg3: memref<9x128x128xbf16, #tpu.memory_space<vmem>>, %arg4: memref<80x1xf32, #tpu.memory_space<vmem>>, %arg5: memref<1x80x128xf32, #tpu.memory_space<vmem>>, %arg6: memref<112x128xbf16, #tpu.memory_space<vmem>>) attributes {dimension_semantics = [#tpu.dimension_semantics<parallel>], iteration_bounds = array<i64: 2>, scalar_prefetch = 0 : i64, scratch_operands = 1 : i64, tpu.core_type = #tpu.core_type<tc>, window_params = [{transform_indices = @transform_0, window_bounds = array<i64: 1, 112, 128>}, {pipeline_mode = #tpu.pipeline_mode<synchronous>, transform_indices = @transform_1, window_bounds = array<i64: 128, 128>}, {pipeline_mode = #tpu.pipeline_mode<synchronous>, transform_indices = @transform_2, window_bounds = array<i64: 9, 128, 128>}, {pipeline_mode = #tpu.pipeline_mode<synchronous>, transform_indices = @transform_3, window_bounds = array<i64: 80, 1>}, {transform_indices = @transform_4, window_bounds = array<i64: 1, 80, 128>}]} {
    %c0 = arith.constant 0 : index
    %c0_0 = arith.constant 0 : index
    %0 = vector.load %arg4[%c0, %c0_0] : memref<80x1xf32, #tpu.memory_space<vmem>>, vector<80x1xf32>
    %c0_1 = arith.constant 0 : index
    %c11 = arith.constant 11 : index
    %c0_2 = arith.constant 0 : index
    %1 = vector.load %arg1[%c0_1, %c11, %c0_2] : memref<1x112x128xbf16, #tpu.memory_space<vmem>>, vector<1x80x128xbf16>
    %2 = vector.shape_cast %1 : vector<1x80x128xbf16> to vector<80x128xbf16>
    %c0_3 = arith.constant 0 : index
    %c0_4 = arith.constant 0 : index
    %3 = vector.load %arg2[%c0_3, %c0_4] : memref<128x128xbf16, #tpu.memory_space<vmem>>, vector<128x128xbf16>
    %cst = arith.constant dense<0.000000e+00> : vector<80x128xf32>
    %4 = tpu.matmul %2, %3, %cst {dimension_numbers = #tpu.dot_dimension_numbers<[1], [0], [0], [1], [0, 0, 1, 1], [], []>} : vector<80x128xbf16>, vector<128x128xbf16>, vector<80x128xf32> -> vector<80x128xf32>
    %5 = vector.broadcast %0 : vector<80x1xf32> to vector<80x128xf32>
    %6 = arith.mulf %4, %5 : vector<80x128xf32>
    %cst_5 = arith.constant dense<0.000000e+00> : vector<128xf32>
    %7 = vector.multi_reduction <add>, %6, %cst_5 [0] : vector<80x128xf32> to vector<128xf32>
    %8 = vector.shape_cast %7 : vector<128xf32> to vector<1x128xf32>
    %cst_6 = arith.constant 6.400000e+01 : f32
    %9 = vector.broadcast %cst_6 : f32 to vector<1x128xf32>
    %10 = arith.divf %8, %9 : vector<1x128xf32>
    %11 = vector.broadcast %10 : vector<1x128xf32> to vector<80x128xf32>
    %12 = arith.subf %4, %11 : vector<80x128xf32>
    %13 = vector.broadcast %0 : vector<80x1xf32> to vector<80x128xf32>
    %14 = arith.mulf %12, %13 : vector<80x128xf32>
    %15 = arith.mulf %14, %14 : vector<80x128xf32>
    %cst_7 = arith.constant dense<0.000000e+00> : vector<128xf32>
    %16 = vector.multi_reduction <add>, %15, %cst_7 [0] : vector<80x128xf32> to vector<128xf32>
    %17 = vector.shape_cast %16 : vector<128xf32> to vector<1x128xf32>
    %cst_8 = arith.constant 6.400000e+01 : f32
    %18 = vector.broadcast %cst_8 : f32 to vector<1x128xf32>
    %19 = arith.divf %17, %18 : vector<1x128xf32>
    %cst_9 = arith.constant 9.99999974E-6 : f32
    %20 = vector.broadcast %cst_9 : f32 to vector<1x128xf32>
    %21 = arith.addf %19, %20 : vector<1x128xf32>
    %22 = math.rsqrt %21 : vector<1x128xf32>
    %23 = vector.broadcast %22 : vector<1x128xf32> to vector<80x128xf32>
    %24 = arith.mulf %14, %23 : vector<80x128xf32>
    %cst_10 = arith.constant 0.000000e+00 : f32
    %25 = vector.broadcast %cst_10 : f32 to vector<80x128xf32>
    %26 = arith.cmpf oge, %24, %25 : vector<80x128xf32>
    %cst_11 = arith.constant 2.000000e-01 : f32
    %27 = vector.broadcast %cst_11 : f32 to vector<80x128xf32>
    %28 = arith.mulf %27, %24 : vector<80x128xf32>
    %29 = arith.select %26, %24, %28 : vector<80x128xi1>, vector<80x128xf32>
    %30 = vector.shape_cast %29 : vector<80x128xf32> to vector<8x10x128xf32>
    %31 = vector.extract_strided_slice %30 {offsets = [0, 0, 0], sizes = [8, 8, 128], strides = [1, 1, 1]} : vector<8x10x128xf32> to vector<8x8x128xf32>
    %32 = vector.extract_strided_slice %31 {offsets = [0, 0, 0], sizes = [8, 1, 128], strides = [1, 1, 1]} : vector<8x8x128xf32> to vector<8x1x128xf32>
    %33 = vector.extract_strided_slice %31 {offsets = [0, 7, 0], sizes = [8, 1, 128], strides = [1, 1, 1]} : vector<8x8x128xf32> to vector<8x1x128xf32>
    %34 = tpu.concatenate %32, %31, %33 in 1 : vector<8x1x128xf32>, vector<8x8x128xf32>, vector<8x1x128xf32> -> vector<8x10x128xf32>
    %35 = vector.extract_strided_slice %34 {offsets = [0, 0, 0], sizes = [1, 10, 128], strides = [1, 1, 1]} : vector<8x10x128xf32> to vector<1x10x128xf32>
    %36 = vector.extract_strided_slice %34 {offsets = [7, 0, 0], sizes = [1, 10, 128], strides = [1, 1, 1]} : vector<8x10x128xf32> to vector<1x10x128xf32>
    %37 = tpu.concatenate %35, %34, %36 in 0 : vector<1x10x128xf32>, vector<8x10x128xf32>, vector<1x10x128xf32> -> vector<10x10x128xf32>
    %cst_12 = arith.constant 0.000000e+00 : bf16
    %38 = vector.broadcast %cst_12 : bf16 to vector<112x128xbf16>
    %c0_13 = arith.constant 0 : index
    %c0_14 = arith.constant 0 : index
    %39 = vector.load %arg6[%c0_13, %c0_14] : memref<112x128xbf16, #tpu.memory_space<vmem>>, vector<112x128xbf16>
    tpu.vector_store %arg6[%c0_13, %c0_14], %38 {strides = array<i32>} : memref<112x128xbf16, #tpu.memory_space<vmem>>, vector<112x128xbf16>,
    %40 = vector.shape_cast %37 : vector<10x10x128xf32> to vector<100x128xf32>
    %41 = arith.truncf %40 : vector<100x128xf32> to vector<100x128xbf16>
    %c0_15 = arith.constant 0 : index
    %c0_16 = arith.constant 0 : index
    %42 = vector.load %arg6[%c0_15, %c0_16] : memref<112x128xbf16, #tpu.memory_space<vmem>>, vector<100x128xbf16>
    tpu.vector_store %arg6[%c0_15, %c0_16], %41 {strides = array<i32>} : memref<112x128xbf16, #tpu.memory_space<vmem>>, vector<100x128xbf16>,
    %cst_17 = arith.constant 0.000000e+00 : f32
    %43 = vector.broadcast %cst_17 : f32 to vector<80x128xf32>
    %c0_18 = arith.constant 0 : index
    %c0_19 = arith.constant 0 : index
    %44 = vector.load %arg6[%c0_18, %c0_19] : memref<112x128xbf16, #tpu.memory_space<vmem>>, vector<80x128xbf16>
    %c0_20 = arith.constant 0 : index
    %c0_21 = arith.constant 0 : index
    %c0_22 = arith.constant 0 : index
    %45 = vector.load %arg3[%c0_20, %c0_21, %c0_22] : memref<9x128x128xbf16, #tpu.memory_space<vmem>>, vector<1x128x128xbf16>
    %46 = vector.shape_cast %45 : vector<1x128x128xbf16> to vector<128x128xbf16>
    %cst_23 = arith.constant dense<0.000000e+00> : vector<80x128xf32>
    %47 = tpu.matmul %44, %46, %cst_23 {dimension_numbers = #tpu.dot_dimension_numbers<[1], [0], [0], [1], [0, 0, 1, 1], [], []>} : vector<80x128xbf16>, vector<128x128xbf16>, vector<80x128xf32> -> vector<80x128xf32>
    %48 = arith.addf %43, %47 : vector<80x128xf32>
    %c1 = arith.constant 1 : index
    %c0_24 = arith.constant 0 : index
    %49 = vector.load %arg6[%c1, %c0_24] : memref<112x128xbf16, #tpu.memory_space<vmem>>, vector<80x128xbf16>
    %c1_25 = arith.constant 1 : index
    %c0_26 = arith.constant 0 : index
    %c0_27 = arith.constant 0 : index
    %50 = vector.load %arg3[%c1_25, %c0_26, %c0_27] : memref<9x128x128xbf16, #tpu.memory_space<vmem>>, vector<1x128x128xbf16>
    %51 = vector.shape_cast %50 : vector<1x128x128xbf16> to vector<128x128xbf16>
    %cst_28 = arith.constant dense<0.000000e+00> : vector<80x128xf32>
    %52 = tpu.matmul %49, %51, %cst_28 {dimension_numbers = #tpu.dot_dimension_numbers<[1], [0], [0], [1], [0, 0, 1, 1], [], []>} : vector<80x128xbf16>, vector<128x128xbf16>, vector<80x128xf32> -> vector<80x128xf32>
    %53 = arith.addf %48, %52 : vector<80x128xf32>
    %c2 = arith.constant 2 : index
    %c0_29 = arith.constant 0 : index
    %54 = vector.load %arg6[%c2, %c0_29] : memref<112x128xbf16, #tpu.memory_space<vmem>>, vector<80x128xbf16>
    %c2_30 = arith.constant 2 : index
    %c0_31 = arith.constant 0 : index
    %c0_32 = arith.constant 0 : index
    %55 = vector.load %arg3[%c2_30, %c0_31, %c0_32] : memref<9x128x128xbf16, #tpu.memory_space<vmem>>, vector<1x128x128xbf16>
    %56 = vector.shape_cast %55 : vector<1x128x128xbf16> to vector<128x128xbf16>
    %cst_33 = arith.constant dense<0.000000e+00> : vector<80x128xf32>
    %57 = tpu.matmul %54, %56, %cst_33 {dimension_numbers = #tpu.dot_dimension_numbers<[1], [0], [0], [1], [0, 0, 1, 1], [], []>} : vector<80x128xbf16>, vector<128x128xbf16>, vector<80x128xf32> -> vector<80x128xf32>
    %58 = arith.addf %53, %57 : vector<80x128xf32>
    %c10 = arith.constant 10 : index
    %c0_34 = arith.constant 0 : index
    %59 = vector.load %arg6[%c10, %c0_34] : memref<112x128xbf16, #tpu.memory_space<vmem>>, vector<80x128xbf16>
    %c3 = arith.constant 3 : index
    %c0_35 = arith.constant 0 : index
    %c0_36 = arith.constant 0 : index
    %60 = vector.load %arg3[%c3, %c0_35, %c0_36] : memref<9x128x128xbf16, #tpu.memory_space<vmem>>, vector<1x128x128xbf16>
    %61 = vector.shape_cast %60 : vector<1x128x128xbf16> to vector<128x128xbf16>
    %cst_37 = arith.constant dense<0.000000e+00> : vector<80x128xf32>
    %62 = tpu.matmul %59, %61, %cst_37 {dimension_numbers = #tpu.dot_dimension_numbers<[1], [0], [0], [1], [0, 0, 1, 1], [], []>} : vector<80x128xbf16>, vector<128x128xbf16>, vector<80x128xf32> -> vector<80x128xf32>
    %63 = arith.addf %58, %62 : vector<80x128xf32>
    %c11_38 = arith.constant 11 : index
    %c0_39 = arith.constant 0 : index
    %64 = vector.load %arg6[%c11_38, %c0_39] : memref<112x128xbf16, #tpu.memory_space<vmem>>, vector<80x128xbf16>
    %c4 = arith.constant 4 : index
    %c0_40 = arith.constant 0 : index
    %c0_41 = arith.constant 0 : index
    %65 = vector.load %arg3[%c4, %c0_40, %c0_41] : memref<9x128x128xbf16, #tpu.memory_space<vmem>>, vector<1x128x128xbf16>
    %66 = vector.shape_cast %65 : vector<1x128x128xbf16> to vector<128x128xbf16>
    %cst_42 = arith.constant dense<0.000000e+00> : vector<80x128xf32>
    %67 = tpu.matmul %64, %66, %cst_42 {dimension_numbers = #tpu.dot_dimension_numbers<[1], [0], [0], [1], [0, 0, 1, 1], [], []>} : vector<80x128xbf16>, vector<128x128xbf16>, vector<80x128xf32> -> vector<80x128xf32>
    %68 = arith.addf %63, %67 : vector<80x128xf32>
    %c12 = arith.constant 12 : index
    %c0_43 = arith.constant 0 : index
    %69 = vector.load %arg6[%c12, %c0_43] : memref<112x128xbf16, #tpu.memory_space<vmem>>, vector<80x128xbf16>
    %c5 = arith.constant 5 : index
    %c0_44 = arith.constant 0 : index
    %c0_45 = arith.constant 0 : index
    %70 = vector.load %arg3[%c5, %c0_44, %c0_45] : memref<9x128x128xbf16, #tpu.memory_space<vmem>>, vector<1x128x128xbf16>
    %71 = vector.shape_cast %70 : vector<1x128x128xbf16> to vector<128x128xbf16>
    %cst_46 = arith.constant dense<0.000000e+00> : vector<80x128xf32>
    %72 = tpu.matmul %69, %71, %cst_46 {dimension_numbers = #tpu.dot_dimension_numbers<[1], [0], [0], [1], [0, 0, 1, 1], [], []>} : vector<80x128xbf16>, vector<128x128xbf16>, vector<80x128xf32> -> vector<80x128xf32>
    %73 = arith.addf %68, %72 : vector<80x128xf32>
    %c20 = arith.constant 20 : index
    %c0_47 = arith.constant 0 : index
    %74 = vector.load %arg6[%c20, %c0_47] : memref<112x128xbf16, #tpu.memory_space<vmem>>, vector<80x128xbf16>
    %c6 = arith.constant 6 : index
    %c0_48 = arith.constant 0 : index
    %c0_49 = arith.constant 0 : index
    %75 = vector.load %arg3[%c6, %c0_48, %c0_49] : memref<9x128x128xbf16, #tpu.memory_space<vmem>>, vector<1x128x128xbf16>
    %76 = vector.shape_cast %75 : vector<1x128x128xbf16> to vector<128x128xbf16>
    %cst_50 = arith.constant dense<0.000000e+00> : vector<80x128xf32>
    %77 = tpu.matmul %74, %76, %cst_50 {dimension_numbers = #tpu.dot_dimension_numbers<[1], [0], [0], [1], [0, 0, 1, 1], [], []>} : vector<80x128xbf16>, vector<128x128xbf16>, vector<80x128xf32> -> vector<80x128xf32>
    %78 = arith.addf %73, %77 : vector<80x128xf32>
    %c21 = arith.constant 21 : index
    %c0_51 = arith.constant 0 : index
    %79 = vector.load %arg6[%c21, %c0_51] : memref<112x128xbf16, #tpu.memory_space<vmem>>, vector<80x128xbf16>
    %c7 = arith.constant 7 : index
    %c0_52 = arith.constant 0 : index
    %c0_53 = arith.constant 0 : index
    %80 = vector.load %arg3[%c7, %c0_52, %c0_53] : memref<9x128x128xbf16, #tpu.memory_space<vmem>>, vector<1x128x128xbf16>
    %81 = vector.shape_cast %80 : vector<1x128x128xbf16> to vector<128x128xbf16>
    %cst_54 = arith.constant dense<0.000000e+00> : vector<80x128xf32>
    %82 = tpu.matmul %79, %81, %cst_54 {dimension_numbers = #tpu.dot_dimension_numbers<[1], [0], [0], [1], [0, 0, 1, 1], [], []>} : vector<80x128xbf16>, vector<128x128xbf16>, vector<80x128xf32> -> vector<80x128xf32>
    %83 = arith.addf %78, %82 : vector<80x128xf32>
    %c22 = arith.constant 22 : index
    %c0_55 = arith.constant 0 : index
    %84 = vector.load %arg6[%c22, %c0_55] : memref<112x128xbf16, #tpu.memory_space<vmem>>, vector<80x128xbf16>
    %c8 = arith.constant 8 : index
    %c0_56 = arith.constant 0 : index
    %c0_57 = arith.constant 0 : index
    %85 = vector.load %arg3[%c8, %c0_56, %c0_57] : memref<9x128x128xbf16, #tpu.memory_space<vmem>>, vector<1x128x128xbf16>
    %86 = vector.shape_cast %85 : vector<1x128x128xbf16> to vector<128x128xbf16>
    %cst_58 = arith.constant dense<0.000000e+00> : vector<80x128xf32>
    %87 = tpu.matmul %84, %86, %cst_58 {dimension_numbers = #tpu.dot_dimension_numbers<[1], [0], [0], [1], [0, 0, 1, 1], [], []>} : vector<80x128xbf16>, vector<128x128xbf16>, vector<80x128xf32> -> vector<80x128xf32>
    %88 = arith.addf %83, %87 : vector<80x128xf32>
    %89 = vector.broadcast %0 : vector<80x1xf32> to vector<80x128xf32>
    %90 = arith.mulf %88, %89 : vector<80x128xf32>
    %cst_59 = arith.constant dense<0.000000e+00> : vector<128xf32>
    %91 = vector.multi_reduction <add>, %90, %cst_59 [0] : vector<80x128xf32> to vector<128xf32>
    %92 = vector.shape_cast %91 : vector<128xf32> to vector<1x128xf32>
    %cst_60 = arith.constant 6.400000e+01 : f32
    %93 = vector.broadcast %cst_60 : f32 to vector<1x128xf32>
    %94 = arith.divf %92, %93 : vector<1x128xf32>
    %95 = vector.broadcast %94 : vector<1x128xf32> to vector<80x128xf32>
    %96 = arith.subf %88, %95 : vector<80x128xf32>
    %97 = vector.broadcast %0 : vector<80x1xf32> to vector<80x128xf32>
    %98 = arith.mulf %96, %97 : vector<80x128xf32>
    %99 = arith.mulf %98, %98 : vector<80x128xf32>
    %cst_61 = arith.constant dense<0.000000e+00> : vector<128xf32>
    %100 = vector.multi_reduction <add>, %99, %cst_61 [0] : vector<80x128xf32> to vector<128xf32>
    %101 = vector.shape_cast %100 : vector<128xf32> to vector<1x128xf32>
    %cst_62 = arith.constant 6.400000e+01 : f32
    %102 = vector.broadcast %cst_62 : f32 to vector<1x128xf32>
    %103 = arith.divf %101, %102 : vector<1x128xf32>
    %cst_63 = arith.constant 9.99999974E-6 : f32
    %104 = vector.broadcast %cst_63 : f32 to vector<1x128xf32>
    %105 = arith.addf %103, %104 : vector<1x128xf32>
    %106 = math.rsqrt %105 : vector<1x128xf32>
    %107 = vector.broadcast %106 : vector<1x128xf32> to vector<80x128xf32>
    %108 = arith.mulf %98, %107 : vector<80x128xf32>
    %c0_64 = arith.constant 0 : index
    %c0_65 = arith.constant 0 : index
    %c0_66 = arith.constant 0 : index
    %109 = vector.load %arg5[%c0_64, %c0_65, %c0_66] : memref<1x80x128xf32, #tpu.memory_space<vmem>>, vector<1x80x128xf32>
    %110 = vector.shape_cast %109 : vector<1x80x128xf32> to vector<80x128xf32>
    %111 = vector.shape_cast %108 : vector<80x128xf32> to vector<1x80x128xf32>
    tpu.vector_store %arg5[%c0_64, %c0_65, %c0_66], %111 {strides = array<i32>} : memref<1x80x128xf32, #tpu.memory_space<vmem>>, vector<1x80x128xf32>,
    return
  }
  func.func @transform_0(%arg0: i32) -> (i32, i32, i32) {
    %c0_i32 = arith.constant 0 : i32
    %c0_i32_0 = arith.constant 0 : i32
    %c0_i32_1 = arith.constant 0 : i32
    return %arg0, %c0_i32, %c0_i32_0 : i32, i32, i32
  }
  func.func @transform_1(%arg0: i32) -> (i32, i32) {
    %c0_i32 = arith.constant 0 : i32
    %c0_i32_0 = arith.constant 0 : i32
    %c0_i32_1 = arith.constant 0 : i32
    return %c0_i32, %c0_i32_0 : i32, i32
  }
  func.func @transform_2(%arg0: i32) -> (i32, i32, i32) {
    %c0_i32 = arith.constant 0 : i32
    %c0_i32_0 = arith.constant 0 : i32
    %c0_i32_1 = arith.constant 0 : i32
    %c0_i32_2 = arith.constant 0 : i32
    return %c0_i32, %c0_i32_0, %c0_i32_1 : i32, i32, i32
  }
  func.func @transform_3(%arg0: i32) -> (i32, i32) {
    %c0_i32 = arith.constant 0 : i32
    %c0_i32_0 = arith.constant 0 : i32
    %c0_i32_1 = arith.constant 0 : i32
    return %c0_i32, %c0_i32_0 : i32, i32
  }
  func.func @transform_4(%arg0: i32) -> (i32, i32, i32) {
    %c0_i32 = arith.constant 0 : i32
    %c0_i32_0 = arith.constant 0 : i32
    %c0_i32_1 = arith.constant 0 : i32
    return %arg0, %c0_i32, %c0_i32_0 : i32, i32, i32
  }
}

</mosaic_0001>

<llo_original>
// kernel: resnet_matching_encoder_forward.4
$region0: #{resnet_matching_encoder_forward.4}
  #allocation0 [shape = 'u32[]', space=smem, size = 0x4, offset = 0x4, fixed_abs, tag = 'smem constant byte address 0x4 - core index']
  #allocation1 [shape = 'u32[144,128]{1,0:T(1,128)}', space=vmem, size = 0x12000, scoped, tag = 'internal scratch']
  %s0 = inlined_call_operand.vmem [shape: bf16[2,256,256], index: 0, kind: input, shape index: {}]
  %s1 = inlined_call_operand.vmem [shape: bf16[256,128], index: 1, kind: input, shape index: {}]
  %s2 = inlined_call_operand.vmem [shape: f32[1,128], index: 2, kind: input, shape index: {}]
  %s3 = inlined_call_operand.vmem [shape: bf16[2,112,128], index: 3, kind: output, shape index: {}]
  %s4 = sld [smem:[#allocation0]]
  $region45: #{resnet_matching_encoder_forward.4} parent=0
    _
  %s6 = ssub.s32 1, %s4
  %s7 = scalar_select 0, %s6, %s4
  loop: start=0, step=1, limit=4
  $region2: #{resnet_matching_encoder_forward.4} parent=0 // loop_pre_header
    _
  $region3: #{resnet_matching_encoder_forward.4} parent=0 // loop_header
    %s9 = sphi 0, %s13
    %p10 = scmp.ge.s32.totalorder %s9, 4
    %s19 = sphi 0, %s21
    %s22 = sphi 0, %s19
    %s23 = sphi 0, %s22
    %s39 = sphi 0, %s23
    %s43 = sphi 0, %s43
    %s45 = sphi 0, %s43
    %s46 = sphi 0, %s45
    %s60 = sphi 0, %s46
    %s64 = sphi 0, %s64
    %s66 = sphi 0, %s64
    %s67 = sphi 0, %s66
    %s81 = sphi 0, %s67
    %s87 = sphi 0, %s89
    %s90 = sphi 0, %s87
    %s91 = sphi 0, %s90
    %s107 = sphi 0, %s91
  $region4: #{resnet_matching_encoder_forward.4} parent=0 // loop_header_branch
    %12 = sbr.rel (%p10) target = $region8
  $region5: #{resnet_matching_encoder_forward.4} parent=0 // loop_body
    %s14 = ssub.s32 %s9, 1
    %s15 = ssub.s32 %s9, 2
    %s16 = sadd.s32 %s9, 1
    %s17 = ssub.s32 %s9, %s16
    %p18 = scmp.eq.s32.totalorder %s17, 0
    %s20 = sadd.s32 %s19, 1
    %s21 = scalar_select %p18, %s19, %s20
    %p24 = pneg %p18
    %p25 = scmp.eq.s32.totalorder %s9, 1
    %p26 = por %p24, %p25
    %p27 = scmp.ne.s32.totalorder %s19, %s22
    %p28 = scmp.eq.s32.totalorder %s9, 0
    %p29 = por %p27, %p28
    %p30 = scmp.ne.s32.totalorder %s19, %s22
    %p31 = scmp.eq.s32.totalorder %s14, 1
    %p32 = por %p30, %p31
    %p33 = scmp.ne.s32.totalorder %s22, %s23
    %p34 = scmp.eq.s32.totalorder %s14, 0
    %p35 = por %p33, %p34
    %p36 = scmp.ne.s32.totalorder %s22, %s23
    %p37 = scmp.eq.s32.totalorder %s15, 1
    %p38 = por %p36, %p37
    %p40 = scmp.ne.s32.totalorder %s23, %s39
    %p41 = scmp.eq.s32.totalorder %s15, 0
    %p42 = por %p40, %p41
    %s44 = sadd.s32 %s43, 1
    %p47 = scmp.eq.s32.totalorder %s9, 1
    %p48 = scmp.ne.s32.totalorder %s43, %s45
    %p49 = scmp.eq.s32.totalorder %s9, 0
    %p50 = por %p48, %p49
    %p51 = scmp.ne.s32.totalorder %s43, %s45
    %p52 = scmp.eq.s32.totalorder %s14, 1
    %p53 = por %p51, %p52
    %p54 = scmp.ne.s32.totalorder %s45, %s46
    %p55 = scmp.eq.s32.totalorder %s14, 0
    %p56 = por %p54, %p55
    %p57 = scmp.ne.s32.totalorder %s45, %s46
    %p58 = scmp.eq.s32.totalorder %s15, 1
    %p59 = por %p57, %p58
    %p61 = scmp.ne.s32.totalorder %s46, %s60
    %p62 = scmp.eq.s32.totalorder %s15, 0
    %p63 = por %p61, %p62
    %s65 = sadd.s32 %s64, 1
    %p68 = scmp.eq.s32.totalorder %s9, 1
    %p69 = scmp.ne.s32.totalorder %s64, %s66
    %p70 = scmp.eq.s32.totalorder %s9, 0
    %p71 = por %p69, %p70
    %p72 = scmp.ne.s32.totalorder %s64, %s66
    %p73 = scmp.eq.s32.totalorder %s14, 1
    %p74 = por %p72, %p73
    %p75 = scmp.ne.s32.totalorder %s66, %s67
    %p76 = scmp.eq.s32.totalorder %s14, 0
    %p77 = por %p75, %p76
    %p78 = scmp.ne.s32.totalorder %s66, %s67
    %p79 = scmp.eq.s32.totalorder %s15, 1
    %p80 = por %p78, %p79
    %p82 = scmp.ne.s32.totalorder %s67, %s81
    %p83 = scmp.eq.s32.totalorder %s15, 0
    %p84 = por %p82, %p83
    %s85 = ssub.s32 %s9, %s16
    %p86 = scmp.eq.s32.totalorder %s85, 0
    %s88 = sadd.s32 %s87, 1
    %s89 = scalar_select %p86, %s87, %s88
    %p92 = pneg %p86
    %p93 = scmp.eq.s32.totalorder %s9, 1
    %p94 = por %p92, %p93
    %p95 = scmp.ne.s32.totalorder %s87, %s90
    %p96 = scmp.eq.s32.totalorder %s9, 0
    %p97 = por %p95, %p96
    %p98 = scmp.ne.s32.totalorder %s87, %s90
    %p99 = scmp.eq.s32.totalorder %s14, 1
    %p100 = por %p98, %p99
    %p101 = scmp.ne.s32.totalorder %s90, %s91
    %p102 = scmp.eq.s32.totalorder %s14, 0
    %p103 = por %p101, %p102
    %p104 = scmp.ne.s32.totalorder %s90, %s91
    %p105 = scmp.eq.s32.totalorder %s15, 1
    %p106 = por %p104, %p105
    %p108 = scmp.ne.s32.totalorder %s91, %s107
    %p109 = scmp.eq.s32.totalorder %s15, 0
    %p110 = por %p108, %p109
    %p111 = scmp.le.s32.totalorder 1, %s9
    %p112 = scmp.lt.s32.totalorder %s9, 3
    %p113 = pnand %p111, %p112
    %p114 = pneg %p113
    // Predicated region
    $region9: #{resnet_matching_encoder_forward.4} parent=5 // pred_check
      _
    $region10: #{resnet_matching_encoder_forward.4} parent=5 // pred_check_branch
      %116 = sbr.rel (%p113) target = $region12
    $region11: #{resnet_matching_encoder_forward.4} parent=5 // pred_region
      %s117 = ssub.s32 %s9, 1
      // Predicated region
      $region13: #{resnet_matching_encoder_forward.4} parent=11 // pred_check
        %p118 = pneg %p56
      $region14: #{resnet_matching_encoder_forward.4} parent=11 // pred_check_branch
        %120 = sbr.rel (%p118) target = $region16
      $region15: #{resnet_matching_encoder_forward.4} parent=11 // pred_region
        _
      $region16: #{resnet_matching_encoder_forward.4} parent=11 // pred_fallthru
        _
      // Predicated region
      $region17: #{resnet_matching_encoder_forward.4} parent=11 // pred_check
        %p121 = pneg %p77
      $region18: #{resnet_matching_encoder_forward.4} parent=11 // pred_check_branch
        %123 = sbr.rel (%p121) target = $region20
      $region19: #{resnet_matching_encoder_forward.4} parent=11 // pred_region
        _
      $region20: #{resnet_matching_encoder_forward.4} parent=11 // pred_fallthru
        _
    $region12: #{resnet_matching_encoder_forward.4} parent=5 // pred_fallthru
      _
    %p124 = scmp.lt.s32.totalorder %s9, 2
    // Predicated region
    $region21: #{resnet_matching_encoder_forward.4} parent=5 // pred_check
      %p125 = pneg %p124
    $region22: #{resnet_matching_encoder_forward.4} parent=5 // pred_check_branch
      %127 = sbr.rel (%p125) target = $region24
    $region23: #{resnet_matching_encoder_forward.4} parent=5 // pred_region
      // Predicated region
      $region25: #{resnet_matching_encoder_forward.4} parent=23 // pred_check
        %p128 = pneg %p29
      $region26: #{resnet_matching_encoder_forward.4} parent=23 // pred_check_branch
        %130 = sbr.rel (%p128) target = $region28
      $region27: #{resnet_matching_encoder_forward.4} parent=23 // pred_region
        %p131 = scmp.lt.s32.totalorder %s9, 1
        %s132 = scalar_select %p131, %s9, 1
        %s133 = smul.addr %s132, 64
        %s134 = smul.addr %s133, 4
        %s135 = scalar_lea.vmem %s0, %s134
      $region28: #{resnet_matching_encoder_forward.4} parent=23 // pred_fallthru
        _
    $region24: #{resnet_matching_encoder_forward.4} parent=5 // pred_fallthru
      _
    %p136 = scmp.le.s32.totalorder 1, %s9
    %p137 = scmp.lt.s32.totalorder %s9, 3
    %p138 = pnand %p136, %p137
    %p139 = pneg %p138
    // Predicated region
    $region29: #{resnet_matching_encoder_forward.4} parent=5 // pred_check
      _
    $region30: #{resnet_matching_encoder_forward.4} parent=5 // pred_check_branch
      %141 = sbr.rel (%p138) target = $region32
    $region31: #{resnet_matching_encoder_forward.4} parent=5 // pred_region
      %s142 = ssub.s32 %s9, 1
      %p143 = scmp.lt.s32.totalorder %s14, 1
      %s144 = scalar_select %p143, %s14, 1
      %s145 = smul.addr %s144, 64
      %s146 = smul.addr %s145, 4
      %s147 = scalar_lea.vmem %s0, %s146
      %p148 = pneg %p35
      %p149 = pneg %p32
      %p150 = pneg %p56
      %p151 = pneg %p53
      %p152 = pneg %p77
      %p153 = pneg %p74
      %p154 = pneg %p103
      %p155 = pneg %p100
      %p156 = scmp.lt.s32.totalorder %s14, 1
      %s157 = scalar_select %p156, %s14, 1
      %s158 = smul.addr %s157, 14
      %s159 = smul.addr %s158, 4
      %s160 = scalar_lea.vmem %s3, %s159
      %p161 = scmp.lt.s32.totalorder %s14, 1
      %s162 = scalar_select %p161, %s14, 1
      %s163 = smul.addr %s162, 64
      %s164 = smul.addr %s163, 4
      %s165 = scalar_lea.vmem %s0, %s164
      %p166 = scmp.lt.s32.totalorder %s14, 1
      %s167 = scalar_select %p166, %s14, 1
      %s168 = smul.addr %s167, 14
      %s169 = smul.addr %s168, 4
      %s170 = scalar_lea.vmem %s3, %s169
      %v172 = vld [vmem:[%s165] sm:$0xff]
      %v173 = vld [vmem:[%s165 + $0x8] sm:$0xff]
      %v174 = vld [vmem:[%s165 + $0x10] sm:$0xff]
      %v175 = vld [vmem:[%s165 + $0x18] sm:$0xff]
      %v176 = vld [vmem:[%s165 + $0x20] sm:$0xff]
      %v177 = vld [vmem:[%s165 + $0x28] sm:$0xff]
      %v178 = vld [vmem:[%s165 + $0x30] sm:$0xff]
      %v179 = vld [vmem:[%s165 + $0x38] sm:$0xff]
      %v180 = vld [vmem:[%s165 + $0x40] sm:$0xff]
      %v181 = vld [vmem:[%s165 + $0x48] sm:$0xff]
      %v182 = vld [vmem:[%s165 + $0x50] sm:$0xff]
      %v183 = vld [vmem:[%s165 + $0x58] sm:$0xff]
      %v184 = vld [vmem:[%s165 + $0x60] sm:$0xff]
      %v185 = vld [vmem:[%s165 + $0x68] sm:$0xff]
      %v186 = vld [vmem:[%s165 + $0x70] sm:$0xff]
      %v187 = vld [vmem:[%s165 + $0x78] sm:$0xff]
      %v188 = vld [vmem:[%s165 + $0x80] sm:$0xff]
      %v189 = vld [vmem:[%s165 + $0x88] sm:$0xff]
      %v190 = vld [vmem:[%s165 + $0x90] sm:$0xff]
      %v191 = vld [vmem:[%s165 + $0x98] sm:$0xff]
      %v192 = vld [vmem:[%s165 + $0xa0] sm:$0xff]
      %v193 = vld [vmem:[%s165 + $0xa8] sm:$0xff]
      %v194 = vld [vmem:[%s165 + $0xb0] sm:$0xff]
      %v195 = vld [vmem:[%s165 + $0xb8] sm:$0xff]
      %v196 = vld [vmem:[%s165 + $0xc0] sm:$0xff]
      %v197 = vld [vmem:[%s165 + $0xc8] sm:$0xff]
      %v198 = vld [vmem:[%s165 + $0xd0] sm:$0xff]
      %v199 = vld [vmem:[%s165 + $0xd8] sm:$0xff]
      %v200 = vld [vmem:[%s165 + $0xe0] sm:$0xff]
      %v201 = vld [vmem:[%s165 + $0xe8] sm:$0xff]
      %v202 = vld [vmem:[%s165 + $0xf0] sm:$0xff]
      %v203 = vld [vmem:[%s165 + $0xf8] sm:$0xff]
      %v204 = vld [vmem:[%s1] sm:$0xf]
      %v205 = vld [vmem:[%s1 + $0x4] sm:$0xf]
      %v206 = vld [vmem:[%s1 + $0x8] sm:$0xf]
      %v207 = vld [vmem:[%s1 + $0xc] sm:$0xf]
      %v208 = vld [vmem:[%s1 + $0x10] sm:$0xf]
      %v209 = vld [vmem:[%s1 + $0x14] sm:$0xf]
      %v210 = vld [vmem:[%s1 + $0x18] sm:$0xf]
      %v211 = vld [vmem:[%s1 + $0x1c] sm:$0xf]
      %v212 = vld [vmem:[%s1 + $0x20] sm:$0xf]
      %v213 = vld [vmem:[%s1 + $0x24] sm:$0xf]
      %v214 = vld [vmem:[%s1 + $0x28] sm:$0xf]
      %v215 = vld [vmem:[%s1 + $0x2c] sm:$0xf]
      %v216 = vld [vmem:[%s1 + $0x30] sm:$0xf]
      %v217 = vld [vmem:[%s1 + $0x34] sm:$0xf]
      %v218 = vld [vmem:[%s1 + $0x38] sm:$0xf]
      %v219 = vld [vmem:[%s1 + $0x3c] sm:$0xf]
      %v220 = vld [vmem:[%s1 + $0x40] sm:$0xf]
      %v221 = vld [vmem:[%s1 + $0x44] sm:$0xf]
      %v222 = vld [vmem:[%s1 + $0x48] sm:$0xf]
      %v223 = vld [vmem:[%s1 + $0x4c] sm:$0xf]
      %v224 = vld [vmem:[%s1 + $0x50] sm:$0xf]
      %v225 = vld [vmem:[%s1 + $0x54] sm:$0xf]
      %v226 = vld [vmem:[%s1 + $0x58] sm:$0xf]
      %v227 = vld [vmem:[%s1 + $0x5c] sm:$0xf]
      %v228 = vld [vmem:[%s1 + $0x60] sm:$0xf]
      %v229 = vld [vmem:[%s1 + $0x64] sm:$0xf]
      %v230 = vld [vmem:[%s1 + $0x68] sm:$0xf]
      %v231 = vld [vmem:[%s1 + $0x6c] sm:$0xf]
      %v232 = vld [vmem:[%s1 + $0x70] sm:$0xf]
      %v233 = vld [vmem:[%s1 + $0x74] sm:$0xf]
      %v234 = vld [vmem:[%s1 + $0x78] sm:$0xf]
      %v235 = vld [vmem:[%s1 + $0x7c] sm:$0xf]
      %v236 = vld [vmem:[%s2] sm:$0x1]
      %v238 = vlaneseq
      %v239 = vshrl.u32 %v238, 7
      %v240 = vsub.s32 0, %v239
      %v241 = vrot.slane %v236, %v240
      %v275 = vunpack.c.l.b16 %v172
      %v276 = vunpack.c.h.b16 %v172
      %v277 = vunpack.c.l.b16 %v173
      %v278 = vunpack.c.h.b16 %v173
      %v279 = vunpack.c.l.b16 %v174
      %v280 = vunpack.c.h.b16 %v174
      %v281 = vunpack.c.l.b16 %v175
      %v282 = vunpack.c.h.b16 %v175
      %v283 = vunpack.c.l.b16 %v176
      %v284 = vunpack.c.h.b16 %v176
      %v285 = vunpack.c.l.b16 %v177
      %v286 = vunpack.c.h.b16 %v177
      %v287 = vunpack.c.l.b16 %v178
      %v288 = vunpack.c.h.b16 %v178
      %v289 = vunpack.c.l.b16 %v179
      %v290 = vunpack.c.h.b16 %v179
      %v291 = vunpack.c.l.b16 %v180
      %v292 = vunpack.c.h.b16 %v180
      %v293 = vunpack.c.l.b16 %v181
      %v294 = vunpack.c.h.b16 %v181
      %v295 = vunpack.c.l.b16 %v182
      %v296 = vunpack.c.h.b16 %v182
      %v297 = vunpack.c.l.b16 %v183
      %v298 = vunpack.c.h.b16 %v183
      %v299 = vunpack.c.l.b16 %v184
      %v300 = vunpack.c.h.b16 %v184
      %v301 = vunpack.c.l.b16 %v185
      %v302 = vunpack.c.h.b16 %v185
      %v303 = vunpack.c.l.b16 %v186
      %v304 = vunpack.c.h.b16 %v186
      %v305 = vunpack.c.l.b16 %v187
      %v306 = vunpack.c.h.b16 %v187
      %v307 = vunpack.c.l.b16 %v188
      %v308 = vunpack.c.h.b16 %v188
      %v309 = vunpack.c.l.b16 %v189
      %v310 = vunpack.c.h.b16 %v189
      %v311 = vunpack.c.l.b16 %v190
      %v312 = vunpack.c.h.b16 %v190
      %v313 = vunpack.c.l.b16 %v191
      %v314 = vunpack.c.h.b16 %v191
      %v315 = vunpack.c.l.b16 %v192
      %v316 = vunpack.c.h.b16 %v192
      %v317 = vunpack.c.l.b16 %v193
      %v318 = vunpack.c.h.b16 %v193
      %v319 = vunpack.c.l.b16 %v194
      %v320 = vunpack.c.h.b16 %v194
      %v321 = vunpack.c.l.b16 %v195
      %v322 = vunpack.c.h.b16 %v195
      %v323 = vunpack.c.l.b16 %v196
      %v324 = vunpack.c.h.b16 %v196
      %v325 = vunpack.c.l.b16 %v197
      %v326 = vunpack.c.h.b16 %v197
      %v327 = vunpack.c.l.b16 %v198
      %v328 = vunpack.c.h.b16 %v198
      %v329 = vunpack.c.l.b16 %v199
      %v330 = vunpack.c.h.b16 %v199
      %v331 = vunpack.c.l.b16 %v200
      %v332 = vunpack.c.h.b16 %v200
      %v333 = vunpack.c.l.b16 %v201
      %v334 = vunpack.c.h.b16 %v201
      %v335 = vunpack.c.l.b16 %v202
      %v336 = vunpack.c.h.b16 %v202
      %v337 = vunpack.c.l.b16 %v203
      %v338 = vunpack.c.h.b16 %v203
      %v339 = vpack.c.b16 %v277, %v275
      %v340 = vpack.c.b16 %v278, %v276
      %v341 = vpack.c.b16 %v281, %v279
      %v342 = vpack.c.b16 %v282, %v280
      %v343 = vpack.c.b16 %v285, %v283
      %v344 = vpack.c.b16 %v286, %v284
      %v345 = vpack.c.b16 %v289, %v287
      %v346 = vpack.c.b16 %v290, %v288
      %v347 = vpack.c.b16 %v293, %v291
      %v348 = vpack.c.b16 %v294, %v292
      %v349 = vpack.c.b16 %v297, %v295
      %v350 = vpack.c.b16 %v298, %v296
      %v351 = vpack.c.b16 %v301, %v299
      %v352 = vpack.c.b16 %v302, %v300
      %v353 = vpack.c.b16 %v305, %v303
      %v354 = vpack.c.b16 %v306, %v304
      %v355 = vpack.c.b16 %v309, %v307
      %v356 = vpack.c.b16 %v310, %v308
      %v357 = vpack.c.b16 %v313, %v311
      %v358 = vpack.c.b16 %v314, %v312
      %v359 = vpack.c.b16 %v317, %v315
      %v360 = vpack.c.b16 %v318, %v316
      %v361 = vpack.c.b16 %v321, %v319
      %v362 = vpack.c.b16 %v322, %v320
      %v363 = vpack.c.b16 %v325, %v323
      %v364 = vpack.c.b16 %v326, %v324
      %v365 = vpack.c.b16 %v329, %v327
      %v366 = vpack.c.b16 %v330, %v328
      %v367 = vpack.c.b16 %v333, %v331
      %v368 = vpack.c.b16 %v334, %v332
      %v369 = vpack.c.b16 %v337, %v335
      %v370 = vpack.c.b16 %v338, %v336
      %v435 = vunpack.c.l.b16 %v204
      %v436 = vunpack.c.l.b16 %v205
      %v437 = vunpack.c.l.b16 %v206
      %v438 = vunpack.c.l.b16 %v207
      %v439 = vunpack.c.l.b16 %v208
      %v440 = vunpack.c.l.b16 %v209
      %v441 = vunpack.c.l.b16 %v210
      %v442 = vunpack.c.l.b16 %v211
      %v443 = vunpack.c.l.b16 %v212
      %v444 = vunpack.c.l.b16 %v213
      %v445 = vunpack.c.l.b16 %v214
      %v446 = vunpack.c.l.b16 %v215
      %v447 = vunpack.c.l.b16 %v216
      %v448 = vunpack.c.l.b16 %v217
      %v449 = vunpack.c.l.b16 %v218
      %v450 = vunpack.c.l.b16 %v219
      %v451 = vunpack.c.l.b16 %v220
      %v452 = vunpack.c.l.b16 %v221
      %v453 = vunpack.c.l.b16 %v222
      %v454 = vunpack.c.l.b16 %v223
      %v455 = vunpack.c.l.b16 %v224
      %v456 = vunpack.c.l.b16 %v225
      %v457 = vunpack.c.l.b16 %v226
      %v458 = vunpack.c.l.b16 %v227
      %v459 = vunpack.c.l.b16 %v228
      %v460 = vunpack.c.l.b16 %v229
      %v461 = vunpack.c.l.b16 %v230
      %v462 = vunpack.c.l.b16 %v231
      %v463 = vunpack.c.l.b16 %v232
      %v464 = vunpack.c.l.b16 %v233
      %v465 = vunpack.c.l.b16 %v234
      %v466 = vunpack.c.l.b16 %v235
      %v467 = vpack.c.b16 %v436, %v435
      %v468 = vpack.c.b16 %v438, %v437
      %v469 = vpack.c.b16 %v440, %v439
      %v470 = vpack.c.b16 %v442, %v441
      %v471 = vpack.c.b16 %v444, %v443
      %v472 = vpack.c.b16 %v446, %v445
      %v473 = vpack.c.b16 %v448, %v447
      %v474 = vpack.c.b16 %v450, %v449
      %v475 = vpack.c.b16 %v452, %v451
      %v476 = vpack.c.b16 %v454, %v453
      %v477 = vpack.c.b16 %v456, %v455
      %v478 = vpack.c.b16 %v458, %v457
      %v479 = vpack.c.b16 %v460, %v459
      %v480 = vpack.c.b16 %v462, %v461
      %v481 = vpack.c.b16 %v464, %v463
      %v482 = vpack.c.b16 %v466, %v465
      %499 = vmatprep.subr.bf16.mxu0 0
      %500 = vmatpush1.bf16.msra.mxu0 %v467
      %501 = vmatprep.subr.bf16.mxu0 0
      %502 = vmatpush1.bf16.msra.mxu0 %v468
      %503 = vmatprep.subr.bf16.mxu0 0
      %504 = vmatpush1.bf16.msra.mxu0 %v469
      %505 = vmatprep.subr.bf16.mxu0 0
      %506 = vmatpush1.bf16.msra.mxu0 %v470
      %507 = vmatprep.subr.bf16.mxu0 0
      %508 = vmatpush1.bf16.msra.mxu0 %v471
      %509 = vmatprep.subr.bf16.mxu0 0
      %510 = vmatpush1.bf16.msra.mxu0 %v472
      %511 = vmatprep.subr.bf16.mxu0 0
      %512 = vmatpush1.bf16.msra.mxu0 %v473
      %513 = vmatprep.subr.bf16.mxu0 0
      %514 = vmatpush1.bf16.msra.mxu0 %v474
      %515 = vmatprep.subr.bf16.mxu0 0
      %516 = vmatpush1.bf16.msra.mxu0 %v475
      %517 = vmatprep.subr.bf16.mxu0 0
      %518 = vmatpush1.bf16.msra.mxu0 %v476
      %519 = vmatprep.subr.bf16.mxu0 0
      %520 = vmatpush1.bf16.msra.mxu0 %v477
      %521 = vmatprep.subr.bf16.mxu0 0
      %522 = vmatpush1.bf16.msra.mxu0 %v478
      %523 = vmatprep.subr.bf16.mxu0 0
      %524 = vmatpush1.bf16.msra.mxu0 %v479
      %525 = vmatprep.subr.bf16.mxu0 0
      %526 = vmatpush1.bf16.msra.mxu0 %v480
      %527 = vmatprep.subr.bf16.mxu0 0
      %528 = vmatpush1.bf16.msra.mxu0 %v481
      %529 = vmatprep.subr.bf16.mxu0 0
      %530 = vmatpush1.bf16.msra.mxu0 %v482
      %531 = vmatprep.mubr.bf16.mxu0 %v340
      %532 = vmatmul.mubr.bf16.gmra.mrb[0].mxu0 %v339
      %v533 = vpop.f32.mrb[0].mxu0
      %v534 = vadd.f32 %v241, %v533
      %v535 = vpop.f32.mrb[0].mxu0
      %v536 = vpop.f32.mrb[0].mxu0
      %v537 = vadd.f32 %v241, %v536
      %v538 = vpop.f32.mrb[0].mxu0
      %539 = vmatprep.mubr.bf16.mxu0 %v342
      %540 = vmatmul.mubr.bf16.gmra.mrb[0].mxu0 %v341
      %v541 = vpop.f32.mrb[0].mxu0
      %v542 = vadd.f32 %v241, %v541
      %v543 = vpop.f32.mrb[0].mxu0
      %v544 = vpop.f32.mrb[0].mxu0
      %v545 = vadd.f32 %v241, %v544
      %v546 = vpop.f32.mrb[0].mxu0
      %547 = vmatprep.mubr.bf16.mxu0 %v344
      %548 = vmatmul.mubr.bf16.gmra.mrb[0].mxu0 %v343
      %v549 = vpop.f32.mrb[0].mxu0
      %v550 = vadd.f32 %v241, %v549
      %v551 = vpop.f32.mrb[0].mxu0
      %v552 = vpop.f32.mrb[0].mxu0
      %v553 = vadd.f32 %v241, %v552
      %v554 = vpop.f32.mrb[0].mxu0
      %555 = vmatprep.mubr.bf16.mxu0 %v346
      %556 = vmatmul.mubr.bf16.gmra.mrb[0].mxu0 %v345
      %v557 = vpop.f32.mrb[0].mxu0
      %v558 = vadd.f32 %v241, %v557
      %v559 = vpop.f32.mrb[0].mxu0
      %v560 = vpop.f32.mrb[0].mxu0
      %v561 = vadd.f32 %v241, %v560
      %v562 = vpop.f32.mrb[0].mxu0
      %563 = vmatprep.mubr.bf16.mxu0 %v348
      %564 = vmatmul.mubr.bf16.gmra.mrb[0].mxu0 %v347
      %v565 = vpop.f32.mrb[0].mxu0
      %v566 = vadd.f32 %v241, %v565
      %v567 = vpop.f32.mrb[0].mxu0
      %v568 = vpop.f32.mrb[0].mxu0
      %v569 = vadd.f32 %v241, %v568
      %v570 = vpop.f32.mrb[0].mxu0
      %571 = vmatprep.mubr.bf16.mxu0 %v350
      %572 = vmatmul.mubr.bf16.gmra.mrb[0].mxu0 %v349
      %v573 = vpop.f32.mrb[0].mxu0
      %v574 = vadd.f32 %v241, %v573
      %v575 = vpop.f32.mrb[0].mxu0
      %v576 = vpop.f32.mrb[0].mxu0
      %v577 = vadd.f32 %v241, %v576
      %v578 = vpop.f32.mrb[0].mxu0
      %579 = vmatprep.mubr.bf16.mxu0 %v352
      %580 = vmatmul.mubr.bf16.gmra.mrb[0].mxu0 %v351
      %v581 = vpop.f32.mrb[0].mxu0
      %v582 = vadd.f32 %v241, %v581
      %v583 = vpop.f32.mrb[0].mxu0
      %v584 = vpop.f32.mrb[0].mxu0
      %v585 = vadd.f32 %v241, %v584
      %v586 = vpop.f32.mrb[0].mxu0
      %587 = vmatprep.mubr.bf16.mxu0 %v354
      %588 = vmatmul.mubr.bf16.gmra.mrb[0].mxu0 %v353
      %v589 = vpop.f32.mrb[0].mxu0
      %v590 = vadd.f32 %v241, %v589
      %v591 = vpop.f32.mrb[0].mxu0
      %v592 = vpop.f32.mrb[0].mxu0
      %v593 = vadd.f32 %v241, %v592
      %v594 = vpop.f32.mrb[0].mxu0
      %595 = vmatprep.mubr.bf16.mxu0 %v356
      %596 = vmatmul.mubr.bf16.gmra.mrb[0].mxu0 %v355
      %v597 = vpop.f32.mrb[0].mxu0
      %v598 = vadd.f32 %v241, %v597
      %v599 = vpop.f32.mrb[0].mxu0
      %v600 = vpop.f32.mrb[0].mxu0
      %v601 = vadd.f32 %v241, %v600
      %v602 = vpop.f32.mrb[0].mxu0
      %603 = vmatprep.mubr.bf16.mxu0 %v358
      %604 = vmatmul.mubr.bf16.gmra.mrb[0].mxu0 %v357
      %v605 = vpop.f32.mrb[0].mxu0
      %v606 = vadd.f32 %v241, %v605
      %v607 = vpop.f32.mrb[0].mxu0
      %v608 = vpop.f32.mrb[0].mxu0
      %v609 = vadd.f32 %v241, %v608
      %v610 = vpop.f32.mrb[0].mxu0
      %611 = vmatprep.mubr.bf16.mxu0 %v360
      %612 = vmatmul.mubr.bf16.gmra.mrb[0].mxu0 %v359
      %v613 = vpop.f32.mrb[0].mxu0
      %v614 = vadd.f32 %v241, %v613
      %v615 = vpop.f32.mrb[0].mxu0
      %v616 = vpop.f32.mrb[0].mxu0
      %v617 = vadd.f32 %v241, %v616
      %v618 = vpop.f32.mrb[0].mxu0
      %619 = vmatprep.mubr.bf16.mxu0 %v362
      %620 = vmatmul.mubr.bf16.gmra.mrb[0].mxu0 %v361
      %v621 = vpop.f32.mrb[0].mxu0
      %v622 = vadd.f32 %v241, %v621
      %v623 = vpop.f32.mrb[0].mxu0
      %v624 = vpop.f32.mrb[0].mxu0
      %v625 = vadd.f32 %v241, %v624
      %v626 = vpop.f32.mrb[0].mxu0
      %627 = vmatprep.mubr.bf16.mxu0 %v364
      %628 = vmatmul.mubr.bf16.gmra.mrb[0].mxu0 %v363
      %v629 = vpop.f32.mrb[0].mxu0
      %v630 = vadd.f32 %v241, %v629
      %v631 = vpop.f32.mrb[0].mxu0
      %v632 = vpop.f32.mrb[0].mxu0
      %v633 = vadd.f32 %v241, %v632
      %v634 = vpop.f32.mrb[0].mxu0
      %635 = vmatprep.mubr.bf16.mxu0 %v366
      %636 = vmatmul.mubr.bf16.gmra.mrb[0].mxu0 %v365
      %v637 = vpop.f32.mrb[0].mxu0
      %v638 = vadd.f32 %v241, %v637
      %v639 = vpop.f32.mrb[0].mxu0
      %v640 = vpop.f32.mrb[0].mxu0
      %v641 = vadd.f32 %v241, %v640
      %v642 = vpop.f32.mrb[0].mxu0
      %643 = vmatprep.mubr.bf16.mxu0 %v368
      %644 = vmatmul.mubr.bf16.gmra.mrb[0].mxu0 %v367
      %v645 = vpop.f32.mrb[0].mxu0
      %v646 = vadd.f32 %v241, %v645
      %v647 = vpop.f32.mrb[0].mxu0
      %v648 = vpop.f32.mrb[0].mxu0
      %v649 = vadd.f32 %v241, %v648
      %v650 = vpop.f32.mrb[0].mxu0
      %651 = vmatprep.mubr.bf16.mxu0 %v370
      %652 = vmatmul.mubr.bf16.gmra.mrb[0].mxu0 %v369
      %v653 = vpop.f32.mrb[0].mxu0
      %v654 = vadd.f32 %v241, %v653
      %v655 = vpop.f32.mrb[0].mxu0
      %v656 = vpop.f32.mrb[0].mxu0
      %v657 = vadd.f32 %v241, %v656
      %v658 = vpop.f32.mrb[0].mxu0
      %659 = vdwg.mxu0
      %v660 = vmax.f32 %v534, 0.0
      %v661 = vmax.f32 %v537, 0.0
      %v662 = vmax.f32 %v542, 0.0
      %v663 = vmax.f32 %v545, 0.0
      %v664 = vmax.f32 %v550, 0.0
      %v665 = vmax.f32 %v553, 0.0
      %v666 = vmax.f32 %v558, 0.0
      %v667 = vmax.f32 %v561, 0.0
      %v668 = vmax.f32 %v566, 0.0
      %v669 = vmax.f32 %v569, 0.0
      %v670 = vmax.f32 %v574, 0.0
      %v671 = vmax.f32 %v577, 0.0
      %v672 = vmax.f32 %v582, 0.0
      %v673 = vmax.f32 %v585, 0.0
      %v674 = vmax.f32 %v590, 0.0
      %v675 = vmax.f32 %v593, 0.0
      %v676 = vmax.f32 %v598, 0.0
      %v677 = vmax.f32 %v601, 0.0
      %v678 = vmax.f32 %v606, 0.0
      %v679 = vmax.f32 %v609, 0.0
      %v680 = vmax.f32 %v614, 0.0
      %v681 = vmax.f32 %v617, 0.0
      %v682 = vmax.f32 %v622, 0.0
      %v683 = vmax.f32 %v625, 0.0
      %v684 = vmax.f32 %v630, 0.0
      %v685 = vmax.f32 %v633, 0.0
      %v686 = vmax.f32 %v638, 0.0
      %v687 = vmax.f32 %v641, 0.0
      %v688 = vmax.f32 %v646, 0.0
      %v689 = vmax.f32 %v649, 0.0
      %v690 = vmax.f32 %v654, 0.0
      %v691 = vmax.f32 %v657, 0.0
      %v692 = vmax.f32 %v660, %v662
      %v693 = vmax.f32 %v661, %v663
      %v694 = vmax.f32 %v664, %v666
      %v695 = vmax.f32 %v665, %v667
      %v696 = vmax.f32 %v668, %v670
      %v697 = vmax.f32 %v669, %v671
      %v698 = vmax.f32 %v672, %v674
      %v699 = vmax.f32 %v673, %v675
      %v700 = vmax.f32 %v676, %v678
      %v701 = vmax.f32 %v677, %v679
      %v702 = vmax.f32 %v680, %v682
      %v703 = vmax.f32 %v681, %v683
      %v704 = vmax.f32 %v684, %v686
      %v705 = vmax.f32 %v685, %v687
      %v706 = vmax.f32 %v688, %v690
      %v707 = vmax.f32 %v689, %v691
      %v708 = vmax.f32 %v692, 0.0
      %v709 = vmax.f32 %v693, 0.0
      %v710 = vmax.f32 %v694, %v662
      %v711 = vmax.f32 %v695, %v663
      %v712 = vmax.f32 %v696, %v666
      %v713 = vmax.f32 %v697, %v667
      %v714 = vmax.f32 %v698, %v670
      %v715 = vmax.f32 %v699, %v671
      %v716 = vmax.f32 %v700, %v674
      %v717 = vmax.f32 %v701, %v675
      %v718 = vmax.f32 %v702, %v678
      %v719 = vmax.f32 %v703, %v679
      %v720 = vmax.f32 %v704, %v682
      %v721 = vmax.f32 %v705, %v683
      %v722 = vmax.f32 %v706, %v686
      %v723 = vmax.f32 %v707, %v687
      %v740 = vcombine.high %v708, %v708
      %v742 = vunpack.c.l.s4 1983009808
      %v743 = vunpack.c.0.s8 %v742
      %v744 = vlaneseq
      %v745 = vshrl.u32 %v744, 7
      %v746 = vsub.s32 %v743, %v745
      %v747 = vrot.slane %v708, %v746
      %v749 = vunpack.c.l.s4 1983009808
      %v750 = vunpack.c.0.s8 %v749
      %v751 = vlaneseq
      %v752 = vshrl.u32 %v751, 7
      %v753 = vsub.s32 %v750, %v752
      %v754 = vrot.slane %v740, %v753
      %v755 = vcombine.high %v747, %v747
      %v756 = vcombine.high %v754, %v754
      %v757 = vcombine.high %v709, %v709
      %v759 = vunpack.c.l.s4 1983009808
      %v760 = vunpack.c.0.s8 %v759
      %v761 = vlaneseq
      %v762 = vshrl.u32 %v761, 7
      %v763 = vsub.s32 %v760, %v762
      %v764 = vrot.slane %v709, %v763
      %v766 = vunpack.c.l.s4 1983009808
      %v767 = vunpack.c.0.s8 %v766
      %v768 = vlaneseq
      %v769 = vshrl.u32 %v768, 7
      %v770 = vsub.s32 %v767, %v769
      %v771 = vrot.slane %v757, %v770
      %v772 = vcombine.high %v764, %v764
      %v773 = vcombine.high %v771, %v771
      %v774 = vcombine.high %v710, %v710
      %v776 = vunpack.c.l.s4 1983009808
      %v777 = vunpack.c.0.s8 %v776
      %v778 = vlaneseq
      %v779 = vshrl.u32 %v778, 7
      %v780 = vsub.s32 %v777, %v779
      %v781 = vrot.slane %v710, %v780
      %v783 = vunpack.c.l.s4 1983009808
      %v784 = vunpack.c.0.s8 %v783
      %v785 = vlaneseq
      %v786 = vshrl.u32 %v785, 7
      %v787 = vsub.s32 %v784, %v786
      %v788 = vrot.slane %v774, %v787
      %v789 = vcombine.high %v781, %v781
      %v790 = vcombine.high %v788, %v788
      %v791 = vcombine.high %v711, %v711
      %v793 = vunpack.c.l.s4 1983009808
      %v794 = vunpack.c.0.s8 %v793
      %v795 = vlaneseq
      %v796 = vshrl.u32 %v795, 7
      %v797 = vsub.s32 %v794, %v796
      %v798 = vrot.slane %v711, %v797
      %v800 = vunpack.c.l.s4 1983009808
      %v801 = vunpack.c.0.s8 %v800
      %v802 = vlaneseq
      %v803 = vshrl.u32 %v802, 7
      %v804 = vsub.s32 %v801, %v803
      %v805 = vrot.slane %v791, %v804
      %v806 = vcombine.high %v798, %v798
      %v807 = vcombine.high %v805, %v805
      %v808 = vcombine.high %v712, %v712
      %v810 = vunpack.c.l.s4 1983009808
      %v811 = vunpack.c.0.s8 %v810
      %v812 = vlaneseq
      %v813 = vshrl.u32 %v812, 7
      %v814 = vsub.s32 %v811, %v813
      %v815 = vrot.slane %v712, %v814
      %v817 = vunpack.c.l.s4 1983009808
      %v818 = vunpack.c.0.s8 %v817
      %v819 = vlaneseq
      %v820 = vshrl.u32 %v819, 7
      %v821 = vsub.s32 %v818, %v820
      %v822 = vrot.slane %v808, %v821
      %v823 = vcombine.high %v815, %v815
      %v824 = vcombine.high %v822, %v822
      %v825 = vcombine.high %v713, %v713
      %v827 = vunpack.c.l.s4 1983009808
      %v828 = vunpack.c.0.s8 %v827
      %v829 = vlaneseq
      %v830 = vshrl.u32 %v829, 7
      %v831 = vsub.s32 %v828, %v830
      %v832 = vrot.slane %v713, %v831
      %v834 = vunpack.c.l.s4 1983009808
      %v835 = vunpack.c.0.s8 %v834
      %v836 = vlaneseq
      %v837 = vshrl.u32 %v836, 7
      %v838 = vsub.s32 %v835, %v837
      %v839 = vrot.slane %v825, %v838
      %v840 = vcombine.high %v832, %v832
      %v841 = vcombine.high %v839, %v839
      %v842 = vcombine.high %v714, %v714
      %v844 = vunpack.c.l.s4 1983009808
      %v845 = vunpack.c.0.s8 %v844
      %v846 = vlaneseq
      %v847 = vshrl.u32 %v846, 7
      %v848 = vsub.s32 %v845, %v847
      %v849 = vrot.slane %v714, %v848
      %v851 = vunpack.c.l.s4 1983009808
      %v852 = vunpack.c.0.s8 %v851
      %v853 = vlaneseq
      %v854 = vshrl.u32 %v853, 7
      %v855 = vsub.s32 %v852, %v854
      %v856 = vrot.slane %v842, %v855
      %v857 = vcombine.high %v849, %v849
      %v858 = vcombine.high %v856, %v856
      %v859 = vcombine.high %v715, %v715
      %v861 = vunpack.c.l.s4 1983009808
      %v862 = vunpack.c.0.s8 %v861
      %v863 = vlaneseq
      %v864 = vshrl.u32 %v863, 7
      %v865 = vsub.s32 %v862, %v864
      %v866 = vrot.slane %v715, %v865
      %v868 = vunpack.c.l.s4 1983009808
      %v869 = vunpack.c.0.s8 %v868
      %v870 = vlaneseq
      %v871 = vshrl.u32 %v870, 7
      %v872 = vsub.s32 %v869, %v871
      %v873 = vrot.slane %v859, %v872
      %v874 = vcombine.high %v866, %v866
      %v875 = vcombine.high %v873, %v873
      %v876 = vcombine.high %v716, %v716
      %v878 = vunpack.c.l.s4 1983009808
      %v879 = vunpack.c.0.s8 %v878
      %v880 = vlaneseq
      %v881 = vshrl.u32 %v880, 7
      %v882 = vsub.s32 %v879, %v881
      %v883 = vrot.slane %v716, %v882
      %v885 = vunpack.c.l.s4 1983009808
      %v886 = vunpack.c.0.s8 %v885
      %v887 = vlaneseq
      %v888 = vshrl.u32 %v887, 7
      %v889 = vsub.s32 %v886, %v888
      %v890 = vrot.slane %v876, %v889
      %v891 = vcombine.high %v883, %v883
      %v892 = vcombine.high %v890, %v890
      %v893 = vcombine.high %v717, %v717
      %v895 = vunpack.c.l.s4 1983009808
      %v896 = vunpack.c.0.s8 %v895
      %v897 = vlaneseq
      %v898 = vshrl.u32 %v897, 7
      %v899 = vsub.s32 %v896, %v898
      %v900 = vrot.slane %v717, %v899
      %v902 = vunpack.c.l.s4 1983009808
      %v903 = vunpack.c.0.s8 %v902
      %v904 = vlaneseq
      %v905 = vshrl.u32 %v904, 7
      %v906 = vsub.s32 %v903, %v905
      %v907 = vrot.slane %v893, %v906
      %v908 = vcombine.high %v900, %v900
      %v909 = vcombine.high %v907, %v907
      %v910 = vcombine.high %v718, %v718
      %v912 = vunpack.c.l.s4 1983009808
      %v913 = vunpack.c.0.s8 %v912
      %v914 = vlaneseq
      %v915 = vshrl.u32 %v914, 7
      %v916 = vsub.s32 %v913, %v915
      %v917 = vrot.slane %v718, %v916
      %v919 = vunpack.c.l.s4 1983009808
      %v920 = vunpack.c.0.s8 %v919
      %v921 = vlaneseq
      %v922 = vshrl.u32 %v921, 7
      %v923 = vsub.s32 %v920, %v922
      %v924 = vrot.slane %v910, %v923
      %v925 = vcombine.high %v917, %v917
      %v926 = vcombine.high %v924, %v924
      %v927 = vcombine.high %v719, %v719
      %v929 = vunpack.c.l.s4 1983009808
      %v930 = vunpack.c.0.s8 %v929
      %v931 = vlaneseq
      %v932 = vshrl.u32 %v931, 7
      %v933 = vsub.s32 %v930, %v932
      %v934 = vrot.slane %v719, %v933
      %v936 = vunpack.c.l.s4 1983009808
      %v937 = vunpack.c.0.s8 %v936
      %v938 = vlaneseq
      %v939 = vshrl.u32 %v938, 7
      %v940 = vsub.s32 %v937, %v939
      %v941 = vrot.slane %v927, %v940
      %v942 = vcombine.high %v934, %v934
      %v943 = vcombine.high %v941, %v941
      %v944 = vcombine.high %v720, %v720
      %v946 = vunpack.c.l.s4 1983009808
      %v947 = vunpack.c.0.s8 %v946
      %v948 = vlaneseq
      %v949 = vshrl.u32 %v948, 7
      %v950 = vsub.s32 %v947, %v949
      %v951 = vrot.slane %v720, %v950
      %v953 = vunpack.c.l.s4 1983009808
      %v954 = vunpack.c.0.s8 %v953
      %v955 = vlaneseq
      %v956 = vshrl.u32 %v955, 7
      %v957 = vsub.s32 %v954, %v956
      %v958 = vrot.slane %v944, %v957
      %v959 = vcombine.high %v951, %v951
      %v960 = vcombine.high %v958, %v958
      %v961 = vcombine.high %v721, %v721
      %v963 = vunpack.c.l.s4 1983009808
      %v964 = vunpack.c.0.s8 %v963
      %v965 = vlaneseq
      %v966 = vshrl.u32 %v965, 7
      %v967 = vsub.s32 %v964, %v966
      %v968 = vrot.slane %v721, %v967
      %v970 = vunpack.c.l.s4 1983009808
      %v971 = vunpack.c.0.s8 %v970
      %v972 = vlaneseq
      %v973 = vshrl.u32 %v972, 7
      %v974 = vsub.s32 %v971, %v973
      %v975 = vrot.slane %v961, %v974
      %v976 = vcombine.high %v968, %v968
      %v977 = vcombine.high %v975, %v975
      %v978 = vcombine.high %v722, %v722
      %v980 = vunpack.c.l.s4 1983009808
      %v981 = vunpack.c.0.s8 %v980
      %v982 = vlaneseq
      %v983 = vshrl.u32 %v982, 7
      %v984 = vsub.s32 %v981, %v983
      %v985 = vrot.slane %v722, %v984
      %v987 = vunpack.c.l.s4 1983009808
      %v988 = vunpack.c.0.s8 %v987
      %v989 = vlaneseq
      %v990 = vshrl.u32 %v989, 7
      %v991 = vsub.s32 %v988, %v990
      %v992 = vrot.slane %v978, %v991
      %v993 = vcombine.high %v985, %v985
      %v994 = vcombine.high %v992, %v992
      %v995 = vcombine.high %v723, %v723
      %v997 = vunpack.c.l.s4 1983009808
      %v998 = vunpack.c.0.s8 %v997
      %v999 = vlaneseq
      %v1000 = vshrl.u32 %v999, 7
      %v1001 = vsub.s32 %v998, %v1000
      %v1002 = vrot.slane %v723, %v1001
      %v1004 = vunpack.c.l.s4 1983009808
      %v1005 = vunpack.c.0.s8 %v1004
      %v1006 = vlaneseq
      %v1007 = vshrl.u32 %v1006, 7
      %v1008 = vsub.s32 %v1005, %v1007
      %v1009 = vrot.slane %v995, %v1008
      %v1010 = vcombine.high %v1002, %v1002
      %v1011 = vcombine.high %v1009, %v1009
      %v1076 = vlaneseq
      %v1077 = vshrl.u32 %v1076, 7
      %v1078 = vsub.s32 1, %v1077
      %v1079 = vrot.slane %v747, %v1078
      %v1080 = vlaneseq
      %v1081 = vshrl.u32 %v1080, 7
      %v1082 = vsub.s32 1, %v1081
      %v1083 = vrot.slane %v755, %v1082
      %v1084 = vlaneseq
      %v1085 = vshrl.u32 %v1084, 7
      %v1086 = vsub.s32 1, %v1085
      %v1087 = vrot.slane %v754, %v1086
      %v1088 = vlaneseq
      %v1089 = vshrl.u32 %v1088, 7
      %v1090 = vsub.s32 1, %v1089
      %v1091 = vrot.slane %v756, %v1090
      %v1092 = vlaneseq
      %v1093 = vshrl.u32 %v1092, 7
      %v1094 = vsub.s32 1, %v1093
      %v1095 = vrot.slane %v764, %v1094
      %v1096 = vlaneseq
      %v1097 = vshrl.u32 %v1096, 7
      %v1098 = vsub.s32 1, %v1097
      %v1099 = vrot.slane %v772, %v1098
      %v1100 = vlaneseq
      %v1101 = vshrl.u32 %v1100, 7
      %v1102 = vsub.s32 1, %v1101
      %v1103 = vrot.slane %v771, %v1102
      %v1104 = vlaneseq
      %v1105 = vshrl.u32 %v1104, 7
      %v1106 = vsub.s32 1, %v1105
      %v1107 = vrot.slane %v781, %v1106
      %v1108 = vlaneseq
      %v1109 = vshrl.u32 %v1108, 7
      %v1110 = vsub.s32 1, %v1109
      %v1111 = vrot.slane %v789, %v1110
      %v1112 = vlaneseq
      %v1113 = vshrl.u32 %v1112, 7
      %v1114 = vsub.s32 1, %v1113
      %v1115 = vrot.slane %v788, %v1114
      %v1116 = vlaneseq
      %v1117 = vshrl.u32 %v1116, 7
      %v1118 = vsub.s32 1, %v1117
      %v1119 = vrot.slane %v790, %v1118
      %v1120 = vlaneseq
      %v1121 = vshrl.u32 %v1120, 7
      %v1122 = vsub.s32 1, %v1121
      %v1123 = vrot.slane %v798, %v1122
      %v1124 = vlaneseq
      %v1125 = vshrl.u32 %v1124, 7
      %v1126 = vsub.s32 1, %v1125
      %v1127 = vrot.slane %v806, %v1126
      %v1128 = vlaneseq
      %v1129 = vshrl.u32 %v1128, 7
      %v1130 = vsub.s32 1, %v1129
      %v1131 = vrot.slane %v805, %v1130
      %v1132 = vlaneseq
      %v1133 = vshrl.u32 %v1132, 7
      %v1134 = vsub.s32 1, %v1133
      %v1135 = vrot.slane %v815, %v1134
      %v1136 = vlaneseq
      %v1137 = vshrl.u32 %v1136, 7
      %v1138 = vsub.s32 1, %v1137
      %v1139 = vrot.slane %v823, %v1138
      %v1140 = vlaneseq
      %v1141 = vshrl.u32 %v1140, 7
      %v1142 = vsub.s32 1, %v1141
      %v1143 = vrot.slane %v822, %v1142
      %v1144 = vlaneseq
      %v1145 = vshrl.u32 %v1144, 7
      %v1146 = vsub.s32 1, %v1145
      %v1147 = vrot.slane %v824, %v1146
      %v1148 = vlaneseq
      %v1149 = vshrl.u32 %v1148, 7
      %v1150 = vsub.s32 1, %v1149
      %v1151 = vrot.slane %v832, %v1150
      %v1152 = vlaneseq
      %v1153 = vshrl.u32 %v1152, 7
      %v1154 = vsub.s32 1, %v1153
      %v1155 = vrot.slane %v840, %v1154
      %v1156 = vlaneseq
      %v1157 = vshrl.u32 %v1156, 7
      %v1158 = vsub.s32 1, %v1157
      %v1159 = vrot.slane %v839, %v1158
      %v1160 = vlaneseq
      %v1161 = vshrl.u32 %v1160, 7
      %v1162 = vsub.s32 1, %v1161
      %v1163 = vrot.slane %v849, %v1162
      %v1164 = vlaneseq
      %v1165 = vshrl.u32 %v1164, 7
      %v1166 = vsub.s32 1, %v1165
      %v1167 = vrot.slane %v857, %v1166
      %v1168 = vlaneseq
      %v1169 = vshrl.u32 %v1168, 7
      %v1170 = vsub.s32 1, %v1169
      %v1171 = vrot.slane %v856, %v1170
      %v1172 = vlaneseq
      %v1173 = vshrl.u32 %v1172, 7
      %v1174 = vsub.s32 1, %v1173
      %v1175 = vrot.slane %v858, %v1174
      %v1176 = vlaneseq
      %v1177 = vshrl.u32 %v1176, 7
      %v1178 = vsub.s32 1, %v1177
      %v1179 = vrot.slane %v866, %v1178
      %v1180 = vlaneseq
      %v1181 = vshrl.u32 %v1180, 7
      %v1182 = vsub.s32 1, %v1181
      %v1183 = vrot.slane %v874, %v1182
      %v1184 = vlaneseq
      %v1185 = vshrl.u32 %v1184, 7
      %v1186 = vsub.s32 1, %v1185
      %v1187 = vrot.slane %v873, %v1186
      %v1188 = vlaneseq
      %v1189 = vshrl.u32 %v1188, 7
      %v1190 = vsub.s32 1, %v1189
      %v1191 = vrot.slane %v883, %v1190
      %v1192 = vlaneseq
      %v1193 = vshrl.u32 %v1192, 7
      %v1194 = vsub.s32 1, %v1193
      %v1195 = vrot.slane %v891, %v1194
      %v1196 = vlaneseq
      %v1197 = vshrl.u32 %v1196, 7
      %v1198 = vsub.s32 1, %v1197
      %v1199 = vrot.slane %v890, %v1198
      %v1200 = vlaneseq
      %v1201 = vshrl.u32 %v1200, 7
      %v1202 = vsub.s32 1, %v1201
      %v1203 = vrot.slane %v892, %v1202
      %v1204 = vlaneseq
      %v1205 = vshrl.u32 %v1204, 7
      %v1206 = vsub.s32 1, %v1205
      %v1207 = vrot.slane %v900, %v1206
      %v1208 = vlaneseq
      %v1209 = vshrl.u32 %v1208, 7
      %v1210 = vsub.s32 1, %v1209
      %v1211 = vrot.slane %v908, %v1210
      %v1212 = vlaneseq
      %v1213 = vshrl.u32 %v1212, 7
      %v1214 = vsub.s32 1, %v1213
      %v1215 = vrot.slane %v907, %v1214
      %v1216 = vlaneseq
      %v1217 = vshrl.u32 %v1216, 7
      %v1218 = vsub.s32 1, %v1217
      %v1219 = vrot.slane %v917, %v1218
      %v1220 = vlaneseq
      %v1221 = vshrl.u32 %v1220, 7
      %v1222 = vsub.s32 1, %v1221
      %v1223 = vrot.slane %v925, %v1222
      %v1224 = vlaneseq
      %v1225 = vshrl.u32 %v1224, 7
      %v1226 = vsub.s32 1, %v1225
      %v1227 = vrot.slane %v924, %v1226
      %v1228 = vlaneseq
      %v1229 = vshrl.u32 %v1228, 7
      %v1230 = vsub.s32 1, %v1229
      %v1231 = vrot.slane %v926, %v1230
      %v1232 = vlaneseq
      %v1233 = vshrl.u32 %v1232, 7
      %v1234 = vsub.s32 1, %v1233
      %v1235 = vrot.slane %v934, %v1234
      %v1236 = vlaneseq
      %v1237 = vshrl.u32 %v1236, 7
      %v1238 = vsub.s32 1, %v1237
      %v1239 = vrot.slane %v942, %v1238
      %v1240 = vlaneseq
      %v1241 = vshrl.u32 %v1240, 7
      %v1242 = vsub.s32 1, %v1241
      %v1243 = vrot.slane %v941, %v1242
      %v1244 = vlaneseq
      %v1245 = vshrl.u32 %v1244, 7
      %v1246 = vsub.s32 1, %v1245
      %v1247 = vrot.slane %v951, %v1246
      %v1248 = vlaneseq
      %v1249 = vshrl.u32 %v1248, 7
      %v1250 = vsub.s32 1, %v1249
      %v1251 = vrot.slane %v959, %v1250
      %v1252 = vlaneseq
      %v1253 = vshrl.u32 %v1252, 7
      %v1254 = vsub.s32 1, %v1253
      %v1255 = vrot.slane %v958, %v1254
      %v1256 = vlaneseq
      %v1257 = vshrl.u32 %v1256, 7
      %v1258 = vsub.s32 1, %v1257
      %v1259 = vrot.slane %v960, %v1258
      %v1260 = vlaneseq
      %v1261 = vshrl.u32 %v1260, 7
      %v1262 = vsub.s32 1, %v1261
      %v1263 = vrot.slane %v968, %v1262
      %v1264 = vlaneseq
      %v1265 = vshrl.u32 %v1264, 7
      %v1266 = vsub.s32 1, %v1265
      %v1267 = vrot.slane %v976, %v1266
      %v1268 = vlaneseq
      %v1269 = vshrl.u32 %v1268, 7
      %v1270 = vsub.s32 1, %v1269
      %v1271 = vrot.slane %v975, %v1270
      %v1272 = vlaneseq
      %v1273 = vshrl.u32 %v1272, 7
      %v1274 = vsub.s32 1, %v1273
      %v1275 = vrot.slane %v985, %v1274
      %v1276 = vlaneseq
      %v1277 = vshrl.u32 %v1276, 7
      %v1278 = vsub.s32 1, %v1277
      %v1279 = vrot.slane %v993, %v1278
      %v1280 = vlaneseq
      %v1281 = vshrl.u32 %v1280, 7
      %v1282 = vsub.s32 1, %v1281
      %v1283 = vrot.slane %v992, %v1282
      %v1284 = vlaneseq
      %v1285 = vshrl.u32 %v1284, 7
      %v1286 = vsub.s32 1, %v1285
      %v1287 = vrot.slane %v994, %v1286
      %v1288 = vlaneseq
      %v1289 = vshrl.u32 %v1288, 7
      %v1290 = vsub.s32 1, %v1289
      %v1291 = vrot.slane %v1002, %v1290
      %v1292 = vlaneseq
      %v1293 = vshrl.u32 %v1292, 7
      %v1294 = vsub.s32 1, %v1293
      %v1295 = vrot.slane %v1010, %v1294
      %v1296 = vlaneseq
      %v1297 = vshrl.u32 %v1296, 7
      %v1298 = vsub.s32 1, %v1297
      %v1299 = vrot.slane %v1009, %v1298
      %vm1300 = vcmask 1042434
      %v1301 = vsel %vm1300, %v1083, %v1079
      %vm1302 = vcmask 1043459
      %v1303 = vsel %vm1302, %v1087, %v1301
      %vm1304 = vcmask 1044484
      %v1305 = vsel %vm1304, %v1091, %v1303
      %vm1306 = vcmask 1045509
      %v1307 = vsel %vm1306, %v1095, %v1305
      %vm1308 = vcmask 1046534
      %v1309 = vsel %vm1308, %v1099, %v1307
      %vm1310 = vcmask 1047559
      %v1311 = vsel %vm1310, %v1103, %v1309
      %v1312 = vsel %vm1300, %v1111, %v1107
      %v1313 = vsel %vm1302, %v1115, %v1312
      %v1314 = vsel %vm1304, %v1119, %v1313
      %v1315 = vsel %vm1306, %v1123, %v1314
      %v1316 = vsel %vm1308, %v1127, %v1315
      %v1317 = vsel %vm1310, %v1131, %v1316
      %v1318 = vsel %vm1300, %v1139, %v1135
      %v1319 = vsel %vm1302, %v1143, %v1318
      %v1320 = vsel %vm1304, %v1147, %v1319
      %v1321 = vsel %vm1306, %v1151, %v1320
      %v1322 = vsel %vm1308, %v1155, %v1321
      %v1323 = vsel %vm1310, %v1159, %v1322
      %v1324 = vsel %vm1300, %v1167, %v1163
      %v1325 = vsel %vm1302, %v1171, %v1324
      %v1326 = vsel %vm1304, %v1175, %v1325
      %v1327 = vsel %vm1306, %v1179, %v1326
      %v1328 = vsel %vm1308, %v1183, %v1327
      %v1329 = vsel %vm1310, %v1187, %v1328
      %v1330 = vsel %vm1300, %v1195, %v1191
      %v1331 = vsel %vm1302, %v1199, %v1330
      %v1332 = vsel %vm1304, %v1203, %v1331
      %v1333 = vsel %vm1306, %v1207, %v1332
      %v1334 = vsel %vm1308, %v1211, %v1333
      %v1335 = vsel %vm1310, %v1215, %v1334
      %v1336 = vsel %vm1300, %v1223, %v1219
      %v1337 = vsel %vm1302, %v1227, %v1336
      %v1338 = vsel %vm1304, %v1231, %v1337
      %v1339 = vsel %vm1306, %v1235, %v1338
      %v1340 = vsel %vm1308, %v1239, %v1339
      %v1341 = vsel %vm1310, %v1243, %v1340
      %v1342 = vsel %vm1300, %v1251, %v1247
      %v1343 = vsel %vm1302, %v1255, %v1342
      %v1344 = vsel %vm1304, %v1259, %v1343
      %v1345 = vsel %vm1306, %v1263, %v1344
      %v1346 = vsel %vm1308, %v1267, %v1345
      %v1347 = vsel %vm1310, %v1271, %v1346
      %v1348 = vsel %vm1300, %v1279, %v1275
      %v1349 = vsel %vm1302, %v1283, %v1348
      %v1350 = vsel %vm1304, %v1287, %v1349
      %v1351 = vsel %vm1306, %v1291, %v1350
      %v1352 = vsel %vm1308, %v1295, %v1351
      %v1353 = vsel %vm1310, %v1299, %v1352
      %vm1362 = vcmask 1040384
      %v1363 = vsel %vm1362, 0.0, %v1311
      %v1364 = vsel %vm1362, 0.0, %v1317
      %v1365 = vsel %vm1362, 0.0, %v1323
      %v1366 = vsel %vm1362, 0.0, %v1329
      %v1367 = vsel %vm1362, 0.0, %v1335
      %v1368 = vsel %vm1362, 0.0, %v1341
      %v1369 = vsel %vm1362, 0.0, %v1347
      %v1370 = vsel %vm1362, 0.0, %v1353
      %v1371 = vrot.slane %v747, 7
      %v1372 = vrot.slane %v1371, 2
      %v1373 = vrot.slane %v755, 7
      %v1374 = vrot.slane %v1373, 2
      %v1375 = vrot.slane %v754, 7
      %v1376 = vrot.slane %v1375, 2
      %v1377 = vrot.slane %v756, 7
      %v1378 = vrot.slane %v1377, 2
      %v1379 = vrot.slane %v764, 7
      %v1380 = vrot.slane %v1379, 2
      %v1381 = vrot.slane %v772, 7
      %v1382 = vrot.slane %v1381, 2
      %v1383 = vrot.slane %v771, 7
      %v1384 = vrot.slane %v1383, 2
      %v1385 = vrot.slane %v773, 7
      %v1386 = vrot.slane %v1385, 2
      %v1387 = vrot.slane %v781, 7
      %v1388 = vrot.slane %v1387, 2
      %v1389 = vrot.slane %v789, 7
      %v1390 = vrot.slane %v1389, 2
      %v1391 = vrot.slane %v788, 7
      %v1392 = vrot.slane %v1391, 2
      %v1393 = vrot.slane %v790, 7
      %v1394 = vrot.slane %v1393, 2
      %v1395 = vrot.slane %v798, 7
      %v1396 = vrot.slane %v1395, 2
      %v1397 = vrot.slane %v806, 7
      %v1398 = vrot.slane %v1397, 2
      %v1399 = vrot.slane %v805, 7
      %v1400 = vrot.slane %v1399, 2
      %v1401 = vrot.slane %v807, 7
      %v1402 = vrot.slane %v1401, 2
      %v1403 = vrot.slane %v815, 7
      %v1404 = vrot.slane %v1403, 2
      %v1405 = vrot.slane %v823, 7
      %v1406 = vrot.slane %v1405, 2
      %v1407 = vrot.slane %v822, 7
      %v1408 = vrot.slane %v1407, 2
      %v1409 = vrot.slane %v824, 7
      %v1410 = vrot.slane %v1409, 2
      %v1411 = vrot.slane %v832, 7
      %v1412 = vrot.slane %v1411, 2
      %v1413 = vrot.slane %v840, 7
      %v1414 = vrot.slane %v1413, 2
      %v1415 = vrot.slane %v839, 7
      %v1416 = vrot.slane %v1415, 2
      %v1417 = vrot.slane %v841, 7
      %v1418 = vrot.slane %v1417, 2
      %v1419 = vrot.slane %v849, 7
      %v1420 = vrot.slane %v1419, 2
      %v1421 = vrot.slane %v857, 7
      %v1422 = vrot.slane %v1421, 2
      %v1423 = vrot.slane %v856, 7
      %v1424 = vrot.slane %v1423, 2
      %v1425 = vrot.slane %v858, 7
      %v1426 = vrot.slane %v1425, 2
      %v1427 = vrot.slane %v866, 7
      %v1428 = vrot.slane %v1427, 2
      %v1429 = vrot.slane %v874, 7
      %v1430 = vrot.slane %v1429, 2
      %v1431 = vrot.slane %v873, 7
      %v1432 = vrot.slane %v1431, 2
      %v1433 = vrot.slane %v875, 7
      %v1434 = vrot.slane %v1433, 2
      %v1435 = vrot.slane %v883, 7
      %v1436 = vrot.slane %v1435, 2
      %v1437 = vrot.slane %v891, 7
      %v1438 = vrot.slane %v1437, 2
      %v1439 = vrot.slane %v890, 7
      %v1440 = vrot.slane %v1439, 2
      %v1441 = vrot.slane %v892, 7
      %v1442 = vrot.slane %v1441, 2
      %v1443 = vrot.slane %v900, 7
      %v1444 = vrot.slane %v1443, 2
      %v1445 = vrot.slane %v908, 7
      %v1446 = vrot.slane %v1445, 2
      %v1447 = vrot.slane %v907, 7
      %v1448 = vrot.slane %v1447, 2
      %v1449 = vrot.slane %v909, 7
      %v1450 = vrot.slane %v1449, 2
      %v1451 = vrot.slane %v917, 7
      %v1452 = vrot.slane %v1451, 2
      %v1453 = vrot.slane %v925, 7
      %v1454 = vrot.slane %v1453, 2
      %v1455 = vrot.slane %v924, 7
      %v1456 = vrot.slane %v1455, 2
      %v1457 = vrot.slane %v926, 7
      %v1458 = vrot.slane %v1457, 2
      %v1459 = vrot.slane %v934, 7
      %v1460 = vrot.slane %v1459, 2
      %v1461 = vrot.slane %v942, 7
      %v1462 = vrot.slane %v1461, 2
      %v1463 = vrot.slane %v941, 7
      %v1464 = vrot.slane %v1463, 2
      %v1465 = vrot.slane %v943, 7
      %v1466 = vrot.slane %v1465, 2
      %v1467 = vrot.slane %v951, 7
      %v1468 = vrot.slane %v1467, 2
      %v1469 = vrot.slane %v959, 7
      %v1470 = vrot.slane %v1469, 2
      %v1471 = vrot.slane %v958, 7
      %v1472 = vrot.slane %v1471, 2
      %v1473 = vrot.slane %v960, 7
      %v1474 = vrot.slane %v1473, 2
      %v1475 = vrot.slane %v968, 7
      %v1476 = vrot.slane %v1475, 2
      %v1477 = vrot.slane %v976, 7
      %v1478 = vrot.slane %v1477, 2
      %v1479 = vrot.slane %v975, 7
      %v1480 = vrot.slane %v1479, 2
      %v1481 = vrot.slane %v977, 7
      %v1482 = vrot.slane %v1481, 2
      %v1483 = vrot.slane %v985, 7
      %v1484 = vrot.slane %v1483, 2
      %v1485 = vrot.slane %v993, 7
      %v1486 = vrot.slane %v1485, 2
      %v1487 = vrot.slane %v992, 7
      %v1488 = vrot.slane %v1487, 2
      %v1489 = vrot.slane %v994, 7
      %v1490 = vrot.slane %v1489, 2
      %v1491 = vrot.slane %v1002, 7
      %v1492 = vrot.slane %v1491, 2
      %v1493 = vrot.slane %v1010, 7
      %v1494 = vrot.slane %v1493, 2
      %v1495 = vrot.slane %v1009, 7
      %v1496 = vrot.slane %v1495, 2
      %v1497 = vrot.slane %v1011, 7
      %v1498 = vrot.slane %v1497, 2
      %v1563 = vmax.f32 %v747, %v1372
      %v1564 = vmax.f32 %v755, %v1374
      %v1565 = vmax.f32 %v754, %v1376
      %v1566 = vmax.f32 %v756, %v1378
      %v1567 = vmax.f32 %v764, %v1380
      %v1568 = vmax.f32 %v772, %v1382
      %v1569 = vmax.f32 %v771, %v1384
      %v1570 = vmax.f32 %v773, %v1386
      %v1571 = vmax.f32 %v781, %v1388
      %v1572 = vmax.f32 %v789, %v1390
      %v1573 = vmax.f32 %v788, %v1392
      %v1574 = vmax.f32 %v790, %v1394
      %v1575 = vmax.f32 %v798, %v1396
      %v1576 = vmax.f32 %v806, %v1398
      %v1577 = vmax.f32 %v805, %v1400
      %v1578 = vmax.f32 %v807, %v1402
      %v1579 = vmax.f32 %v815, %v1404
      %v1580 = vmax.f32 %v823, %v1406
      %v1581 = vmax.f32 %v822, %v1408
      %v1582 = vmax.f32 %v824, %v1410
      %v1583 = vmax.f32 %v832, %v1412
      %v1584 = vmax.f32 %v840, %v1414
      %v1585 = vmax.f32 %v839, %v1416
      %v1586 = vmax.f32 %v841, %v1418
      %v1587 = vmax.f32 %v849, %v1420
      %v1588 = vmax.f32 %v857, %v1422
      %v1589 = vmax.f32 %v856, %v1424
      %v1590 = vmax.f32 %v858, %v1426
      %v1591 = vmax.f32 %v866, %v1428
      %v1592 = vmax.f32 %v874, %v1430
      %v1593 = vmax.f32 %v873, %v1432
      %v1594 = vmax.f32 %v875, %v1434
      %v1595 = vmax.f32 %v883, %v1436
      %v1596 = vmax.f32 %v891, %v1438
      %v1597 = vmax.f32 %v890, %v1440
      %v1598 = vmax.f32 %v892, %v1442
      %v1599 = vmax.f32 %v900, %v1444
      %v1600 = vmax.f32 %v908, %v1446
      %v1601 = vmax.f32 %v907, %v1448
      %v1602 = vmax.f32 %v909, %v1450
      %v1603 = vmax.f32 %v917, %v1452
      %v1604 = vmax.f32 %v925, %v1454
      %v1605 = vmax.f32 %v924, %v1456
      %v1606 = vmax.f32 %v926, %v1458
      %v1607 = vmax.f32 %v934, %v1460
      %v1608 = vmax.f32 %v942, %v1462
      %v1609 = vmax.f32 %v941, %v1464
      %v1610 = vmax.f32 %v943, %v1466
      %v1611 = vmax.f32 %v951, %v1468
      %v1612 = vmax.f32 %v959, %v1470
      %v1613 = vmax.f32 %v958, %v1472
      %v1614 = vmax.f32 %v960, %v1474
      %v1615 = vmax.f32 %v968, %v1476
      %v1616 = vmax.f32 %v976, %v1478
      %v1617 = vmax.f32 %v975, %v1480
      %v1618 = vmax.f32 %v977, %v1482
      %v1619 = vmax.f32 %v985, %v1484
      %v1620 = vmax.f32 %v993, %v1486
      %v1621 = vmax.f32 %v992, %v1488
      %v1622 = vmax.f32 %v994, %v1490
      %v1623 = vmax.f32 %v1002, %v1492
      %v1624 = vmax.f32 %v1010, %v1494
      %v1625 = vmax.f32 %v1009, %v1496
      %v1626 = vmax.f32 %v1011, %v1498
      %v1635 = vcombine.high %v1363, %v1363
      %v1637 = vunpack.c.l.s4 1983009808
      %v1638 = vunpack.c.0.s8 %v1637
      %v1639 = vlaneseq
      %v1640 = vshrl.u32 %v1639, 7
      %v1641 = vsub.s32 %v1638, %v1640
      %v1642 = vrot.slane %v1363, %v1641
      %v1644 = vunpack.c.l.s4 1983009808
      %v1645 = vunpack.c.0.s8 %v1644
      %v1646 = vlaneseq
      %v1647 = vshrl.u32 %v1646, 7
      %v1648 = vsub.s32 %v1645, %v1647
      %v1649 = vrot.slane %v1635, %v1648
      %v1650 = vcombine.high %v1642, %v1642
      %v1651 = vcombine.high %v1649, %v1649
      %v1652 = vcombine.high %v1364, %v1364
      %v1654 = vunpack.c.l.s4 1983009808
      %v1655 = vunpack.c.0.s8 %v1654
      %v1656 = vlaneseq
      %v1657 = vshrl.u32 %v1656, 7
      %v1658 = vsub.s32 %v1655, %v1657
      %v1659 = vrot.slane %v1364, %v1658
      %v1661 = vunpack.c.l.s4 1983009808
      %v1662 = vunpack.c.0.s8 %v1661
      %v1663 = vlaneseq
      %v1664 = vshrl.u32 %v1663, 7
      %v1665 = vsub.s32 %v1662, %v1664
      %v1666 = vrot.slane %v1652, %v1665
      %v1667 = vcombine.high %v1659, %v1659
      %v1668 = vcombine.high %v1666, %v1666
      %v1669 = vcombine.high %v1365, %v1365
      %v1671 = vunpack.c.l.s4 1983009808
      %v1672 = vunpack.c.0.s8 %v1671
      %v1673 = vlaneseq
      %v1674 = vshrl.u32 %v1673, 7
      %v1675 = vsub.s32 %v1672, %v1674
      %v1676 = vrot.slane %v1365, %v1675
      %v1678 = vunpack.c.l.s4 1983009808
      %v1679 = vunpack.c.0.s8 %v1678
      %v1680 = vlaneseq
      %v1681 = vshrl.u32 %v1680, 7
      %v1682 = vsub.s32 %v1679, %v1681
      %v1683 = vrot.slane %v1669, %v1682
      %v1684 = vcombine.high %v1676, %v1676
      %v1685 = vcombine.high %v1683, %v1683
      %v1686 = vcombine.high %v1366, %v1366
      %v1688 = vunpack.c.l.s4 1983009808
      %v1689 = vunpack.c.0.s8 %v1688
      %v1690 = vlaneseq
      %v1691 = vshrl.u32 %v1690, 7
      %v1692 = vsub.s32 %v1689, %v1691
      %v1693 = vrot.slane %v1366, %v1692
      %v1695 = vunpack.c.l.s4 1983009808
      %v1696 = vunpack.c.0.s8 %v1695
      %v1697 = vlaneseq
      %v1698 = vshrl.u32 %v1697, 7
      %v1699 = vsub.s32 %v1696, %v1698
      %v1700 = vrot.slane %v1686, %v1699
      %v1701 = vcombine.high %v1693, %v1693
      %v1702 = vcombine.high %v1700, %v1700
      %v1703 = vcombine.high %v1367, %v1367
      %v1705 = vunpack.c.l.s4 1983009808
      %v1706 = vunpack.c.0.s8 %v1705
      %v1707 = vlaneseq
      %v1708 = vshrl.u32 %v1707, 7
      %v1709 = vsub.s32 %v1706, %v1708
      %v1710 = vrot.slane %v1367, %v1709
      %v1712 = vunpack.c.l.s4 1983009808
      %v1713 = vunpack.c.0.s8 %v1712
      %v1714 = vlaneseq
      %v1715 = vshrl.u32 %v1714, 7
      %v1716 = vsub.s32 %v1713, %v1715
      %v1717 = vrot.slane %v1703, %v1716
      %v1718 = vcombine.high %v1710, %v1710
      %v1719 = vcombine.high %v1717, %v1717
      %v1720 = vcombine.high %v1368, %v1368
      %v1722 = vunpack.c.l.s4 1983009808
      %v1723 = vunpack.c.0.s8 %v1722
      %v1724 = vlaneseq
      %v1725 = vshrl.u32 %v1724, 7
      %v1726 = vsub.s32 %v1723, %v1725
      %v1727 = vrot.slane %v1368, %v1726
      %v1729 = vunpack.c.l.s4 1983009808
      %v1730 = vunpack.c.0.s8 %v1729
      %v1731 = vlaneseq
      %v1732 = vshrl.u32 %v1731, 7
      %v1733 = vsub.s32 %v1730, %v1732
      %v1734 = vrot.slane %v1720, %v1733
      %v1735 = vcombine.high %v1727, %v1727
      %v1736 = vcombine.high %v1734, %v1734
      %v1737 = vcombine.high %v1369, %v1369
      %v1739 = vunpack.c.l.s4 1983009808
      %v1740 = vunpack.c.0.s8 %v1739
      %v1741 = vlaneseq
      %v1742 = vshrl.u32 %v1741, 7
      %v1743 = vsub.s32 %v1740, %v1742
      %v1744 = vrot.slane %v1369, %v1743
      %v1746 = vunpack.c.l.s4 1983009808
      %v1747 = vunpack.c.0.s8 %v1746
      %v1748 = vlaneseq
      %v1749 = vshrl.u32 %v1748, 7
      %v1750 = vsub.s32 %v1747, %v1749
      %v1751 = vrot.slane %v1737, %v1750
      %v1752 = vcombine.high %v1744, %v1744
      %v1753 = vcombine.high %v1751, %v1751
      %v1754 = vcombine.high %v1370, %v1370
      %v1756 = vunpack.c.l.s4 1983009808
      %v1757 = vunpack.c.0.s8 %v1756
      %v1758 = vlaneseq
      %v1759 = vshrl.u32 %v1758, 7
      %v1760 = vsub.s32 %v1757, %v1759
      %v1761 = vrot.slane %v1370, %v1760
      %v1763 = vunpack.c.l.s4 1983009808
      %v1764 = vunpack.c.0.s8 %v1763
      %v1765 = vlaneseq
      %v1766 = vshrl.u32 %v1765, 7
      %v1767 = vsub.s32 %v1764, %v1766
      %v1768 = vrot.slane %v1754, %v1767
      %v1769 = vcombine.high %v1761, %v1761
      %v1770 = vcombine.high %v1768, %v1768
      %v1771 = vrot.slane %v1642, 1
      %v1772 = vrot.slane %v1650, 1
      %v1773 = vrot.slane %v1649, 1
      %v1774 = vrot.slane %v1651, 1
      %v1775 = vrot.slane %v1659, 1
      %v1776 = vrot.slane %v1667, 1
      %v1777 = vrot.slane %v1666, 1
      %v1778 = vrot.slane %v1668, 1
      %v1779 = vrot.slane %v1676, 1
      %v1780 = vrot.slane %v1684, 1
      %v1781 = vrot.slane %v1683, 1
      %v1782 = vrot.slane %v1685, 1
      %v1783 = vrot.slane %v1693, 1
      %v1784 = vrot.slane %v1701, 1
      %v1785 = vrot.slane %v1700, 1
      %v1786 = vrot.slane %v1702, 1
      %v1787 = vrot.slane %v1710, 1
      %v1788 = vrot.slane %v1718, 1
      %v1789 = vrot.slane %v1717, 1
      %v1790 = vrot.slane %v1719, 1
      %v1791 = vrot.slane %v1727, 1
      %v1792 = vrot.slane %v1735, 1
      %v1793 = vrot.slane %v1734, 1
      %v1794 = vrot.slane %v1736, 1
      %v1795 = vrot.slane %v1744, 1
      %v1796 = vrot.slane %v1752, 1
      %v1797 = vrot.slane %v1751, 1
      %v1798 = vrot.slane %v1753, 1
      %v1799 = vrot.slane %v1761, 1
      %v1800 = vrot.slane %v1769, 1
      %v1801 = vrot.slane %v1768, 1
      %v1802 = vrot.slane %v1770, 1
      %v1867 = vmax.f32 %v1563, %v1642
      %v1868 = vmax.f32 %v1564, %v1771
      %v1869 = vmax.f32 %v1565, %v1650
      %v1870 = vmax.f32 %v1566, %v1772
      %v1871 = vmax.f32 %v1567, %v1649
      %v1872 = vmax.f32 %v1568, %v1773
      %v1873 = vmax.f32 %v1569, %v1651
      %v1874 = vmax.f32 %v1570, %v1774
      %v1875 = vmax.f32 %v1571, %v1659
      %v1876 = vmax.f32 %v1572, %v1775
      %v1877 = vmax.f32 %v1573, %v1667
      %v1878 = vmax.f32 %v1574, %v1776
      %v1879 = vmax.f32 %v1575, %v1666
      %v1880 = vmax.f32 %v1576, %v1777
      %v1881 = vmax.f32 %v1577, %v1668
      %v1882 = vmax.f32 %v1578, %v1778
      %v1883 = vmax.f32 %v1579, %v1676
      %v1884 = vmax.f32 %v1580, %v1779
      %v1885 = vmax.f32 %v1581, %v1684
      %v1886 = vmax.f32 %v1582, %v1780
      %v1887 = vmax.f32 %v1583, %v1683
      %v1888 = vmax.f32 %v1584, %v1781
      %v1889 = vmax.f32 %v1585, %v1685
      %v1890 = vmax.f32 %v1586, %v1782
      %v1891 = vmax.f32 %v1587, %v1693
      %v1892 = vmax.f32 %v1588, %v1783
      %v1893 = vmax.f32 %v1589, %v1701
      %v1894 = vmax.f32 %v1590, %v1784
      %v1895 = vmax.f32 %v1591, %v1700
      %v1896 = vmax.f32 %v1592, %v1785
      %v1897 = vmax.f32 %v1593, %v1702
      %v1898 = vmax.f32 %v1594, %v1786
      %v1899 = vmax.f32 %v1595, %v1710
      %v1900 = vmax.f32 %v1596, %v1787
      %v1901 = vmax.f32 %v1597, %v1718
      %v1902 = vmax.f32 %v1598, %v1788
      %v1903 = vmax.f32 %v1599, %v1717
      %v1904 = vmax.f32 %v1600, %v1789
      %v1905 = vmax.f32 %v1601, %v1719
      %v1906 = vmax.f32 %v1602, %v1790
      %v1907 = vmax.f32 %v1603, %v1727
      %v1908 = vmax.f32 %v1604, %v1791
      %v1909 = vmax.f32 %v1605, %v1735
      %v1910 = vmax.f32 %v1606, %v1792
      %v1911 = vmax.f32 %v1607, %v1734
      %v1912 = vmax.f32 %v1608, %v1793
      %v1913 = vmax.f32 %v1609, %v1736
      %v1914 = vmax.f32 %v1610, %v1794
      %v1915 = vmax.f32 %v1611, %v1744
      %v1916 = vmax.f32 %v1612, %v1795
      %v1917 = vmax.f32 %v1613, %v1752
      %v1918 = vmax.f32 %v1614, %v1796
      %v1919 = vmax.f32 %v1615, %v1751
      %v1920 = vmax.f32 %v1616, %v1797
      %v1921 = vmax.f32 %v1617, %v1753
      %v1922 = vmax.f32 %v1618, %v1798
      %v1923 = vmax.f32 %v1619, %v1761
      %v1924 = vmax.f32 %v1620, %v1799
      %v1925 = vmax.f32 %v1621, %v1769
      %v1926 = vmax.f32 %v1622, %v1800
      %v1927 = vmax.f32 %v1623, %v1768
      %v1928 = vmax.f32 %v1624, %v1801
      %v1929 = vmax.f32 %v1625, %v1770
      %v1930 = vmax.f32 %v1626, %v1802
      %v1995 = vlaneseq
      %v1996 = vshrl.u32 %v1995, 7
      %v1997 = vsub.s32 0, %v1996
      %v1998 = vrot.slane %v1867, %v1997
      %v1999 = vlaneseq
      %v2000 = vshrl.u32 %v1999, 7
      %v2001 = vsub.s32 0, %v2000
      %v2002 = vrot.slane %v1868, %v2001
      %v2003 = vlaneseq
      %v2004 = vshrl.u32 %v2003, 7
      %v2005 = vsub.s32 0, %v2004
      %v2006 = vrot.slane %v1869, %v2005
      %v2007 = vlaneseq
      %v2008 = vshrl.u32 %v2007, 7
      %v2009 = vsub.s32 0, %v2008
      %v2010 = vrot.slane %v1870, %v2009
      %v2011 = vlaneseq
      %v2012 = vshrl.u32 %v2011, 7
      %v2013 = vsub.s32 0, %v2012
      %v2014 = vrot.slane %v1871, %v2013
      %v2015 = vlaneseq
      %v2016 = vshrl.u32 %v2015, 7
      %v2017 = vsub.s32 0, %v2016
      %v2018 = vrot.slane %v1872, %v2017
      %v2019 = vlaneseq
      %v2020 = vshrl.u32 %v2019, 7
      %v2021 = vsub.s32 0, %v2020
      %v2022 = vrot.slane %v1873, %v2021
      %v2023 = vlaneseq
      %v2024 = vshrl.u32 %v2023, 7
      %v2025 = vsub.s32 0, %v2024
      %v2026 = vrot.slane %v1874, %v2025
      %v2027 = vlaneseq
      %v2028 = vshrl.u32 %v2027, 7
      %v2029 = vsub.s32 0, %v2028
      %v2030 = vrot.slane %v1875, %v2029
      %v2031 = vlaneseq
      %v2032 = vshrl.u32 %v2031, 7
      %v2033 = vsub.s32 0, %v2032
      %v2034 = vrot.slane %v1876, %v2033
      %v2035 = vlaneseq
      %v2036 = vshrl.u32 %v2035, 7
      %v2037 = vsub.s32 0, %v2036
      %v2038 = vrot.slane %v1877, %v2037
      %v2039 = vlaneseq
      %v2040 = vshrl.u32 %v2039, 7
      %v2041 = vsub.s32 0, %v2040
      %v2042 = vrot.slane %v1878, %v2041
      %v2043 = vlaneseq
      %v2044 = vshrl.u32 %v2043, 7
      %v2045 = vsub.s32 0, %v2044
      %v2046 = vrot.slane %v1879, %v2045
      %v2047 = vlaneseq
      %v2048 = vshrl.u32 %v2047, 7
      %v2049 = vsub.s32 0, %v2048
      %v2050 = vrot.slane %v1880, %v2049
      %v2051 = vlaneseq
      %v2052 = vshrl.u32 %v2051, 7
      %v2053 = vsub.s32 0, %v2052
      %v2054 = vrot.slane %v1881, %v2053
      %v2055 = vlaneseq
      %v2056 = vshrl.u32 %v2055, 7
      %v2057 = vsub.s32 0, %v2056
      %v2058 = vrot.slane %v1882, %v2057
      %v2059 = vlaneseq
      %v2060 = vshrl.u32 %v2059, 7
      %v2061 = vsub.s32 0, %v2060
      %v2062 = vrot.slane %v1883, %v2061
      %v2063 = vlaneseq
      %v2064 = vshrl.u32 %v2063, 7
      %v2065 = vsub.s32 0, %v2064
      %v2066 = vrot.slane %v1884, %v2065
      %v2067 = vlaneseq
      %v2068 = vshrl.u32 %v2067, 7
      %v2069 = vsub.s32 0, %v2068
      %v2070 = vrot.slane %v1885, %v2069
      %v2071 = vlaneseq
      %v2072 = vshrl.u32 %v2071, 7
      %v2073 = vsub.s32 0, %v2072
      %v2074 = vrot.slane %v1886, %v2073
      %v2075 = vlaneseq
      %v2076 = vshrl.u32 %v2075, 7
      %v2077 = vsub.s32 0, %v2076
      %v2078 = vrot.slane %v1887, %v2077
      %v2079 = vlaneseq
      %v2080 = vshrl.u32 %v2079, 7
      %v2081 = vsub.s32 0, %v2080
      %v2082 = vrot.slane %v1888, %v2081
      %v2083 = vlaneseq
      %v2084 = vshrl.u32 %v2083, 7
      %v2085 = vsub.s32 0, %v2084
      %v2086 = vrot.slane %v1889, %v2085
      %v2087 = vlaneseq
      %v2088 = vshrl.u32 %v2087, 7
      %v2089 = vsub.s32 0, %v2088
      %v2090 = vrot.slane %v1890, %v2089
      %v2091 = vlaneseq
      %v2092 = vshrl.u32 %v2091, 7
      %v2093 = vsub.s32 0, %v2092
      %v2094 = vrot.slane %v1891, %v2093
      %v2095 = vlaneseq
      %v2096 = vshrl.u32 %v2095, 7
      %v2097 = vsub.s32 0, %v2096
      %v2098 = vrot.slane %v1892, %v2097
      %v2099 = vlaneseq
      %v2100 = vshrl.u32 %v2099, 7
      %v2101 = vsub.s32 0, %v2100
      %v2102 = vrot.slane %v1893, %v2101
      %v2103 = vlaneseq
      %v2104 = vshrl.u32 %v2103, 7
      %v2105 = vsub.s32 0, %v2104
      %v2106 = vrot.slane %v1894, %v2105
      %v2107 = vlaneseq
      %v2108 = vshrl.u32 %v2107, 7
      %v2109 = vsub.s32 0, %v2108
      %v2110 = vrot.slane %v1895, %v2109
      %v2111 = vlaneseq
      %v2112 = vshrl.u32 %v2111, 7
      %v2113 = vsub.s32 0, %v2112
      %v2114 = vrot.slane %v1896, %v2113
      %v2115 = vlaneseq
      %v2116 = vshrl.u32 %v2115, 7
      %v2117 = vsub.s32 0, %v2116
      %v2118 = vrot.slane %v1897, %v2117
      %v2119 = vlaneseq
      %v2120 = vshrl.u32 %v2119, 7
      %v2121 = vsub.s32 0, %v2120
      %v2122 = vrot.slane %v1898, %v2121
      %v2123 = vlaneseq
      %v2124 = vshrl.u32 %v2123, 7
      %v2125 = vsub.s32 0, %v2124
      %v2126 = vrot.slane %v1899, %v2125
      %v2127 = vlaneseq
      %v2128 = vshrl.u32 %v2127, 7
      %v2129 = vsub.s32 0, %v2128
      %v2130 = vrot.slane %v1900, %v2129
      %v2131 = vlaneseq
      %v2132 = vshrl.u32 %v2131, 7
      %v2133 = vsub.s32 0, %v2132
      %v2134 = vrot.slane %v1901, %v2133
      %v2135 = vlaneseq
      %v2136 = vshrl.u32 %v2135, 7
      %v2137 = vsub.s32 0, %v2136
      %v2138 = vrot.slane %v1902, %v2137
      %v2139 = vlaneseq
      %v2140 = vshrl.u32 %v2139, 7
      %v2141 = vsub.s32 0, %v2140
      %v2142 = vrot.slane %v1903, %v2141
      %v2143 = vlaneseq
      %v2144 = vshrl.u32 %v2143, 7
      %v2145 = vsub.s32 0, %v2144
      %v2146 = vrot.slane %v1904, %v2145
      %v2147 = vlaneseq
      %v2148 = vshrl.u32 %v2147, 7
      %v2149 = vsub.s32 0, %v2148
      %v2150 = vrot.slane %v1905, %v2149
      %v2151 = vlaneseq
      %v2152 = vshrl.u32 %v2151, 7
      %v2153 = vsub.s32 0, %v2152
      %v2154 = vrot.slane %v1906, %v2153
      %v2155 = vlaneseq
      %v2156 = vshrl.u32 %v2155, 7
      %v2157 = vsub.s32 0, %v2156
      %v2158 = vrot.slane %v1907, %v2157
      %v2159 = vlaneseq
      %v2160 = vshrl.u32 %v2159, 7
      %v2161 = vsub.s32 0, %v2160
      %v2162 = vrot.slane %v1908, %v2161
      %v2163 = vlaneseq
      %v2164 = vshrl.u32 %v2163, 7
      %v2165 = vsub.s32 0, %v2164
      %v2166 = vrot.slane %v1909, %v2165
      %v2167 = vlaneseq
      %v2168 = vshrl.u32 %v2167, 7
      %v2169 = vsub.s32 0, %v2168
      %v2170 = vrot.slane %v1910, %v2169
      %v2171 = vlaneseq
      %v2172 = vshrl.u32 %v2171, 7
      %v2173 = vsub.s32 0, %v2172
      %v2174 = vrot.slane %v1911, %v2173
      %v2175 = vlaneseq
      %v2176 = vshrl.u32 %v2175, 7
      %v2177 = vsub.s32 0, %v2176
      %v2178 = vrot.slane %v1912, %v2177
      %v2179 = vlaneseq
      %v2180 = vshrl.u32 %v2179, 7
      %v2181 = vsub.s32 0, %v2180
      %v2182 = vrot.slane %v1913, %v2181
      %v2183 = vlaneseq
      %v2184 = vshrl.u32 %v2183, 7
      %v2185 = vsub.s32 0, %v2184
      %v2186 = vrot.slane %v1914, %v2185
      %v2187 = vlaneseq
      %v2188 = vshrl.u32 %v2187, 7
      %v2189 = vsub.s32 0, %v2188
      %v2190 = vrot.slane %v1915, %v2189
      %v2191 = vlaneseq
      %v2192 = vshrl.u32 %v2191, 7
      %v2193 = vsub.s32 0, %v2192
      %v2194 = vrot.slane %v1916, %v2193
      %v2195 = vlaneseq
      %v2196 = vshrl.u32 %v2195, 7
      %v2197 = vsub.s32 0, %v2196
      %v2198 = vrot.slane %v1917, %v2197
      %v2199 = vlaneseq
      %v2200 = vshrl.u32 %v2199, 7
      %v2201 = vsub.s32 0, %v2200
      %v2202 = vrot.slane %v1918, %v2201
      %v2203 = vlaneseq
      %v2204 = vshrl.u32 %v2203, 7
      %v2205 = vsub.s32 0, %v2204
      %v2206 = vrot.slane %v1919, %v2205
      %v2207 = vlaneseq
      %v2208 = vshrl.u32 %v2207, 7
      %v2209 = vsub.s32 0, %v2208
      %v2210 = vrot.slane %v1920, %v2209
      %v2211 = vlaneseq
      %v2212 = vshrl.u32 %v2211, 7
      %v2213 = vsub.s32 0, %v2212
      %v2214 = vrot.slane %v1921, %v2213
      %v2215 = vlaneseq
      %v2216 = vshrl.u32 %v2215, 7
      %v2217 = vsub.s32 0, %v2216
      %v2218 = vrot.slane %v1922, %v2217
      %v2219 = vlaneseq
      %v2220 = vshrl.u32 %v2219, 7
      %v2221 = vsub.s32 0, %v2220
      %v2222 = vrot.slane %v1923, %v2221
      %v2223 = vlaneseq
      %v2224 = vshrl.u32 %v2223, 7
      %v2225 = vsub.s32 0, %v2224
      %v2226 = vrot.slane %v1924, %v2225
      %v2227 = vlaneseq
      %v2228 = vshrl.u32 %v2227, 7
      %v2229 = vsub.s32 0, %v2228
      %v2230 = vrot.slane %v1925, %v2229
      %v2231 = vlaneseq
      %v2232 = vshrl.u32 %v2231, 7
      %v2233 = vsub.s32 0, %v2232
      %v2234 = vrot.slane %v1926, %v2233
      %v2235 = vlaneseq
      %v2236 = vshrl.u32 %v2235, 7
      %v2237 = vsub.s32 0, %v2236
      %v2238 = vrot.slane %v1927, %v2237
      %v2239 = vlaneseq
      %v2240 = vshrl.u32 %v2239, 7
      %v2241 = vsub.s32 0, %v2240
      %v2242 = vrot.slane %v1928, %v2241
      %v2243 = vlaneseq
      %v2244 = vshrl.u32 %v2243, 7
      %v2245 = vsub.s32 0, %v2244
      %v2246 = vrot.slane %v1929, %v2245
      %v2247 = vlaneseq
      %v2248 = vshrl.u32 %v2247, 7
      %v2249 = vsub.s32 0, %v2248
      %v2250 = vrot.slane %v1930, %v2249
      %v2251 = vsel %vm1300, %v2002, %v1998
      %v2252 = vsel %vm1302, %v2006, %v2251
      %v2253 = vsel %vm1304, %v2010, %v2252
      %v2254 = vsel %vm1306, %v2014, %v2253
      %v2255 = vsel %vm1308, %v2018, %v2254
      %v2256 = vsel %vm1310, %v2022, %v2255
      %v2257 = vsel %vm1300, %v2034, %v2030
      %v2258 = vsel %vm1302, %v2038, %v2257
      %v2259 = vsel %vm1304, %v2042, %v2258
      %v2260 = vsel %vm1306, %v2046, %v2259
      %v2261 = vsel %vm1308, %v2050, %v2260
      %v2262 = vsel %vm1310, %v2054, %v2261
      %v2263 = vsel %vm1300, %v2066, %v2062
      %v2264 = vsel %vm1302, %v2070, %v2263
      %v2265 = vsel %vm1304, %v2074, %v2264
      %v2266 = vsel %vm1306, %v2078, %v2265
      %v2267 = vsel %vm1308, %v2082, %v2266
      %v2268 = vsel %vm1310, %v2086, %v2267
      %v2269 = vsel %vm1300, %v2098, %v2094
      %v2270 = vsel %vm1302, %v2102, %v2269
      %v2271 = vsel %vm1304, %v2106, %v2270
      %v2272 = vsel %vm1306, %v2110, %v2271
      %v2273 = vsel %vm1308, %v2114, %v2272
      %v2274 = vsel %vm1310, %v2118, %v2273
      %v2275 = vsel %vm1300, %v2130, %v2126
      %v2276 = vsel %vm1302, %v2134, %v2275
      %v2277 = vsel %vm1304, %v2138, %v2276
      %v2278 = vsel %vm1306, %v2142, %v2277
      %v2279 = vsel %vm1308, %v2146, %v2278
      %v2280 = vsel %vm1310, %v2150, %v2279
      %v2281 = vsel %vm1300, %v2162, %v2158
      %v2282 = vsel %vm1302, %v2166, %v2281
      %v2283 = vsel %vm1304, %v2170, %v2282
      %v2284 = vsel %vm1306, %v2174, %v2283
      %v2285 = vsel %vm1308, %v2178, %v2284
      %v2286 = vsel %vm1310, %v2182, %v2285
      %v2287 = vsel %vm1300, %v2194, %v2190
      %v2288 = vsel %vm1302, %v2198, %v2287
      %v2289 = vsel %vm1304, %v2202, %v2288
      %v2290 = vsel %vm1306, %v2206, %v2289
      %v2291 = vsel %vm1308, %v2210, %v2290
      %v2292 = vsel %vm1310, %v2214, %v2291
      %v2293 = vsel %vm1300, %v2226, %v2222
      %v2294 = vsel %vm1302, %v2230, %v2293
      %v2295 = vsel %vm1304, %v2234, %v2294
      %v2296 = vsel %vm1306, %v2238, %v2295
      %v2297 = vsel %vm1308, %v2242, %v2296
      %v2298 = vsel %vm1310, %v2246, %v2297
      %v2315 = vsel %vm1362, 0.0, %v2256
      %v2316 = vsel %vm1362, 0.0, %v2262
      %v2317 = vsel %vm1362, 0.0, %v2268
      %v2318 = vsel %vm1362, 0.0, %v2274
      %v2319 = vsel %vm1362, 0.0, %v2280
      %v2320 = vsel %vm1362, 0.0, %v2286
      %v2321 = vsel %vm1362, 0.0, %v2292
      %v2322 = vsel %vm1362, 0.0, %v2298
      %v2323 = vsel %vm1362, %v2026, 0.0
      %v2324 = vsel %vm1362, %v2058, 0.0
      %v2325 = vsel %vm1362, %v2090, 0.0
      %v2326 = vsel %vm1362, %v2122, 0.0
      %v2327 = vsel %vm1362, %v2154, 0.0
      %v2328 = vsel %vm1362, %v2186, 0.0
      %v2329 = vsel %vm1362, %v2218, 0.0
      %v2330 = vsel %vm1362, %v2250, 0.0
      %2331 = vst [vmem:[%s170] sm:$0xf] 0
      %2332 = vst [vmem:[%s170 + $0x4] sm:$0xf] 0
      %2333 = vst [vmem:[%s170 + $0x8] sm:$0xf] 0
      %2334 = vst [vmem:[%s170 + $0xc] sm:$0xf] 0
      %2335 = vst [vmem:[%s170 + $0x10] sm:$0xf] 0
      %2336 = vst [vmem:[%s170 + $0x14] sm:$0xf] 0
      %2337 = vst [vmem:[%s170 + $0x18] sm:$0xf] 0
      %2338 = vst [vmem:[%s170 + $0x1c] sm:$0xf] 0
      %2339 = vst [vmem:[%s170 + $0x20] sm:$0xf] 0
      %2340 = vst [vmem:[%s170 + $0x24] sm:$0xf] 0
      %2341 = vst [vmem:[%s170 + $0x28] sm:$0xf] 0
      %2342 = vst [vmem:[%s170 + $0x2c] sm:$0xf] 0
      %2343 = vst [vmem:[%s170 + $0x30] sm:$0xf] 0
      %2344 = vst [vmem:[%s170 + $0x34] sm:$0xf] 0
      %v2362 = vcombine.high 0.0, 0.0
      %v2364 = vunpack.c.l.s4 1983009808
      %v2365 = vunpack.c.0.s8 %v2364
      %v2366 = vlaneseq
      %v2367 = vshrl.u32 %v2366, 7
      %v2368 = vsub.s32 %v2365, %v2367
      %v2369 = vrot.slane 0.0, %v2368
      %v2371 = vunpack.c.l.s4 1983009808
      %v2372 = vunpack.c.0.s8 %v2371
      %v2373 = vlaneseq
      %v2374 = vshrl.u32 %v2373, 7
      %v2375 = vsub.s32 %v2372, %v2374
      %v2376 = vrot.slane %v2362, %v2375
      %v2377 = vcombine.high %v2369, %v2369
      %v2378 = vcombine.high %v2376, %v2376
      %v2379 = vcombine.high %v2315, %v2315
      %v2381 = vunpack.c.l.s4 1983009808
      %v2382 = vunpack.c.0.s8 %v2381
      %v2383 = vlaneseq
      %v2384 = vshrl.u32 %v2383, 7
      %v2385 = vsub.s32 %v2382, %v2384
      %v2386 = vrot.slane %v2315, %v2385
      %v2388 = vunpack.c.l.s4 1983009808
      %v2389 = vunpack.c.0.s8 %v2388
      %v2390 = vlaneseq
      %v2391 = vshrl.u32 %v2390, 7
      %v2392 = vsub.s32 %v2389, %v2391
      %v2393 = vrot.slane %v2379, %v2392
      %v2394 = vcombine.high %v2386, %v2386
      %v2395 = vcombine.high %v2393, %v2393
      %v2397 = vunpack.c.l.s4 1983009808
      %v2398 = vunpack.c.0.s8 %v2397
      %v2399 = vlaneseq
      %v2400 = vshrl.u32 %v2399, 7
      %v2401 = vsub.s32 %v2398, %v2400
      %v2402 = vrot.slane %v2323, %v2401
      %v2403 = vcombine.high %v2316, %v2316
      %v2405 = vunpack.c.l.s4 1983009808
      %v2406 = vunpack.c.0.s8 %v2405
      %v2407 = vlaneseq
      %v2408 = vshrl.u32 %v2407, 7
      %v2409 = vsub.s32 %v2406, %v2408
      %v2410 = vrot.slane %v2316, %v2409
      %v2412 = vunpack.c.l.s4 1983009808
      %v2413 = vunpack.c.0.s8 %v2412
      %v2414 = vlaneseq
      %v2415 = vshrl.u32 %v2414, 7
      %v2416 = vsub.s32 %v2413, %v2415
      %v2417 = vrot.slane %v2403, %v2416
      %v2418 = vcombine.high %v2410, %v2410
      %v2419 = vcombine.high %v2417, %v2417
      %v2421 = vunpack.c.l.s4 1983009808
      %v2422 = vunpack.c.0.s8 %v2421
      %v2423 = vlaneseq
      %v2424 = vshrl.u32 %v2423, 7
      %v2425 = vsub.s32 %v2422, %v2424
      %v2426 = vrot.slane %v2324, %v2425
      %v2427 = vcombine.high %v2317, %v2317
      %v2429 = vunpack.c.l.s4 1983009808
      %v2430 = vunpack.c.0.s8 %v2429
      %v2431 = vlaneseq
      %v2432 = vshrl.u32 %v2431, 7
      %v2433 = vsub.s32 %v2430, %v2432
      %v2434 = vrot.slane %v2317, %v2433
      %v2436 = vunpack.c.l.s4 1983009808
      %v2437 = vunpack.c.0.s8 %v2436
      %v2438 = vlaneseq
      %v2439 = vshrl.u32 %v2438, 7
      %v2440 = vsub.s32 %v2437, %v2439
      %v2441 = vrot.slane %v2427, %v2440
      %v2442 = vcombine.high %v2434, %v2434
      %v2443 = vcombine.high %v2441, %v2441
      %v2445 = vunpack.c.l.s4 1983009808
      %v2446 = vunpack.c.0.s8 %v2445
      %v2447 = vlaneseq
      %v2448 = vshrl.u32 %v2447, 7
      %v2449 = vsub.s32 %v2446, %v2448
      %v2450 = vrot.slane %v2325, %v2449
      %v2451 = vcombine.high %v2318, %v2318
      %v2453 = vunpack.c.l.s4 1983009808
      %v2454 = vunpack.c.0.s8 %v2453
      %v2455 = vlaneseq
      %v2456 = vshrl.u32 %v2455, 7
      %v2457 = vsub.s32 %v2454, %v2456
      %v2458 = vrot.slane %v2318, %v2457
      %v2460 = vunpack.c.l.s4 1983009808
      %v2461 = vunpack.c.0.s8 %v2460
      %v2462 = vlaneseq
      %v2463 = vshrl.u32 %v2462, 7
      %v2464 = vsub.s32 %v2461, %v2463
      %v2465 = vrot.slane %v2451, %v2464
      %v2466 = vcombine.high %v2458, %v2458
      %v2467 = vcombine.high %v2465, %v2465
      %v2469 = vunpack.c.l.s4 1983009808
      %v2470 = vunpack.c.0.s8 %v2469
      %v2471 = vlaneseq
      %v2472 = vshrl.u32 %v2471, 7
      %v2473 = vsub.s32 %v2470, %v2472
      %v2474 = vrot.slane %v2326, %v2473
      %v2475 = vcombine.high %v2319, %v2319
      %v2477 = vunpack.c.l.s4 1983009808
      %v2478 = vunpack.c.0.s8 %v2477
      %v2479 = vlaneseq
      %v2480 = vshrl.u32 %v2479, 7
      %v2481 = vsub.s32 %v2478, %v2480
      %v2482 = vrot.slane %v2319, %v2481
      %v2484 = vunpack.c.l.s4 1983009808
      %v2485 = vunpack.c.0.s8 %v2484
      %v2486 = vlaneseq
      %v2487 = vshrl.u32 %v2486, 7
      %v2488 = vsub.s32 %v2485, %v2487
      %v2489 = vrot.slane %v2475, %v2488
      %v2490 = vcombine.high %v2482, %v2482
      %v2491 = vcombine.high %v2489, %v2489
      %v2493 = vunpack.c.l.s4 1983009808
      %v2494 = vunpack.c.0.s8 %v2493
      %v2495 = vlaneseq
      %v2496 = vshrl.u32 %v2495, 7
      %v2497 = vsub.s32 %v2494, %v2496
      %v2498 = vrot.slane %v2327, %v2497
      %v2499 = vcombine.high %v2320, %v2320
      %v2501 = vunpack.c.l.s4 1983009808
      %v2502 = vunpack.c.0.s8 %v2501
      %v2503 = vlaneseq
      %v2504 = vshrl.u32 %v2503, 7
      %v2505 = vsub.s32 %v2502, %v2504
      %v2506 = vrot.slane %v2320, %v2505
      %v2508 = vunpack.c.l.s4 1983009808
      %v2509 = vunpack.c.0.s8 %v2508
      %v2510 = vlaneseq
      %v2511 = vshrl.u32 %v2510, 7
      %v2512 = vsub.s32 %v2509, %v2511
      %v2513 = vrot.slane %v2499, %v2512
      %v2514 = vcombine.high %v2506, %v2506
      %v2515 = vcombine.high %v2513, %v2513
      %v2517 = vunpack.c.l.s4 1983009808
      %v2518 = vunpack.c.0.s8 %v2517
      %v2519 = vlaneseq
      %v2520 = vshrl.u32 %v2519, 7
      %v2521 = vsub.s32 %v2518, %v2520
      %v2522 = vrot.slane %v2328, %v2521
      %v2523 = vcombine.high %v2321, %v2321
      %v2525 = vunpack.c.l.s4 1983009808
      %v2526 = vunpack.c.0.s8 %v2525
      %v2527 = vlaneseq
      %v2528 = vshrl.u32 %v2527, 7
      %v2529 = vsub.s32 %v2526, %v2528
      %v2530 = vrot.slane %v2321, %v2529
      %v2532 = vunpack.c.l.s4 1983009808
      %v2533 = vunpack.c.0.s8 %v2532
      %v2534 = vlaneseq
      %v2535 = vshrl.u32 %v2534, 7
      %v2536 = vsub.s32 %v2533, %v2535
      %v2537 = vrot.slane %v2523, %v2536
      %v2538 = vcombine.high %v2530, %v2530
      %v2539 = vcombine.high %v2537, %v2537
      %v2541 = vunpack.c.l.s4 1983009808
      %v2542 = vunpack.c.0.s8 %v2541
      %v2543 = vlaneseq
      %v2544 = vshrl.u32 %v2543, 7
      %v2545 = vsub.s32 %v2542, %v2544
      %v2546 = vrot.slane %v2329, %v2545
      %v2547 = vcombine.high %v2322, %v2322
      %v2549 = vunpack.c.l.s4 1983009808
      %v2550 = vunpack.c.0.s8 %v2549
      %v2551 = vlaneseq
      %v2552 = vshrl.u32 %v2551, 7
      %v2553 = vsub.s32 %v2550, %v2552
      %v2554 = vrot.slane %v2322, %v2553
      %v2556 = vunpack.c.l.s4 1983009808
      %v2557 = vunpack.c.0.s8 %v2556
      %v2558 = vlaneseq
      %v2559 = vshrl.u32 %v2558, 7
      %v2560 = vsub.s32 %v2557, %v2559
      %v2561 = vrot.slane %v2547, %v2560
      %v2562 = vcombine.high %v2554, %v2554
      %v2563 = vcombine.high %v2561, %v2561
      %v2565 = vunpack.c.l.s4 1983009808
      %v2566 = vunpack.c.0.s8 %v2565
      %v2567 = vlaneseq
      %v2568 = vshrl.u32 %v2567, 7
      %v2569 = vsub.s32 %v2566, %v2568
      %v2570 = vrot.slane %v2330, %v2569
      %v2571 = vcombine.low %v2369, %v2377
      %v2572 = vcombine.low %v2376, %v2378
      %v2574 = vunpack.c.l.s4 1983009808
      %v2575 = vunpack.c.0.s8 %v2574
      %v2576 = vlaneseq
      %v2577 = vshrl.u32 %v2576, 7
      %v2578 = vsub.s32 %v2575, %v2577
      %v2579 = vrot.slane %v2571, %v2578
      %v2581 = vunpack.c.l.s4 1983009808
      %v2582 = vunpack.c.0.s8 %v2581
      %v2583 = vlaneseq
      %v2584 = vshrl.u32 %v2583, 7
      %v2585 = vsub.s32 %v2582, %v2584
      %v2586 = vrot.slane %v2572, %v2585
      %v2587 = vcombine.low %v2579, %v2586
      %v2588 = vcombine.low %v2369, %v2386
      %v2589 = vcombine.low %v2394, %v2393
      %v2591 = vunpack.c.l.s4 1983009808
      %v2592 = vunpack.c.0.s8 %v2591
      %v2593 = vlaneseq
      %v2594 = vshrl.u32 %v2593, 7
      %v2595 = vsub.s32 %v2592, %v2594
      %v2596 = vrot.slane %v2588, %v2595
      %v2598 = vunpack.c.l.s4 1983009808
      %v2599 = vunpack.c.0.s8 %v2598
      %v2600 = vlaneseq
      %v2601 = vshrl.u32 %v2600, 7
      %v2602 = vsub.s32 %v2599, %v2601
      %v2603 = vrot.slane %v2589, %v2602
      %v2604 = vcombine.low %v2596, %v2603
      %v2605 = vcombine.low %v2395, %v2402
      %v2606 = vcombine.low %v2410, %v2418
      %v2608 = vunpack.c.l.s4 1983009808
      %v2609 = vunpack.c.0.s8 %v2608
      %v2610 = vlaneseq
      %v2611 = vshrl.u32 %v2610, 7
      %v2612 = vsub.s32 %v2609, %v2611
      %v2613 = vrot.slane %v2605, %v2612
      %v2615 = vunpack.c.l.s4 1983009808
      %v2616 = vunpack.c.0.s8 %v2615
      %v2617 = vlaneseq
      %v2618 = vshrl.u32 %v2617, 7
      %v2619 = vsub.s32 %v2616, %v2618
      %v2620 = vrot.slane %v2606, %v2619
      %v2621 = vcombine.low %v2613, %v2620
      %v2622 = vcombine.low %v2417, %v2419
      %v2623 = vcombine.low %v2426, %v2434
      %v2625 = vunpack.c.l.s4 1983009808
      %v2626 = vunpack.c.0.s8 %v2625
      %v2627 = vlaneseq
      %v2628 = vshrl.u32 %v2627, 7
      %v2629 = vsub.s32 %v2626, %v2628
      %v2630 = vrot.slane %v2622, %v2629
      %v2632 = vunpack.c.l.s4 1983009808
      %v2633 = vunpack.c.0.s8 %v2632
      %v2634 = vlaneseq
      %v2635 = vshrl.u32 %v2634, 7
      %v2636 = vsub.s32 %v2633, %v2635
      %v2637 = vrot.slane %v2623, %v2636
      %v2638 = vcombine.low %v2630, %v2637
      %v2639 = vcombine.low %v2442, %v2441
      %v2640 = vcombine.low %v2443, %v2450
      %v2642 = vunpack.c.l.s4 1983009808
      %v2643 = vunpack.c.0.s8 %v2642
      %v2644 = vlaneseq
      %v2645 = vshrl.u32 %v2644, 7
      %v2646 = vsub.s32 %v2643, %v2645
      %v2647 = vrot.slane %v2639, %v2646
      %v2649 = vunpack.c.l.s4 1983009808
      %v2650 = vunpack.c.0.s8 %v2649
      %v2651 = vlaneseq
      %v2652 = vshrl.u32 %v2651, 7
      %v2653 = vsub.s32 %v2650, %v2652
      %v2654 = vrot.slane %v2640, %v2653
      %v2655 = vcombine.low %v2647, %v2654
      %v2656 = vcombine.low %v2458, %v2466
      %v2657 = vcombine.low %v2465, %v2467
      %v2659 = vunpack.c.l.s4 1983009808
      %v2660 = vunpack.c.0.s8 %v2659
      %v2661 = vlaneseq
      %v2662 = vshrl.u32 %v2661, 7
      %v2663 = vsub.s32 %v2660, %v2662
      %v2664 = vrot.slane %v2656, %v2663
      %v2666 = vunpack.c.l.s4 1983009808
      %v2667 = vunpack.c.0.s8 %v2666
      %v2668 = vlaneseq
      %v2669 = vshrl.u32 %v2668, 7
      %v2670 = vsub.s32 %v2667, %v2669
      %v2671 = vrot.slane %v2657, %v2670
      %v2672 = vcombine.low %v2664, %v2671
      %v2673 = vcombine.low %v2474, %v2482
      %v2674 = vcombine.low %v2490, %v2489
      %v2676 = vunpack.c.l.s4 1983009808
      %v2677 = vunpack.c.0.s8 %v2676
      %v2678 = vlaneseq
      %v2679 = vshrl.u32 %v2678, 7
      %v2680 = vsub.s32 %v2677, %v2679
      %v2681 = vrot.slane %v2673, %v2680
      %v2683 = vunpack.c.l.s4 1983009808
      %v2684 = vunpack.c.0.s8 %v2683
      %v2685 = vlaneseq
      %v2686 = vshrl.u32 %v2685, 7
      %v2687 = vsub.s32 %v2684, %v2686
      %v2688 = vrot.slane %v2674, %v2687
      %v2689 = vcombine.low %v2681, %v2688
      %v2690 = vcombine.low %v2491, %v2498
      %v2691 = vcombine.low %v2506, %v2514
      %v2693 = vunpack.c.l.s4 1983009808
      %v2694 = vunpack.c.0.s8 %v2693
      %v2695 = vlaneseq
      %v2696 = vshrl.u32 %v2695, 7
      %v2697 = vsub.s32 %v2694, %v2696
      %v2698 = vrot.slane %v2690, %v2697
      %v2700 = vunpack.c.l.s4 1983009808
      %v2701 = vunpack.c.0.s8 %v2700
      %v2702 = vlaneseq
      %v2703 = vshrl.u32 %v2702, 7
      %v2704 = vsub.s32 %v2701, %v2703
      %v2705 = vrot.slane %v2691, %v2704
      %v2706 = vcombine.low %v2698, %v2705
      %v2707 = vcombine.low %v2513, %v2515
      %v2708 = vcombine.low %v2522, %v2530
      %v2710 = vunpack.c.l.s4 1983009808
      %v2711 = vunpack.c.0.s8 %v2710
      %v2712 = vlaneseq
      %v2713 = vshrl.u32 %v2712, 7
      %v2714 = vsub.s32 %v2711, %v2713
      %v2715 = vrot.slane %v2707, %v2714
      %v2717 = vunpack.c.l.s4 1983009808
      %v2718 = vunpack.c.0.s8 %v2717
      %v2719 = vlaneseq
      %v2720 = vshrl.u32 %v2719, 7
      %v2721 = vsub.s32 %v2718, %v2720
      %v2722 = vrot.slane %v2708, %v2721
      %v2723 = vcombine.low %v2715, %v2722
      %v2724 = vcombine.low %v2538, %v2537
      %v2725 = vcombine.low %v2539, %v2546
      %v2727 = vunpack.c.l.s4 1983009808
      %v2728 = vunpack.c.0.s8 %v2727
      %v2729 = vlaneseq
      %v2730 = vshrl.u32 %v2729, 7
      %v2731 = vsub.s32 %v2728, %v2730
      %v2732 = vrot.slane %v2724, %v2731
      %v2734 = vunpack.c.l.s4 1983009808
      %v2735 = vunpack.c.0.s8 %v2734
      %v2736 = vlaneseq
      %v2737 = vshrl.u32 %v2736, 7
      %v2738 = vsub.s32 %v2735, %v2737
      %v2739 = vrot.slane %v2725, %v2738
      %v2740 = vcombine.low %v2732, %v2739
      %v2741 = vcombine.low %v2554, %v2562
      %v2742 = vcombine.low %v2561, %v2563
      %v2744 = vunpack.c.l.s4 1983009808
      %v2745 = vunpack.c.0.s8 %v2744
      %v2746 = vlaneseq
      %v2747 = vshrl.u32 %v2746, 7
      %v2748 = vsub.s32 %v2745, %v2747
      %v2749 = vrot.slane %v2741, %v2748
      %v2751 = vunpack.c.l.s4 1983009808
      %v2752 = vunpack.c.0.s8 %v2751
      %v2753 = vlaneseq
      %v2754 = vshrl.u32 %v2753, 7
      %v2755 = vsub.s32 %v2752, %v2754
      %v2756 = vrot.slane %v2742, %v2755
      %v2757 = vcombine.low %v2749, %v2756
      %v2758 = vcombine.low %v2570, %v2369
      %v2759 = vcombine.low %v2377, %v2376
      %v2761 = vunpack.c.l.s4 1983009808
      %v2762 = vunpack.c.0.s8 %v2761
      %v2763 = vlaneseq
      %v2764 = vshrl.u32 %v2763, 7
      %v2765 = vsub.s32 %v2762, %v2764
      %v2766 = vrot.slane %v2758, %v2765
      %v2768 = vunpack.c.l.s4 1983009808
      %v2769 = vunpack.c.0.s8 %v2768
      %v2770 = vlaneseq
      %v2771 = vshrl.u32 %v2770, 7
      %v2772 = vsub.s32 %v2769, %v2771
      %v2773 = vrot.slane %v2759, %v2772
      %v2774 = vcombine.low %v2766, %v2773
      %v2775 = vcombine.low %v2378, %v2369
      %v2777 = vunpack.c.l.s4 1983009808
      %v2778 = vunpack.c.0.s8 %v2777
      %v2779 = vlaneseq
      %v2780 = vshrl.u32 %v2779, 7
      %v2781 = vsub.s32 %v2778, %v2780
      %v2782 = vrot.slane %v2775, %v2781
      %v2783 = vcombine.low %v2782, %v2579
      %v2785 = vunpack.c.l.s4 1983009808
      %v2786 = vunpack.c.0.s8 %v2785
      %v2787 = vlaneseq
      %v2788 = vshrl.u32 %v2787, 7
      %v2789 = vsub.s32 %v2786, %v2788
      %v2790 = vrot.slane %v2369, %v2789
      %v2791 = vcombine.low %v2586, %v2790
      %v2806 = vpack.c.bf16 %v2604, %v2587
      %v2807 = vpack.c.bf16 %v2638, %v2621
      %v2808 = vpack.c.bf16 %v2672, %v2655
      %v2809 = vpack.c.bf16 %v2706, %v2689
      %v2810 = vpack.c.bf16 %v2740, %v2723
      %v2811 = vpack.c.bf16 %v2774, %v2757
      %v2812 = vpack.c.bf16 %v2791, %v2783
      %v2820 = vunpack.c.l.b16 %v2806
      %v2821 = vunpack.c.h.b16 %v2806
      %v2822 = vunpack.c.l.b16 %v2807
      %v2823 = vunpack.c.h.b16 %v2807
      %v2824 = vunpack.c.l.b16 %v2808
      %v2825 = vunpack.c.h.b16 %v2808
      %v2826 = vunpack.c.l.b16 %v2809
      %v2827 = vunpack.c.h.b16 %v2809
      %v2828 = vunpack.c.l.b16 %v2810
      %v2829 = vunpack.c.h.b16 %v2810
      %v2830 = vunpack.c.l.b16 %v2811
      %v2831 = vunpack.c.h.b16 %v2811
      %v2832 = vunpack.c.l.b16 %v2812
      %v2833 = vunpack.c.h.b16 %v2812
      %v2834 = vpack.c.b16 %v2820, %v2820
      %v2835 = vpack.c.b16 %v2821, %v2821
      %v2836 = vpack.c.b16 %v2822, %v2822
      %v2837 = vpack.c.b16 %v2823, %v2823
      %v2838 = vpack.c.b16 %v2824, %v2824
      %v2839 = vpack.c.b16 %v2825, %v2825
      %v2840 = vpack.c.b16 %v2826, %v2826
      %v2841 = vpack.c.b16 %v2827, %v2827
      %v2842 = vpack.c.b16 %v2828, %v2828
      %v2843 = vpack.c.b16 %v2829, %v2829
      %v2844 = vpack.c.b16 %v2830, %v2830
      %v2845 = vpack.c.b16 %v2831, %v2831
      %v2846 = vpack.c.b16 %v2832, %v2832
      %v2847 = vpack.c.b16 %v2833, %v2833
      %2862 = vst [vmem:[%s170] sm:$0xf] %v2834
      %2863 = vst [vmem:[%s170 + $0x4] sm:$0xf] %v2835
      %2864 = vst [vmem:[%s170 + $0x8] sm:$0xf] %v2836
      %2865 = vst [vmem:[%s170 + $0xc] sm:$0xf] %v2837
      %2866 = vst [vmem:[%s170 + $0x10] sm:$0xf] %v2838
      %2867 = vst [vmem:[%s170 + $0x14] sm:$0xf] %v2839
      %2868 = vst [vmem:[%s170 + $0x18] sm:$0xf] %v2840
      %2869 = vst [vmem:[%s170 + $0x1c] sm:$0xf] %v2841
      %2870 = vst [vmem:[%s170 + $0x20] sm:$0xf] %v2842
      %2871 = vst [vmem:[%s170 + $0x24] sm:$0xf] %v2843
      %2872 = vst [vmem:[%s170 + $0x28] sm:$0xf] %v2844
      %2873 = vst [vmem:[%s170 + $0x2c] sm:$0xf] %v2845
      %2874 = vst [vmem:[%s170 + $0x30] sm:$0xf] %v2846
      %2875 = vst [vmem:[%s170 + $0x34] sm:$0x7] %v2847
      %p2876 = scmp.lt.s32.totalorder %s14, 1
      %s2877 = scalar_select %p2876, %s14, 1
      %s2878 = smul.addr %s2877, 14
      %s2879 = smul.addr %s2878, 4
      %s2880 = scalar_lea.vmem %s3, %s2879
      // Predicated region
      $region33: #{resnet_matching_encoder_forward.4} parent=31 // pred_check
        %p2881 = pneg %p100
      $region34: #{resnet_matching_encoder_forward.4} parent=31 // pred_check_branch
        %2883 = sbr.rel (%p2881) target = $region36
      $region35: #{resnet_matching_encoder_forward.4} parent=31 // pred_region
        _
      $region36: #{resnet_matching_encoder_forward.4} parent=31 // pred_fallthru
        _
    $region32: #{resnet_matching_encoder_forward.4} parent=5 // pred_fallthru
      _
    %p2884 = scmp.le.s32.totalorder 2, %s9
    // Predicated region
    $region37: #{resnet_matching_encoder_forward.4} parent=5 // pred_check
      %p2885 = pneg %p2884
    $region38: #{resnet_matching_encoder_forward.4} parent=5 // pred_check_branch
      %2887 = sbr.rel (%p2885) target = $region40
    $region39: #{resnet_matching_encoder_forward.4} parent=5 // pred_region
      %s2888 = ssub.s32 %s9, 2
      // Predicated region
      $region41: #{resnet_matching_encoder_forward.4} parent=39 // pred_check
        %p2889 = pneg %p106
      $region42: #{resnet_matching_encoder_forward.4} parent=39 // pred_check_branch
        %2891 = sbr.rel (%p2889) target = $region44
      $region43: #{resnet_matching_encoder_forward.4} parent=39 // pred_region
        %p2892 = scmp.lt.s32.totalorder %s15, 1
        %s2893 = scalar_select %p2892, %s15, 1
        %s2894 = smul.addr %s2893, 14
        %s2895 = smul.addr %s2894, 4
        %s2896 = scalar_lea.vmem %s3, %s2895
      $region44: #{resnet_matching_encoder_forward.4} parent=39 // pred_fallthru
        _
    $region40: #{resnet_matching_encoder_forward.4} parent=5 // pred_fallthru
      _
  $region6: #{resnet_matching_encoder_forward.4} parent=0 // loop_footer
    %s13 = sadd.s32 1, %s9
  $region7: #{resnet_matching_encoder_forward.4} parent=0 // loop_footer_branch
    %8 = sbr.rel target = $region3
  $region8: #{resnet_matching_encoder_forward.4} parent=0 // loop_exit
    _

// kernel: resnet_matching_encoder_forward.7
$region0: #{resnet_matching_encoder_forward.7}
  #allocation0 [shape = 'u32[]', space=smem, size = 0x4, offset = 0x4, fixed_abs, tag = 'smem constant byte address 0x4 - core index']
  #allocation1 [shape = 'u32[144,128]{1,0:T(1,128)}', space=vmem, size = 0x12000, scoped, tag = 'internal scratch']
  #allocation2 [shape = 'bf16[112,128]{1,0:T(16,128)(2,1)}', space=vmem, size = 0x7000, scoped, tag = 'scratch operand']
  %s0 = inlined_call_operand.vmem [shape: bf16[2,112,128], index: 0, kind: input, shape index: {}]
  %s1 = inlined_call_operand.vmem [shape: bf16[128,128], index: 1, kind: input, shape index: {}]
  %s2 = inlined_call_operand.vmem [shape: bf16[9,128,128], index: 2, kind: input, shape index: {}]
  %s3 = inlined_call_operand.vmem [shape: f32[80,1], index: 3, kind: input, shape index: {}]
  %s4 = inlined_call_operand.vmem [shape: f32[2,80,128], index: 4, kind: output, shape index: {}]
  %s5 = sld [smem:[#allocation0]]
  $region49: #{resnet_matching_encoder_forward.7} parent=0
    _
  %s7 = ssub.s32 1, %s5
  %s8 = scalar_select 0, %s7, %s5
  loop: start=0, step=1, limit=4
  $region2: #{resnet_matching_encoder_forward.7} parent=0 // loop_pre_header
    _
  $region3: #{resnet_matching_encoder_forward.7} parent=0 // loop_header
    %s10 = sphi 0, %s14
    %p11 = scmp.ge.s32.totalorder %s10, 4
    %s20 = sphi 0, %s22
    %s23 = sphi 0, %s20
    %s24 = sphi 0, %s23
    %s40 = sphi 0, %s24
    %s44 = sphi 0, %s44
    %s46 = sphi 0, %s44
    %s47 = sphi 0, %s46
    %s61 = sphi 0, %s47
    %s65 = sphi 0, %s65
    %s67 = sphi 0, %s65
    %s68 = sphi 0, %s67
    %s82 = sphi 0, %s68
    %s86 = sphi 0, %s86
    %s88 = sphi 0, %s86
    %s89 = sphi 0, %s88
    %s103 = sphi 0, %s89
    %s109 = sphi 0, %s111
    %s112 = sphi 0, %s109
    %s113 = sphi 0, %s112
    %s129 = sphi 0, %s113
  $region4: #{resnet_matching_encoder_forward.7} parent=0 // loop_header_branch
    %13 = sbr.rel (%p11) target = $region8
  $region5: #{resnet_matching_encoder_forward.7} parent=0 // loop_body
    %s15 = ssub.s32 %s10, 1
    %s16 = ssub.s32 %s10, 2
    %s17 = sadd.s32 %s10, 1
    %s18 = ssub.s32 %s10, %s17
    %p19 = scmp.eq.s32.totalorder %s18, 0
    %s21 = sadd.s32 %s20, 1
    %s22 = scalar_select %p19, %s20, %s21
    %p25 = pneg %p19
    %p26 = scmp.eq.s32.totalorder %s10, 1
    %p27 = por %p25, %p26
    %p28 = scmp.ne.s32.totalorder %s20, %s23
    %p29 = scmp.eq.s32.totalorder %s10, 0
    %p30 = por %p28, %p29
    %p31 = scmp.ne.s32.totalorder %s20, %s23
    %p32 = scmp.eq.s32.totalorder %s15, 1
    %p33 = por %p31, %p32
    %p34 = scmp.ne.s32.totalorder %s23, %s24
    %p35 = scmp.eq.s32.totalorder %s15, 0
    %p36 = por %p34, %p35
    %p37 = scmp.ne.s32.totalorder %s23, %s24
    %p38 = scmp.eq.s32.totalorder %s16, 1
    %p39 = por %p37, %p38
    %p41 = scmp.ne.s32.totalorder %s24, %s40
    %p42 = scmp.eq.s32.totalorder %s16, 0
    %p43 = por %p41, %p42
    %s45 = sadd.s32 %s44, 1
    %p48 = scmp.eq.s32.totalorder %s10, 1
    %p49 = scmp.ne.s32.totalorder %s44, %s46
    %p50 = scmp.eq.s32.totalorder %s10, 0
    %p51 = por %p49, %p50
    %p52 = scmp.ne.s32.totalorder %s44, %s46
    %p53 = scmp.eq.s32.totalorder %s15, 1
    %p54 = por %p52, %p53
    %p55 = scmp.ne.s32.totalorder %s46, %s47
    %p56 = scmp.eq.s32.totalorder %s15, 0
    %p57 = por %p55, %p56
    %p58 = scmp.ne.s32.totalorder %s46, %s47
    %p59 = scmp.eq.s32.totalorder %s16, 1
    %p60 = por %p58, %p59
    %p62 = scmp.ne.s32.totalorder %s47, %s61
    %p63 = scmp.eq.s32.totalorder %s16, 0
    %p64 = por %p62, %p63
    %s66 = sadd.s32 %s65, 1
    %p69 = scmp.eq.s32.totalorder %s10, 1
    %p70 = scmp.ne.s32.totalorder %s65, %s67
    %p71 = scmp.eq.s32.totalorder %s10, 0
    %p72 = por %p70, %p71
    %p73 = scmp.ne.s32.totalorder %s65, %s67
    %p74 = scmp.eq.s32.totalorder %s15, 1
    %p75 = por %p73, %p74
    %p76 = scmp.ne.s32.totalorder %s67, %s68
    %p77 = scmp.eq.s32.totalorder %s15, 0
    %p78 = por %p76, %p77
    %p79 = scmp.ne.s32.totalorder %s67, %s68
    %p80 = scmp.eq.s32.totalorder %s16, 1
    %p81 = por %p79, %p80
    %p83 = scmp.ne.s32.totalorder %s68, %s82
    %p84 = scmp.eq.s32.totalorder %s16, 0
    %p85 = por %p83, %p84
    %s87 = sadd.s32 %s86, 1
    %p90 = scmp.eq.s32.totalorder %s10, 1
    %p91 = scmp.ne.s32.totalorder %s86, %s88
    %p92 = scmp.eq.s32.totalorder %s10, 0
    %p93 = por %p91, %p92
    %p94 = scmp.ne.s32.totalorder %s86, %s88
    %p95 = scmp.eq.s32.totalorder %s15, 1
    %p96 = por %p94, %p95
    %p97 = scmp.ne.s32.totalorder %s88, %s89
    %p98 = scmp.eq.s32.totalorder %s15, 0
    %p99 = por %p97, %p98
    %p100 = scmp.ne.s32.totalorder %s88, %s89
    %p101 = scmp.eq.s32.totalorder %s16, 1
    %p102 = por %p100, %p101
    %p104 = scmp.ne.s32.totalorder %s89, %s103
    %p105 = scmp.eq.s32.totalorder %s16, 0
    %p106 = por %p104, %p105
    %s107 = ssub.s32 %s10, %s17
    %p108 = scmp.eq.s32.totalorder %s107, 0
    %s110 = sadd.s32 %s109, 1
    %s111 = scalar_select %p108, %s109, %s110
    %p114 = pneg %p108
    %p115 = scmp.eq.s32.totalorder %s10, 1
    %p116 = por %p114, %p115
    %p117 = scmp.ne.s32.totalorder %s109, %s112
    %p118 = scmp.eq.s32.totalorder %s10, 0
    %p119 = por %p117, %p118
    %p120 = scmp.ne.s32.totalorder %s109, %s112
    %p121 = scmp.eq.s32.totalorder %s15, 1
    %p122 = por %p120, %p121
    %p123 = scmp.ne.s32.totalorder %s112, %s113
    %p124 = scmp.eq.s32.totalorder %s15, 0
    %p125 = por %p123, %p124
    %p126 = scmp.ne.s32.totalorder %s112, %s113
    %p127 = scmp.eq.s32.totalorder %s16, 1
    %p128 = por %p126, %p127
    %p130 = scmp.ne.s32.totalorder %s113, %s129
    %p131 = scmp.eq.s32.totalorder %s16, 0
    %p132 = por %p130, %p131
    %p133 = scmp.le.s32.totalorder 1, %s10
    %p134 = scmp.lt.s32.totalorder %s10, 3
    %p135 = pnand %p133, %p134
    %p136 = pneg %p135
    // Predicated region
    $region9: #{resnet_matching_encoder_forward.7} parent=5 // pred_check
      _
    $region10: #{resnet_matching_encoder_forward.7} parent=5 // pred_check_branch
      %138 = sbr.rel (%p135) target = $region12
    $region11: #{resnet_matching_encoder_forward.7} parent=5 // pred_region
      %s139 = ssub.s32 %s10, 1
      // Predicated region
      $region13: #{resnet_matching_encoder_forward.7} parent=11 // pred_check
        %p140 = pneg %p57
      $region14: #{resnet_matching_encoder_forward.7} parent=11 // pred_check_branch
        %142 = sbr.rel (%p140) target = $region16
      $region15: #{resnet_matching_encoder_forward.7} parent=11 // pred_region
        _
      $region16: #{resnet_matching_encoder_forward.7} parent=11 // pred_fallthru
        _
      // Predicated region
      $region17: #{resnet_matching_encoder_forward.7} parent=11 // pred_check
        %p143 = pneg %p78
      $region18: #{resnet_matching_encoder_forward.7} parent=11 // pred_check_branch
        %145 = sbr.rel (%p143) target = $region20
      $region19: #{resnet_matching_encoder_forward.7} parent=11 // pred_region
        _
      $region20: #{resnet_matching_encoder_forward.7} parent=11 // pred_fallthru
        _
      // Predicated region
      $region21: #{resnet_matching_encoder_forward.7} parent=11 // pred_check
        %p146 = pneg %p99
      $region22: #{resnet_matching_encoder_forward.7} parent=11 // pred_check_branch
        %148 = sbr.rel (%p146) target = $region24
      $region23: #{resnet_matching_encoder_forward.7} parent=11 // pred_region
        _
      $region24: #{resnet_matching_encoder_forward.7} parent=11 // pred_fallthru
        _
    $region12: #{resnet_matching_encoder_forward.7} parent=5 // pred_fallthru
      _
    %p149 = scmp.lt.s32.totalorder %s10, 2
    // Predicated region
    $region25: #{resnet_matching_encoder_forward.7} parent=5 // pred_check
      %p150 = pneg %p149
    $region26: #{resnet_matching_encoder_forward.7} parent=5 // pred_check_branch
      %152 = sbr.rel (%p150) target = $region28
    $region27: #{resnet_matching_encoder_forward.7} parent=5 // pred_region
      // Predicated region
      $region29: #{resnet_matching_encoder_forward.7} parent=27 // pred_check
        %p153 = pneg %p30
      $region30: #{resnet_matching_encoder_forward.7} parent=27 // pred_check_branch
        %155 = sbr.rel (%p153) target = $region32
      $region31: #{resnet_matching_encoder_forward.7} parent=27 // pred_region
        %p156 = scmp.lt.s32.totalorder %s10, 1
        %s157 = scalar_select %p156, %s10, 1
        %s158 = smul.addr %s157, 14
        %s159 = smul.addr %s158, 4
        %s160 = scalar_lea.vmem %s0, %s159
      $region32: #{resnet_matching_encoder_forward.7} parent=27 // pred_fallthru
        _
    $region28: #{resnet_matching_encoder_forward.7} parent=5 // pred_fallthru
      _
    %p161 = scmp.le.s32.totalorder 1, %s10
    %p162 = scmp.lt.s32.totalorder %s10, 3
    %p163 = pnand %p161, %p162
    %p164 = pneg %p163
    // Predicated region
    $region33: #{resnet_matching_encoder_forward.7} parent=5 // pred_check
      _
    $region34: #{resnet_matching_encoder_forward.7} parent=5 // pred_check_branch
      %166 = sbr.rel (%p163) target = $region36
    $region35: #{resnet_matching_encoder_forward.7} parent=5 // pred_region
      %s167 = ssub.s32 %s10, 1
      %p168 = scmp.lt.s32.totalorder %s15, 1
      %s169 = scalar_select %p168, %s15, 1
      %s170 = smul.addr %s169, 14
      %s171 = smul.addr %s170, 4
      %s172 = scalar_lea.vmem %s0, %s171
      %p173 = pneg %p36
      %p174 = pneg %p33
      %p175 = pneg %p57
      %p176 = pneg %p54
      %p177 = pneg %p78
      %p178 = pneg %p75
      %p179 = pneg %p99
      %p180 = pneg %p96
      %p181 = pneg %p125
      %p182 = pneg %p122
      %p183 = scmp.lt.s32.totalorder %s15, 1
      %s184 = scalar_select %p183, %s15, 1
      %s185 = smul.addr %s184, 10
      %s186 = smul.addr %s185, 8
      %s187 = scalar_lea.vmem %s4, %s186
      %p188 = scmp.lt.s32.totalorder %s15, 1
      %s189 = scalar_select %p188, %s15, 1
      %s190 = smul.addr %s189, 14
      %s191 = smul.addr %s190, 4
      %s192 = scalar_lea.vmem %s0, %s191
      %p193 = scmp.lt.s32.totalorder %s15, 1
      %s194 = scalar_select %p193, %s15, 1
      %s195 = smul.addr %s194, 10
      %s196 = smul.addr %s195, 8
      %s197 = scalar_lea.vmem %s4, %s196
      %v199 = vld [vmem:[%s3] sm:$0xff]
      %v200 = vld [vmem:[%s3 + $0x8] sm:$0xff]
      %v201 = vld [vmem:[%s3 + $0x10] sm:$0xff]
      %v202 = vld [vmem:[%s3 + $0x18] sm:$0xff]
      %v203 = vld [vmem:[%s3 + $0x20] sm:$0xff]
      %v204 = vld [vmem:[%s3 + $0x28] sm:$0xff]
      %v205 = vld [vmem:[%s3 + $0x30] sm:$0xff]
      %v206 = vld [vmem:[%s3 + $0x38] sm:$0xff]
      %v207 = vld [vmem:[%s3 + $0x40] sm:$0xff]
      %v208 = vld [vmem:[%s3 + $0x48] sm:$0xff]
      %v209 = vld [vmem:[%s192 + $0x4] sm:$0xe]
      %v210 = vld [vmem:[%s192 + $0x8] sm:$0xf]
      %v211 = vld [vmem:[%s192 + $0xc] sm:$0xf]
      %v212 = vld [vmem:[%s192 + $0x10] sm:$0xf]
      %v213 = vld [vmem:[%s192 + $0x14] sm:$0xf]
      %v214 = vld [vmem:[%s192 + $0x18] sm:$0xf]
      %v215 = vld [vmem:[%s192 + $0x1c] sm:$0xf]
      %v216 = vld [vmem:[%s192 + $0x20] sm:$0xf]
      %v217 = vld [vmem:[%s192 + $0x24] sm:$0xf]
      %v218 = vld [vmem:[%s192 + $0x28] sm:$0xf]
      %v219 = vld [vmem:[%s192 + $0x2c] sm:$0x3]
      %v220 = vld [vmem:[%s1] sm:$0xf]
      %v221 = vld [vmem:[%s1 + $0x4] sm:$0xf]
      %v222 = vld [vmem:[%s1 + $0x8] sm:$0xf]
      %v223 = vld [vmem:[%s1 + $0xc] sm:$0xf]
      %v224 = vld [vmem:[%s1 + $0x10] sm:$0xf]
      %v225 = vld [vmem:[%s1 + $0x14] sm:$0xf]
      %v226 = vld [vmem:[%s1 + $0x18] sm:$0xf]
      %v227 = vld [vmem:[%s1 + $0x1c] sm:$0xf]
      %v228 = vld [vmem:[%s1 + $0x20] sm:$0xf]
      %v229 = vld [vmem:[%s1 + $0x24] sm:$0xf]
      %v230 = vld [vmem:[%s1 + $0x28] sm:$0xf]
      %v231 = vld [vmem:[%s1 + $0x2c] sm:$0xf]
      %v232 = vld [vmem:[%s1 + $0x30] sm:$0xf]
      %v233 = vld [vmem:[%s1 + $0x34] sm:$0xf]
      %v234 = vld [vmem:[%s1 + $0x38] sm:$0xf]
      %v235 = vld [vmem:[%s1 + $0x3c] sm:$0xf]
      %v247 = vunpack.c.l.b16 %v209
      %v248 = vunpack.c.l.b16 %v210
      %v249 = vunpack.c.l.b16 %v211
      %v250 = vunpack.c.l.b16 %v212
      %v251 = vunpack.c.l.b16 %v213
      %v252 = vunpack.c.l.b16 %v214
      %v253 = vunpack.c.l.b16 %v215
      %v254 = vunpack.c.l.b16 %v216
      %v255 = vunpack.c.l.b16 %v217
      %v256 = vunpack.c.l.b16 %v218
      %v257 = vunpack.c.l.b16 %v219
      %v258 = vpack.c.b16 %v248, %v247
      %v259 = vpack.c.b16 %v250, %v249
      %v260 = vpack.c.b16 %v252, %v251
      %v261 = vpack.c.b16 %v254, %v253
      %v262 = vpack.c.b16 %v256, %v255
      %v263 = vpack.c.b16 %v257, %v257
      %vm264 = vsmask.f32 6400
      %v266 = vshrl.u32 %v258, 16
      %v268 = vrot.slane %v266, 1
      %v269 = vshll.u32 %v258, 16
      %v271 = vrot.slane %v269, 2
      %v272 = vor.u32 %v268, %v271
      %v274 = vshrl.u32 %v259, 16
      %v276 = vrot.slane %v274, 1
      %v277 = vshll.u32 %v259, 16
      %v279 = vrot.slane %v277, 2
      %v280 = vor.u32 %v276, %v279
      %v281 = vsel %vm264, %v272, %v280
      %v283 = vshrl.u32 %v260, 16
      %v285 = vrot.slane %v283, 1
      %v286 = vshll.u32 %v260, 16
      %v288 = vrot.slane %v286, 2
      %v289 = vor.u32 %v285, %v288
      %v290 = vsel %vm264, %v280, %v289
      %v292 = vshrl.u32 %v261, 16
      %v294 = vrot.slane %v292, 1
      %v295 = vshll.u32 %v261, 16
      %v297 = vrot.slane %v295, 2
      %v298 = vor.u32 %v294, %v297
      %v299 = vsel %vm264, %v289, %v298
      %v301 = vshrl.u32 %v262, 16
      %v303 = vrot.slane %v301, 1
      %v304 = vshll.u32 %v262, 16
      %v306 = vrot.slane %v304, 2
      %v307 = vor.u32 %v303, %v306
      %v308 = vsel %vm264, %v298, %v307
      %v310 = vshrl.u32 %v263, 16
      %v312 = vrot.slane %v310, 1
      %v313 = vshll.u32 %v263, 16
      %v315 = vrot.slane %v313, 2
      %v316 = vor.u32 %v312, %v315
      %v317 = vsel %vm264, %v307, %v316
      %v339 = vunpack.c.l.b16 %v220
      %v340 = vunpack.c.l.b16 %v221
      %v341 = vunpack.c.l.b16 %v222
      %v342 = vunpack.c.l.b16 %v223
      %v343 = vunpack.c.l.b16 %v224
      %v344 = vunpack.c.l.b16 %v225
      %v345 = vunpack.c.l.b16 %v226
      %v346 = vunpack.c.l.b16 %v227
      %v347 = vunpack.c.l.b16 %v228
      %v348 = vunpack.c.l.b16 %v229
      %v349 = vunpack.c.l.b16 %v230
      %v350 = vunpack.c.l.b16 %v231
      %v351 = vunpack.c.l.b16 %v232
      %v352 = vunpack.c.l.b16 %v233
      %v353 = vunpack.c.l.b16 %v234
      %v354 = vunpack.c.l.b16 %v235
      %v355 = vpack.c.b16 %v340, %v339
      %v356 = vpack.c.b16 %v342, %v341
      %v357 = vpack.c.b16 %v344, %v343
      %v358 = vpack.c.b16 %v346, %v345
      %v359 = vpack.c.b16 %v348, %v347
      %v360 = vpack.c.b16 %v350, %v349
      %v361 = vpack.c.b16 %v352, %v351
      %v362 = vpack.c.b16 %v354, %v353
      %371 = vmatprep.subr.bf16.mxu0 0
      %372 = vmatpush1.bf16.msra.mxu0 %v355
      %373 = vmatprep.subr.bf16.mxu0 0
      %374 = vmatpush1.bf16.msra.mxu0 %v356
      %375 = vmatprep.subr.bf16.mxu0 0
      %376 = vmatpush1.bf16.msra.mxu0 %v357
      %377 = vmatprep.subr.bf16.mxu0 0
      %378 = vmatpush1.bf16.msra.mxu0 %v358
      %379 = vmatprep.subr.bf16.mxu0 0
      %380 = vmatpush1.bf16.msra.mxu0 %v359
      %381 = vmatprep.subr.bf16.mxu0 0
      %382 = vmatpush1.bf16.msra.mxu0 %v360
      %383 = vmatprep.subr.bf16.mxu0 0
      %384 = vmatpush1.bf16.msra.mxu0 %v361
      %385 = vmatprep.subr.bf16.mxu0 0
      %386 = vmatpush1.bf16.msra.mxu0 %v362
      %387 = vmatprep.subr.bf16.mxu0 0
      %388 = vmatpush1.bf16.msra.mxu0 0
      %389 = vmatprep.subr.bf16.mxu0 0
      %390 = vmatpush1.bf16.msra.mxu0 0
      %391 = vmatprep.subr.bf16.mxu0 0
      %392 = vmatpush1.bf16.msra.mxu0 0
      %393 = vmatprep.subr.bf16.mxu0 0
      %394 = vmatpush1.bf16.msra.mxu0 0
      %395 = vmatprep.subr.bf16.mxu0 0
      %396 = vmatpush1.bf16.msra.mxu0 0
      %397 = vmatprep.subr.bf16.mxu0 0
      %398 = vmatpush1.bf16.msra.mxu0 0
      %399 = vmatprep.subr.bf16.mxu0 0
      %400 = vmatpush1.bf16.msra.mxu0 0
      %401 = vmatprep.subr.bf16.mxu0 0
      %402 = vmatpush1.bf16.msra.mxu0 0
      %403 = vmatprep.mubr.bf16.mxu0 0
      %404 = vmatmul.mubr.bf16.gmra.mrb[0].mxu0 %v281
      %v405 = vpop.f32.mrb[0].mxu0
      %v406 = vadd.f32 0.0, %v405
      %v407 = vpop.f32.mrb[0].mxu0
      %v408 = vpop.f32.mrb[0].mxu0
      %v409 = vadd.f32 0.0, %v408
      %v410 = vpop.f32.mrb[0].mxu0
      %411 = vmatprep.mubr.bf16.mxu0 0
      %412 = vmatmul.mubr.bf16.gmra.mrb[0].mxu0 %v290
      %v413 = vpop.f32.mrb[0].mxu0
      %v414 = vadd.f32 0.0, %v413
      %v415 = vpop.f32.mrb[0].mxu0
      %v416 = vpop.f32.mrb[0].mxu0
      %v417 = vadd.f32 0.0, %v416
      %v418 = vpop.f32.mrb[0].mxu0
      %419 = vmatprep.mubr.bf16.mxu0 0
      %420 = vmatmul.mubr.bf16.gmra.mrb[0].mxu0 %v299
      %v421 = vpop.f32.mrb[0].mxu0
      %v422 = vadd.f32 0.0, %v421
      %v423 = vpop.f32.mrb[0].mxu0
      %v424 = vpop.f32.mrb[0].mxu0
      %v425 = vadd.f32 0.0, %v424
      %v426 = vpop.f32.mrb[0].mxu0
      %427 = vmatprep.mubr.bf16.mxu0 0
      %428 = vmatmul.mubr.bf16.gmra.mrb[0].mxu0 %v308
      %v429 = vpop.f32.mrb[0].mxu0
      %v430 = vadd.f32 0.0, %v429
      %v431 = vpop.f32.mrb[0].mxu0
      %v432 = vpop.f32.mrb[0].mxu0
      %v433 = vadd.f32 0.0, %v432
      %v434 = vpop.f32.mrb[0].mxu0
      %435 = vmatprep.mubr.bf16.mxu0 0
      %436 = vmatmul.mubr.bf16.gmra.mrb[0].mxu0 %v317
      %v437 = vpop.f32.mrb[0].mxu0
      %v438 = vadd.f32 0.0, %v437
      %v439 = vpop.f32.mrb[0].mxu0
      %v440 = vpop.f32.mrb[0].mxu0
      %v441 = vadd.f32 0.0, %v440
      %v442 = vpop.f32.mrb[0].mxu0
      %443 = vdwg.mxu0
      %445 = vset.pattern.permute.xlu0 0
      %446 = vperm.xlu0 %445, %v199
      %v447 = vpop.permute.xlu0 %446
      %450 = vset.pattern.permute.xlu0 0
      %451 = vperm.xlu0 %450, %v200
      %v452 = vpop.permute.xlu0 %451
      %455 = vset.pattern.permute.xlu0 0
      %456 = vperm.xlu0 %455, %v201
      %v457 = vpop.permute.xlu0 %456
      %460 = vset.pattern.permute.xlu0 0
      %461 = vperm.xlu0 %460, %v202
      %v462 = vpop.permute.xlu0 %461
      %465 = vset.pattern.permute.xlu0 0
      %466 = vperm.xlu0 %465, %v203
      %v467 = vpop.permute.xlu0 %466
      %470 = vset.pattern.permute.xlu0 0
      %471 = vperm.xlu0 %470, %v204
      %v472 = vpop.permute.xlu0 %471
      %475 = vset.pattern.permute.xlu0 0
      %476 = vperm.xlu0 %475, %v205
      %v477 = vpop.permute.xlu0 %476
      %480 = vset.pattern.permute.xlu0 0
      %481 = vperm.xlu0 %480, %v206
      %v482 = vpop.permute.xlu0 %481
      %485 = vset.pattern.permute.xlu0 0
      %486 = vperm.xlu0 %485, %v207
      %v487 = vpop.permute.xlu0 %486
      %490 = vset.pattern.permute.xlu0 0
      %491 = vperm.xlu0 %490, %v208
      %v492 = vpop.permute.xlu0 %491
      %v494 = vmul.f32 %v406, %v447
      %v495 = vmul.f32 %v409, %v452
      %v496 = vmul.f32 %v414, %v457
      %v497 = vmul.f32 %v417, %v462
      %v498 = vmul.f32 %v422, %v467
      %v499 = vmul.f32 %v425, %v472
      %v500 = vmul.f32 %v430, %v477
      %v501 = vmul.f32 %v433, %v482
      %v502 = vmul.f32 %v438, %v487
      %v503 = vmul.f32 %v441, %v492
      %v504 = vadd.f32 %v494, %v495
      %v505 = vadd.f32 %v504, %v496
      %v506 = vadd.f32 %v505, %v497
      %v507 = vadd.f32 %v506, %v498
      %v508 = vadd.f32 %v507, %v499
      %v509 = vadd.f32 %v508, %v500
      %v510 = vadd.f32 %v509, %v501
      %v511 = vadd.f32 %v510, %v502
      %v512 = vadd.f32 %v511, %v503
      %v513 = vrot.slane %v512, 4
      %v514 = vadd.f32 %v512, %v513
      %v515 = vrot.slane %v514, 2
      %v516 = vadd.f32 %v514, %v515
      %v517 = vrot.slane %v516, 1
      %v518 = vadd.f32 %v516, %v517
      %v519 = vrcp.pop 64.0
      %v520 = vmul.f32 %v518, %v519
      %v521 = vsub.f32 %v406, %v520
      %v522 = vsub.f32 %v409, %v520
      %v523 = vsub.f32 %v414, %v520
      %v524 = vsub.f32 %v417, %v520
      %v525 = vsub.f32 %v422, %v520
      %v526 = vsub.f32 %v425, %v520
      %v527 = vsub.f32 %v430, %v520
      %v528 = vsub.f32 %v433, %v520
      %v529 = vsub.f32 %v438, %v520
      %v530 = vsub.f32 %v441, %v520
      %v531 = vmul.f32 %v521, %v447
      %v532 = vmul.f32 %v522, %v452
      %v533 = vmul.f32 %v523, %v457
      %v534 = vmul.f32 %v524, %v462
      %v535 = vmul.f32 %v525, %v467
      %v536 = vmul.f32 %v526, %v472
      %v537 = vmul.f32 %v527, %v477
      %v538 = vmul.f32 %v528, %v482
      %v539 = vmul.f32 %v529, %v487
      %v540 = vmul.f32 %v530, %v492
      %v541 = vmul.f32 %v531, %v531
      %v542 = vmul.f32 %v532, %v532
      %v543 = vmul.f32 %v533, %v533
      %v544 = vmul.f32 %v534, %v534
      %v545 = vmul.f32 %v535, %v535
      %v546 = vmul.f32 %v536, %v536
      %v547 = vmul.f32 %v537, %v537
      %v548 = vmul.f32 %v538, %v538
      %v549 = vmul.f32 %v539, %v539
      %v550 = vmul.f32 %v540, %v540
      %v551 = vadd.f32 %v541, %v542
      %v552 = vadd.f32 %v551, %v543
      %v553 = vadd.f32 %v552, %v544
      %v554 = vadd.f32 %v553, %v545
      %v555 = vadd.f32 %v554, %v546
      %v556 = vadd.f32 %v555, %v547
      %v557 = vadd.f32 %v556, %v548
      %v558 = vadd.f32 %v557, %v549
      %v559 = vadd.f32 %v558, %v550
      %v560 = vrot.slane %v559, 4
      %v561 = vadd.f32 %v559, %v560
      %v562 = vrot.slane %v561, 2
      %v563 = vadd.f32 %v561, %v562
      %v564 = vrot.slane %v563, 1
      %v565 = vadd.f32 %v563, %v564
      %v566 = vmul.f32 %v565, %v519
      %v567 = vadd.f32 %v566, 1e-05
      %v568 = vrsqrt.pop %v567
      %v569 = vmul.f32 %v531, %v568
      %v570 = vmul.f32 %v532, %v568
      %v571 = vmul.f32 %v533, %v568
      %v572 = vmul.f32 %v534, %v568
      %v573 = vmul.f32 %v535, %v568
      %v574 = vmul.f32 %v536, %v568
      %v575 = vmul.f32 %v537, %v568
      %v576 = vmul.f32 %v538, %v568
      %v577 = vmul.f32 %v539, %v568
      %v578 = vmul.f32 %v540, %v568
      %vm579 = vcmp.ge.f32.partialorder %v569, 0.0
      %vm580 = vcmp.ge.f32.partialorder %v570, 0.0
      %vm581 = vcmp.ge.f32.partialorder %v571, 0.0
      %vm582 = vcmp.ge.f32.partialorder %v572, 0.0
      %vm583 = vcmp.ge.f32.partialorder %v573, 0.0
      %vm584 = vcmp.ge.f32.partialorder %v574, 0.0
      %vm585 = vcmp.ge.f32.partialorder %v575, 0.0
      %vm586 = vcmp.ge.f32.partialorder %v576, 0.0
      %vm587 = vcmp.ge.f32.partialorder %v577, 0.0
      %vm588 = vcmp.ge.f32.partialorder %v578, 0.0
      %v589 = vmul.f32 %v569, 0.2
      %v590 = vmul.f32 %v570, 0.2
      %v591 = vmul.f32 %v571, 0.2
      %v592 = vmul.f32 %v572, 0.2
      %v593 = vmul.f32 %v573, 0.2
      %v594 = vmul.f32 %v574, 0.2
      %v595 = vmul.f32 %v575, 0.2
      %v596 = vmul.f32 %v576, 0.2
      %v597 = vmul.f32 %v577, 0.2
      %v598 = vmul.f32 %v578, 0.2
      %v599 = vsel %vm579, %v569, %v589
      %v600 = vsel %vm580, %v570, %v590
      %v601 = vsel %vm581, %v571, %v591
      %v602 = vsel %vm582, %v572, %v592
      %v603 = vsel %vm583, %v573, %v593
      %v604 = vsel %vm584, %v574, %v594
      %v605 = vsel %vm585, %v575, %v595
      %v606 = vsel %vm586, %v576, %v596
      %v607 = vsel %vm587, %v577, %v597
      %v608 = vsel %vm588, %v578, %v598
      %v619 = vcombine.high %v599, %v599
      %v621 = vunpack.c.l.s4 1983009808
      %v622 = vunpack.c.0.s8 %v621
      %v623 = vlaneseq
      %v624 = vshrl.u32 %v623, 7
      %v625 = vsub.s32 %v622, %v624
      %v626 = vrot.slane %v599, %v625
      %v628 = vunpack.c.l.s4 1983009808
      %v629 = vunpack.c.0.s8 %v628
      %v630 = vlaneseq
      %v631 = vshrl.u32 %v630, 7
      %v632 = vsub.s32 %v629, %v631
      %v633 = vrot.slane %v619, %v632
      %v634 = vcombine.high %v626, %v626
      %v635 = vcombine.high %v633, %v633
      %v636 = vcombine.high %v600, %v600
      %v638 = vunpack.c.l.s4 1983009808
      %v639 = vunpack.c.0.s8 %v638
      %v640 = vlaneseq
      %v641 = vshrl.u32 %v640, 7
      %v642 = vsub.s32 %v639, %v641
      %v643 = vrot.slane %v600, %v642
      %v645 = vunpack.c.l.s4 1983009808
      %v646 = vunpack.c.0.s8 %v645
      %v647 = vlaneseq
      %v648 = vshrl.u32 %v647, 7
      %v649 = vsub.s32 %v646, %v648
      %v650 = vrot.slane %v636, %v649
      %v651 = vcombine.high %v643, %v643
      %v652 = vcombine.high %v650, %v650
      %v653 = vcombine.high %v601, %v601
      %v655 = vunpack.c.l.s4 1983009808
      %v656 = vunpack.c.0.s8 %v655
      %v657 = vlaneseq
      %v658 = vshrl.u32 %v657, 7
      %v659 = vsub.s32 %v656, %v658
      %v660 = vrot.slane %v601, %v659
      %v662 = vunpack.c.l.s4 1983009808
      %v663 = vunpack.c.0.s8 %v662
      %v664 = vlaneseq
      %v665 = vshrl.u32 %v664, 7
      %v666 = vsub.s32 %v663, %v665
      %v667 = vrot.slane %v653, %v666
      %v668 = vcombine.high %v667, %v667
      %v669 = vcombine.high %v602, %v602
      %v671 = vunpack.c.l.s4 1983009808
      %v672 = vunpack.c.0.s8 %v671
      %v673 = vlaneseq
      %v674 = vshrl.u32 %v673, 7
      %v675 = vsub.s32 %v672, %v674
      %v676 = vrot.slane %v602, %v675
      %v678 = vunpack.c.l.s4 1983009808
      %v679 = vunpack.c.0.s8 %v678
      %v680 = vlaneseq
      %v681 = vshrl.u32 %v680, 7
      %v682 = vsub.s32 %v679, %v681
      %v683 = vrot.slane %v669, %v682
      %v684 = vcombine.high %v676, %v676
      %v685 = vcombine.high %v683, %v683
      %v686 = vcombine.high %v603, %v603
      %v688 = vunpack.c.l.s4 1983009808
      %v689 = vunpack.c.0.s8 %v688
      %v690 = vlaneseq
      %v691 = vshrl.u32 %v690, 7
      %v692 = vsub.s32 %v689, %v691
      %v693 = vrot.slane %v603, %v692
      %v695 = vunpack.c.l.s4 1983009808
      %v696 = vunpack.c.0.s8 %v695
      %v697 = vlaneseq
      %v698 = vshrl.u32 %v697, 7
      %v699 = vsub.s32 %v696, %v698
      %v700 = vrot.slane %v686, %v699
      %v701 = vcombine.high %v693, %v693
      %v702 = vcombine.high %v604, %v604
      %v704 = vunpack.c.l.s4 1983009808
      %v705 = vunpack.c.0.s8 %v704
      %v706 = vlaneseq
      %v707 = vshrl.u32 %v706, 7
      %v708 = vsub.s32 %v705, %v707
      %v709 = vrot.slane %v604, %v708
      %v711 = vunpack.c.l.s4 1983009808
      %v712 = vunpack.c.0.s8 %v711
      %v713 = vlaneseq
      %v714 = vshrl.u32 %v713, 7
      %v715 = vsub.s32 %v712, %v714
      %v716 = vrot.slane %v702, %v715
      %v717 = vcombine.high %v709, %v709
      %v718 = vcombine.high %v716, %v716
      %v719 = vcombine.high %v605, %v605
      %v721 = vunpack.c.l.s4 1983009808
      %v722 = vunpack.c.0.s8 %v721
      %v723 = vlaneseq
      %v724 = vshrl.u32 %v723, 7
      %v725 = vsub.s32 %v722, %v724
      %v726 = vrot.slane %v605, %v725
      %v728 = vunpack.c.l.s4 1983009808
      %v729 = vunpack.c.0.s8 %v728
      %v730 = vlaneseq
      %v731 = vshrl.u32 %v730, 7
      %v732 = vsub.s32 %v729, %v731
      %v733 = vrot.slane %v719, %v732
      %v734 = vcombine.high %v726, %v726
      %v735 = vcombine.high %v733, %v733
      %v736 = vcombine.high %v606, %v606
      %v738 = vunpack.c.l.s4 1983009808
      %v739 = vunpack.c.0.s8 %v738
      %v740 = vlaneseq
      %v741 = vshrl.u32 %v740, 7
      %v742 = vsub.s32 %v739, %v741
      %v743 = vrot.slane %v606, %v742
      %v745 = vunpack.c.l.s4 1983009808
      %v746 = vunpack.c.0.s8 %v745
      %v747 = vlaneseq
      %v748 = vshrl.u32 %v747, 7
      %v749 = vsub.s32 %v746, %v748
      %v750 = vrot.slane %v736, %v749
      %v751 = vcombine.high %v750, %v750
      %v752 = vcombine.high %v607, %v607
      %v754 = vunpack.c.l.s4 1983009808
      %v755 = vunpack.c.0.s8 %v754
      %v756 = vlaneseq
      %v757 = vshrl.u32 %v756, 7
      %v758 = vsub.s32 %v755, %v757
      %v759 = vrot.slane %v607, %v758
      %v761 = vunpack.c.l.s4 1983009808
      %v762 = vunpack.c.0.s8 %v761
      %v763 = vlaneseq
      %v764 = vshrl.u32 %v763, 7
      %v765 = vsub.s32 %v762, %v764
      %v766 = vrot.slane %v752, %v765
      %v767 = vcombine.high %v759, %v759
      %v768 = vcombine.high %v766, %v766
      %v769 = vcombine.high %v608, %v608
      %v771 = vunpack.c.l.s4 1983009808
      %v772 = vunpack.c.0.s8 %v771
      %v773 = vlaneseq
      %v774 = vshrl.u32 %v773, 7
      %v775 = vsub.s32 %v772, %v774
      %v776 = vrot.slane %v608, %v775
      %v778 = vunpack.c.l.s4 1983009808
      %v779 = vunpack.c.0.s8 %v778
      %v780 = vlaneseq
      %v781 = vshrl.u32 %v780, 7
      %v782 = vsub.s32 %v779, %v781
      %v783 = vrot.slane %v769, %v782
      %v784 = vcombine.high %v776, %v776
      %v801 = vcombine.low %v626, %v634
      %v802 = vcombine.low %v633, %v635
      %v804 = vunpack.c.l.s4 1983009808
      %v805 = vunpack.c.0.s8 %v804
      %v806 = vlaneseq
      %v807 = vshrl.u32 %v806, 7
      %v808 = vsub.s32 %v805, %v807
      %v809 = vrot.slane %v801, %v808
      %v811 = vunpack.c.l.s4 1983009808
      %v812 = vunpack.c.0.s8 %v811
      %v813 = vlaneseq
      %v814 = vshrl.u32 %v813, 7
      %v815 = vsub.s32 %v812, %v814
      %v816 = vrot.slane %v802, %v815
      %v817 = vcombine.low %v809, %v816
      %v818 = vcombine.low %v651, %v650
      %v819 = vcombine.low %v652, %v660
      %v821 = vunpack.c.l.s4 1983009808
      %v822 = vunpack.c.0.s8 %v821
      %v823 = vlaneseq
      %v824 = vshrl.u32 %v823, 7
      %v825 = vsub.s32 %v822, %v824
      %v826 = vrot.slane %v818, %v825
      %v828 = vunpack.c.l.s4 1983009808
      %v829 = vunpack.c.0.s8 %v828
      %v830 = vlaneseq
      %v831 = vshrl.u32 %v830, 7
      %v832 = vsub.s32 %v829, %v831
      %v833 = vrot.slane %v819, %v832
      %v834 = vcombine.low %v826, %v833
      %v835 = vcombine.low %v667, %v668
      %v836 = vcombine.low %v676, %v684
      %v838 = vunpack.c.l.s4 1983009808
      %v839 = vunpack.c.0.s8 %v838
      %v840 = vlaneseq
      %v841 = vshrl.u32 %v840, 7
      %v842 = vsub.s32 %v839, %v841
      %v843 = vrot.slane %v835, %v842
      %v845 = vunpack.c.l.s4 1983009808
      %v846 = vunpack.c.0.s8 %v845
      %v847 = vlaneseq
      %v848 = vshrl.u32 %v847, 7
      %v849 = vsub.s32 %v846, %v848
      %v850 = vrot.slane %v836, %v849
      %v851 = vcombine.low %v843, %v850
      %v852 = vcombine.low %v685, %v693
      %v853 = vcombine.low %v701, %v700
      %v855 = vunpack.c.l.s4 1983009808
      %v856 = vunpack.c.0.s8 %v855
      %v857 = vlaneseq
      %v858 = vshrl.u32 %v857, 7
      %v859 = vsub.s32 %v856, %v858
      %v860 = vrot.slane %v852, %v859
      %v862 = vunpack.c.l.s4 1983009808
      %v863 = vunpack.c.0.s8 %v862
      %v864 = vlaneseq
      %v865 = vshrl.u32 %v864, 7
      %v866 = vsub.s32 %v863, %v865
      %v867 = vrot.slane %v853, %v866
      %v868 = vcombine.low %v860, %v867
      %v869 = vcombine.low %v709, %v717
      %v870 = vcombine.low %v716, %v718
      %v872 = vunpack.c.l.s4 1983009808
      %v873 = vunpack.c.0.s8 %v872
      %v874 = vlaneseq
      %v875 = vshrl.u32 %v874, 7
      %v876 = vsub.s32 %v873, %v875
      %v877 = vrot.slane %v869, %v876
      %v879 = vunpack.c.l.s4 1983009808
      %v880 = vunpack.c.0.s8 %v879
      %v881 = vlaneseq
      %v882 = vshrl.u32 %v881, 7
      %v883 = vsub.s32 %v880, %v882
      %v884 = vrot.slane %v870, %v883
      %v885 = vcombine.low %v877, %v884
      %v886 = vcombine.low %v734, %v733
      %v887 = vcombine.low %v735, %v743
      %v889 = vunpack.c.l.s4 1983009808
      %v890 = vunpack.c.0.s8 %v889
      %v891 = vlaneseq
      %v892 = vshrl.u32 %v891, 7
      %v893 = vsub.s32 %v890, %v892
      %v894 = vrot.slane %v886, %v893
      %v896 = vunpack.c.l.s4 1983009808
      %v897 = vunpack.c.0.s8 %v896
      %v898 = vlaneseq
      %v899 = vshrl.u32 %v898, 7
      %v900 = vsub.s32 %v897, %v899
      %v901 = vrot.slane %v887, %v900
      %v902 = vcombine.low %v894, %v901
      %v903 = vcombine.low %v750, %v751
      %v904 = vcombine.low %v759, %v767
      %v906 = vunpack.c.l.s4 1983009808
      %v907 = vunpack.c.0.s8 %v906
      %v908 = vlaneseq
      %v909 = vshrl.u32 %v908, 7
      %v910 = vsub.s32 %v907, %v909
      %v911 = vrot.slane %v903, %v910
      %v913 = vunpack.c.l.s4 1983009808
      %v914 = vunpack.c.0.s8 %v913
      %v915 = vlaneseq
      %v916 = vshrl.u32 %v915, 7
      %v917 = vsub.s32 %v914, %v916
      %v918 = vrot.slane %v904, %v917
      %v919 = vcombine.low %v911, %v918
      %v920 = vcombine.low %v768, %v776
      %v921 = vcombine.low %v784, %v783
      %v923 = vunpack.c.l.s4 1983009808
      %v924 = vunpack.c.0.s8 %v923
      %v925 = vlaneseq
      %v926 = vshrl.u32 %v925, 7
      %v927 = vsub.s32 %v924, %v926
      %v928 = vrot.slane %v920, %v927
      %v930 = vunpack.c.l.s4 1983009808
      %v931 = vunpack.c.0.s8 %v930
      %v932 = vlaneseq
      %v933 = vshrl.u32 %v932, 7
      %v934 = vsub.s32 %v931, %v933
      %v935 = vrot.slane %v921, %v934
      %v936 = vcombine.low %v928, %v935
      %v937 = vrot.slane %v817, 7
      %v938 = vrot.slane %v834, 7
      %v939 = vrot.slane %v851, 7
      %v940 = vrot.slane %v868, 7
      %v941 = vrot.slane %v885, 7
      %v942 = vrot.slane %v902, 7
      %v943 = vrot.slane %v919, 7
      %v944 = vrot.slane %v936, 7
      %vm953 = vcmask 1040384
      %v954 = vsel %vm953, %v626, %v937
      %v955 = vsel %vm953, %v651, %v938
      %v956 = vsel %vm953, %v667, %v939
      %v957 = vsel %vm953, %v685, %v940
      %v958 = vsel %vm953, %v709, %v941
      %v959 = vsel %vm953, %v734, %v942
      %v960 = vsel %vm953, %v750, %v943
      %v961 = vsel %vm953, %v768, %v944
      %v962 = vsel %vm953, %v937, %v635
      %v963 = vsel %vm953, %v938, %v660
      %v964 = vsel %vm953, %v939, %v684
      %v965 = vsel %vm953, %v940, %v700
      %v966 = vsel %vm953, %v941, %v718
      %v967 = vsel %vm953, %v942, %v743
      %v968 = vsel %vm953, %v943, %v767
      %v969 = vsel %vm953, %v944, %v783
      %970 = vst [vmem:[#allocation2] sm:$0xff] 0
      %971 = vst [vmem:[#allocation2 + $0x8] sm:$0xff] 0
      %972 = vst [vmem:[#allocation2 + $0x10] sm:$0xff] 0
      %973 = vst [vmem:[#allocation2 + $0x18] sm:$0xff] 0
      %974 = vst [vmem:[#allocation2 + $0x20] sm:$0xff] 0
      %975 = vst [vmem:[#allocation2 + $0x28] sm:$0xff] 0
      %976 = vst [vmem:[#allocation2 + $0x30] sm:$0xff] 0
      %v993 = vcombine.high %v954, %v954
      %v995 = vunpack.c.l.s4 1983009808
      %v996 = vunpack.c.0.s8 %v995
      %v997 = vlaneseq
      %v998 = vshrl.u32 %v997, 7
      %v999 = vsub.s32 %v996, %v998
      %v1000 = vrot.slane %v954, %v999
      %v1002 = vunpack.c.l.s4 1983009808
      %v1003 = vunpack.c.0.s8 %v1002
      %v1004 = vlaneseq
      %v1005 = vshrl.u32 %v1004, 7
      %v1006 = vsub.s32 %v1003, %v1005
      %v1007 = vrot.slane %v993, %v1006
      %v1008 = vcombine.high %v1000, %v1000
      %v1009 = vcombine.high %v1007, %v1007
      %v1011 = vunpack.c.l.s4 1983009808
      %v1012 = vunpack.c.0.s8 %v1011
      %v1013 = vlaneseq
      %v1014 = vshrl.u32 %v1013, 7
      %v1015 = vsub.s32 %v1012, %v1014
      %v1016 = vrot.slane %v962, %v1015
      %v1017 = vcombine.high %v955, %v955
      %v1019 = vunpack.c.l.s4 1983009808
      %v1020 = vunpack.c.0.s8 %v1019
      %v1021 = vlaneseq
      %v1022 = vshrl.u32 %v1021, 7
      %v1023 = vsub.s32 %v1020, %v1022
      %v1024 = vrot.slane %v955, %v1023
      %v1026 = vunpack.c.l.s4 1983009808
      %v1027 = vunpack.c.0.s8 %v1026
      %v1028 = vlaneseq
      %v1029 = vshrl.u32 %v1028, 7
      %v1030 = vsub.s32 %v1027, %v1029
      %v1031 = vrot.slane %v1017, %v1030
      %v1032 = vcombine.high %v1024, %v1024
      %v1033 = vcombine.high %v1031, %v1031
      %v1035 = vunpack.c.l.s4 1983009808
      %v1036 = vunpack.c.0.s8 %v1035
      %v1037 = vlaneseq
      %v1038 = vshrl.u32 %v1037, 7
      %v1039 = vsub.s32 %v1036, %v1038
      %v1040 = vrot.slane %v963, %v1039
      %v1041 = vcombine.high %v956, %v956
      %v1043 = vunpack.c.l.s4 1983009808
      %v1044 = vunpack.c.0.s8 %v1043
      %v1045 = vlaneseq
      %v1046 = vshrl.u32 %v1045, 7
      %v1047 = vsub.s32 %v1044, %v1046
      %v1048 = vrot.slane %v956, %v1047
      %v1050 = vunpack.c.l.s4 1983009808
      %v1051 = vunpack.c.0.s8 %v1050
      %v1052 = vlaneseq
      %v1053 = vshrl.u32 %v1052, 7
      %v1054 = vsub.s32 %v1051, %v1053
      %v1055 = vrot.slane %v1041, %v1054
      %v1056 = vcombine.high %v1048, %v1048
      %v1057 = vcombine.high %v1055, %v1055
      %v1059 = vunpack.c.l.s4 1983009808
      %v1060 = vunpack.c.0.s8 %v1059
      %v1061 = vlaneseq
      %v1062 = vshrl.u32 %v1061, 7
      %v1063 = vsub.s32 %v1060, %v1062
      %v1064 = vrot.slane %v964, %v1063
      %v1065 = vcombine.high %v957, %v957
      %v1067 = vunpack.c.l.s4 1983009808
      %v1068 = vunpack.c.0.s8 %v1067
      %v1069 = vlaneseq
      %v1070 = vshrl.u32 %v1069, 7
      %v1071 = vsub.s32 %v1068, %v1070
      %v1072 = vrot.slane %v957, %v1071
      %v1074 = vunpack.c.l.s4 1983009808
      %v1075 = vunpack.c.0.s8 %v1074
      %v1076 = vlaneseq
      %v1077 = vshrl.u32 %v1076, 7
      %v1078 = vsub.s32 %v1075, %v1077
      %v1079 = vrot.slane %v1065, %v1078
      %v1080 = vcombine.high %v1072, %v1072
      %v1081 = vcombine.high %v1079, %v1079
      %v1083 = vunpack.c.l.s4 1983009808
      %v1084 = vunpack.c.0.s8 %v1083
      %v1085 = vlaneseq
      %v1086 = vshrl.u32 %v1085, 7
      %v1087 = vsub.s32 %v1084, %v1086
      %v1088 = vrot.slane %v965, %v1087
      %v1089 = vcombine.high %v958, %v958
      %v1091 = vunpack.c.l.s4 1983009808
      %v1092 = vunpack.c.0.s8 %v1091
      %v1093 = vlaneseq
      %v1094 = vshrl.u32 %v1093, 7
      %v1095 = vsub.s32 %v1092, %v1094
      %v1096 = vrot.slane %v958, %v1095
      %v1098 = vunpack.c.l.s4 1983009808
      %v1099 = vunpack.c.0.s8 %v1098
      %v1100 = vlaneseq
      %v1101 = vshrl.u32 %v1100, 7
      %v1102 = vsub.s32 %v1099, %v1101
      %v1103 = vrot.slane %v1089, %v1102
      %v1104 = vcombine.high %v1096, %v1096
      %v1105 = vcombine.high %v1103, %v1103
      %v1107 = vunpack.c.l.s4 1983009808
      %v1108 = vunpack.c.0.s8 %v1107
      %v1109 = vlaneseq
      %v1110 = vshrl.u32 %v1109, 7
      %v1111 = vsub.s32 %v1108, %v1110
      %v1112 = vrot.slane %v966, %v1111
      %v1113 = vcombine.high %v959, %v959
      %v1115 = vunpack.c.l.s4 1983009808
      %v1116 = vunpack.c.0.s8 %v1115
      %v1117 = vlaneseq
      %v1118 = vshrl.u32 %v1117, 7
      %v1119 = vsub.s32 %v1116, %v1118
      %v1120 = vrot.slane %v959, %v1119
      %v1122 = vunpack.c.l.s4 1983009808
      %v1123 = vunpack.c.0.s8 %v1122
      %v1124 = vlaneseq
      %v1125 = vshrl.u32 %v1124, 7
      %v1126 = vsub.s32 %v1123, %v1125
      %v1127 = vrot.slane %v1113, %v1126
      %v1128 = vcombine.high %v1120, %v1120
      %v1129 = vcombine.high %v1127, %v1127
      %v1131 = vunpack.c.l.s4 1983009808
      %v1132 = vunpack.c.0.s8 %v1131
      %v1133 = vlaneseq
      %v1134 = vshrl.u32 %v1133, 7
      %v1135 = vsub.s32 %v1132, %v1134
      %v1136 = vrot.slane %v967, %v1135
      %v1137 = vcombine.high %v960, %v960
      %v1139 = vunpack.c.l.s4 1983009808
      %v1140 = vunpack.c.0.s8 %v1139
      %v1141 = vlaneseq
      %v1142 = vshrl.u32 %v1141, 7
      %v1143 = vsub.s32 %v1140, %v1142
      %v1144 = vrot.slane %v960, %v1143
      %v1146 = vunpack.c.l.s4 1983009808
      %v1147 = vunpack.c.0.s8 %v1146
      %v1148 = vlaneseq
      %v1149 = vshrl.u32 %v1148, 7
      %v1150 = vsub.s32 %v1147, %v1149
      %v1151 = vrot.slane %v1137, %v1150
      %v1152 = vcombine.high %v1144, %v1144
      %v1153 = vcombine.high %v1151, %v1151
      %v1155 = vunpack.c.l.s4 1983009808
      %v1156 = vunpack.c.0.s8 %v1155
      %v1157 = vlaneseq
      %v1158 = vshrl.u32 %v1157, 7
      %v1159 = vsub.s32 %v1156, %v1158
      %v1160 = vrot.slane %v968, %v1159
      %v1161 = vcombine.high %v961, %v961
      %v1163 = vunpack.c.l.s4 1983009808
      %v1164 = vunpack.c.0.s8 %v1163
      %v1165 = vlaneseq
      %v1166 = vshrl.u32 %v1165, 7
      %v1167 = vsub.s32 %v1164, %v1166
      %v1168 = vrot.slane %v961, %v1167
      %v1170 = vunpack.c.l.s4 1983009808
      %v1171 = vunpack.c.0.s8 %v1170
      %v1172 = vlaneseq
      %v1173 = vshrl.u32 %v1172, 7
      %v1174 = vsub.s32 %v1171, %v1173
      %v1175 = vrot.slane %v1161, %v1174
      %v1176 = vcombine.high %v1168, %v1168
      %v1177 = vcombine.high %v1175, %v1175
      %v1179 = vunpack.c.l.s4 1983009808
      %v1180 = vunpack.c.0.s8 %v1179
      %v1181 = vlaneseq
      %v1182 = vshrl.u32 %v1181, 7
      %v1183 = vsub.s32 %v1180, %v1182
      %v1184 = vrot.slane %v969, %v1183
      %v1185 = vcombine.low %v1000, %v1008
      %v1186 = vcombine.low %v1007, %v1009
      %v1188 = vunpack.c.l.s4 1983009808
      %v1189 = vunpack.c.0.s8 %v1188
      %v1190 = vlaneseq
      %v1191 = vshrl.u32 %v1190, 7
      %v1192 = vsub.s32 %v1189, %v1191
      %v1193 = vrot.slane %v1185, %v1192
      %v1195 = vunpack.c.l.s4 1983009808
      %v1196 = vunpack.c.0.s8 %v1195
      %v1197 = vlaneseq
      %v1198 = vshrl.u32 %v1197, 7
      %v1199 = vsub.s32 %v1196, %v1198
      %v1200 = vrot.slane %v1186, %v1199
      %v1201 = vcombine.low %v1193, %v1200
      %v1202 = vcombine.low %v1016, %v1000
      %v1203 = vcombine.low %v1008, %v1007
      %v1205 = vunpack.c.l.s4 1983009808
      %v1206 = vunpack.c.0.s8 %v1205
      %v1207 = vlaneseq
      %v1208 = vshrl.u32 %v1207, 7
      %v1209 = vsub.s32 %v1206, %v1208
      %v1210 = vrot.slane %v1202, %v1209
      %v1212 = vunpack.c.l.s4 1983009808
      %v1213 = vunpack.c.0.s8 %v1212
      %v1214 = vlaneseq
      %v1215 = vshrl.u32 %v1214, 7
      %v1216 = vsub.s32 %v1213, %v1215
      %v1217 = vrot.slane %v1203, %v1216
      %v1218 = vcombine.low %v1210, %v1217
      %v1219 = vcombine.low %v1009, %v1016
      %v1220 = vcombine.low %v1024, %v1032
      %v1222 = vunpack.c.l.s4 1983009808
      %v1223 = vunpack.c.0.s8 %v1222
      %v1224 = vlaneseq
      %v1225 = vshrl.u32 %v1224, 7
      %v1226 = vsub.s32 %v1223, %v1225
      %v1227 = vrot.slane %v1219, %v1226
      %v1229 = vunpack.c.l.s4 1983009808
      %v1230 = vunpack.c.0.s8 %v1229
      %v1231 = vlaneseq
      %v1232 = vshrl.u32 %v1231, 7
      %v1233 = vsub.s32 %v1230, %v1232
      %v1234 = vrot.slane %v1220, %v1233
      %v1235 = vcombine.low %v1227, %v1234
      %v1236 = vcombine.low %v1031, %v1033
      %v1237 = vcombine.low %v1040, %v1048
      %v1239 = vunpack.c.l.s4 1983009808
      %v1240 = vunpack.c.0.s8 %v1239
      %v1241 = vlaneseq
      %v1242 = vshrl.u32 %v1241, 7
      %v1243 = vsub.s32 %v1240, %v1242
      %v1244 = vrot.slane %v1236, %v1243
      %v1246 = vunpack.c.l.s4 1983009808
      %v1247 = vunpack.c.0.s8 %v1246
      %v1248 = vlaneseq
      %v1249 = vshrl.u32 %v1248, 7
      %v1250 = vsub.s32 %v1247, %v1249
      %v1251 = vrot.slane %v1237, %v1250
      %v1252 = vcombine.low %v1244, %v1251
      %v1253 = vcombine.low %v1056, %v1055
      %v1254 = vcombine.low %v1057, %v1064
      %v1256 = vunpack.c.l.s4 1983009808
      %v1257 = vunpack.c.0.s8 %v1256
      %v1258 = vlaneseq
      %v1259 = vshrl.u32 %v1258, 7
      %v1260 = vsub.s32 %v1257, %v1259
      %v1261 = vrot.slane %v1253, %v1260
      %v1263 = vunpack.c.l.s4 1983009808
      %v1264 = vunpack.c.0.s8 %v1263
      %v1265 = vlaneseq
      %v1266 = vshrl.u32 %v1265, 7
      %v1267 = vsub.s32 %v1264, %v1266
      %v1268 = vrot.slane %v1254, %v1267
      %v1269 = vcombine.low %v1261, %v1268
      %v1270 = vcombine.low %v1072, %v1080
      %v1271 = vcombine.low %v1079, %v1081
      %v1273 = vunpack.c.l.s4 1983009808
      %v1274 = vunpack.c.0.s8 %v1273
      %v1275 = vlaneseq
      %v1276 = vshrl.u32 %v1275, 7
      %v1277 = vsub.s32 %v1274, %v1276
      %v1278 = vrot.slane %v1270, %v1277
      %v1280 = vunpack.c.l.s4 1983009808
      %v1281 = vunpack.c.0.s8 %v1280
      %v1282 = vlaneseq
      %v1283 = vshrl.u32 %v1282, 7
      %v1284 = vsub.s32 %v1281, %v1283
      %v1285 = vrot.slane %v1271, %v1284
      %v1286 = vcombine.low %v1278, %v1285
      %v1287 = vcombine.low %v1088, %v1096
      %v1288 = vcombine.low %v1104, %v1103
      %v1290 = vunpack.c.l.s4 1983009808
      %v1291 = vunpack.c.0.s8 %v1290
      %v1292 = vlaneseq
      %v1293 = vshrl.u32 %v1292, 7
      %v1294 = vsub.s32 %v1291, %v1293
      %v1295 = vrot.slane %v1287, %v1294
      %v1297 = vunpack.c.l.s4 1983009808
      %v1298 = vunpack.c.0.s8 %v1297
      %v1299 = vlaneseq
      %v1300 = vshrl.u32 %v1299, 7
      %v1301 = vsub.s32 %v1298, %v1300
      %v1302 = vrot.slane %v1288, %v1301
      %v1303 = vcombine.low %v1295, %v1302
      %v1304 = vcombine.low %v1105, %v1112
      %v1305 = vcombine.low %v1120, %v1128
      %v1307 = vunpack.c.l.s4 1983009808
      %v1308 = vunpack.c.0.s8 %v1307
      %v1309 = vlaneseq
      %v1310 = vshrl.u32 %v1309, 7
      %v1311 = vsub.s32 %v1308, %v1310
      %v1312 = vrot.slane %v1304, %v1311
      %v1314 = vunpack.c.l.s4 1983009808
      %v1315 = vunpack.c.0.s8 %v1314
      %v1316 = vlaneseq
      %v1317 = vshrl.u32 %v1316, 7
      %v1318 = vsub.s32 %v1315, %v1317
      %v1319 = vrot.slane %v1305, %v1318
      %v1320 = vcombine.low %v1312, %v1319
      %v1321 = vcombine.low %v1127, %v1129
      %v1322 = vcombine.low %v1136, %v1144
      %v1324 = vunpack.c.l.s4 1983009808
      %v1325 = vunpack.c.0.s8 %v1324
      %v1326 = vlaneseq
      %v1327 = vshrl.u32 %v1326, 7
      %v1328 = vsub.s32 %v1325, %v1327
      %v1329 = vrot.slane %v1321, %v1328
      %v1331 = vunpack.c.l.s4 1983009808
      %v1332 = vunpack.c.0.s8 %v1331
      %v1333 = vlaneseq
      %v1334 = vshrl.u32 %v1333, 7
      %v1335 = vsub.s32 %v1332, %v1334
      %v1336 = vrot.slane %v1322, %v1335
      %v1337 = vcombine.low %v1329, %v1336
      %v1338 = vcombine.low %v1152, %v1151
      %v1339 = vcombine.low %v1153, %v1160
      %v1341 = vunpack.c.l.s4 1983009808
      %v1342 = vunpack.c.0.s8 %v1341
      %v1343 = vlaneseq
      %v1344 = vshrl.u32 %v1343, 7
      %v1345 = vsub.s32 %v1342, %v1344
      %v1346 = vrot.slane %v1338, %v1345
      %v1348 = vunpack.c.l.s4 1983009808
      %v1349 = vunpack.c.0.s8 %v1348
      %v1350 = vlaneseq
      %v1351 = vshrl.u32 %v1350, 7
      %v1352 = vsub.s32 %v1349, %v1351
      %v1353 = vrot.slane %v1339, %v1352
      %v1354 = vcombine.low %v1346, %v1353
      %v1355 = vcombine.low %v1168, %v1176
      %v1356 = vcombine.low %v1175, %v1177
      %v1358 = vunpack.c.l.s4 1983009808
      %v1359 = vunpack.c.0.s8 %v1358
      %v1360 = vlaneseq
      %v1361 = vshrl.u32 %v1360, 7
      %v1362 = vsub.s32 %v1359, %v1361
      %v1363 = vrot.slane %v1355, %v1362
      %v1365 = vunpack.c.l.s4 1983009808
      %v1366 = vunpack.c.0.s8 %v1365
      %v1367 = vlaneseq
      %v1368 = vshrl.u32 %v1367, 7
      %v1369 = vsub.s32 %v1366, %v1368
      %v1370 = vrot.slane %v1356, %v1369
      %v1371 = vcombine.low %v1363, %v1370
      %v1372 = vcombine.low %v1184, %v1168
      %v1373 = vcombine.low %v1176, %v1175
      %v1375 = vunpack.c.l.s4 1983009808
      %v1376 = vunpack.c.0.s8 %v1375
      %v1377 = vlaneseq
      %v1378 = vshrl.u32 %v1377, 7
      %v1379 = vsub.s32 %v1376, %v1378
      %v1380 = vrot.slane %v1372, %v1379
      %v1382 = vunpack.c.l.s4 1983009808
      %v1383 = vunpack.c.0.s8 %v1382
      %v1384 = vlaneseq
      %v1385 = vshrl.u32 %v1384, 7
      %v1386 = vsub.s32 %v1383, %v1385
      %v1387 = vrot.slane %v1373, %v1386
      %v1388 = vcombine.low %v1380, %v1387
      %v1389 = vcombine.low %v1177, %v1184
      %v1391 = vunpack.c.l.s4 1983009808
      %v1392 = vunpack.c.0.s8 %v1391
      %v1393 = vlaneseq
      %v1394 = vshrl.u32 %v1393, 7
      %v1395 = vsub.s32 %v1392, %v1394
      %v1396 = vrot.slane %v1389, %v1395
      %v1410 = vpack.c.bf16 %v1218, %v1201
      %v1411 = vpack.c.bf16 %v1252, %v1235
      %v1412 = vpack.c.bf16 %v1286, %v1269
      %v1413 = vpack.c.bf16 %v1320, %v1303
      %v1414 = vpack.c.bf16 %v1354, %v1337
      %v1415 = vpack.c.bf16 %v1388, %v1371
      %v1416 = vpack.c.bf16 %v1396, %v1396
      %1417 = vst [vmem:[#allocation2] sm:$0xff] %v1410
      %1418 = vst [vmem:[#allocation2 + $0x8] sm:$0xff] %v1411
      %1419 = vst [vmem:[#allocation2 + $0x10] sm:$0xff] %v1412
      %1420 = vst [vmem:[#allocation2 + $0x18] sm:$0xff] %v1413
      %1421 = vst [vmem:[#allocation2 + $0x20] sm:$0xff] %v1414
      %1422 = vst [vmem:[#allocation2 + $0x28] sm:$0xff] %v1415
      %1423 = vst [vmem:[#allocation2 + $0x30] sm:$0x3] %v1416
      %v1424 = vld [vmem:[#allocation2] sm:$0xff]
      %v1425 = vld [vmem:[#allocation2 + $0x8] sm:$0xff]
      %v1426 = vld [vmem:[#allocation2 + $0x10] sm:$0xff]
      %v1427 = vld [vmem:[#allocation2 + $0x18] sm:$0xff]
      %v1428 = vld [vmem:[#allocation2 + $0x20] sm:$0xff]
      %v1429 = vld [vmem:[%s2] sm:$0xf]
      %v1430 = vld [vmem:[%s2 + $0x4] sm:$0xf]
      %v1431 = vld [vmem:[%s2 + $0x8] sm:$0xf]
      %v1432 = vld [vmem:[%s2 + $0xc] sm:$0xf]
      %v1433 = vld [vmem:[%s2 + $0x10] sm:$0xf]
      %v1434 = vld [vmem:[%s2 + $0x14] sm:$0xf]
      %v1435 = vld [vmem:[%s2 + $0x18] sm:$0xf]
      %v1436 = vld [vmem:[%s2 + $0x1c] sm:$0xf]
      %v1437 = vld [vmem:[%s2 + $0x20] sm:$0xf]
      %v1438 = vld [vmem:[%s2 + $0x24] sm:$0xf]
      %v1439 = vld [vmem:[%s2 + $0x28] sm:$0xf]
      %v1440 = vld [vmem:[%s2 + $0x2c] sm:$0xf]
      %v1441 = vld [vmem:[%s2 + $0x30] sm:$0xf]
      %v1442 = vld [vmem:[%s2 + $0x34] sm:$0xf]
      %v1443 = vld [vmem:[%s2 + $0x38] sm:$0xf]
      %v1444 = vld [vmem:[%s2 + $0x3c] sm:$0xf]
      %v1445 = vld [vmem:[#allocation2 + $0x28] sm:$0x1]
      %s1446 = scalar_lea.vmem %s2, 64
      %v1447 = vld [vmem:[%s1446] sm:$0xf]
      %v1448 = vld [vmem:[%s1446 + $0x4] sm:$0xf]
      %v1449 = vld [vmem:[%s1446 + $0x8] sm:$0xf]
      %v1450 = vld [vmem:[%s1446 + $0xc] sm:$0xf]
      %v1451 = vld [vmem:[%s1446 + $0x10] sm:$0xf]
      %v1452 = vld [vmem:[%s1446 + $0x14] sm:$0xf]
      %v1453 = vld [vmem:[%s1446 + $0x18] sm:$0xf]
      %v1454 = vld [vmem:[%s1446 + $0x1c] sm:$0xf]
      %v1455 = vld [vmem:[%s1446 + $0x20] sm:$0xf]
      %v1456 = vld [vmem:[%s1446 + $0x24] sm:$0xf]
      %v1457 = vld [vmem:[%s1446 + $0x28] sm:$0xf]
      %v1458 = vld [vmem:[%s1446 + $0x2c] sm:$0xf]
      %v1459 = vld [vmem:[%s1446 + $0x30] sm:$0xf]
      %v1460 = vld [vmem:[%s1446 + $0x34] sm:$0xf]
      %v1461 = vld [vmem:[%s1446 + $0x38] sm:$0xf]
      %v1462 = vld [vmem:[%s1446 + $0x3c] sm:$0xf]
      %vm1463 = vsmask.f32 7424
      %v1465 = vshrl.u32 %v1424, 16
      %v1467 = vshll.u32 %v1424, 16
      %v1469 = vrot.slane %v1467, 1
      %v1470 = vor.u32 %v1465, %v1469
      %v1472 = vshll.u32 %v1425, 16
      %v1474 = vrot.slane %v1472, 1
      %v1475 = vsel %vm1463, %v1470, %v1474
      %v1476 = vshrl.u32 %v1425, 16
      %v1478 = vor.u32 %v1476, %v1474
      %v1480 = vshll.u32 %v1426, 16
      %v1482 = vrot.slane %v1480, 1
      %v1483 = vsel %vm1463, %v1478, %v1482
      %v1484 = vshrl.u32 %v1426, 16
      %v1486 = vor.u32 %v1484, %v1482
      %v1488 = vshll.u32 %v1427, 16
      %v1490 = vrot.slane %v1488, 1
      %v1491 = vsel %vm1463, %v1486, %v1490
      %v1492 = vshrl.u32 %v1427, 16
      %v1494 = vor.u32 %v1492, %v1490
      %v1496 = vshll.u32 %v1428, 16
      %v1498 = vrot.slane %v1496, 1
      %v1499 = vsel %vm1463, %v1494, %v1498
      %v1500 = vshrl.u32 %v1428, 16
      %v1502 = vor.u32 %v1500, %v1498
      %v1504 = vshll.u32 %v1445, 16
      %v1506 = vrot.slane %v1504, 1
      %v1507 = vsel %vm1463, %v1502, %v1506
      %v1529 = vunpack.c.l.b16 %v1447
      %v1530 = vunpack.c.l.b16 %v1448
      %v1531 = vunpack.c.l.b16 %v1449
      %v1532 = vunpack.c.l.b16 %v1450
      %v1533 = vunpack.c.l.b16 %v1451
      %v1534 = vunpack.c.l.b16 %v1452
      %v1535 = vunpack.c.l.b16 %v1453
      %v1536 = vunpack.c.l.b16 %v1454
      %v1537 = vunpack.c.l.b16 %v1455
      %v1538 = vunpack.c.l.b16 %v1456
      %v1539 = vunpack.c.l.b16 %v1457
      %v1540 = vunpack.c.l.b16 %v1458
      %v1541 = vunpack.c.l.b16 %v1459
      %v1542 = vunpack.c.l.b16 %v1460
      %v1543 = vunpack.c.l.b16 %v1461
      %v1544 = vunpack.c.l.b16 %v1462
      %v1545 = vpack.c.b16 %v1530, %v1529
      %v1546 = vpack.c.b16 %v1532, %v1531
      %v1547 = vpack.c.b16 %v1534, %v1533
      %v1548 = vpack.c.b16 %v1536, %v1535
      %v1549 = vpack.c.b16 %v1538, %v1537
      %v1550 = vpack.c.b16 %v1540, %v1539
      %v1551 = vpack.c.b16 %v1542, %v1541
      %v1552 = vpack.c.b16 %v1544, %v1543
      %1561 = vmatprep.subr.bf16.mxu0 0
      %1562 = vmatpush1.bf16.msra.mxu0 %v1545
      %1563 = vmatprep.subr.bf16.mxu0 0
      %1564 = vmatpush1.bf16.msra.mxu0 %v1546
      %1565 = vmatprep.subr.bf16.mxu0 0
      %1566 = vmatpush1.bf16.msra.mxu0 %v1547
      %1567 = vmatprep.subr.bf16.mxu0 0
      %1568 = vmatpush1.bf16.msra.mxu0 %v1548
      %1569 = vmatprep.subr.bf16.mxu0 0
      %1570 = vmatpush1.bf16.msra.mxu0 %v1549
      %1571 = vmatprep.subr.bf16.mxu0 0
      %1572 = vmatpush1.bf16.msra.mxu0 %v1550
      %1573 = vmatprep.subr.bf16.mxu0 0
      %1574 = vmatpush1.bf16.msra.mxu0 %v1551
      %1575 = vmatprep.subr.bf16.mxu0 0
      %1576 = vmatpush1.bf16.msra.mxu0 %v1552
      %1577 = vmatprep.subr.bf16.mxu0 0
      %1578 = vmatpush1.bf16.msra.mxu0 0
      %1579 = vmatprep.subr.bf16.mxu0 0
      %1580 = vmatpush1.bf16.msra.mxu0 0
      %1581 = vmatprep.subr.bf16.mxu0 0
      %1582 = vmatpush1.bf16.msra.mxu0 0
      %1583 = vmatprep.subr.bf16.mxu0 0
      %1584 = vmatpush1.bf16.msra.mxu0 0
      %1585 = vmatprep.subr.bf16.mxu0 0
      %1586 = vmatpush1.bf16.msra.mxu0 0
      %1587 = vmatprep.subr.bf16.mxu0 0
      %1588 = vmatpush1.bf16.msra.mxu0 0
      %1589 = vmatprep.subr.bf16.mxu0 0
      %1590 = vmatpush1.bf16.msra.mxu0 0
      %1591 = vmatprep.subr.bf16.mxu0 0
      %1592 = vmatpush1.bf16.msra.mxu0 0
      %1593 = vmatprep.mubr.bf16.mxu0 0
      %1594 = vmatmul.mubr.bf16.gmra.mrb[0].mxu0 %v1475
      %v1595 = vpop.f32.mrb[0].mxu0
      %v1596 = vadd.f32 0.0, %v1595
      %v1597 = vpop.f32.mrb[0].mxu0
      %v1598 = vpop.f32.mrb[0].mxu0
      %v1599 = vadd.f32 0.0, %v1598
      %v1600 = vpop.f32.mrb[0].mxu0
      %1601 = vmatprep.mubr.bf16.mxu0 0
      %1602 = vmatmul.mubr.bf16.gmra.mrb[0].mxu0 %v1483
      %v1603 = vpop.f32.mrb[0].mxu0
      %v1604 = vadd.f32 0.0, %v1603
      %v1605 = vpop.f32.mrb[0].mxu0
      %v1606 = vpop.f32.mrb[0].mxu0
      %v1607 = vadd.f32 0.0, %v1606
      %v1608 = vpop.f32.mrb[0].mxu0
      %1609 = vmatprep.mubr.bf16.mxu0 0
      %1610 = vmatmul.mubr.bf16.gmra.mrb[0].mxu0 %v1491
      %v1611 = vpop.f32.mrb[0].mxu0
      %v1612 = vadd.f32 0.0, %v1611
      %v1613 = vpop.f32.mrb[0].mxu0
      %v1614 = vpop.f32.mrb[0].mxu0
      %v1615 = vadd.f32 0.0, %v1614
      %v1616 = vpop.f32.mrb[0].mxu0
      %1617 = vmatprep.mubr.bf16.mxu0 0
      %1618 = vmatmul.mubr.bf16.gmra.mrb[0].mxu0 %v1499
      %v1619 = vpop.f32.mrb[0].mxu0
      %v1620 = vadd.f32 0.0, %v1619
      %v1621 = vpop.f32.mrb[0].mxu0
      %v1622 = vpop.f32.mrb[0].mxu0
      %v1623 = vadd.f32 0.0, %v1622
      %v1624 = vpop.f32.mrb[0].mxu0
      %1625 = vmatprep.mubr.bf16.mxu0 0
      %1626 = vmatmul.mubr.bf16.gmra.mrb[0].mxu0 %v1507
      %v1627 = vpop.f32.mrb[0].mxu0
      %v1628 = vadd.f32 0.0, %v1627
      %v1629 = vpop.f32.mrb[0].mxu0
      %v1630 = vpop.f32.mrb[0].mxu0
      %v1631 = vadd.f32 0.0, %v1630
      %v1632 = vpop.f32.mrb[0].mxu0
      %1633 = vdwg.mxu0
      %v1650 = vunpack.c.l.b16 %v1429
      %v1651 = vunpack.c.l.b16 %v1430
      %v1652 = vunpack.c.l.b16 %v1431
      %v1653 = vunpack.c.l.b16 %v1432
      %v1654 = vunpack.c.l.b16 %v1433
      %v1655 = vunpack.c.l.b16 %v1434
      %v1656 = vunpack.c.l.b16 %v1435
      %v1657 = vunpack.c.l.b16 %v1436
      %v1658 = vunpack.c.l.b16 %v1437
      %v1659 = vunpack.c.l.b16 %v1438
      %v1660 = vunpack.c.l.b16 %v1439
      %v1661 = vunpack.c.l.b16 %v1440
      %v1662 = vunpack.c.l.b16 %v1441
      %v1663 = vunpack.c.l.b16 %v1442
      %v1664 = vunpack.c.l.b16 %v1443
      %v1665 = vunpack.c.l.b16 %v1444
      %v1666 = vpack.c.b16 %v1651, %v1650
      %v1667 = vpack.c.b16 %v1653, %v1652
      %v1668 = vpack.c.b16 %v1655, %v1654
      %v1669 = vpack.c.b16 %v1657, %v1656
      %v1670 = vpack.c.b16 %v1659, %v1658
      %v1671 = vpack.c.b16 %v1661, %v1660
      %v1672 = vpack.c.b16 %v1663, %v1662
      %v1673 = vpack.c.b16 %v1665, %v1664
      %1682 = vmatprep.subr.bf16.mxu0 0
      %1683 = vmatpush1.bf16.msra.mxu0 %v1666
      %1684 = vmatprep.subr.bf16.mxu0 0
      %1685 = vmatpush1.bf16.msra.mxu0 %v1667
      %1686 = vmatprep.subr.bf16.mxu0 0
      %1687 = vmatpush1.bf16.msra.mxu0 %v1668
      %1688 = vmatprep.subr.bf16.mxu0 0
      %1689 = vmatpush1.bf16.msra.mxu0 %v1669
      %1690 = vmatprep.subr.bf16.mxu0 0
      %1691 = vmatpush1.bf16.msra.mxu0 %v1670
      %1692 = vmatprep.subr.bf16.mxu0 0
      %1693 = vmatpush1.bf16.msra.mxu0 %v1671
      %1694 = vmatprep.subr.bf16.mxu0 0
      %1695 = vmatpush1.bf16.msra.mxu0 %v1672
      %1696 = vmatprep.subr.bf16.mxu0 0
      %1697 = vmatpush1.bf16.msra.mxu0 %v1673
      %1698 = vmatprep.subr.bf16.mxu0 0
      %1699 = vmatpush1.bf16.msra.mxu0 0
      %1700 = vmatprep.subr.bf16.mxu0 0
      %1701 = vmatpush1.bf16.msra.mxu0 0
      %1702 = vmatprep.subr.bf16.mxu0 0
      %1703 = vmatpush1.bf16.msra.mxu0 0
      %1704 = vmatprep.subr.bf16.mxu0 0
      %1705 = vmatpush1.bf16.msra.mxu0 0
      %1706 = vmatprep.subr.bf16.mxu0 0
      %1707 = vmatpush1.bf16.msra.mxu0 0
      %1708 = vmatprep.subr.bf16.mxu0 0
      %1709 = vmatpush1.bf16.msra.mxu0 0
      %1710 = vmatprep.subr.bf16.mxu0 0
      %1711 = vmatpush1.bf16.msra.mxu0 0
      %1712 = vmatprep.subr.bf16.mxu0 0
      %1713 = vmatpush1.bf16.msra.mxu0 0
      %1714 = vmatprep.mubr.bf16.mxu0 0
      %1715 = vmatmul.mubr.bf16.gmra.mrb[0].mxu0 %v1424
      %v1716 = vpop.f32.mrb[0].mxu0
      %v1717 = vadd.f32 %v1596, %v1716
      %v1718 = vpop.f32.mrb[0].mxu0
      %v1719 = vpop.f32.mrb[0].mxu0
      %v1720 = vadd.f32 %v1599, %v1719
      %v1721 = vpop.f32.mrb[0].mxu0
      %1722 = vmatprep.mubr.bf16.mxu0 0
      %1723 = vmatmul.mubr.bf16.gmra.mrb[0].mxu0 %v1425
      %v1724 = vpop.f32.mrb[0].mxu0
      %v1725 = vadd.f32 %v1604, %v1724
      %v1726 = vpop.f32.mrb[0].mxu0
      %v1727 = vpop.f32.mrb[0].mxu0
      %v1728 = vadd.f32 %v1607, %v1727
      %v1729 = vpop.f32.mrb[0].mxu0
      %1730 = vmatprep.mubr.bf16.mxu0 0
      %1731 = vmatmul.mubr.bf16.gmra.mrb[0].mxu0 %v1426
      %v1732 = vpop.f32.mrb[0].mxu0
      %v1733 = vadd.f32 %v1612, %v1732
      %v1734 = vpop.f32.mrb[0].mxu0
      %v1735 = vpop.f32.mrb[0].mxu0
      %v1736 = vadd.f32 %v1615, %v1735
      %v1737 = vpop.f32.mrb[0].mxu0
      %1738 = vmatprep.mubr.bf16.mxu0 0
      %1739 = vmatmul.mubr.bf16.gmra.mrb[0].mxu0 %v1427
      %v1740 = vpop.f32.mrb[0].mxu0
      %v1741 = vadd.f32 %v1620, %v1740
      %v1742 = vpop.f32.mrb[0].mxu0
      %v1743 = vpop.f32.mrb[0].mxu0
      %v1744 = vadd.f32 %v1623, %v1743
      %v1745 = vpop.f32.mrb[0].mxu0
      %1746 = vmatprep.mubr.bf16.mxu0 0
      %1747 = vmatmul.mubr.bf16.gmra.mrb[0].mxu0 %v1428
      %v1748 = vpop.f32.mrb[0].mxu0
      %v1749 = vadd.f32 %v1628, %v1748
      %v1750 = vpop.f32.mrb[0].mxu0
      %v1751 = vpop.f32.mrb[0].mxu0
      %v1752 = vadd.f32 %v1631, %v1751
      %v1753 = vpop.f32.mrb[0].mxu0
      %1754 = vdwg.mxu0
      %v1755 = vld [vmem:[#allocation2] sm:$0xfe]
      %s1756 = scalar_lea.vmem %s2, 128
      %v1757 = vld [vmem:[%s1756] sm:$0xf]
      %v1758 = vld [vmem:[%s1756 + $0x4] sm:$0xf]
      %v1759 = vld [vmem:[%s1756 + $0x8] sm:$0xf]
      %v1760 = vld [vmem:[%s1756 + $0xc] sm:$0xf]
      %v1761 = vld [vmem:[%s1756 + $0x10] sm:$0xf]
      %v1762 = vld [vmem:[%s1756 + $0x14] sm:$0xf]
      %v1763 = vld [vmem:[%s1756 + $0x18] sm:$0xf]
      %v1764 = vld [vmem:[%s1756 + $0x1c] sm:$0xf]
      %v1765 = vld [vmem:[%s1756 + $0x20] sm:$0xf]
      %v1766 = vld [vmem:[%s1756 + $0x24] sm:$0xf]
      %v1767 = vld [vmem:[%s1756 + $0x28] sm:$0xf]
      %v1768 = vld [vmem:[%s1756 + $0x2c] sm:$0xf]
      %v1769 = vld [vmem:[%s1756 + $0x30] sm:$0xf]
      %v1770 = vld [vmem:[%s1756 + $0x34] sm:$0xf]
      %v1771 = vld [vmem:[%s1756 + $0x38] sm:$0xf]
      %v1772 = vld [vmem:[%s1756 + $0x3c] sm:$0xf]
      %vm1779 = vcmask 1046528
      %v1780 = vrot.slane %v1755, 1
      %v1781 = vrot.slane %v1425, 1
      %v1782 = vsel %vm1779, %v1780, %v1781
      %v1783 = vrot.slane %v1426, 1
      %v1784 = vsel %vm1779, %v1781, %v1783
      %v1785 = vrot.slane %v1427, 1
      %v1786 = vsel %vm1779, %v1783, %v1785
      %v1787 = vrot.slane %v1428, 1
      %v1788 = vsel %vm1779, %v1785, %v1787
      %v1789 = vrot.slane %v1445, 1
      %v1790 = vsel %vm1779, %v1787, %v1789
      %v1812 = vunpack.c.l.b16 %v1757
      %v1813 = vunpack.c.l.b16 %v1758
      %v1814 = vunpack.c.l.b16 %v1759
      %v1815 = vunpack.c.l.b16 %v1760
      %v1816 = vunpack.c.l.b16 %v1761
      %v1817 = vunpack.c.l.b16 %v1762
      %v1818 = vunpack.c.l.b16 %v1763
      %v1819 = vunpack.c.l.b16 %v1764
      %v1820 = vunpack.c.l.b16 %v1765
      %v1821 = vunpack.c.l.b16 %v1766
      %v1822 = vunpack.c.l.b16 %v1767
      %v1823 = vunpack.c.l.b16 %v1768
      %v1824 = vunpack.c.l.b16 %v1769
      %v1825 = vunpack.c.l.b16 %v1770
      %v1826 = vunpack.c.l.b16 %v1771
      %v1827 = vunpack.c.l.b16 %v1772
      %v1828 = vpack.c.b16 %v1813, %v1812
      %v1829 = vpack.c.b16 %v1815, %v1814
      %v1830 = vpack.c.b16 %v1817, %v1816
      %v1831 = vpack.c.b16 %v1819, %v1818
      %v1832 = vpack.c.b16 %v1821, %v1820
      %v1833 = vpack.c.b16 %v1823, %v1822
      %v1834 = vpack.c.b16 %v1825, %v1824
      %v1835 = vpack.c.b16 %v1827, %v1826
      %1844 = vmatprep.subr.bf16.mxu0 0
      %1845 = vmatpush1.bf16.msra.mxu0 %v1828
      %1846 = vmatprep.subr.bf16.mxu0 0
      %1847 = vmatpush1.bf16.msra.mxu0 %v1829
      %1848 = vmatprep.subr.bf16.mxu0 0
      %1849 = vmatpush1.bf16.msra.mxu0 %v1830
      %1850 = vmatprep.subr.bf16.mxu0 0
      %1851 = vmatpush1.bf16.msra.mxu0 %v1831
      %1852 = vmatprep.subr.bf16.mxu0 0
      %1853 = vmatpush1.bf16.msra.mxu0 %v1832
      %1854 = vmatprep.subr.bf16.mxu0 0
      %1855 = vmatpush1.bf16.msra.mxu0 %v1833
      %1856 = vmatprep.subr.bf16.mxu0 0
      %1857 = vmatpush1.bf16.msra.mxu0 %v1834
      %1858 = vmatprep.subr.bf16.mxu0 0
      %1859 = vmatpush1.bf16.msra.mxu0 %v1835
      %1860 = vmatprep.subr.bf16.mxu0 0
      %1861 = vmatpush1.bf16.msra.mxu0 0
      %1862 = vmatprep.subr.bf16.mxu0 0
      %1863 = vmatpush1.bf16.msra.mxu0 0
      %1864 = vmatprep.subr.bf16.mxu0 0
      %1865 = vmatpush1.bf16.msra.mxu0 0
      %1866 = vmatprep.subr.bf16.mxu0 0
      %1867 = vmatpush1.bf16.msra.mxu0 0
      %1868 = vmatprep.subr.bf16.mxu0 0
      %1869 = vmatpush1.bf16.msra.mxu0 0
      %1870 = vmatprep.subr.bf16.mxu0 0
      %1871 = vmatpush1.bf16.msra.mxu0 0
      %1872 = vmatprep.subr.bf16.mxu0 0
      %1873 = vmatpush1.bf16.msra.mxu0 0
      %1874 = vmatprep.subr.bf16.mxu0 0
      %1875 = vmatpush1.bf16.msra.mxu0 0
      %1876 = vmatprep.mubr.bf16.mxu0 0
      %1877 = vmatmul.mubr.bf16.gmra.mrb[0].mxu0 %v1782
      %v1878 = vpop.f32.mrb[0].mxu0
      %v1879 = vadd.f32 0.0, %v1878
      %v1880 = vpop.f32.mrb[0].mxu0
      %v1881 = vpop.f32.mrb[0].mxu0
      %v1882 = vadd.f32 0.0, %v1881
      %v1883 = vpop.f32.mrb[0].mxu0
      %1884 = vmatprep.mubr.bf16.mxu0 0
      %1885 = vmatmul.mubr.bf16.gmra.mrb[0].mxu0 %v1784
      %v1886 = vpop.f32.mrb[0].mxu0
      %v1887 = vadd.f32 0.0, %v1886
      %v1888 = vpop.f32.mrb[0].mxu0
      %v1889 = vpop.f32.mrb[0].mxu0
      %v1890 = vadd.f32 0.0, %v1889
      %v1891 = vpop.f32.mrb[0].mxu0
      %1892 = vmatprep.mubr.bf16.mxu0 0
      %1893 = vmatmul.mubr.bf16.gmra.mrb[0].mxu0 %v1786
      %v1894 = vpop.f32.mrb[0].mxu0
      %v1895 = vadd.f32 0.0, %v1894
      %v1896 = vpop.f32.mrb[0].mxu0
      %v1897 = vpop.f32.mrb[0].mxu0
      %v1898 = vadd.f32 0.0, %v1897
      %v1899 = vpop.f32.mrb[0].mxu0
      %1900 = vmatprep.mubr.bf16.mxu0 0
      %1901 = vmatmul.mubr.bf16.gmra.mrb[0].mxu0 %v1788
      %v1902 = vpop.f32.mrb[0].mxu0
      %v1903 = vadd.f32 0.0, %v1902
      %v1904 = vpop.f32.mrb[0].mxu0
      %v1905 = vpop.f32.mrb[0].mxu0
      %v1906 = vadd.f32 0.0, %v1905
      %v1907 = vpop.f32.mrb[0].mxu0
      %1908 = vmatprep.mubr.bf16.mxu0 0
      %1909 = vmatmul.mubr.bf16.gmra.mrb[0].mxu0 %v1790
      %v1910 = vpop.f32.mrb[0].mxu0
      %v1911 = vadd.f32 0.0, %v1910
      %v1912 = vpop.f32.mrb[0].mxu0
      %v1913 = vpop.f32.mrb[0].mxu0
      %v1914 = vadd.f32 0.0, %v1913
      %v1915 = vpop.f32.mrb[0].mxu0
      %1916 = vdwg.mxu0
      %v1917 = vadd.f32 %v1717, %v1879
      %v1918 = vadd.f32 %v1720, %v1882
      %v1919 = vadd.f32 %v1725, %v1887
      %v1920 = vadd.f32 %v1728, %v1890
      %v1921 = vadd.f32 %v1733, %v1895
      %v1922 = vadd.f32 %v1736, %v1898
      %v1923 = vadd.f32 %v1741, %v1903
      %v1924 = vadd.f32 %v1744, %v1906
      %v1925 = vadd.f32 %v1749, %v1911
      %v1926 = vadd.f32 %v1752, %v1914
      %v1927 = vld [vmem:[#allocation2] sm:$0xe0]
      %v1928 = vld [vmem:[#allocation2 + $0x28] sm:$0x1f]
      %s1929 = scalar_lea.vmem %s2, 192
      %v1930 = vld [vmem:[%s1929] sm:$0xf]
      %v1931 = vld [vmem:[%s1929 + $0x4] sm:$0xf]
      %v1932 = vld [vmem:[%s1929 + $0x8] sm:$0xf]
      %v1933 = vld [vmem:[%s1929 + $0xc] sm:$0xf]
      %v1934 = vld [vmem:[%s1929 + $0x10] sm:$0xf]
      %v1935 = vld [vmem:[%s1929 + $0x14] sm:$0xf]
      %v1936 = vld [vmem:[%s1929 + $0x18] sm:$0xf]
      %v1937 = vld [vmem:[%s1929 + $0x1c] sm:$0xf]
      %v1938 = vld [vmem:[%s1929 + $0x20] sm:$0xf]
      %v1939 = vld [vmem:[%s1929 + $0x24] sm:$0xf]
      %v1940 = vld [vmem:[%s1929 + $0x28] sm:$0xf]
      %v1941 = vld [vmem:[%s1929 + $0x2c] sm:$0xf]
      %v1942 = vld [vmem:[%s1929 + $0x30] sm:$0xf]
      %v1943 = vld [vmem:[%s1929 + $0x34] sm:$0xf]
      %v1944 = vld [vmem:[%s1929 + $0x38] sm:$0xf]
      %v1945 = vld [vmem:[%s1929 + $0x3c] sm:$0xf]
      %vm1948 = vcmask 1042432
      %v1949 = vrot.slane %v1927, 5
      %v1950 = vrot.slane %v1425, 5
      %v1951 = vsel %vm1948, %v1949, %v1950
      %v1952 = vrot.slane %v1426, 5
      %v1953 = vsel %vm1948, %v1950, %v1952
      %v1954 = vrot.slane %v1427, 5
      %v1955 = vsel %vm1948, %v1952, %v1954
      %v1956 = vrot.slane %v1428, 5
      %v1957 = vsel %vm1948, %v1954, %v1956
      %v1958 = vrot.slane %v1928, 5
      %v1959 = vsel %vm1948, %v1956, %v1958
      %v1981 = vunpack.c.l.b16 %v1930
      %v1982 = vunpack.c.l.b16 %v1931
      %v1983 = vunpack.c.l.b16 %v1932
      %v1984 = vunpack.c.l.b16 %v1933
      %v1985 = vunpack.c.l.b16 %v1934
      %v1986 = vunpack.c.l.b16 %v1935
      %v1987 = vunpack.c.l.b16 %v1936
      %v1988 = vunpack.c.l.b16 %v1937
      %v1989 = vunpack.c.l.b16 %v1938
      %v1990 = vunpack.c.l.b16 %v1939
      %v1991 = vunpack.c.l.b16 %v1940
      %v1992 = vunpack.c.l.b16 %v1941
      %v1993 = vunpack.c.l.b16 %v1942
      %v1994 = vunpack.c.l.b16 %v1943
      %v1995 = vunpack.c.l.b16 %v1944
      %v1996 = vunpack.c.l.b16 %v1945
      %v1997 = vpack.c.b16 %v1982, %v1981
      %v1998 = vpack.c.b16 %v1984, %v1983
      %v1999 = vpack.c.b16 %v1986, %v1985
      %v2000 = vpack.c.b16 %v1988, %v1987
      %v2001 = vpack.c.b16 %v1990, %v1989
      %v2002 = vpack.c.b16 %v1992, %v1991
      %v2003 = vpack.c.b16 %v1994, %v1993
      %v2004 = vpack.c.b16 %v1996, %v1995
      %2013 = vmatprep.subr.bf16.mxu0 0
      %2014 = vmatpush1.bf16.msra.mxu0 %v1997
      %2015 = vmatprep.subr.bf16.mxu0 0
      %2016 = vmatpush1.bf16.msra.mxu0 %v1998
      %2017 = vmatprep.subr.bf16.mxu0 0
      %2018 = vmatpush1.bf16.msra.mxu0 %v1999
      %2019 = vmatprep.subr.bf16.mxu0 0
      %2020 = vmatpush1.bf16.msra.mxu0 %v2000
      %2021 = vmatprep.subr.bf16.mxu0 0
      %2022 = vmatpush1.bf16.msra.mxu0 %v2001
      %2023 = vmatprep.subr.bf16.mxu0 0
      %2024 = vmatpush1.bf16.msra.mxu0 %v2002
      %2025 = vmatprep.subr.bf16.mxu0 0
      %2026 = vmatpush1.bf16.msra.mxu0 %v2003
      %2027 = vmatprep.subr.bf16.mxu0 0
      %2028 = vmatpush1.bf16.msra.mxu0 %v2004
      %2029 = vmatprep.subr.bf16.mxu0 0
      %2030 = vmatpush1.bf16.msra.mxu0 0
      %2031 = vmatprep.subr.bf16.mxu0 0
      %2032 = vmatpush1.bf16.msra.mxu0 0
      %2033 = vmatprep.subr.bf16.mxu0 0
      %2034 = vmatpush1.bf16.msra.mxu0 0
      %2035 = vmatprep.subr.bf16.mxu0 0
      %2036 = vmatpush1.bf16.msra.mxu0 0
      %2037 = vmatprep.subr.bf16.mxu0 0
      %2038 = vmatpush1.bf16.msra.mxu0 0
      %2039 = vmatprep.subr.bf16.mxu0 0
      %2040 = vmatpush1.bf16.msra.mxu0 0
      %2041 = vmatprep.subr.bf16.mxu0 0
      %2042 = vmatpush1.bf16.msra.mxu0 0
      %2043 = vmatprep.subr.bf16.mxu0 0
      %2044 = vmatpush1.bf16.msra.mxu0 0
      %2045 = vmatprep.mubr.bf16.mxu0 0
      %2046 = vmatmul.mubr.bf16.gmra.mrb[0].mxu0 %v1951
      %v2047 = vpop.f32.mrb[0].mxu0
      %v2048 = vadd.f32 0.0, %v2047
      %v2049 = vpop.f32.mrb[0].mxu0
      %v2050 = vpop.f32.mrb[0].mxu0
      %v2051 = vadd.f32 0.0, %v2050
      %v2052 = vpop.f32.mrb[0].mxu0
      %2053 = vmatprep.mubr.bf16.mxu0 0
      %2054 = vmatmul.mubr.bf16.gmra.mrb[0].mxu0 %v1953
      %v2055 = vpop.f32.mrb[0].mxu0
      %v2056 = vadd.f32 0.0, %v2055
      %v2057 = vpop.f32.mrb[0].mxu0
      %v2058 = vpop.f32.mrb[0].mxu0
      %v2059 = vadd.f32 0.0, %v2058
      %v2060 = vpop.f32.mrb[0].mxu0
      %2061 = vmatprep.mubr.bf16.mxu0 0
      %2062 = vmatmul.mubr.bf16.gmra.mrb[0].mxu0 %v1955
      %v2063 = vpop.f32.mrb[0].mxu0
      %v2064 = vadd.f32 0.0, %v2063
      %v2065 = vpop.f32.mrb[0].mxu0
      %v2066 = vpop.f32.mrb[0].mxu0
      %v2067 = vadd.f32 0.0, %v2066
      %v2068 = vpop.f32.mrb[0].mxu0
      %2069 = vmatprep.mubr.bf16.mxu0 0
      %2070 = vmatmul.mubr.bf16.gmra.mrb[0].mxu0 %v1957
      %v2071 = vpop.f32.mrb[0].mxu0
      %v2072 = vadd.f32 0.0, %v2071
      %v2073 = vpop.f32.mrb[0].mxu0
      %v2074 = vpop.f32.mrb[0].mxu0
      %v2075 = vadd.f32 0.0, %v2074
      %v2076 = vpop.f32.mrb[0].mxu0
      %2077 = vmatprep.mubr.bf16.mxu0 0
      %2078 = vmatmul.mubr.bf16.gmra.mrb[0].mxu0 %v1959
      %v2079 = vpop.f32.mrb[0].mxu0
      %v2080 = vadd.f32 0.0, %v2079
      %v2081 = vpop.f32.mrb[0].mxu0
      %v2082 = vpop.f32.mrb[0].mxu0
      %v2083 = vadd.f32 0.0, %v2082
      %v2084 = vpop.f32.mrb[0].mxu0
      %2085 = vdwg.mxu0
      %v2086 = vadd.f32 %v1917, %v2048
      %v2087 = vadd.f32 %v1918, %v2051
      %v2088 = vadd.f32 %v1919, %v2056
      %v2089 = vadd.f32 %v1920, %v2059
      %v2090 = vadd.f32 %v1921, %v2064
      %v2091 = vadd.f32 %v1922, %v2067
      %v2092 = vadd.f32 %v1923, %v2072
      %v2093 = vadd.f32 %v1924, %v2075
      %v2094 = vadd.f32 %v1925, %v2080
      %v2095 = vadd.f32 %v1926, %v2083
      %v2096 = vld [vmem:[#allocation2 + $0x28] sm:$0x3f]
      %s2097 = scalar_lea.vmem %s2, 256
      %v2098 = vld [vmem:[%s2097] sm:$0xf]
      %v2099 = vld [vmem:[%s2097 + $0x4] sm:$0xf]
      %v2100 = vld [vmem:[%s2097 + $0x8] sm:$0xf]
      %v2101 = vld [vmem:[%s2097 + $0xc] sm:$0xf]
      %v2102 = vld [vmem:[%s2097 + $0x10] sm:$0xf]
      %v2103 = vld [vmem:[%s2097 + $0x14] sm:$0xf]
      %v2104 = vld [vmem:[%s2097 + $0x18] sm:$0xf]
      %v2105 = vld [vmem:[%s2097 + $0x1c] sm:$0xf]
      %v2106 = vld [vmem:[%s2097 + $0x20] sm:$0xf]
      %v2107 = vld [vmem:[%s2097 + $0x24] sm:$0xf]
      %v2108 = vld [vmem:[%s2097 + $0x28] sm:$0xf]
      %v2109 = vld [vmem:[%s2097 + $0x2c] sm:$0xf]
      %v2110 = vld [vmem:[%s2097 + $0x30] sm:$0xf]
      %v2111 = vld [vmem:[%s2097 + $0x34] sm:$0xf]
      %v2112 = vld [vmem:[%s2097 + $0x38] sm:$0xf]
      %v2113 = vld [vmem:[%s2097 + $0x3c] sm:$0xf]
      %vm2114 = vsmask.f32 2304
      %v2116 = vshrl.u32 %v1927, 16
      %v2118 = vrot.slane %v2116, 5
      %v2119 = vshll.u32 %v1927, 16
      %v2121 = vrot.slane %v2119, 6
      %v2122 = vor.u32 %v2118, %v2121
      %v2123 = vrot.slane %v1476, 5
      %v2124 = vrot.slane %v1472, 6
      %v2125 = vor.u32 %v2123, %v2124
      %v2126 = vsel %vm2114, %v2122, %v2125
      %v2127 = vrot.slane %v1484, 5
      %v2128 = vrot.slane %v1480, 6
      %v2129 = vor.u32 %v2127, %v2128
      %v2130 = vsel %vm2114, %v2125, %v2129
      %v2131 = vrot.slane %v1492, 5
      %v2132 = vrot.slane %v1488, 6
      %v2133 = vor.u32 %v2131, %v2132
      %v2134 = vsel %vm2114, %v2129, %v2133
      %v2135 = vrot.slane %v1500, 5
      %v2136 = vrot.slane %v1496, 6
      %v2137 = vor.u32 %v2135, %v2136
      %v2138 = vsel %vm2114, %v2133, %v2137
      %v2140 = vshrl.u32 %v2096, 16
      %v2142 = vrot.slane %v2140, 5
      %v2143 = vshll.u32 %v2096, 16
      %v2145 = vrot.slane %v2143, 6
      %v2146 = vor.u32 %v2142, %v2145
      %v2147 = vsel %vm2114, %v2137, %v2146
      %v2169 = vunpack.c.l.b16 %v2098
      %v2170 = vunpack.c.l.b16 %v2099
      %v2171 = vunpack.c.l.b16 %v2100
      %v2172 = vunpack.c.l.b16 %v2101
      %v2173 = vunpack.c.l.b16 %v2102
      %v2174 = vunpack.c.l.b16 %v2103
      %v2175 = vunpack.c.l.b16 %v2104
      %v2176 = vunpack.c.l.b16 %v2105
      %v2177 = vunpack.c.l.b16 %v2106
      %v2178 = vunpack.c.l.b16 %v2107
      %v2179 = vunpack.c.l.b16 %v2108
      %v2180 = vunpack.c.l.b16 %v2109
      %v2181 = vunpack.c.l.b16 %v2110
      %v2182 = vunpack.c.l.b16 %v2111
      %v2183 = vunpack.c.l.b16 %v2112
      %v2184 = vunpack.c.l.b16 %v2113
      %v2185 = vpack.c.b16 %v2170, %v2169
      %v2186 = vpack.c.b16 %v2172, %v2171
      %v2187 = vpack.c.b16 %v2174, %v2173
      %v2188 = vpack.c.b16 %v2176, %v2175
      %v2189 = vpack.c.b16 %v2178, %v2177
      %v2190 = vpack.c.b16 %v2180, %v2179
      %v2191 = vpack.c.b16 %v2182, %v2181
      %v2192 = vpack.c.b16 %v2184, %v2183
      %2201 = vmatprep.subr.bf16.mxu0 0
      %2202 = vmatpush1.bf16.msra.mxu0 %v2185
      %2203 = vmatprep.subr.bf16.mxu0 0
      %2204 = vmatpush1.bf16.msra.mxu0 %v2186
      %2205 = vmatprep.subr.bf16.mxu0 0
      %2206 = vmatpush1.bf16.msra.mxu0 %v2187
      %2207 = vmatprep.subr.bf16.mxu0 0
      %2208 = vmatpush1.bf16.msra.mxu0 %v2188
      %2209 = vmatprep.subr.bf16.mxu0 0
      %2210 = vmatpush1.bf16.msra.mxu0 %v2189
      %2211 = vmatprep.subr.bf16.mxu0 0
      %2212 = vmatpush1.bf16.msra.mxu0 %v2190
      %2213 = vmatprep.subr.bf16.mxu0 0
      %2214 = vmatpush1.bf16.msra.mxu0 %v2191
      %2215 = vmatprep.subr.bf16.mxu0 0
      %2216 = vmatpush1.bf16.msra.mxu0 %v2192
      %2217 = vmatprep.subr.bf16.mxu0 0
      %2218 = vmatpush1.bf16.msra.mxu0 0
      %2219 = vmatprep.subr.bf16.mxu0 0
      %2220 = vmatpush1.bf16.msra.mxu0 0
      %2221 = vmatprep.subr.bf16.mxu0 0
      %2222 = vmatpush1.bf16.msra.mxu0 0
      %2223 = vmatprep.subr.bf16.mxu0 0
      %2224 = vmatpush1.bf16.msra.mxu0 0
      %2225 = vmatprep.subr.bf16.mxu0 0
      %2226 = vmatpush1.bf16.msra.mxu0 0
      %2227 = vmatprep.subr.bf16.mxu0 0
      %2228 = vmatpush1.bf16.msra.mxu0 0
      %2229 = vmatprep.subr.bf16.mxu0 0
      %2230 = vmatpush1.bf16.msra.mxu0 0
      %2231 = vmatprep.subr.bf16.mxu0 0
      %2232 = vmatpush1.bf16.msra.mxu0 0
      %2233 = vmatprep.mubr.bf16.mxu0 0
      %2234 = vmatmul.mubr.bf16.gmra.mrb[0].mxu0 %v2126
      %v2235 = vpop.f32.mrb[0].mxu0
      %v2236 = vadd.f32 0.0, %v2235
      %v2237 = vpop.f32.mrb[0].mxu0
      %v2238 = vpop.f32.mrb[0].mxu0
      %v2239 = vadd.f32 0.0, %v2238
      %v2240 = vpop.f32.mrb[0].mxu0
      %2241 = vmatprep.mubr.bf16.mxu0 0
      %2242 = vmatmul.mubr.bf16.gmra.mrb[0].mxu0 %v2130
      %v2243 = vpop.f32.mrb[0].mxu0
      %v2244 = vadd.f32 0.0, %v2243
      %v2245 = vpop.f32.mrb[0].mxu0
      %v2246 = vpop.f32.mrb[0].mxu0
      %v2247 = vadd.f32 0.0, %v2246
      %v2248 = vpop.f32.mrb[0].mxu0
      %2249 = vmatprep.mubr.bf16.mxu0 0
      %2250 = vmatmul.mubr.bf16.gmra.mrb[0].mxu0 %v2134
      %v2251 = vpop.f32.mrb[0].mxu0
      %v2252 = vadd.f32 0.0, %v2251
      %v2253 = vpop.f32.mrb[0].mxu0
      %v2254 = vpop.f32.mrb[0].mxu0
      %v2255 = vadd.f32 0.0, %v2254
      %v2256 = vpop.f32.mrb[0].mxu0
      %2257 = vmatprep.mubr.bf16.mxu0 0
      %2258 = vmatmul.mubr.bf16.gmra.mrb[0].mxu0 %v2138
      %v2259 = vpop.f32.mrb[0].mxu0
      %v2260 = vadd.f32 0.0, %v2259
      %v2261 = vpop.f32.mrb[0].mxu0
      %v2262 = vpop.f32.mrb[0].mxu0
      %v2263 = vadd.f32 0.0, %v2262
      %v2264 = vpop.f32.mrb[0].mxu0
      %2265 = vmatprep.mubr.bf16.mxu0 0
      %2266 = vmatmul.mubr.bf16.gmra.mrb[0].mxu0 %v2147
      %v2267 = vpop.f32.mrb[0].mxu0
      %v2268 = vadd.f32 0.0, %v2267
      %v2269 = vpop.f32.mrb[0].mxu0
      %v2270 = vpop.f32.mrb[0].mxu0
      %v2271 = vadd.f32 0.0, %v2270
      %v2272 = vpop.f32.mrb[0].mxu0
      %2273 = vdwg.mxu0
      %v2274 = vadd.f32 %v2086, %v2236
      %v2275 = vadd.f32 %v2087, %v2239
      %v2276 = vadd.f32 %v2088, %v2244
      %v2277 = vadd.f32 %v2089, %v2247
      %v2278 = vadd.f32 %v2090, %v2252
      %v2279 = vadd.f32 %v2091, %v2255
      %v2280 = vadd.f32 %v2092, %v2260
      %v2281 = vadd.f32 %v2093, %v2263
      %v2282 = vadd.f32 %v2094, %v2268
      %v2283 = vadd.f32 %v2095, %v2271
      %v2284 = vld [vmem:[#allocation2] sm:$0xc0]
      %s2285 = scalar_lea.vmem %s2, 320
      %v2286 = vld [vmem:[%s2285] sm:$0xf]
      %v2287 = vld [vmem:[%s2285 + $0x4] sm:$0xf]
      %v2288 = vld [vmem:[%s2285 + $0x8] sm:$0xf]
      %v2289 = vld [vmem:[%s2285 + $0xc] sm:$0xf]
      %v2290 = vld [vmem:[%s2285 + $0x10] sm:$0xf]
      %v2291 = vld [vmem:[%s2285 + $0x14] sm:$0xf]
      %v2292 = vld [vmem:[%s2285 + $0x18] sm:$0xf]
      %v2293 = vld [vmem:[%s2285 + $0x1c] sm:$0xf]
      %v2294 = vld [vmem:[%s2285 + $0x20] sm:$0xf]
      %v2295 = vld [vmem:[%s2285 + $0x24] sm:$0xf]
      %v2296 = vld [vmem:[%s2285 + $0x28] sm:$0xf]
      %v2297 = vld [vmem:[%s2285 + $0x2c] sm:$0xf]
      %v2298 = vld [vmem:[%s2285 + $0x30] sm:$0xf]
      %v2299 = vld [vmem:[%s2285 + $0x34] sm:$0xf]
      %v2300 = vld [vmem:[%s2285 + $0x38] sm:$0xf]
      %v2301 = vld [vmem:[%s2285 + $0x3c] sm:$0xf]
      %vm2304 = vcmask 1041408
      %v2305 = vrot.slane %v2284, 6
      %v2306 = vrot.slane %v1425, 6
      %v2307 = vsel %vm2304, %v2305, %v2306
      %v2308 = vrot.slane %v1426, 6
      %v2309 = vsel %vm2304, %v2306, %v2308
      %v2310 = vrot.slane %v1427, 6
      %v2311 = vsel %vm2304, %v2308, %v2310
      %v2312 = vrot.slane %v1428, 6
      %v2313 = vsel %vm2304, %v2310, %v2312
      %v2314 = vrot.slane %v2096, 6
      %v2315 = vsel %vm2304, %v2312, %v2314
      %v2337 = vunpack.c.l.b16 %v2286
      %v2338 = vunpack.c.l.b16 %v2287
      %v2339 = vunpack.c.l.b16 %v2288
      %v2340 = vunpack.c.l.b16 %v2289
      %v2341 = vunpack.c.l.b16 %v2290
      %v2342 = vunpack.c.l.b16 %v2291
      %v2343 = vunpack.c.l.b16 %v2292
      %v2344 = vunpack.c.l.b16 %v2293
      %v2345 = vunpack.c.l.b16 %v2294
      %v2346 = vunpack.c.l.b16 %v2295
      %v2347 = vunpack.c.l.b16 %v2296
      %v2348 = vunpack.c.l.b16 %v2297
      %v2349 = vunpack.c.l.b16 %v2298
      %v2350 = vunpack.c.l.b16 %v2299
      %v2351 = vunpack.c.l.b16 %v2300
      %v2352 = vunpack.c.l.b16 %v2301
      %v2353 = vpack.c.b16 %v2338, %v2337
      %v2354 = vpack.c.b16 %v2340, %v2339
      %v2355 = vpack.c.b16 %v2342, %v2341
      %v2356 = vpack.c.b16 %v2344, %v2343
      %v2357 = vpack.c.b16 %v2346, %v2345
      %v2358 = vpack.c.b16 %v2348, %v2347
      %v2359 = vpack.c.b16 %v2350, %v2349
      %v2360 = vpack.c.b16 %v2352, %v2351
      %2369 = vmatprep.subr.bf16.mxu0 0
      %2370 = vmatpush1.bf16.msra.mxu0 %v2353
      %2371 = vmatprep.subr.bf16.mxu0 0
      %2372 = vmatpush1.bf16.msra.mxu0 %v2354
      %2373 = vmatprep.subr.bf16.mxu0 0
      %2374 = vmatpush1.bf16.msra.mxu0 %v2355
      %2375 = vmatprep.subr.bf16.mxu0 0
      %2376 = vmatpush1.bf16.msra.mxu0 %v2356
      %2377 = vmatprep.subr.bf16.mxu0 0
      %2378 = vmatpush1.bf16.msra.mxu0 %v2357
      %2379 = vmatprep.subr.bf16.mxu0 0
      %2380 = vmatpush1.bf16.msra.mxu0 %v2358
      %2381 = vmatprep.subr.bf16.mxu0 0
      %2382 = vmatpush1.bf16.msra.mxu0 %v2359
      %2383 = vmatprep.subr.bf16.mxu0 0
      %2384 = vmatpush1.bf16.msra.mxu0 %v2360
      %2385 = vmatprep.subr.bf16.mxu0 0
      %2386 = vmatpush1.bf16.msra.mxu0 0
      %2387 = vmatprep.subr.bf16.mxu0 0
      %2388 = vmatpush1.bf16.msra.mxu0 0
      %2389 = vmatprep.subr.bf16.mxu0 0
      %2390 = vmatpush1.bf16.msra.mxu0 0
      %2391 = vmatprep.subr.bf16.mxu0 0
      %2392 = vmatpush1.bf16.msra.mxu0 0
      %2393 = vmatprep.subr.bf16.mxu0 0
      %2394 = vmatpush1.bf16.msra.mxu0 0
      %2395 = vmatprep.subr.bf16.mxu0 0
      %2396 = vmatpush1.bf16.msra.mxu0 0
      %2397 = vmatprep.subr.bf16.mxu0 0
      %2398 = vmatpush1.bf16.msra.mxu0 0
      %2399 = vmatprep.subr.bf16.mxu0 0
      %2400 = vmatpush1.bf16.msra.mxu0 0
      %2401 = vmatprep.mubr.bf16.mxu0 0
      %2402 = vmatmul.mubr.bf16.gmra.mrb[0].mxu0 %v2307
      %v2403 = vpop.f32.mrb[0].mxu0
      %v2404 = vadd.f32 0.0, %v2403
      %v2405 = vpop.f32.mrb[0].mxu0
      %v2406 = vpop.f32.mrb[0].mxu0
      %v2407 = vadd.f32 0.0, %v2406
      %v2408 = vpop.f32.mrb[0].mxu0
      %2409 = vmatprep.mubr.bf16.mxu0 0
      %2410 = vmatmul.mubr.bf16.gmra.mrb[0].mxu0 %v2309
      %v2411 = vpop.f32.mrb[0].mxu0
      %v2412 = vadd.f32 0.0, %v2411
      %v2413 = vpop.f32.mrb[0].mxu0
      %v2414 = vpop.f32.mrb[0].mxu0
      %v2415 = vadd.f32 0.0, %v2414
      %v2416 = vpop.f32.mrb[0].mxu0
      %2417 = vmatprep.mubr.bf16.mxu0 0
      %2418 = vmatmul.mubr.bf16.gmra.mrb[0].mxu0 %v2311
      %v2419 = vpop.f32.mrb[0].mxu0
      %v2420 = vadd.f32 0.0, %v2419
      %v2421 = vpop.f32.mrb[0].mxu0
      %v2422 = vpop.f32.mrb[0].mxu0
      %v2423 = vadd.f32 0.0, %v2422
      %v2424 = vpop.f32.mrb[0].mxu0
      %2425 = vmatprep.mubr.bf16.mxu0 0
      %2426 = vmatmul.mubr.bf16.gmra.mrb[0].mxu0 %v2313
      %v2427 = vpop.f32.mrb[0].mxu0
      %v2428 = vadd.f32 0.0, %v2427
      %v2429 = vpop.f32.mrb[0].mxu0
      %v2430 = vpop.f32.mrb[0].mxu0
      %v2431 = vadd.f32 0.0, %v2430
      %v2432 = vpop.f32.mrb[0].mxu0
      %2433 = vmatprep.mubr.bf16.mxu0 0
      %2434 = vmatmul.mubr.bf16.gmra.mrb[0].mxu0 %v2315
      %v2435 = vpop.f32.mrb[0].mxu0
      %v2436 = vadd.f32 0.0, %v2435
      %v2437 = vpop.f32.mrb[0].mxu0
      %v2438 = vpop.f32.mrb[0].mxu0
      %v2439 = vadd.f32 0.0, %v2438
      %v2440 = vpop.f32.mrb[0].mxu0
      %2441 = vdwg.mxu0
      %v2442 = vadd.f32 %v2274, %v2404
      %v2443 = vadd.f32 %v2275, %v2407
      %v2444 = vadd.f32 %v2276, %v2412
      %v2445 = vadd.f32 %v2277, %v2415
      %v2446 = vadd.f32 %v2278, %v2420
      %v2447 = vadd.f32 %v2279, %v2423
      %v2448 = vadd.f32 %v2280, %v2428
      %v2449 = vadd.f32 %v2281, %v2431
      %v2450 = vadd.f32 %v2282, %v2436
      %v2451 = vadd.f32 %v2283, %v2439
      %v2452 = vld [vmem:[#allocation2 + $0x8] sm:$0xfc]
      %v2453 = vld [vmem:[#allocation2 + $0x10] sm:$0xff]
      %v2454 = vld [vmem:[#allocation2 + $0x18] sm:$0xff]
      %v2455 = vld [vmem:[#allocation2 + $0x20] sm:$0xff]
      %v2456 = vld [vmem:[#allocation2 + $0x28] sm:$0xff]
      %v2457 = vld [vmem:[#allocation2 + $0x30] sm:$0x3]
      %s2458 = scalar_lea.vmem %s2, 384
      %v2459 = vld [vmem:[%s2458] sm:$0xf]
      %v2460 = vld [vmem:[%s2458 + $0x4] sm:$0xf]
      %v2461 = vld [vmem:[%s2458 + $0x8] sm:$0xf]
      %v2462 = vld [vmem:[%s2458 + $0xc] sm:$0xf]
      %v2463 = vld [vmem:[%s2458 + $0x10] sm:$0xf]
      %v2464 = vld [vmem:[%s2458 + $0x14] sm:$0xf]
      %v2465 = vld [vmem:[%s2458 + $0x18] sm:$0xf]
      %v2466 = vld [vmem:[%s2458 + $0x1c] sm:$0xf]
      %v2467 = vld [vmem:[%s2458 + $0x20] sm:$0xf]
      %v2468 = vld [vmem:[%s2458 + $0x24] sm:$0xf]
      %v2469 = vld [vmem:[%s2458 + $0x28] sm:$0xf]
      %v2470 = vld [vmem:[%s2458 + $0x2c] sm:$0xf]
      %v2471 = vld [vmem:[%s2458 + $0x30] sm:$0xf]
      %v2472 = vld [vmem:[%s2458 + $0x34] sm:$0xf]
      %v2473 = vld [vmem:[%s2458 + $0x38] sm:$0xf]
      %v2474 = vld [vmem:[%s2458 + $0x3c] sm:$0xf]
      %vm2481 = vcmask 1045504
      %v2482 = vrot.slane %v2452, 2
      %v2483 = vrot.slane %v2453, 2
      %v2484 = vsel %vm2481, %v2482, %v2483
      %v2485 = vrot.slane %v2454, 2
      %v2486 = vsel %vm2481, %v2483, %v2485
      %v2487 = vrot.slane %v2455, 2
      %v2488 = vsel %vm2481, %v2485, %v2487
      %v2489 = vrot.slane %v2456, 2
      %v2490 = vsel %vm2481, %v2487, %v2489
      %v2491 = vrot.slane %v2457, 2
      %v2492 = vsel %vm2481, %v2489, %v2491
      %v2514 = vunpack.c.l.b16 %v2459
      %v2515 = vunpack.c.l.b16 %v2460
      %v2516 = vunpack.c.l.b16 %v2461
      %v2517 = vunpack.c.l.b16 %v2462
      %v2518 = vunpack.c.l.b16 %v2463
      %v2519 = vunpack.c.l.b16 %v2464
      %v2520 = vunpack.c.l.b16 %v2465
      %v2521 = vunpack.c.l.b16 %v2466
      %v2522 = vunpack.c.l.b16 %v2467
      %v2523 = vunpack.c.l.b16 %v2468
      %v2524 = vunpack.c.l.b16 %v2469
      %v2525 = vunpack.c.l.b16 %v2470
      %v2526 = vunpack.c.l.b16 %v2471
      %v2527 = vunpack.c.l.b16 %v2472
      %v2528 = vunpack.c.l.b16 %v2473
      %v2529 = vunpack.c.l.b16 %v2474
      %v2530 = vpack.c.b16 %v2515, %v2514
      %v2531 = vpack.c.b16 %v2517, %v2516
      %v2532 = vpack.c.b16 %v2519, %v2518
      %v2533 = vpack.c.b16 %v2521, %v2520
      %v2534 = vpack.c.b16 %v2523, %v2522
      %v2535 = vpack.c.b16 %v2525, %v2524
      %v2536 = vpack.c.b16 %v2527, %v2526
      %v2537 = vpack.c.b16 %v2529, %v2528
      %2546 = vmatprep.subr.bf16.mxu0 0
      %2547 = vmatpush1.bf16.msra.mxu0 %v2530
      %2548 = vmatprep.subr.bf16.mxu0 0
      %2549 = vmatpush1.bf16.msra.mxu0 %v2531
      %2550 = vmatprep.subr.bf16.mxu0 0
      %2551 = vmatpush1.bf16.msra.mxu0 %v2532
      %2552 = vmatprep.subr.bf16.mxu0 0
      %2553 = vmatpush1.bf16.msra.mxu0 %v2533
      %2554 = vmatprep.subr.bf16.mxu0 0
      %2555 = vmatpush1.bf16.msra.mxu0 %v2534
      %2556 = vmatprep.subr.bf16.mxu0 0
      %2557 = vmatpush1.bf16.msra.mxu0 %v2535
      %2558 = vmatprep.subr.bf16.mxu0 0
      %2559 = vmatpush1.bf16.msra.mxu0 %v2536
      %2560 = vmatprep.subr.bf16.mxu0 0
      %2561 = vmatpush1.bf16.msra.mxu0 %v2537
      %2562 = vmatprep.subr.bf16.mxu0 0
      %2563 = vmatpush1.bf16.msra.mxu0 0
      %2564 = vmatprep.subr.bf16.mxu0 0
      %2565 = vmatpush1.bf16.msra.mxu0 0
      %2566 = vmatprep.subr.bf16.mxu0 0
      %2567 = vmatpush1.bf16.msra.mxu0 0
      %2568 = vmatprep.subr.bf16.mxu0 0
      %2569 = vmatpush1.bf16.msra.mxu0 0
      %2570 = vmatprep.subr.bf16.mxu0 0
      %2571 = vmatpush1.bf16.msra.mxu0 0
      %2572 = vmatprep.subr.bf16.mxu0 0
      %2573 = vmatpush1.bf16.msra.mxu0 0
      %2574 = vmatprep.subr.bf16.mxu0 0
      %2575 = vmatpush1.bf16.msra.mxu0 0
      %2576 = vmatprep.subr.bf16.mxu0 0
      %2577 = vmatpush1.bf16.msra.mxu0 0
      %2578 = vmatprep.mubr.bf16.mxu0 0
      %2579 = vmatmul.mubr.bf16.gmra.mrb[0].mxu0 %v2484
      %v2580 = vpop.f32.mrb[0].mxu0
      %v2581 = vadd.f32 0.0, %v2580
      %v2582 = vpop.f32.mrb[0].mxu0
      %v2583 = vpop.f32.mrb[0].mxu0
      %v2584 = vadd.f32 0.0, %v2583
      %v2585 = vpop.f32.mrb[0].mxu0
      %2586 = vmatprep.mubr.bf16.mxu0 0
      %2587 = vmatmul.mubr.bf16.gmra.mrb[0].mxu0 %v2486
      %v2588 = vpop.f32.mrb[0].mxu0
      %v2589 = vadd.f32 0.0, %v2588
      %v2590 = vpop.f32.mrb[0].mxu0
      %v2591 = vpop.f32.mrb[0].mxu0
      %v2592 = vadd.f32 0.0, %v2591
      %v2593 = vpop.f32.mrb[0].mxu0
      %2594 = vmatprep.mubr.bf16.mxu0 0
      %2595 = vmatmul.mubr.bf16.gmra.mrb[0].mxu0 %v2488
      %v2596 = vpop.f32.mrb[0].mxu0
      %v2597 = vadd.f32 0.0, %v2596
      %v2598 = vpop.f32.mrb[0].mxu0
      %v2599 = vpop.f32.mrb[0].mxu0
      %v2600 = vadd.f32 0.0, %v2599
      %v2601 = vpop.f32.mrb[0].mxu0
      %2602 = vmatprep.mubr.bf16.mxu0 0
      %2603 = vmatmul.mubr.bf16.gmra.mrb[0].mxu0 %v2490
      %v2604 = vpop.f32.mrb[0].mxu0
      %v2605 = vadd.f32 0.0, %v2604
      %v2606 = vpop.f32.mrb[0].mxu0
      %v2607 = vpop.f32.mrb[0].mxu0
      %v2608 = vadd.f32 0.0, %v2607
      %v2609 = vpop.f32.mrb[0].mxu0
      %2610 = vmatprep.mubr.bf16.mxu0 0
      %2611 = vmatmul.mubr.bf16.gmra.mrb[0].mxu0 %v2492
      %v2612 = vpop.f32.mrb[0].mxu0
      %v2613 = vadd.f32 0.0, %v2612
      %v2614 = vpop.f32.mrb[0].mxu0
      %v2615 = vpop.f32.mrb[0].mxu0
      %v2616 = vadd.f32 0.0, %v2615
      %v2617 = vpop.f32.mrb[0].mxu0
      %2618 = vdwg.mxu0
      %v2619 = vadd.f32 %v2442, %v2581
      %v2620 = vadd.f32 %v2443, %v2584
      %v2621 = vadd.f32 %v2444, %v2589
      %v2622 = vadd.f32 %v2445, %v2592
      %v2623 = vadd.f32 %v2446, %v2597
      %v2624 = vadd.f32 %v2447, %v2600
      %v2625 = vadd.f32 %v2448, %v2605
      %v2626 = vadd.f32 %v2449, %v2608
      %v2627 = vadd.f32 %v2450, %v2613
      %v2628 = vadd.f32 %v2451, %v2616
      %v2629 = vld [vmem:[#allocation2 + $0x30] sm:$0x7]
      %s2630 = scalar_lea.vmem %s2, 448
      %v2631 = vld [vmem:[%s2630] sm:$0xf]
      %v2632 = vld [vmem:[%s2630 + $0x4] sm:$0xf]
      %v2633 = vld [vmem:[%s2630 + $0x8] sm:$0xf]
      %v2634 = vld [vmem:[%s2630 + $0xc] sm:$0xf]
      %v2635 = vld [vmem:[%s2630 + $0x10] sm:$0xf]
      %v2636 = vld [vmem:[%s2630 + $0x14] sm:$0xf]
      %v2637 = vld [vmem:[%s2630 + $0x18] sm:$0xf]
      %v2638 = vld [vmem:[%s2630 + $0x1c] sm:$0xf]
      %v2639 = vld [vmem:[%s2630 + $0x20] sm:$0xf]
      %v2640 = vld [vmem:[%s2630 + $0x24] sm:$0xf]
      %v2641 = vld [vmem:[%s2630 + $0x28] sm:$0xf]
      %v2642 = vld [vmem:[%s2630 + $0x2c] sm:$0xf]
      %v2643 = vld [vmem:[%s2630 + $0x30] sm:$0xf]
      %v2644 = vld [vmem:[%s2630 + $0x34] sm:$0xf]
      %v2645 = vld [vmem:[%s2630 + $0x38] sm:$0xf]
      %v2646 = vld [vmem:[%s2630 + $0x3c] sm:$0xf]
      %vm2647 = vsmask.f32 5376
      %v2649 = vshrl.u32 %v2452, 16
      %v2651 = vrot.slane %v2649, 2
      %v2652 = vshll.u32 %v2452, 16
      %v2654 = vrot.slane %v2652, 3
      %v2655 = vor.u32 %v2651, %v2654
      %v2657 = vshrl.u32 %v2453, 16
      %v2659 = vrot.slane %v2657, 2
      %v2660 = vshll.u32 %v2453, 16
      %v2662 = vrot.slane %v2660, 3
      %v2663 = vor.u32 %v2659, %v2662
      %v2664 = vsel %vm2647, %v2655, %v2663
      %v2666 = vshrl.u32 %v2454, 16
      %v2668 = vrot.slane %v2666, 2
      %v2669 = vshll.u32 %v2454, 16
      %v2671 = vrot.slane %v2669, 3
      %v2672 = vor.u32 %v2668, %v2671
      %v2673 = vsel %vm2647, %v2663, %v2672
      %v2675 = vshrl.u32 %v2455, 16
      %v2677 = vrot.slane %v2675, 2
      %v2678 = vshll.u32 %v2455, 16
      %v2680 = vrot.slane %v2678, 3
      %v2681 = vor.u32 %v2677, %v2680
      %v2682 = vsel %vm2647, %v2672, %v2681
      %v2684 = vshrl.u32 %v2456, 16
      %v2686 = vrot.slane %v2684, 2
      %v2687 = vshll.u32 %v2456, 16
      %v2689 = vrot.slane %v2687, 3
      %v2690 = vor.u32 %v2686, %v2689
      %v2691 = vsel %vm2647, %v2681, %v2690
      %v2693 = vshrl.u32 %v2629, 16
      %v2695 = vrot.slane %v2693, 2
      %v2696 = vshll.u32 %v2629, 16
      %v2698 = vrot.slane %v2696, 3
      %v2699 = vor.u32 %v2695, %v2698
      %v2700 = vsel %vm2647, %v2690, %v2699
      %v2722 = vunpack.c.l.b16 %v2631
      %v2723 = vunpack.c.l.b16 %v2632
      %v2724 = vunpack.c.l.b16 %v2633
      %v2725 = vunpack.c.l.b16 %v2634
      %v2726 = vunpack.c.l.b16 %v2635
      %v2727 = vunpack.c.l.b16 %v2636
      %v2728 = vunpack.c.l.b16 %v2637
      %v2729 = vunpack.c.l.b16 %v2638
      %v2730 = vunpack.c.l.b16 %v2639
      %v2731 = vunpack.c.l.b16 %v2640
      %v2732 = vunpack.c.l.b16 %v2641
      %v2733 = vunpack.c.l.b16 %v2642
      %v2734 = vunpack.c.l.b16 %v2643
      %v2735 = vunpack.c.l.b16 %v2644
      %v2736 = vunpack.c.l.b16 %v2645
      %v2737 = vunpack.c.l.b16 %v2646
      %v2738 = vpack.c.b16 %v2723, %v2722
      %v2739 = vpack.c.b16 %v2725, %v2724
      %v2740 = vpack.c.b16 %v2727, %v2726
      %v2741 = vpack.c.b16 %v2729, %v2728
      %v2742 = vpack.c.b16 %v2731, %v2730
      %v2743 = vpack.c.b16 %v2733, %v2732
      %v2744 = vpack.c.b16 %v2735, %v2734
      %v2745 = vpack.c.b16 %v2737, %v2736
      %2754 = vmatprep.subr.bf16.mxu0 0
      %2755 = vmatpush1.bf16.msra.mxu0 %v2738
      %2756 = vmatprep.subr.bf16.mxu0 0
      %2757 = vmatpush1.bf16.msra.mxu0 %v2739
      %2758 = vmatprep.subr.bf16.mxu0 0
      %2759 = vmatpush1.bf16.msra.mxu0 %v2740
      %2760 = vmatprep.subr.bf16.mxu0 0
      %2761 = vmatpush1.bf16.msra.mxu0 %v2741
      %2762 = vmatprep.subr.bf16.mxu0 0
      %2763 = vmatpush1.bf16.msra.mxu0 %v2742
      %2764 = vmatprep.subr.bf16.mxu0 0
      %2765 = vmatpush1.bf16.msra.mxu0 %v2743
      %2766 = vmatprep.subr.bf16.mxu0 0
      %2767 = vmatpush1.bf16.msra.mxu0 %v2744
      %2768 = vmatprep.subr.bf16.mxu0 0
      %2769 = vmatpush1.bf16.msra.mxu0 %v2745
      %2770 = vmatprep.subr.bf16.mxu0 0
      %2771 = vmatpush1.bf16.msra.mxu0 0
      %2772 = vmatprep.subr.bf16.mxu0 0
      %2773 = vmatpush1.bf16.msra.mxu0 0
      %2774 = vmatprep.subr.bf16.mxu0 0
      %2775 = vmatpush1.bf16.msra.mxu0 0
      %2776 = vmatprep.subr.bf16.mxu0 0
      %2777 = vmatpush1.bf16.msra.mxu0 0
      %2778 = vmatprep.subr.bf16.mxu0 0
      %2779 = vmatpush1.bf16.msra.mxu0 0
      %2780 = vmatprep.subr.bf16.mxu0 0
      %2781 = vmatpush1.bf16.msra.mxu0 0
      %2782 = vmatprep.subr.bf16.mxu0 0
      %2783 = vmatpush1.bf16.msra.mxu0 0
      %2784 = vmatprep.subr.bf16.mxu0 0
      %2785 = vmatpush1.bf16.msra.mxu0 0
      %2786 = vmatprep.mubr.bf16.mxu0 0
      %2787 = vmatmul.mubr.bf16.gmra.mrb[0].mxu0 %v2664
      %v2788 = vpop.f32.mrb[0].mxu0
      %v2789 = vadd.f32 0.0, %v2788
      %v2790 = vpop.f32.mrb[0].mxu0
      %v2791 = vpop.f32.mrb[0].mxu0
      %v2792 = vadd.f32 0.0, %v2791
      %v2793 = vpop.f32.mrb[0].mxu0
      %2794 = vmatprep.mubr.bf16.mxu0 0
      %2795 = vmatmul.mubr.bf16.gmra.mrb[0].mxu0 %v2673
      %v2796 = vpop.f32.mrb[0].mxu0
      %v2797 = vadd.f32 0.0, %v2796
      %v2798 = vpop.f32.mrb[0].mxu0
      %v2799 = vpop.f32.mrb[0].mxu0
      %v2800 = vadd.f32 0.0, %v2799
      %v2801 = vpop.f32.mrb[0].mxu0
      %2802 = vmatprep.mubr.bf16.mxu0 0
      %2803 = vmatmul.mubr.bf16.gmra.mrb[0].mxu0 %v2682
      %v2804 = vpop.f32.mrb[0].mxu0
      %v2805 = vadd.f32 0.0, %v2804
      %v2806 = vpop.f32.mrb[0].mxu0
      %v2807 = vpop.f32.mrb[0].mxu0
      %v2808 = vadd.f32 0.0, %v2807
      %v2809 = vpop.f32.mrb[0].mxu0
      %2810 = vmatprep.mubr.bf16.mxu0 0
      %2811 = vmatmul.mubr.bf16.gmra.mrb[0].mxu0 %v2691
      %v2812 = vpop.f32.mrb[0].mxu0
      %v2813 = vadd.f32 0.0, %v2812
      %v2814 = vpop.f32.mrb[0].mxu0
      %v2815 = vpop.f32.mrb[0].mxu0
      %v2816 = vadd.f32 0.0, %v2815
      %v2817 = vpop.f32.mrb[0].mxu0
      %2818 = vmatprep.mubr.bf16.mxu0 0
      %2819 = vmatmul.mubr.bf16.gmra.mrb[0].mxu0 %v2700
      %v2820 = vpop.f32.mrb[0].mxu0
      %v2821 = vadd.f32 0.0, %v2820
      %v2822 = vpop.f32.mrb[0].mxu0
      %v2823 = vpop.f32.mrb[0].mxu0
      %v2824 = vadd.f32 0.0, %v2823
      %v2825 = vpop.f32.mrb[0].mxu0
      %2826 = vdwg.mxu0
      %v2827 = vadd.f32 %v2619, %v2789
      %v2828 = vadd.f32 %v2620, %v2792
      %v2829 = vadd.f32 %v2621, %v2797
      %v2830 = vadd.f32 %v2622, %v2800
      %v2831 = vadd.f32 %v2623, %v2805
      %v2832 = vadd.f32 %v2624, %v2808
      %v2833 = vadd.f32 %v2625, %v2813
      %v2834 = vadd.f32 %v2626, %v2816
      %v2835 = vadd.f32 %v2627, %v2821
      %v2836 = vadd.f32 %v2628, %v2824
      %v2837 = vld [vmem:[#allocation2 + $0x8] sm:$0xf8]
      %s2838 = scalar_lea.vmem %s2, 512
      %v2839 = vld [vmem:[%s2838] sm:$0xf]
      %v2840 = vld [vmem:[%s2838 + $0x4] sm:$0xf]
      %v2841 = vld [vmem:[%s2838 + $0x8] sm:$0xf]
      %v2842 = vld [vmem:[%s2838 + $0xc] sm:$0xf]
      %v2843 = vld [vmem:[%s2838 + $0x10] sm:$0xf]
      %v2844 = vld [vmem:[%s2838 + $0x14] sm:$0xf]
      %v2845 = vld [vmem:[%s2838 + $0x18] sm:$0xf]
      %v2846 = vld [vmem:[%s2838 + $0x1c] sm:$0xf]
      %v2847 = vld [vmem:[%s2838 + $0x20] sm:$0xf]
      %v2848 = vld [vmem:[%s2838 + $0x24] sm:$0xf]
      %v2849 = vld [vmem:[%s2838 + $0x28] sm:$0xf]
      %v2850 = vld [vmem:[%s2838 + $0x2c] sm:$0xf]
      %v2851 = vld [vmem:[%s2838 + $0x30] sm:$0xf]
      %v2852 = vld [vmem:[%s2838 + $0x34] sm:$0xf]
      %v2853 = vld [vmem:[%s2838 + $0x38] sm:$0xf]
      %v2854 = vld [vmem:[%s2838 + $0x3c] sm:$0xf]
      %vm2857 = vcmask 1044480
      %v2858 = vrot.slane %v2837, 3
      %v2859 = vrot.slane %v2453, 3
      %v2860 = vsel %vm2857, %v2858, %v2859
      %v2861 = vrot.slane %v2454, 3
      %v2862 = vsel %vm2857, %v2859, %v2861
      %v2863 = vrot.slane %v2455, 3
      %v2864 = vsel %vm2857, %v2861, %v2863
      %v2865 = vrot.slane %v2456, 3
      %v2866 = vsel %vm2857, %v2863, %v2865
      %v2867 = vrot.slane %v2629, 3
      %v2868 = vsel %vm2857, %v2865, %v2867
      %v2890 = vunpack.c.l.b16 %v2839
      %v2891 = vunpack.c.l.b16 %v2840
      %v2892 = vunpack.c.l.b16 %v2841
      %v2893 = vunpack.c.l.b16 %v2842
      %v2894 = vunpack.c.l.b16 %v2843
      %v2895 = vunpack.c.l.b16 %v2844
      %v2896 = vunpack.c.l.b16 %v2845
      %v2897 = vunpack.c.l.b16 %v2846
      %v2898 = vunpack.c.l.b16 %v2847
      %v2899 = vunpack.c.l.b16 %v2848
      %v2900 = vunpack.c.l.b16 %v2849
      %v2901 = vunpack.c.l.b16 %v2850
      %v2902 = vunpack.c.l.b16 %v2851
      %v2903 = vunpack.c.l.b16 %v2852
      %v2904 = vunpack.c.l.b16 %v2853
      %v2905 = vunpack.c.l.b16 %v2854
      %v2906 = vpack.c.b16 %v2891, %v2890
      %v2907 = vpack.c.b16 %v2893, %v2892
      %v2908 = vpack.c.b16 %v2895, %v2894
      %v2909 = vpack.c.b16 %v2897, %v2896
      %v2910 = vpack.c.b16 %v2899, %v2898
      %v2911 = vpack.c.b16 %v2901, %v2900
      %v2912 = vpack.c.b16 %v2903, %v2902
      %v2913 = vpack.c.b16 %v2905, %v2904
      %2922 = vmatprep.subr.bf16.mxu0 0
      %2923 = vmatpush1.bf16.msra.mxu0 %v2906
      %2924 = vmatprep.subr.bf16.mxu0 0
      %2925 = vmatpush1.bf16.msra.mxu0 %v2907
      %2926 = vmatprep.subr.bf16.mxu0 0
      %2927 = vmatpush1.bf16.msra.mxu0 %v2908
      %2928 = vmatprep.subr.bf16.mxu0 0
      %2929 = vmatpush1.bf16.msra.mxu0 %v2909
      %2930 = vmatprep.subr.bf16.mxu0 0
      %2931 = vmatpush1.bf16.msra.mxu0 %v2910
      %2932 = vmatprep.subr.bf16.mxu0 0
      %2933 = vmatpush1.bf16.msra.mxu0 %v2911
      %2934 = vmatprep.subr.bf16.mxu0 0
      %2935 = vmatpush1.bf16.msra.mxu0 %v2912
      %2936 = vmatprep.subr.bf16.mxu0 0
      %2937 = vmatpush1.bf16.msra.mxu0 %v2913
      %2938 = vmatprep.subr.bf16.mxu0 0
      %2939 = vmatpush1.bf16.msra.mxu0 0
      %2940 = vmatprep.subr.bf16.mxu0 0
      %2941 = vmatpush1.bf16.msra.mxu0 0
      %2942 = vmatprep.subr.bf16.mxu0 0
      %2943 = vmatpush1.bf16.msra.mxu0 0
      %2944 = vmatprep.subr.bf16.mxu0 0
      %2945 = vmatpush1.bf16.msra.mxu0 0
      %2946 = vmatprep.subr.bf16.mxu0 0
      %2947 = vmatpush1.bf16.msra.mxu0 0
      %2948 = vmatprep.subr.bf16.mxu0 0
      %2949 = vmatpush1.bf16.msra.mxu0 0
      %2950 = vmatprep.subr.bf16.mxu0 0
      %2951 = vmatpush1.bf16.msra.mxu0 0
      %2952 = vmatprep.subr.bf16.mxu0 0
      %2953 = vmatpush1.bf16.msra.mxu0 0
      %2954 = vmatprep.mubr.bf16.mxu0 0
      %2955 = vmatmul.mubr.bf16.gmra.mrb[0].mxu0 %v2860
      %v2956 = vpop.f32.mrb[0].mxu0
      %v2957 = vadd.f32 0.0, %v2956
      %v2958 = vpop.f32.mrb[0].mxu0
      %v2959 = vpop.f32.mrb[0].mxu0
      %v2960 = vadd.f32 0.0, %v2959
      %v2961 = vpop.f32.mrb[0].mxu0
      %2962 = vmatprep.mubr.bf16.mxu0 0
      %2963 = vmatmul.mubr.bf16.gmra.mrb[0].mxu0 %v2862
      %v2964 = vpop.f32.mrb[0].mxu0
      %v2965 = vadd.f32 0.0, %v2964
      %v2966 = vpop.f32.mrb[0].mxu0
      %v2967 = vpop.f32.mrb[0].mxu0
      %v2968 = vadd.f32 0.0, %v2967
      %v2969 = vpop.f32.mrb[0].mxu0
      %2970 = vmatprep.mubr.bf16.mxu0 0
      %2971 = vmatmul.mubr.bf16.gmra.mrb[0].mxu0 %v2864
      %v2972 = vpop.f32.mrb[0].mxu0
      %v2973 = vadd.f32 0.0, %v2972
      %v2974 = vpop.f32.mrb[0].mxu0
      %v2975 = vpop.f32.mrb[0].mxu0
      %v2976 = vadd.f32 0.0, %v2975
      %v2977 = vpop.f32.mrb[0].mxu0
      %2978 = vmatprep.mubr.bf16.mxu0 0
      %2979 = vmatmul.mubr.bf16.gmra.mrb[0].mxu0 %v2866
      %v2980 = vpop.f32.mrb[0].mxu0
      %v2981 = vadd.f32 0.0, %v2980
      %v2982 = vpop.f32.mrb[0].mxu0
      %v2983 = vpop.f32.mrb[0].mxu0
      %v2984 = vadd.f32 0.0, %v2983
      %v2985 = vpop.f32.mrb[0].mxu0
      %2986 = vmatprep.mubr.bf16.mxu0 0
      %2987 = vmatmul.mubr.bf16.gmra.mrb[0].mxu0 %v2868
      %v2988 = vpop.f32.mrb[0].mxu0
      %v2989 = vadd.f32 0.0, %v2988
      %v2990 = vpop.f32.mrb[0].mxu0
      %v2991 = vpop.f32.mrb[0].mxu0
      %v2992 = vadd.f32 0.0, %v2991
      %v2993 = vpop.f32.mrb[0].mxu0
      %2994 = vdwg.mxu0
      %v2995 = vadd.f32 %v2827, %v2957
      %v2996 = vadd.f32 %v2828, %v2960
      %v2997 = vadd.f32 %v2829, %v2965
      %v2998 = vadd.f32 %v2830, %v2968
      %v2999 = vadd.f32 %v2831, %v2973
      %v3000 = vadd.f32 %v2832, %v2976
      %v3001 = vadd.f32 %v2833, %v2981
      %v3002 = vadd.f32 %v2834, %v2984
      %v3003 = vadd.f32 %v2835, %v2989
      %v3004 = vadd.f32 %v2836, %v2992
      %v3005 = vmul.f32 %v2995, %v447
      %v3006 = vmul.f32 %v2996, %v452
      %v3007 = vmul.f32 %v2997, %v457
      %v3008 = vmul.f32 %v2998, %v462
      %v3009 = vmul.f32 %v2999, %v467
      %v3010 = vmul.f32 %v3000, %v472
      %v3011 = vmul.f32 %v3001, %v477
      %v3012 = vmul.f32 %v3002, %v482
      %v3013 = vmul.f32 %v3003, %v487
      %v3014 = vmul.f32 %v3004, %v492
      %v3015 = vadd.f32 %v3005, %v3006
      %v3016 = vadd.f32 %v3015, %v3007
      %v3017 = vadd.f32 %v3016, %v3008
      %v3018 = vadd.f32 %v3017, %v3009
      %v3019 = vadd.f32 %v3018, %v3010
      %v3020 = vadd.f32 %v3019, %v3011
      %v3021 = vadd.f32 %v3020, %v3012
      %v3022 = vadd.f32 %v3021, %v3013
      %v3023 = vadd.f32 %v3022, %v3014
      %v3024 = vrot.slane %v3023, 4
      %v3025 = vadd.f32 %v3023, %v3024
      %v3026 = vrot.slane %v3025, 2
      %v3027 = vadd.f32 %v3025, %v3026
      %v3028 = vrot.slane %v3027, 1
      %v3029 = vadd.f32 %v3027, %v3028
      %v3030 = vmul.f32 %v3029, %v519
      %v3031 = vsub.f32 %v2995, %v3030
      %v3032 = vsub.f32 %v2996, %v3030
      %v3033 = vsub.f32 %v2997, %v3030
      %v3034 = vsub.f32 %v2998, %v3030
      %v3035 = vsub.f32 %v2999, %v3030
      %v3036 = vsub.f32 %v3000, %v3030
      %v3037 = vsub.f32 %v3001, %v3030
      %v3038 = vsub.f32 %v3002, %v3030
      %v3039 = vsub.f32 %v3003, %v3030
      %v3040 = vsub.f32 %v3004, %v3030
      %v3041 = vmul.f32 %v3031, %v447
      %v3042 = vmul.f32 %v3032, %v452
      %v3043 = vmul.f32 %v3033, %v457
      %v3044 = vmul.f32 %v3034, %v462
      %v3045 = vmul.f32 %v3035, %v467
      %v3046 = vmul.f32 %v3036, %v472
      %v3047 = vmul.f32 %v3037, %v477
      %v3048 = vmul.f32 %v3038, %v482
      %v3049 = vmul.f32 %v3039, %v487
      %v3050 = vmul.f32 %v3040, %v492
      %v3051 = vmul.f32 %v3041, %v3041
      %v3052 = vmul.f32 %v3042, %v3042
      %v3053 = vmul.f32 %v3043, %v3043
      %v3054 = vmul.f32 %v3044, %v3044
      %v3055 = vmul.f32 %v3045, %v3045
      %v3056 = vmul.f32 %v3046, %v3046
      %v3057 = vmul.f32 %v3047, %v3047
      %v3058 = vmul.f32 %v3048, %v3048
      %v3059 = vmul.f32 %v3049, %v3049
      %v3060 = vmul.f32 %v3050, %v3050
      %v3061 = vadd.f32 %v3051, %v3052
      %v3062 = vadd.f32 %v3061, %v3053
      %v3063 = vadd.f32 %v3062, %v3054
      %v3064 = vadd.f32 %v3063, %v3055
      %v3065 = vadd.f32 %v3064, %v3056
      %v3066 = vadd.f32 %v3065, %v3057
      %v3067 = vadd.f32 %v3066, %v3058
      %v3068 = vadd.f32 %v3067, %v3059
      %v3069 = vadd.f32 %v3068, %v3060
      %v3070 = vrot.slane %v3069, 4
      %v3071 = vadd.f32 %v3069, %v3070
      %v3072 = vrot.slane %v3071, 2
      %v3073 = vadd.f32 %v3071, %v3072
      %v3074 = vrot.slane %v3073, 1
      %v3075 = vadd.f32 %v3073, %v3074
      %v3076 = vmul.f32 %v3075, %v519
      %v3077 = vadd.f32 %v3076, 1e-05
      %v3078 = vrsqrt.pop %v3077
      %v3079 = vmul.f32 %v3041, %v3078
      %v3080 = vmul.f32 %v3042, %v3078
      %v3081 = vmul.f32 %v3043, %v3078
      %v3082 = vmul.f32 %v3044, %v3078
      %v3083 = vmul.f32 %v3045, %v3078
      %v3084 = vmul.f32 %v3046, %v3078
      %v3085 = vmul.f32 %v3047, %v3078
      %v3086 = vmul.f32 %v3048, %v3078
      %v3087 = vmul.f32 %v3049, %v3078
      %v3088 = vmul.f32 %v3050, %v3078
      %3089 = vst [vmem:[%s197] sm:$0xff] %v3079
      %3090 = vst [vmem:[%s197 + $0x8] sm:$0xff] %v3080
      %3091 = vst [vmem:[%s197 + $0x10] sm:$0xff] %v3081
      %3092 = vst [vmem:[%s197 + $0x18] sm:$0xff] %v3082
      %3093 = vst [vmem:[%s197 + $0x20] sm:$0xff] %v3083
      %3094 = vst [vmem:[%s197 + $0x28] sm:$0xff] %v3084
      %3095 = vst [vmem:[%s197 + $0x30] sm:$0xff] %v3085
      %3096 = vst [vmem:[%s197 + $0x38] sm:$0xff] %v3086
      %3097 = vst [vmem:[%s197 + $0x40] sm:$0xff] %v3087
      %3098 = vst [vmem:[%s197 + $0x48] sm:$0xff] %v3088
      %p3099 = scmp.lt.s32.totalorder %s15, 1
      %s3100 = scalar_select %p3099, %s15, 1
      %s3101 = smul.addr %s3100, 10
      %s3102 = smul.addr %s3101, 8
      %s3103 = scalar_lea.vmem %s4, %s3102
      // Predicated region
      $region37: #{resnet_matching_encoder_forward.7} parent=35 // pred_check
        %p3104 = pneg %p122
      $region38: #{resnet_matching_encoder_forward.7} parent=35 // pred_check_branch
        %3106 = sbr.rel (%p3104) target = $region40
      $region39: #{resnet_matching_encoder_forward.7} parent=35 // pred_region
        _
      $region40: #{resnet_matching_encoder_forward.7} parent=35 // pred_fallthru
        _
    $region36: #{resnet_matching_encoder_forward.7} parent=5 // pred_fallthru
      _
    %p3107 = scmp.le.s32.totalorder 2, %s10
    // Predicated region
    $region41: #{resnet_matching_encoder_forward.7} parent=5 // pred_check
      %p3108 = pneg %p3107
    $region42: #{resnet_matching_encoder_forward.7} parent=5 // pred_check_branch
      %3110 = sbr.rel (%p3108) target = $region44
    $region43: #{resnet_matching_encoder_forward.7} parent=5 // pred_region
      %s3111 = ssub.s32 %s10, 2
      // Predicated region
      $region45: #{resnet_matching_encoder_forward.7} parent=43 // pred_check
        %p3112 = pneg %p128
      $region46: #{resnet_matching_encoder_forward.7} parent=43 // pred_check_branch
        %3114 = sbr.rel (%p3112) target = $region48
      $region47: #{resnet_matching_encoder_forward.7} parent=43 // pred_region
        %p3115 = scmp.lt.s32.totalorder %s16, 1
        %s3116 = scalar_select %p3115, %s16, 1
        %s3117 = smul.addr %s3116, 10
        %s3118 = smul.addr %s3117, 8
        %s3119 = scalar_lea.vmem %s4, %s3118
      $region48: #{resnet_matching_encoder_forward.7} parent=43 // pred_fallthru
        _
    $region44: #{resnet_matching_encoder_forward.7} parent=5 // pred_fallthru
      _
  $region6: #{resnet_matching_encoder_forward.7} parent=0 // loop_footer
    %s14 = sadd.s32 1, %s10
  $region7: #{resnet_matching_encoder_forward.7} parent=0 // loop_footer_branch
    %9 = sbr.rel target = $region3
  $region8: #{resnet_matching_encoder_forward.7} parent=0 // loop_exit
    _

// kernel: resnet_matching_encoder_forward.5
$region0: #{resnet_matching_encoder_forward.5}
  #allocation0 [shape = 'u32[]', space=smem, size = 0x4, offset = 0x4, fixed_abs, tag = 'smem constant byte address 0x4 - core index']
  #allocation1 [shape = 'u32[144,128]{1,0:T(1,128)}', space=vmem, size = 0x12000, scoped, tag = 'internal scratch']
  #allocation2 [shape = 'bf16[112,128]{1,0:T(16,128)(2,1)}', space=vmem, size = 0x7000, scoped, tag = 'scratch operand']
  %s0 = inlined_call_operand.vmem [shape: bf16[2,112,128], index: 0, kind: input, shape index: {}]
  %s1 = inlined_call_operand.vmem [shape: bf16[9,128,128], index: 1, kind: input, shape index: {}]
  %s2 = inlined_call_operand.vmem [shape: bf16[9,128,128], index: 2, kind: input, shape index: {}]
  %s3 = inlined_call_operand.vmem [shape: f32[1,128], index: 3, kind: input, shape index: {}]
  %s4 = inlined_call_operand.vmem [shape: f32[1,128], index: 4, kind: input, shape index: {}]
  %s5 = inlined_call_operand.vmem [shape: f32[80,1], index: 5, kind: input, shape index: {}]
  %s6 = inlined_call_operand.vmem [shape: bf16[2,112,128], index: 6, kind: output, shape index: {}]
  %s7 = sld [smem:[#allocation0]]
  $region57: #{resnet_matching_encoder_forward.5} parent=0
    _
  %s9 = ssub.s32 1, %s7
  %s10 = scalar_select 0, %s9, %s7
  loop: start=0, step=1, limit=4
  $region2: #{resnet_matching_encoder_forward.5} parent=0 // loop_pre_header
    _
  $region3: #{resnet_matching_encoder_forward.5} parent=0 // loop_header
    %s12 = sphi 0, %s16
    %p13 = scmp.ge.s32.totalorder %s12, 4
    %s22 = sphi 0, %s24
    %s25 = sphi 0, %s22
    %s26 = sphi 0, %s25
    %s42 = sphi 0, %s26
    %s46 = sphi 0, %s46
    %s48 = sphi 0, %s46
    %s49 = sphi 0, %s48
    %s63 = sphi 0, %s49
    %s67 = sphi 0, %s67
    %s69 = sphi 0, %s67
    %s70 = sphi 0, %s69
    %s84 = sphi 0, %s70
    %s88 = sphi 0, %s88
    %s90 = sphi 0, %s88
    %s91 = sphi 0, %s90
    %s105 = sphi 0, %s91
    %s109 = sphi 0, %s109
    %s111 = sphi 0, %s109
    %s112 = sphi 0, %s111
    %s126 = sphi 0, %s112
    %s130 = sphi 0, %s130
    %s132 = sphi 0, %s130
    %s133 = sphi 0, %s132
    %s147 = sphi 0, %s133
    %s153 = sphi 0, %s155
    %s156 = sphi 0, %s153
    %s157 = sphi 0, %s156
    %s173 = sphi 0, %s157
  $region4: #{resnet_matching_encoder_forward.5} parent=0 // loop_header_branch
    %15 = sbr.rel (%p13) target = $region8
  $region5: #{resnet_matching_encoder_forward.5} parent=0 // loop_body
    %s17 = ssub.s32 %s12, 1
    %s18 = ssub.s32 %s12, 2
    %s19 = sadd.s32 %s12, 1
    %s20 = ssub.s32 %s12, %s19
    %p21 = scmp.eq.s32.totalorder %s20, 0
    %s23 = sadd.s32 %s22, 1
    %s24 = scalar_select %p21, %s22, %s23
    %p27 = pneg %p21
    %p28 = scmp.eq.s32.totalorder %s12, 1
    %p29 = por %p27, %p28
    %p30 = scmp.ne.s32.totalorder %s22, %s25
    %p31 = scmp.eq.s32.totalorder %s12, 0
    %p32 = por %p30, %p31
    %p33 = scmp.ne.s32.totalorder %s22, %s25
    %p34 = scmp.eq.s32.totalorder %s17, 1
    %p35 = por %p33, %p34
    %p36 = scmp.ne.s32.totalorder %s25, %s26
    %p37 = scmp.eq.s32.totalorder %s17, 0
    %p38 = por %p36, %p37
    %p39 = scmp.ne.s32.totalorder %s25, %s26
    %p40 = scmp.eq.s32.totalorder %s18, 1
    %p41 = por %p39, %p40
    %p43 = scmp.ne.s32.totalorder %s26, %s42
    %p44 = scmp.eq.s32.totalorder %s18, 0
    %p45 = por %p43, %p44
    %s47 = sadd.s32 %s46, 1
    %p50 = scmp.eq.s32.totalorder %s12, 1
    %p51 = scmp.ne.s32.totalorder %s46, %s48
    %p52 = scmp.eq.s32.totalorder %s12, 0
    %p53 = por %p51, %p52
    %p54 = scmp.ne.s32.totalorder %s46, %s48
    %p55 = scmp.eq.s32.totalorder %s17, 1
    %p56 = por %p54, %p55
    %p57 = scmp.ne.s32.totalorder %s48, %s49
    %p58 = scmp.eq.s32.totalorder %s17, 0
    %p59 = por %p57, %p58
    %p60 = scmp.ne.s32.totalorder %s48, %s49
    %p61 = scmp.eq.s32.totalorder %s18, 1
    %p62 = por %p60, %p61
    %p64 = scmp.ne.s32.totalorder %s49, %s63
    %p65 = scmp.eq.s32.totalorder %s18, 0
    %p66 = por %p64, %p65
    %s68 = sadd.s32 %s67, 1
    %p71 = scmp.eq.s32.totalorder %s12, 1
    %p72 = scmp.ne.s32.totalorder %s67, %s69
    %p73 = scmp.eq.s32.totalorder %s12, 0
    %p74 = por %p72, %p73
    %p75 = scmp.ne.s32.totalorder %s67, %s69
    %p76 = scmp.eq.s32.totalorder %s17, 1
    %p77 = por %p75, %p76
    %p78 = scmp.ne.s32.totalorder %s69, %s70
    %p79 = scmp.eq.s32.totalorder %s17, 0
    %p80 = por %p78, %p79
    %p81 = scmp.ne.s32.totalorder %s69, %s70
    %p82 = scmp.eq.s32.totalorder %s18, 1
    %p83 = por %p81, %p82
    %p85 = scmp.ne.s32.totalorder %s70, %s84
    %p86 = scmp.eq.s32.totalorder %s18, 0
    %p87 = por %p85, %p86
    %s89 = sadd.s32 %s88, 1
    %p92 = scmp.eq.s32.totalorder %s12, 1
    %p93 = scmp.ne.s32.totalorder %s88, %s90
    %p94 = scmp.eq.s32.totalorder %s12, 0
    %p95 = por %p93, %p94
    %p96 = scmp.ne.s32.totalorder %s88, %s90
    %p97 = scmp.eq.s32.totalorder %s17, 1
    %p98 = por %p96, %p97
    %p99 = scmp.ne.s32.totalorder %s90, %s91
    %p100 = scmp.eq.s32.totalorder %s17, 0
    %p101 = por %p99, %p100
    %p102 = scmp.ne.s32.totalorder %s90, %s91
    %p103 = scmp.eq.s32.totalorder %s18, 1
    %p104 = por %p102, %p103
    %p106 = scmp.ne.s32.totalorder %s91, %s105
    %p107 = scmp.eq.s32.totalorder %s18, 0
    %p108 = por %p106, %p107
    %s110 = sadd.s32 %s109, 1
    %p113 = scmp.eq.s32.totalorder %s12, 1
    %p114 = scmp.ne.s32.totalorder %s109, %s111
    %p115 = scmp.eq.s32.totalorder %s12, 0
    %p116 = por %p114, %p115
    %p117 = scmp.ne.s32.totalorder %s109, %s111
    %p118 = scmp.eq.s32.totalorder %s17, 1
    %p119 = por %p117, %p118
    %p120 = scmp.ne.s32.totalorder %s111, %s112
    %p121 = scmp.eq.s32.totalorder %s17, 0
    %p122 = por %p120, %p121
    %p123 = scmp.ne.s32.totalorder %s111, %s112
    %p124 = scmp.eq.s32.totalorder %s18, 1
    %p125 = por %p123, %p124
    %p127 = scmp.ne.s32.totalorder %s112, %s126
    %p128 = scmp.eq.s32.totalorder %s18, 0
    %p129 = por %p127, %p128
    %s131 = sadd.s32 %s130, 1
    %p134 = scmp.eq.s32.totalorder %s12, 1
    %p135 = scmp.ne.s32.totalorder %s130, %s132
    %p136 = scmp.eq.s32.totalorder %s12, 0
    %p137 = por %p135, %p136
    %p138 = scmp.ne.s32.totalorder %s130, %s132
    %p139 = scmp.eq.s32.totalorder %s17, 1
    %p140 = por %p138, %p139
    %p141 = scmp.ne.s32.totalorder %s132, %s133
    %p142 = scmp.eq.s32.totalorder %s17, 0
    %p143 = por %p141, %p142
    %p144 = scmp.ne.s32.totalorder %s132, %s133
    %p145 = scmp.eq.s32.totalorder %s18, 1
    %p146 = por %p144, %p145
    %p148 = scmp.ne.s32.totalorder %s133, %s147
    %p149 = scmp.eq.s32.totalorder %s18, 0
    %p150 = por %p148, %p149
    %s151 = ssub.s32 %s12, %s19
    %p152 = scmp.eq.s32.totalorder %s151, 0
    %s154 = sadd.s32 %s153, 1
    %s155 = scalar_select %p152, %s153, %s154
    %p158 = pneg %p152
    %p159 = scmp.eq.s32.totalorder %s12, 1
    %p160 = por %p158, %p159
    %p161 = scmp.ne.s32.totalorder %s153, %s156
    %p162 = scmp.eq.s32.totalorder %s12, 0
    %p163 = por %p161, %p162
    %p164 = scmp.ne.s32.totalorder %s153, %s156
    %p165 = scmp.eq.s32.totalorder %s17, 1
    %p166 = por %p164, %p165
    %p167 = scmp.ne.s32.totalorder %s156, %s157
    %p168 = scmp.eq.s32.totalorder %s17, 0
    %p169 = por %p167, %p168
    %p170 = scmp.ne.s32.totalorder %s156, %s157
    %p171 = scmp.eq.s32.totalorder %s18, 1
    %p172 = por %p170, %p171
    %p174 = scmp.ne.s32.totalorder %s157, %s173
    %p175 = scmp.eq.s32.totalorder %s18, 0
    %p176 = por %p174, %p175
    %p177 = scmp.le.s32.totalorder 1, %s12
    %p178 = scmp.lt.s32.totalorder %s12, 3
    %p179 = pnand %p177, %p178
    %p180 = pneg %p179
    // Predicated region
    $region9: #{resnet_matching_encoder_forward.5} parent=5 // pred_check
      _
    $region10: #{resnet_matching_encoder_forward.5} parent=5 // pred_check_branch
      %182 = sbr.rel (%p179) target = $region12
    $region11: #{resnet_matching_encoder_forward.5} parent=5 // pred_region
      %s183 = ssub.s32 %s12, 1
      // Predicated region
      $region13: #{resnet_matching_encoder_forward.5} parent=11 // pred_check
        %p184 = pneg %p59
      $region14: #{resnet_matching_encoder_forward.5} parent=11 // pred_check_branch
        %186 = sbr.rel (%p184) target = $region16
      $region15: #{resnet_matching_encoder_forward.5} parent=11 // pred_region
        _
      $region16: #{resnet_matching_encoder_forward.5} parent=11 // pred_fallthru
        _
      // Predicated region
      $region17: #{resnet_matching_encoder_forward.5} parent=11 // pred_check
        %p187 = pneg %p80
      $region18: #{resnet_matching_encoder_forward.5} parent=11 // pred_check_branch
        %189 = sbr.rel (%p187) target = $region20
      $region19: #{resnet_matching_encoder_forward.5} parent=11 // pred_region
        _
      $region20: #{resnet_matching_encoder_forward.5} parent=11 // pred_fallthru
        _
      // Predicated region
      $region21: #{resnet_matching_encoder_forward.5} parent=11 // pred_check
        %p190 = pneg %p101
      $region22: #{resnet_matching_encoder_forward.5} parent=11 // pred_check_branch
        %192 = sbr.rel (%p190) target = $region24
      $region23: #{resnet_matching_encoder_forward.5} parent=11 // pred_region
        _
      $region24: #{resnet_matching_encoder_forward.5} parent=11 // pred_fallthru
        _
      // Predicated region
      $region25: #{resnet_matching_encoder_forward.5} parent=11 // pred_check
        %p193 = pneg %p122
      $region26: #{resnet_matching_encoder_forward.5} parent=11 // pred_check_branch
        %195 = sbr.rel (%p193) target = $region28
      $region27: #{resnet_matching_encoder_forward.5} parent=11 // pred_region
        _
      $region28: #{resnet_matching_encoder_forward.5} parent=11 // pred_fallthru
        _
      // Predicated region
      $region29: #{resnet_matching_encoder_forward.5} parent=11 // pred_check
        %p196 = pneg %p143
      $region30: #{resnet_matching_encoder_forward.5} parent=11 // pred_check_branch
        %198 = sbr.rel (%p196) target = $region32
      $region31: #{resnet_matching_encoder_forward.5} parent=11 // pred_region
        _
      $region32: #{resnet_matching_encoder_forward.5} parent=11 // pred_fallthru
        _
    $region12: #{resnet_matching_encoder_forward.5} parent=5 // pred_fallthru
      _
    %p199 = scmp.lt.s32.totalorder %s12, 2
    // Predicated region
    $region33: #{resnet_matching_encoder_forward.5} parent=5 // pred_check
      %p200 = pneg %p199
    $region34: #{resnet_matching_encoder_forward.5} parent=5 // pred_check_branch
      %202 = sbr.rel (%p200) target = $region36
    $region35: #{resnet_matching_encoder_forward.5} parent=5 // pred_region
      // Predicated region
      $region37: #{resnet_matching_encoder_forward.5} parent=35 // pred_check
        %p203 = pneg %p32
      $region38: #{resnet_matching_encoder_forward.5} parent=35 // pred_check_branch
        %205 = sbr.rel (%p203) target = $region40
      $region39: #{resnet_matching_encoder_forward.5} parent=35 // pred_region
        %p206 = scmp.lt.s32.totalorder %s12, 1
        %s207 = scalar_select %p206, %s12, 1
        %s208 = smul.addr %s207, 14
        %s209 = smul.addr %s208, 4
        %s210 = scalar_lea.vmem %s0, %s209
      $region40: #{resnet_matching_encoder_forward.5} parent=35 // pred_fallthru
        _
    $region36: #{resnet_matching_encoder_forward.5} parent=5 // pred_fallthru
      _
    %p211 = scmp.le.s32.totalorder 1, %s12
    %p212 = scmp.lt.s32.totalorder %s12, 3
    %p213 = pnand %p211, %p212
    %p214 = pneg %p213
    // Predicated region
    $region41: #{resnet_matching_encoder_forward.5} parent=5 // pred_check
      _
    $region42: #{resnet_matching_encoder_forward.5} parent=5 // pred_check_branch
      %216 = sbr.rel (%p213) target = $region44
    $region43: #{resnet_matching_encoder_forward.5} parent=5 // pred_region
      %s217 = ssub.s32 %s12, 1
      %p218 = scmp.lt.s32.totalorder %s17, 1
      %s219 = scalar_select %p218, %s17, 1
      %s220 = smul.addr %s219, 14
      %s221 = smul.addr %s220, 4
      %s222 = scalar_lea.vmem %s0, %s221
      %p223 = pneg %p38
      %p224 = pneg %p35
      %p225 = pneg %p59
      %p226 = pneg %p56
      %p227 = pneg %p80
      %p228 = pneg %p77
      %p229 = pneg %p101
      %p230 = pneg %p98
      %p231 = pneg %p122
      %p232 = pneg %p119
      %p233 = pneg %p143
      %p234 = pneg %p140
      %p235 = pneg %p169
      %p236 = pneg %p166
      %p237 = scmp.lt.s32.totalorder %s17, 1
      %s238 = scalar_select %p237, %s17, 1
      %s239 = smul.addr %s238, 14
      %s240 = smul.addr %s239, 4
      %s241 = scalar_lea.vmem %s6, %s240
      %p242 = scmp.lt.s32.totalorder %s17, 1
      %s243 = scalar_select %p242, %s17, 1
      %s244 = smul.addr %s243, 14
      %s245 = smul.addr %s244, 4
      %s246 = scalar_lea.vmem %s0, %s245
      %p247 = scmp.lt.s32.totalorder %s17, 1
      %s248 = scalar_select %p247, %s17, 1
      %s249 = smul.addr %s248, 14
      %s250 = smul.addr %s249, 4
      %s251 = scalar_lea.vmem %s6, %s250
      %v253 = vld [vmem:[%s5] sm:$0xff]
      %v254 = vld [vmem:[%s5 + $0x8] sm:$0xff]
      %v255 = vld [vmem:[%s5 + $0x10] sm:$0xff]
      %v256 = vld [vmem:[%s5 + $0x18] sm:$0xff]
      %v257 = vld [vmem:[%s5 + $0x20] sm:$0xff]
      %v258 = vld [vmem:[%s5 + $0x28] sm:$0xff]
      %v259 = vld [vmem:[%s5 + $0x30] sm:$0xff]
      %v260 = vld [vmem:[%s5 + $0x38] sm:$0xff]
      %v261 = vld [vmem:[%s5 + $0x40] sm:$0xff]
      %v262 = vld [vmem:[%s5 + $0x48] sm:$0xff]
      %v263 = vld [vmem:[%s246] sm:$0xf]
      %v264 = vld [vmem:[%s246 + $0x4] sm:$0xf]
      %v265 = vld [vmem:[%s246 + $0x8] sm:$0xf]
      %v266 = vld [vmem:[%s246 + $0xc] sm:$0xf]
      %v267 = vld [vmem:[%s246 + $0x10] sm:$0xf]
      %v268 = vld [vmem:[%s246 + $0x14] sm:$0xf]
      %v269 = vld [vmem:[%s246 + $0x18] sm:$0xf]
      %v270 = vld [vmem:[%s246 + $0x1c] sm:$0xf]
      %v271 = vld [vmem:[%s246 + $0x20] sm:$0xf]
      %v272 = vld [vmem:[%s246 + $0x24] sm:$0xf]
      %v273 = vld [vmem:[%s1] sm:$0xf]
      %v274 = vld [vmem:[%s1 + $0x4] sm:$0xf]
      %v275 = vld [vmem:[%s1 + $0x8] sm:$0xf]
      %v276 = vld [vmem:[%s1 + $0xc] sm:$0xf]
      %v277 = vld [vmem:[%s1 + $0x10] sm:$0xf]
      %v278 = vld [vmem:[%s1 + $0x14] sm:$0xf]
      %v279 = vld [vmem:[%s1 + $0x18] sm:$0xf]
      %v280 = vld [vmem:[%s1 + $0x1c] sm:$0xf]
      %v281 = vld [vmem:[%s1 + $0x20] sm:$0xf]
      %v282 = vld [vmem:[%s1 + $0x24] sm:$0xf]
      %v283 = vld [vmem:[%s1 + $0x28] sm:$0xf]
      %v284 = vld [vmem:[%s1 + $0x2c] sm:$0xf]
      %v285 = vld [vmem:[%s1 + $0x30] sm:$0xf]
      %v286 = vld [vmem:[%s1 + $0x34] sm:$0xf]
      %v287 = vld [vmem:[%s1 + $0x38] sm:$0xf]
      %v288 = vld [vmem:[%s1 + $0x3c] sm:$0xf]
      %v289 = vld [vmem:[%s246 + $0x28] sm:$0x1]
      %s290 = scalar_lea.vmem %s1, 64
      %v291 = vld [vmem:[%s290] sm:$0xf]
      %v292 = vld [vmem:[%s290 + $0x4] sm:$0xf]
      %v293 = vld [vmem:[%s290 + $0x8] sm:$0xf]
      %v294 = vld [vmem:[%s290 + $0xc] sm:$0xf]
      %v295 = vld [vmem:[%s290 + $0x10] sm:$0xf]
      %v296 = vld [vmem:[%s290 + $0x14] sm:$0xf]
      %v297 = vld [vmem:[%s290 + $0x18] sm:$0xf]
      %v298 = vld [vmem:[%s290 + $0x1c] sm:$0xf]
      %v299 = vld [vmem:[%s290 + $0x20] sm:$0xf]
      %v300 = vld [vmem:[%s290 + $0x24] sm:$0xf]
      %v301 = vld [vmem:[%s290 + $0x28] sm:$0xf]
      %v302 = vld [vmem:[%s290 + $0x2c] sm:$0xf]
      %v303 = vld [vmem:[%s290 + $0x30] sm:$0xf]
      %v304 = vld [vmem:[%s290 + $0x34] sm:$0xf]
      %v305 = vld [vmem:[%s290 + $0x38] sm:$0xf]
      %v306 = vld [vmem:[%s290 + $0x3c] sm:$0xf]
      %v318 = vunpack.c.l.b16 %v263
      %v319 = vunpack.c.l.b16 %v264
      %v320 = vunpack.c.l.b16 %v265
      %v321 = vunpack.c.l.b16 %v266
      %v322 = vunpack.c.l.b16 %v267
      %v323 = vunpack.c.l.b16 %v268
      %v324 = vunpack.c.l.b16 %v269
      %v325 = vunpack.c.l.b16 %v270
      %v326 = vunpack.c.l.b16 %v271
      %v327 = vunpack.c.l.b16 %v272
      %v328 = vunpack.c.l.b16 %v289
      %v329 = vpack.c.b16 %v319, %v318
      %v330 = vpack.c.b16 %v321, %v320
      %v331 = vpack.c.b16 %v323, %v322
      %v332 = vpack.c.b16 %v325, %v324
      %v333 = vpack.c.b16 %v327, %v326
      %v334 = vpack.c.b16 %v328, %v328
      %vm335 = vsmask.f32 7424
      %v337 = vshrl.u32 %v329, 16
      %v339 = vshll.u32 %v329, 16
      %v341 = vrot.slane %v339, 1
      %v342 = vor.u32 %v337, %v341
      %v344 = vshll.u32 %v330, 16
      %v346 = vrot.slane %v344, 1
      %v347 = vsel %vm335, %v342, %v346
      %v348 = vshrl.u32 %v330, 16
      %v350 = vor.u32 %v348, %v346
      %v352 = vshll.u32 %v331, 16
      %v354 = vrot.slane %v352, 1
      %v355 = vsel %vm335, %v350, %v354
      %v356 = vshrl.u32 %v331, 16
      %v358 = vor.u32 %v356, %v354
      %v360 = vshll.u32 %v332, 16
      %v362 = vrot.slane %v360, 1
      %v363 = vsel %vm335, %v358, %v362
      %v364 = vshrl.u32 %v332, 16
      %v366 = vor.u32 %v364, %v362
      %v368 = vshll.u32 %v333, 16
      %v370 = vrot.slane %v368, 1
      %v371 = vsel %vm335, %v366, %v370
      %v372 = vshrl.u32 %v333, 16
      %v374 = vor.u32 %v372, %v370
      %v376 = vshll.u32 %v334, 16
      %v378 = vrot.slane %v376, 1
      %v379 = vsel %vm335, %v374, %v378
      %v401 = vunpack.c.l.b16 %v291
      %v402 = vunpack.c.l.b16 %v292
      %v403 = vunpack.c.l.b16 %v293
      %v404 = vunpack.c.l.b16 %v294
      %v405 = vunpack.c.l.b16 %v295
      %v406 = vunpack.c.l.b16 %v296
      %v407 = vunpack.c.l.b16 %v297
      %v408 = vunpack.c.l.b16 %v298
      %v409 = vunpack.c.l.b16 %v299
      %v410 = vunpack.c.l.b16 %v300
      %v411 = vunpack.c.l.b16 %v301
      %v412 = vunpack.c.l.b16 %v302
      %v413 = vunpack.c.l.b16 %v303
      %v414 = vunpack.c.l.b16 %v304
      %v415 = vunpack.c.l.b16 %v305
      %v416 = vunpack.c.l.b16 %v306
      %v417 = vpack.c.b16 %v402, %v401
      %v418 = vpack.c.b16 %v404, %v403
      %v419 = vpack.c.b16 %v406, %v405
      %v420 = vpack.c.b16 %v408, %v407
      %v421 = vpack.c.b16 %v410, %v409
      %v422 = vpack.c.b16 %v412, %v411
      %v423 = vpack.c.b16 %v414, %v413
      %v424 = vpack.c.b16 %v416, %v415
      %433 = vmatprep.subr.bf16.mxu0 0
      %434 = vmatpush1.bf16.msra.mxu0 %v417
      %435 = vmatprep.subr.bf16.mxu0 0
      %436 = vmatpush1.bf16.msra.mxu0 %v418
      %437 = vmatprep.subr.bf16.mxu0 0
      %438 = vmatpush1.bf16.msra.mxu0 %v419
      %439 = vmatprep.subr.bf16.mxu0 0
      %440 = vmatpush1.bf16.msra.mxu0 %v420
      %441 = vmatprep.subr.bf16.mxu0 0
      %442 = vmatpush1.bf16.msra.mxu0 %v421
      %443 = vmatprep.subr.bf16.mxu0 0
      %444 = vmatpush1.bf16.msra.mxu0 %v422
      %445 = vmatprep.subr.bf16.mxu0 0
      %446 = vmatpush1.bf16.msra.mxu0 %v423
      %447 = vmatprep.subr.bf16.mxu0 0
      %448 = vmatpush1.bf16.msra.mxu0 %v424
      %449 = vmatprep.subr.bf16.mxu0 0
      %450 = vmatpush1.bf16.msra.mxu0 0
      %451 = vmatprep.subr.bf16.mxu0 0
      %452 = vmatpush1.bf16.msra.mxu0 0
      %453 = vmatprep.subr.bf16.mxu0 0
      %454 = vmatpush1.bf16.msra.mxu0 0
      %455 = vmatprep.subr.bf16.mxu0 0
      %456 = vmatpush1.bf16.msra.mxu0 0
      %457 = vmatprep.subr.bf16.mxu0 0
      %458 = vmatpush1.bf16.msra.mxu0 0
      %459 = vmatprep.subr.bf16.mxu0 0
      %460 = vmatpush1.bf16.msra.mxu0 0
      %461 = vmatprep.subr.bf16.mxu0 0
      %462 = vmatpush1.bf16.msra.mxu0 0
      %463 = vmatprep.subr.bf16.mxu0 0
      %464 = vmatpush1.bf16.msra.mxu0 0
      %465 = vmatprep.mubr.bf16.mxu0 0
      %466 = vmatmul.mubr.bf16.gmra.mrb[0].mxu0 %v347
      %v467 = vpop.f32.mrb[0].mxu0
      %v468 = vadd.f32 0.0, %v467
      %v469 = vpop.f32.mrb[0].mxu0
      %v470 = vpop.f32.mrb[0].mxu0
      %v471 = vadd.f32 0.0, %v470
      %v472 = vpop.f32.mrb[0].mxu0
      %473 = vmatprep.mubr.bf16.mxu0 0
      %474 = vmatmul.mubr.bf16.gmra.mrb[0].mxu0 %v355
      %v475 = vpop.f32.mrb[0].mxu0
      %v476 = vadd.f32 0.0, %v475
      %v477 = vpop.f32.mrb[0].mxu0
      %v478 = vpop.f32.mrb[0].mxu0
      %v479 = vadd.f32 0.0, %v478
      %v480 = vpop.f32.mrb[0].mxu0
      %481 = vmatprep.mubr.bf16.mxu0 0
      %482 = vmatmul.mubr.bf16.gmra.mrb[0].mxu0 %v363
      %v483 = vpop.f32.mrb[0].mxu0
      %v484 = vadd.f32 0.0, %v483
      %v485 = vpop.f32.mrb[0].mxu0
      %v486 = vpop.f32.mrb[0].mxu0
      %v487 = vadd.f32 0.0, %v486
      %v488 = vpop.f32.mrb[0].mxu0
      %489 = vmatprep.mubr.bf16.mxu0 0
      %490 = vmatmul.mubr.bf16.gmra.mrb[0].mxu0 %v371
      %v491 = vpop.f32.mrb[0].mxu0
      %v492 = vadd.f32 0.0, %v491
      %v493 = vpop.f32.mrb[0].mxu0
      %v494 = vpop.f32.mrb[0].mxu0
      %v495 = vadd.f32 0.0, %v494
      %v496 = vpop.f32.mrb[0].mxu0
      %497 = vmatprep.mubr.bf16.mxu0 0
      %498 = vmatmul.mubr.bf16.gmra.mrb[0].mxu0 %v379
      %v499 = vpop.f32.mrb[0].mxu0
      %v500 = vadd.f32 0.0, %v499
      %v501 = vpop.f32.mrb[0].mxu0
      %v502 = vpop.f32.mrb[0].mxu0
      %v503 = vadd.f32 0.0, %v502
      %v504 = vpop.f32.mrb[0].mxu0
      %505 = vdwg.mxu0
      %v527 = vunpack.c.l.b16 %v273
      %v528 = vunpack.c.l.b16 %v274
      %v529 = vunpack.c.l.b16 %v275
      %v530 = vunpack.c.l.b16 %v276
      %v531 = vunpack.c.l.b16 %v277
      %v532 = vunpack.c.l.b16 %v278
      %v533 = vunpack.c.l.b16 %v279
      %v534 = vunpack.c.l.b16 %v280
      %v535 = vunpack.c.l.b16 %v281
      %v536 = vunpack.c.l.b16 %v282
      %v537 = vunpack.c.l.b16 %v283
      %v538 = vunpack.c.l.b16 %v284
      %v539 = vunpack.c.l.b16 %v285
      %v540 = vunpack.c.l.b16 %v286
      %v541 = vunpack.c.l.b16 %v287
      %v542 = vunpack.c.l.b16 %v288
      %v543 = vpack.c.b16 %v528, %v527
      %v544 = vpack.c.b16 %v530, %v529
      %v545 = vpack.c.b16 %v532, %v531
      %v546 = vpack.c.b16 %v534, %v533
      %v547 = vpack.c.b16 %v536, %v535
      %v548 = vpack.c.b16 %v538, %v537
      %v549 = vpack.c.b16 %v540, %v539
      %v550 = vpack.c.b16 %v542, %v541
      %559 = vmatprep.subr.bf16.mxu0 0
      %560 = vmatpush1.bf16.msra.mxu0 %v543
      %561 = vmatprep.subr.bf16.mxu0 0
      %562 = vmatpush1.bf16.msra.mxu0 %v544
      %563 = vmatprep.subr.bf16.mxu0 0
      %564 = vmatpush1.bf16.msra.mxu0 %v545
      %565 = vmatprep.subr.bf16.mxu0 0
      %566 = vmatpush1.bf16.msra.mxu0 %v546
      %567 = vmatprep.subr.bf16.mxu0 0
      %568 = vmatpush1.bf16.msra.mxu0 %v547
      %569 = vmatprep.subr.bf16.mxu0 0
      %570 = vmatpush1.bf16.msra.mxu0 %v548
      %571 = vmatprep.subr.bf16.mxu0 0
      %572 = vmatpush1.bf16.msra.mxu0 %v549
      %573 = vmatprep.subr.bf16.mxu0 0
      %574 = vmatpush1.bf16.msra.mxu0 %v550
      %575 = vmatprep.subr.bf16.mxu0 0
      %576 = vmatpush1.bf16.msra.mxu0 0
      %577 = vmatprep.subr.bf16.mxu0 0
      %578 = vmatpush1.bf16.msra.mxu0 0
      %579 = vmatprep.subr.bf16.mxu0 0
      %580 = vmatpush1.bf16.msra.mxu0 0
      %581 = vmatprep.subr.bf16.mxu0 0
      %582 = vmatpush1.bf16.msra.mxu0 0
      %583 = vmatprep.subr.bf16.mxu0 0
      %584 = vmatpush1.bf16.msra.mxu0 0
      %585 = vmatprep.subr.bf16.mxu0 0
      %586 = vmatpush1.bf16.msra.mxu0 0
      %587 = vmatprep.subr.bf16.mxu0 0
      %588 = vmatpush1.bf16.msra.mxu0 0
      %589 = vmatprep.subr.bf16.mxu0 0
      %590 = vmatpush1.bf16.msra.mxu0 0
      %591 = vmatprep.mubr.bf16.mxu0 0
      %592 = vmatmul.mubr.bf16.gmra.mrb[0].mxu0 %v329
      %v593 = vpop.f32.mrb[0].mxu0
      %v594 = vadd.f32 %v468, %v593
      %v595 = vpop.f32.mrb[0].mxu0
      %v596 = vpop.f32.mrb[0].mxu0
      %v597 = vadd.f32 %v471, %v596
      %v598 = vpop.f32.mrb[0].mxu0
      %599 = vmatprep.mubr.bf16.mxu0 0
      %600 = vmatmul.mubr.bf16.gmra.mrb[0].mxu0 %v330
      %v601 = vpop.f32.mrb[0].mxu0
      %v602 = vadd.f32 %v476, %v601
      %v603 = vpop.f32.mrb[0].mxu0
      %v604 = vpop.f32.mrb[0].mxu0
      %v605 = vadd.f32 %v479, %v604
      %v606 = vpop.f32.mrb[0].mxu0
      %607 = vmatprep.mubr.bf16.mxu0 0
      %608 = vmatmul.mubr.bf16.gmra.mrb[0].mxu0 %v331
      %v609 = vpop.f32.mrb[0].mxu0
      %v610 = vadd.f32 %v484, %v609
      %v611 = vpop.f32.mrb[0].mxu0
      %v612 = vpop.f32.mrb[0].mxu0
      %v613 = vadd.f32 %v487, %v612
      %v614 = vpop.f32.mrb[0].mxu0
      %615 = vmatprep.mubr.bf16.mxu0 0
      %616 = vmatmul.mubr.bf16.gmra.mrb[0].mxu0 %v332
      %v617 = vpop.f32.mrb[0].mxu0
      %v618 = vadd.f32 %v492, %v617
      %v619 = vpop.f32.mrb[0].mxu0
      %v620 = vpop.f32.mrb[0].mxu0
      %v621 = vadd.f32 %v495, %v620
      %v622 = vpop.f32.mrb[0].mxu0
      %623 = vmatprep.mubr.bf16.mxu0 0
      %624 = vmatmul.mubr.bf16.gmra.mrb[0].mxu0 %v333
      %v625 = vpop.f32.mrb[0].mxu0
      %v626 = vadd.f32 %v500, %v625
      %v627 = vpop.f32.mrb[0].mxu0
      %v628 = vpop.f32.mrb[0].mxu0
      %v629 = vadd.f32 %v503, %v628
      %v630 = vpop.f32.mrb[0].mxu0
      %631 = vdwg.mxu0
      %v632 = vld [vmem:[%s246] sm:$0xe]
      %s633 = scalar_lea.vmem %s1, 128
      %v634 = vld [vmem:[%s633] sm:$0xf]
      %v635 = vld [vmem:[%s633 + $0x4] sm:$0xf]
      %v636 = vld [vmem:[%s633 + $0x8] sm:$0xf]
      %v637 = vld [vmem:[%s633 + $0xc] sm:$0xf]
      %v638 = vld [vmem:[%s633 + $0x10] sm:$0xf]
      %v639 = vld [vmem:[%s633 + $0x14] sm:$0xf]
      %v640 = vld [vmem:[%s633 + $0x18] sm:$0xf]
      %v641 = vld [vmem:[%s633 + $0x1c] sm:$0xf]
      %v642 = vld [vmem:[%s633 + $0x20] sm:$0xf]
      %v643 = vld [vmem:[%s633 + $0x24] sm:$0xf]
      %v644 = vld [vmem:[%s633 + $0x28] sm:$0xf]
      %v645 = vld [vmem:[%s633 + $0x2c] sm:$0xf]
      %v646 = vld [vmem:[%s633 + $0x30] sm:$0xf]
      %v647 = vld [vmem:[%s633 + $0x34] sm:$0xf]
      %v648 = vld [vmem:[%s633 + $0x38] sm:$0xf]
      %v649 = vld [vmem:[%s633 + $0x3c] sm:$0xf]
      %v651 = vunpack.c.l.b16 %v632
      %v652 = vpack.c.b16 %v319, %v651
      %vm653 = vcmask 1046528
      %v654 = vrot.slane %v652, 1
      %v655 = vrot.slane %v330, 1
      %v656 = vsel %vm653, %v654, %v655
      %v657 = vrot.slane %v331, 1
      %v658 = vsel %vm653, %v655, %v657
      %v659 = vrot.slane %v332, 1
      %v660 = vsel %vm653, %v657, %v659
      %v661 = vrot.slane %v333, 1
      %v662 = vsel %vm653, %v659, %v661
      %v663 = vrot.slane %v334, 1
      %v664 = vsel %vm653, %v661, %v663
      %v686 = vunpack.c.l.b16 %v634
      %v687 = vunpack.c.l.b16 %v635
      %v688 = vunpack.c.l.b16 %v636
      %v689 = vunpack.c.l.b16 %v637
      %v690 = vunpack.c.l.b16 %v638
      %v691 = vunpack.c.l.b16 %v639
      %v692 = vunpack.c.l.b16 %v640
      %v693 = vunpack.c.l.b16 %v641
      %v694 = vunpack.c.l.b16 %v642
      %v695 = vunpack.c.l.b16 %v643
      %v696 = vunpack.c.l.b16 %v644
      %v697 = vunpack.c.l.b16 %v645
      %v698 = vunpack.c.l.b16 %v646
      %v699 = vunpack.c.l.b16 %v647
      %v700 = vunpack.c.l.b16 %v648
      %v701 = vunpack.c.l.b16 %v649
      %v702 = vpack.c.b16 %v687, %v686
      %v703 = vpack.c.b16 %v689, %v688
      %v704 = vpack.c.b16 %v691, %v690
      %v705 = vpack.c.b16 %v693, %v692
      %v706 = vpack.c.b16 %v695, %v694
      %v707 = vpack.c.b16 %v697, %v696
      %v708 = vpack.c.b16 %v699, %v698
      %v709 = vpack.c.b16 %v701, %v700
      %718 = vmatprep.subr.bf16.mxu0 0
      %719 = vmatpush1.bf16.msra.mxu0 %v702
      %720 = vmatprep.subr.bf16.mxu0 0
      %721 = vmatpush1.bf16.msra.mxu0 %v703
      %722 = vmatprep.subr.bf16.mxu0 0
      %723 = vmatpush1.bf16.msra.mxu0 %v704
      %724 = vmatprep.subr.bf16.mxu0 0
      %725 = vmatpush1.bf16.msra.mxu0 %v705
      %726 = vmatprep.subr.bf16.mxu0 0
      %727 = vmatpush1.bf16.msra.mxu0 %v706
      %728 = vmatprep.subr.bf16.mxu0 0
      %729 = vmatpush1.bf16.msra.mxu0 %v707
      %730 = vmatprep.subr.bf16.mxu0 0
      %731 = vmatpush1.bf16.msra.mxu0 %v708
      %732 = vmatprep.subr.bf16.mxu0 0
      %733 = vmatpush1.bf16.msra.mxu0 %v709
      %734 = vmatprep.subr.bf16.mxu0 0
      %735 = vmatpush1.bf16.msra.mxu0 0
      %736 = vmatprep.subr.bf16.mxu0 0
      %737 = vmatpush1.bf16.msra.mxu0 0
      %738 = vmatprep.subr.bf16.mxu0 0
      %739 = vmatpush1.bf16.msra.mxu0 0
      %740 = vmatprep.subr.bf16.mxu0 0
      %741 = vmatpush1.bf16.msra.mxu0 0
      %742 = vmatprep.subr.bf16.mxu0 0
      %743 = vmatpush1.bf16.msra.mxu0 0
      %744 = vmatprep.subr.bf16.mxu0 0
      %745 = vmatpush1.bf16.msra.mxu0 0
      %746 = vmatprep.subr.bf16.mxu0 0
      %747 = vmatpush1.bf16.msra.mxu0 0
      %748 = vmatprep.subr.bf16.mxu0 0
      %749 = vmatpush1.bf16.msra.mxu0 0
      %750 = vmatprep.mubr.bf16.mxu0 0
      %751 = vmatmul.mubr.bf16.gmra.mrb[0].mxu0 %v656
      %v752 = vpop.f32.mrb[0].mxu0
      %v753 = vadd.f32 0.0, %v752
      %v754 = vpop.f32.mrb[0].mxu0
      %v755 = vpop.f32.mrb[0].mxu0
      %v756 = vadd.f32 0.0, %v755
      %v757 = vpop.f32.mrb[0].mxu0
      %758 = vmatprep.mubr.bf16.mxu0 0
      %759 = vmatmul.mubr.bf16.gmra.mrb[0].mxu0 %v658
      %v760 = vpop.f32.mrb[0].mxu0
      %v761 = vadd.f32 0.0, %v760
      %v762 = vpop.f32.mrb[0].mxu0
      %v763 = vpop.f32.mrb[0].mxu0
      %v764 = vadd.f32 0.0, %v763
      %v765 = vpop.f32.mrb[0].mxu0
      %766 = vmatprep.mubr.bf16.mxu0 0
      %767 = vmatmul.mubr.bf16.gmra.mrb[0].mxu0 %v660
      %v768 = vpop.f32.mrb[0].mxu0
      %v769 = vadd.f32 0.0, %v768
      %v770 = vpop.f32.mrb[0].mxu0
      %v771 = vpop.f32.mrb[0].mxu0
      %v772 = vadd.f32 0.0, %v771
      %v773 = vpop.f32.mrb[0].mxu0
      %774 = vmatprep.mubr.bf16.mxu0 0
      %775 = vmatmul.mubr.bf16.gmra.mrb[0].mxu0 %v662
      %v776 = vpop.f32.mrb[0].mxu0
      %v777 = vadd.f32 0.0, %v776
      %v778 = vpop.f32.mrb[0].mxu0
      %v779 = vpop.f32.mrb[0].mxu0
      %v780 = vadd.f32 0.0, %v779
      %v781 = vpop.f32.mrb[0].mxu0
      %782 = vmatprep.mubr.bf16.mxu0 0
      %783 = vmatmul.mubr.bf16.gmra.mrb[0].mxu0 %v664
      %v784 = vpop.f32.mrb[0].mxu0
      %v785 = vadd.f32 0.0, %v784
      %v786 = vpop.f32.mrb[0].mxu0
      %v787 = vpop.f32.mrb[0].mxu0
      %v788 = vadd.f32 0.0, %v787
      %v789 = vpop.f32.mrb[0].mxu0
      %790 = vdwg.mxu0
      %v791 = vadd.f32 %v594, %v753
      %v792 = vadd.f32 %v597, %v756
      %v793 = vadd.f32 %v602, %v761
      %v794 = vadd.f32 %v605, %v764
      %v795 = vadd.f32 %v610, %v769
      %v796 = vadd.f32 %v613, %v772
      %v797 = vadd.f32 %v618, %v777
      %v798 = vadd.f32 %v621, %v780
      %v799 = vadd.f32 %v626, %v785
      %v800 = vadd.f32 %v629, %v788
      %v801 = vld [vmem:[%s246 + $0x4] sm:$0xe]
      %v802 = vld [vmem:[%s246 + $0x8] sm:$0xf]
      %v803 = vld [vmem:[%s246 + $0xc] sm:$0xf]
      %v804 = vld [vmem:[%s246 + $0x10] sm:$0xf]
      %v805 = vld [vmem:[%s246 + $0x14] sm:$0xf]
      %v806 = vld [vmem:[%s246 + $0x18] sm:$0xf]
      %v807 = vld [vmem:[%s246 + $0x1c] sm:$0xf]
      %v808 = vld [vmem:[%s246 + $0x20] sm:$0xf]
      %v809 = vld [vmem:[%s246 + $0x24] sm:$0xf]
      %v810 = vld [vmem:[%s246 + $0x28] sm:$0xf]
      %v811 = vld [vmem:[%s246 + $0x2c] sm:$0x1]
      %s812 = scalar_lea.vmem %s1, 192
      %v813 = vld [vmem:[%s812] sm:$0xf]
      %v814 = vld [vmem:[%s812 + $0x4] sm:$0xf]
      %v815 = vld [vmem:[%s812 + $0x8] sm:$0xf]
      %v816 = vld [vmem:[%s812 + $0xc] sm:$0xf]
      %v817 = vld [vmem:[%s812 + $0x10] sm:$0xf]
      %v818 = vld [vmem:[%s812 + $0x14] sm:$0xf]
      %v819 = vld [vmem:[%s812 + $0x18] sm:$0xf]
      %v820 = vld [vmem:[%s812 + $0x1c] sm:$0xf]
      %v821 = vld [vmem:[%s812 + $0x20] sm:$0xf]
      %v822 = vld [vmem:[%s812 + $0x24] sm:$0xf]
      %v823 = vld [vmem:[%s812 + $0x28] sm:$0xf]
      %v824 = vld [vmem:[%s812 + $0x2c] sm:$0xf]
      %v825 = vld [vmem:[%s812 + $0x30] sm:$0xf]
      %v826 = vld [vmem:[%s812 + $0x34] sm:$0xf]
      %v827 = vld [vmem:[%s812 + $0x38] sm:$0xf]
      %v828 = vld [vmem:[%s812 + $0x3c] sm:$0xf]
      %v840 = vunpack.c.l.b16 %v801
      %v841 = vunpack.c.l.b16 %v802
      %v842 = vunpack.c.l.b16 %v803
      %v843 = vunpack.c.l.b16 %v804
      %v844 = vunpack.c.l.b16 %v805
      %v845 = vunpack.c.l.b16 %v806
      %v846 = vunpack.c.l.b16 %v807
      %v847 = vunpack.c.l.b16 %v808
      %v848 = vunpack.c.l.b16 %v809
      %v849 = vunpack.c.l.b16 %v810
      %v850 = vunpack.c.l.b16 %v811
      %v851 = vpack.c.b16 %v841, %v840
      %v852 = vpack.c.b16 %v843, %v842
      %v853 = vpack.c.b16 %v845, %v844
      %v854 = vpack.c.b16 %v847, %v846
      %v855 = vpack.c.b16 %v849, %v848
      %v856 = vpack.c.b16 %v850, %v850
      %v857 = vrot.slane %v851, 1
      %v858 = vrot.slane %v852, 1
      %v859 = vsel %vm653, %v857, %v858
      %v860 = vrot.slane %v853, 1
      %v861 = vsel %vm653, %v858, %v860
      %v862 = vrot.slane %v854, 1
      %v863 = vsel %vm653, %v860, %v862
      %v864 = vrot.slane %v855, 1
      %v865 = vsel %vm653, %v862, %v864
      %v866 = vrot.slane %v856, 1
      %v867 = vsel %vm653, %v864, %v866
      %v889 = vunpack.c.l.b16 %v813
      %v890 = vunpack.c.l.b16 %v814
      %v891 = vunpack.c.l.b16 %v815
      %v892 = vunpack.c.l.b16 %v816
      %v893 = vunpack.c.l.b16 %v817
      %v894 = vunpack.c.l.b16 %v818
      %v895 = vunpack.c.l.b16 %v819
      %v896 = vunpack.c.l.b16 %v820
      %v897 = vunpack.c.l.b16 %v821
      %v898 = vunpack.c.l.b16 %v822
      %v899 = vunpack.c.l.b16 %v823
      %v900 = vunpack.c.l.b16 %v824
      %v901 = vunpack.c.l.b16 %v825
      %v902 = vunpack.c.l.b16 %v826
      %v903 = vunpack.c.l.b16 %v827
      %v904 = vunpack.c.l.b16 %v828
      %v905 = vpack.c.b16 %v890, %v889
      %v906 = vpack.c.b16 %v892, %v891
      %v907 = vpack.c.b16 %v894, %v893
      %v908 = vpack.c.b16 %v896, %v895
      %v909 = vpack.c.b16 %v898, %v897
      %v910 = vpack.c.b16 %v900, %v899
      %v911 = vpack.c.b16 %v902, %v901
      %v912 = vpack.c.b16 %v904, %v903
      %921 = vmatprep.subr.bf16.mxu0 0
      %922 = vmatpush1.bf16.msra.mxu0 %v905
      %923 = vmatprep.subr.bf16.mxu0 0
      %924 = vmatpush1.bf16.msra.mxu0 %v906
      %925 = vmatprep.subr.bf16.mxu0 0
      %926 = vmatpush1.bf16.msra.mxu0 %v907
      %927 = vmatprep.subr.bf16.mxu0 0
      %928 = vmatpush1.bf16.msra.mxu0 %v908
      %929 = vmatprep.subr.bf16.mxu0 0
      %930 = vmatpush1.bf16.msra.mxu0 %v909
      %931 = vmatprep.subr.bf16.mxu0 0
      %932 = vmatpush1.bf16.msra.mxu0 %v910
      %933 = vmatprep.subr.bf16.mxu0 0
      %934 = vmatpush1.bf16.msra.mxu0 %v911
      %935 = vmatprep.subr.bf16.mxu0 0
      %936 = vmatpush1.bf16.msra.mxu0 %v912
      %937 = vmatprep.subr.bf16.mxu0 0
      %938 = vmatpush1.bf16.msra.mxu0 0
      %939 = vmatprep.subr.bf16.mxu0 0
      %940 = vmatpush1.bf16.msra.mxu0 0
      %941 = vmatprep.subr.bf16.mxu0 0
      %942 = vmatpush1.bf16.msra.mxu0 0
      %943 = vmatprep.subr.bf16.mxu0 0
      %944 = vmatpush1.bf16.msra.mxu0 0
      %945 = vmatprep.subr.bf16.mxu0 0
      %946 = vmatpush1.bf16.msra.mxu0 0
      %947 = vmatprep.subr.bf16.mxu0 0
      %948 = vmatpush1.bf16.msra.mxu0 0
      %949 = vmatprep.subr.bf16.mxu0 0
      %950 = vmatpush1.bf16.msra.mxu0 0
      %951 = vmatprep.subr.bf16.mxu0 0
      %952 = vmatpush1.bf16.msra.mxu0 0
      %953 = vmatprep.mubr.bf16.mxu0 0
      %954 = vmatmul.mubr.bf16.gmra.mrb[0].mxu0 %v859
      %v955 = vpop.f32.mrb[0].mxu0
      %v956 = vadd.f32 0.0, %v955
      %v957 = vpop.f32.mrb[0].mxu0
      %v958 = vpop.f32.mrb[0].mxu0
      %v959 = vadd.f32 0.0, %v958
      %v960 = vpop.f32.mrb[0].mxu0
      %961 = vmatprep.mubr.bf16.mxu0 0
      %962 = vmatmul.mubr.bf16.gmra.mrb[0].mxu0 %v861
      %v963 = vpop.f32.mrb[0].mxu0
      %v964 = vadd.f32 0.0, %v963
      %v965 = vpop.f32.mrb[0].mxu0
      %v966 = vpop.f32.mrb[0].mxu0
      %v967 = vadd.f32 0.0, %v966
      %v968 = vpop.f32.mrb[0].mxu0
      %969 = vmatprep.mubr.bf16.mxu0 0
      %970 = vmatmul.mubr.bf16.gmra.mrb[0].mxu0 %v863
      %v971 = vpop.f32.mrb[0].mxu0
      %v972 = vadd.f32 0.0, %v971
      %v973 = vpop.f32.mrb[0].mxu0
      %v974 = vpop.f32.mrb[0].mxu0
      %v975 = vadd.f32 0.0, %v974
      %v976 = vpop.f32.mrb[0].mxu0
      %977 = vmatprep.mubr.bf16.mxu0 0
      %978 = vmatmul.mubr.bf16.gmra.mrb[0].mxu0 %v865
      %v979 = vpop.f32.mrb[0].mxu0
      %v980 = vadd.f32 0.0, %v979
      %v981 = vpop.f32.mrb[0].mxu0
      %v982 = vpop.f32.mrb[0].mxu0
      %v983 = vadd.f32 0.0, %v982
      %v984 = vpop.f32.mrb[0].mxu0
      %985 = vmatprep.mubr.bf16.mxu0 0
      %986 = vmatmul.mubr.bf16.gmra.mrb[0].mxu0 %v867
      %v987 = vpop.f32.mrb[0].mxu0
      %v988 = vadd.f32 0.0, %v987
      %v989 = vpop.f32.mrb[0].mxu0
      %v990 = vpop.f32.mrb[0].mxu0
      %v991 = vadd.f32 0.0, %v990
      %v992 = vpop.f32.mrb[0].mxu0
      %993 = vdwg.mxu0
      %v994 = vadd.f32 %v791, %v956
      %v995 = vadd.f32 %v792, %v959
      %v996 = vadd.f32 %v793, %v964
      %v997 = vadd.f32 %v794, %v967
      %v998 = vadd.f32 %v795, %v972
      %v999 = vadd.f32 %v796, %v975
      %v1000 = vadd.f32 %v797, %v980
      %v1001 = vadd.f32 %v798, %v983
      %v1002 = vadd.f32 %v799, %v988
      %v1003 = vadd.f32 %v800, %v991
      %v1004 = vld [vmem:[%s246 + $0x2c] sm:$0x3]
      %s1005 = scalar_lea.vmem %s1, 256
      %v1006 = vld [vmem:[%s1005] sm:$0xf]
      %v1007 = vld [vmem:[%s1005 + $0x4] sm:$0xf]
      %v1008 = vld [vmem:[%s1005 + $0x8] sm:$0xf]
      %v1009 = vld [vmem:[%s1005 + $0xc] sm:$0xf]
      %v1010 = vld [vmem:[%s1005 + $0x10] sm:$0xf]
      %v1011 = vld [vmem:[%s1005 + $0x14] sm:$0xf]
      %v1012 = vld [vmem:[%s1005 + $0x18] sm:$0xf]
      %v1013 = vld [vmem:[%s1005 + $0x1c] sm:$0xf]
      %v1014 = vld [vmem:[%s1005 + $0x20] sm:$0xf]
      %v1015 = vld [vmem:[%s1005 + $0x24] sm:$0xf]
      %v1016 = vld [vmem:[%s1005 + $0x28] sm:$0xf]
      %v1017 = vld [vmem:[%s1005 + $0x2c] sm:$0xf]
      %v1018 = vld [vmem:[%s1005 + $0x30] sm:$0xf]
      %v1019 = vld [vmem:[%s1005 + $0x34] sm:$0xf]
      %v1020 = vld [vmem:[%s1005 + $0x38] sm:$0xf]
      %v1021 = vld [vmem:[%s1005 + $0x3c] sm:$0xf]
      %v1023 = vunpack.c.l.b16 %v1004
      %v1024 = vpack.c.b16 %v1023, %v1023
      %vm1025 = vsmask.f32 6400
      %v1027 = vshrl.u32 %v851, 16
      %v1029 = vrot.slane %v1027, 1
      %v1030 = vshll.u32 %v851, 16
      %v1032 = vrot.slane %v1030, 2
      %v1033 = vor.u32 %v1029, %v1032
      %v1035 = vshrl.u32 %v852, 16
      %v1037 = vrot.slane %v1035, 1
      %v1038 = vshll.u32 %v852, 16
      %v1040 = vrot.slane %v1038, 2
      %v1041 = vor.u32 %v1037, %v1040
      %v1042 = vsel %vm1025, %v1033, %v1041
      %v1044 = vshrl.u32 %v853, 16
      %v1046 = vrot.slane %v1044, 1
      %v1047 = vshll.u32 %v853, 16
      %v1049 = vrot.slane %v1047, 2
      %v1050 = vor.u32 %v1046, %v1049
      %v1051 = vsel %vm1025, %v1041, %v1050
      %v1053 = vshrl.u32 %v854, 16
      %v1055 = vrot.slane %v1053, 1
      %v1056 = vshll.u32 %v854, 16
      %v1058 = vrot.slane %v1056, 2
      %v1059 = vor.u32 %v1055, %v1058
      %v1060 = vsel %vm1025, %v1050, %v1059
      %v1062 = vshrl.u32 %v855, 16
      %v1064 = vrot.slane %v1062, 1
      %v1065 = vshll.u32 %v855, 16
      %v1067 = vrot.slane %v1065, 2
      %v1068 = vor.u32 %v1064, %v1067
      %v1069 = vsel %vm1025, %v1059, %v1068
      %v1071 = vshrl.u32 %v1024, 16
      %v1073 = vrot.slane %v1071, 1
      %v1074 = vshll.u32 %v1024, 16
      %v1076 = vrot.slane %v1074, 2
      %v1077 = vor.u32 %v1073, %v1076
      %v1078 = vsel %vm1025, %v1068, %v1077
      %v1100 = vunpack.c.l.b16 %v1006
      %v1101 = vunpack.c.l.b16 %v1007
      %v1102 = vunpack.c.l.b16 %v1008
      %v1103 = vunpack.c.l.b16 %v1009
      %v1104 = vunpack.c.l.b16 %v1010
      %v1105 = vunpack.c.l.b16 %v1011
      %v1106 = vunpack.c.l.b16 %v1012
      %v1107 = vunpack.c.l.b16 %v1013
      %v1108 = vunpack.c.l.b16 %v1014
      %v1109 = vunpack.c.l.b16 %v1015
      %v1110 = vunpack.c.l.b16 %v1016
      %v1111 = vunpack.c.l.b16 %v1017
      %v1112 = vunpack.c.l.b16 %v1018
      %v1113 = vunpack.c.l.b16 %v1019
      %v1114 = vunpack.c.l.b16 %v1020
      %v1115 = vunpack.c.l.b16 %v1021
      %v1116 = vpack.c.b16 %v1101, %v1100
      %v1117 = vpack.c.b16 %v1103, %v1102
      %v1118 = vpack.c.b16 %v1105, %v1104
      %v1119 = vpack.c.b16 %v1107, %v1106
      %v1120 = vpack.c.b16 %v1109, %v1108
      %v1121 = vpack.c.b16 %v1111, %v1110
      %v1122 = vpack.c.b16 %v1113, %v1112
      %v1123 = vpack.c.b16 %v1115, %v1114
      %1132 = vmatprep.subr.bf16.mxu0 0
      %1133 = vmatpush1.bf16.msra.mxu0 %v1116
      %1134 = vmatprep.subr.bf16.mxu0 0
      %1135 = vmatpush1.bf16.msra.mxu0 %v1117
      %1136 = vmatprep.subr.bf16.mxu0 0
      %1137 = vmatpush1.bf16.msra.mxu0 %v1118
      %1138 = vmatprep.subr.bf16.mxu0 0
      %1139 = vmatpush1.bf16.msra.mxu0 %v1119
      %1140 = vmatprep.subr.bf16.mxu0 0
      %1141 = vmatpush1.bf16.msra.mxu0 %v1120
      %1142 = vmatprep.subr.bf16.mxu0 0
      %1143 = vmatpush1.bf16.msra.mxu0 %v1121
      %1144 = vmatprep.subr.bf16.mxu0 0
      %1145 = vmatpush1.bf16.msra.mxu0 %v1122
      %1146 = vmatprep.subr.bf16.mxu0 0
      %1147 = vmatpush1.bf16.msra.mxu0 %v1123
      %1148 = vmatprep.subr.bf16.mxu0 0
      %1149 = vmatpush1.bf16.msra.mxu0 0
      %1150 = vmatprep.subr.bf16.mxu0 0
      %1151 = vmatpush1.bf16.msra.mxu0 0
      %1152 = vmatprep.subr.bf16.mxu0 0
      %1153 = vmatpush1.bf16.msra.mxu0 0
      %1154 = vmatprep.subr.bf16.mxu0 0
      %1155 = vmatpush1.bf16.msra.mxu0 0
      %1156 = vmatprep.subr.bf16.mxu0 0
      %1157 = vmatpush1.bf16.msra.mxu0 0
      %1158 = vmatprep.subr.bf16.mxu0 0
      %1159 = vmatpush1.bf16.msra.mxu0 0
      %1160 = vmatprep.subr.bf16.mxu0 0
      %1161 = vmatpush1.bf16.msra.mxu0 0
      %1162 = vmatprep.subr.bf16.mxu0 0
      %1163 = vmatpush1.bf16.msra.mxu0 0
      %1164 = vmatprep.mubr.bf16.mxu0 0
      %1165 = vmatmul.mubr.bf16.gmra.mrb[0].mxu0 %v1042
      %v1166 = vpop.f32.mrb[0].mxu0
      %v1167 = vadd.f32 0.0, %v1166
      %v1168 = vpop.f32.mrb[0].mxu0
      %v1169 = vpop.f32.mrb[0].mxu0
      %v1170 = vadd.f32 0.0, %v1169
      %v1171 = vpop.f32.mrb[0].mxu0
      %1172 = vmatprep.mubr.bf16.mxu0 0
      %1173 = vmatmul.mubr.bf16.gmra.mrb[0].mxu0 %v1051
      %v1174 = vpop.f32.mrb[0].mxu0
      %v1175 = vadd.f32 0.0, %v1174
      %v1176 = vpop.f32.mrb[0].mxu0
      %v1177 = vpop.f32.mrb[0].mxu0
      %v1178 = vadd.f32 0.0, %v1177
      %v1179 = vpop.f32.mrb[0].mxu0
      %1180 = vmatprep.mubr.bf16.mxu0 0
      %1181 = vmatmul.mubr.bf16.gmra.mrb[0].mxu0 %v1060
      %v1182 = vpop.f32.mrb[0].mxu0
      %v1183 = vadd.f32 0.0, %v1182
      %v1184 = vpop.f32.mrb[0].mxu0
      %v1185 = vpop.f32.mrb[0].mxu0
      %v1186 = vadd.f32 0.0, %v1185
      %v1187 = vpop.f32.mrb[0].mxu0
      %1188 = vmatprep.mubr.bf16.mxu0 0
      %1189 = vmatmul.mubr.bf16.gmra.mrb[0].mxu0 %v1069
      %v1190 = vpop.f32.mrb[0].mxu0
      %v1191 = vadd.f32 0.0, %v1190
      %v1192 = vpop.f32.mrb[0].mxu0
      %v1193 = vpop.f32.mrb[0].mxu0
      %v1194 = vadd.f32 0.0, %v1193
      %v1195 = vpop.f32.mrb[0].mxu0
      %1196 = vmatprep.mubr.bf16.mxu0 0
      %1197 = vmatmul.mubr.bf16.gmra.mrb[0].mxu0 %v1078
      %v1198 = vpop.f32.mrb[0].mxu0
      %v1199 = vadd.f32 0.0, %v1198
      %v1200 = vpop.f32.mrb[0].mxu0
      %v1201 = vpop.f32.mrb[0].mxu0
      %v1202 = vadd.f32 0.0, %v1201
      %v1203 = vpop.f32.mrb[0].mxu0
      %1204 = vdwg.mxu0
      %v1205 = vadd.f32 %v994, %v1167
      %v1206 = vadd.f32 %v995, %v1170
      %v1207 = vadd.f32 %v996, %v1175
      %v1208 = vadd.f32 %v997, %v1178
      %v1209 = vadd.f32 %v998, %v1183
      %v1210 = vadd.f32 %v999, %v1186
      %v1211 = vadd.f32 %v1000, %v1191
      %v1212 = vadd.f32 %v1001, %v1194
      %v1213 = vadd.f32 %v1002, %v1199
      %v1214 = vadd.f32 %v1003, %v1202
      %v1215 = vld [vmem:[%s246 + $0x4] sm:$0xc]
      %s1216 = scalar_lea.vmem %s1, 320
      %v1217 = vld [vmem:[%s1216] sm:$0xf]
      %v1218 = vld [vmem:[%s1216 + $0x4] sm:$0xf]
      %v1219 = vld [vmem:[%s1216 + $0x8] sm:$0xf]
      %v1220 = vld [vmem:[%s1216 + $0xc] sm:$0xf]
      %v1221 = vld [vmem:[%s1216 + $0x10] sm:$0xf]
      %v1222 = vld [vmem:[%s1216 + $0x14] sm:$0xf]
      %v1223 = vld [vmem:[%s1216 + $0x18] sm:$0xf]
      %v1224 = vld [vmem:[%s1216 + $0x1c] sm:$0xf]
      %v1225 = vld [vmem:[%s1216 + $0x20] sm:$0xf]
      %v1226 = vld [vmem:[%s1216 + $0x24] sm:$0xf]
      %v1227 = vld [vmem:[%s1216 + $0x28] sm:$0xf]
      %v1228 = vld [vmem:[%s1216 + $0x2c] sm:$0xf]
      %v1229 = vld [vmem:[%s1216 + $0x30] sm:$0xf]
      %v1230 = vld [vmem:[%s1216 + $0x34] sm:$0xf]
      %v1231 = vld [vmem:[%s1216 + $0x38] sm:$0xf]
      %v1232 = vld [vmem:[%s1216 + $0x3c] sm:$0xf]
      %v1234 = vunpack.c.l.b16 %v1215
      %v1235 = vpack.c.b16 %v841, %v1234
      %vm1236 = vcmask 1045504
      %v1237 = vrot.slane %v1235, 2
      %v1238 = vrot.slane %v852, 2
      %v1239 = vsel %vm1236, %v1237, %v1238
      %v1240 = vrot.slane %v853, 2
      %v1241 = vsel %vm1236, %v1238, %v1240
      %v1242 = vrot.slane %v854, 2
      %v1243 = vsel %vm1236, %v1240, %v1242
      %v1244 = vrot.slane %v855, 2
      %v1245 = vsel %vm1236, %v1242, %v1244
      %v1246 = vrot.slane %v1024, 2
      %v1247 = vsel %vm1236, %v1244, %v1246
      %v1269 = vunpack.c.l.b16 %v1217
      %v1270 = vunpack.c.l.b16 %v1218
      %v1271 = vunpack.c.l.b16 %v1219
      %v1272 = vunpack.c.l.b16 %v1220
      %v1273 = vunpack.c.l.b16 %v1221
      %v1274 = vunpack.c.l.b16 %v1222
      %v1275 = vunpack.c.l.b16 %v1223
      %v1276 = vunpack.c.l.b16 %v1224
      %v1277 = vunpack.c.l.b16 %v1225
      %v1278 = vunpack.c.l.b16 %v1226
      %v1279 = vunpack.c.l.b16 %v1227
      %v1280 = vunpack.c.l.b16 %v1228
      %v1281 = vunpack.c.l.b16 %v1229
      %v1282 = vunpack.c.l.b16 %v1230
      %v1283 = vunpack.c.l.b16 %v1231
      %v1284 = vunpack.c.l.b16 %v1232
      %v1285 = vpack.c.b16 %v1270, %v1269
      %v1286 = vpack.c.b16 %v1272, %v1271
      %v1287 = vpack.c.b16 %v1274, %v1273
      %v1288 = vpack.c.b16 %v1276, %v1275
      %v1289 = vpack.c.b16 %v1278, %v1277
      %v1290 = vpack.c.b16 %v1280, %v1279
      %v1291 = vpack.c.b16 %v1282, %v1281
      %v1292 = vpack.c.b16 %v1284, %v1283
      %1301 = vmatprep.subr.bf16.mxu0 0
      %1302 = vmatpush1.bf16.msra.mxu0 %v1285
      %1303 = vmatprep.subr.bf16.mxu0 0
      %1304 = vmatpush1.bf16.msra.mxu0 %v1286
      %1305 = vmatprep.subr.bf16.mxu0 0
      %1306 = vmatpush1.bf16.msra.mxu0 %v1287
      %1307 = vmatprep.subr.bf16.mxu0 0
      %1308 = vmatpush1.bf16.msra.mxu0 %v1288
      %1309 = vmatprep.subr.bf16.mxu0 0
      %1310 = vmatpush1.bf16.msra.mxu0 %v1289
      %1311 = vmatprep.subr.bf16.mxu0 0
      %1312 = vmatpush1.bf16.msra.mxu0 %v1290
      %1313 = vmatprep.subr.bf16.mxu0 0
      %1314 = vmatpush1.bf16.msra.mxu0 %v1291
      %1315 = vmatprep.subr.bf16.mxu0 0
      %1316 = vmatpush1.bf16.msra.mxu0 %v1292
      %1317 = vmatprep.subr.bf16.mxu0 0
      %1318 = vmatpush1.bf16.msra.mxu0 0
      %1319 = vmatprep.subr.bf16.mxu0 0
      %1320 = vmatpush1.bf16.msra.mxu0 0
      %1321 = vmatprep.subr.bf16.mxu0 0
      %1322 = vmatpush1.bf16.msra.mxu0 0
      %1323 = vmatprep.subr.bf16.mxu0 0
      %1324 = vmatpush1.bf16.msra.mxu0 0
      %1325 = vmatprep.subr.bf16.mxu0 0
      %1326 = vmatpush1.bf16.msra.mxu0 0
      %1327 = vmatprep.subr.bf16.mxu0 0
      %1328 = vmatpush1.bf16.msra.mxu0 0
      %1329 = vmatprep.subr.bf16.mxu0 0
      %1330 = vmatpush1.bf16.msra.mxu0 0
      %1331 = vmatprep.subr.bf16.mxu0 0
      %1332 = vmatpush1.bf16.msra.mxu0 0
      %1333 = vmatprep.mubr.bf16.mxu0 0
      %1334 = vmatmul.mubr.bf16.gmra.mrb[0].mxu0 %v1239
      %v1335 = vpop.f32.mrb[0].mxu0
      %v1336 = vadd.f32 0.0, %v1335
      %v1337 = vpop.f32.mrb[0].mxu0
      %v1338 = vpop.f32.mrb[0].mxu0
      %v1339 = vadd.f32 0.0, %v1338
      %v1340 = vpop.f32.mrb[0].mxu0
      %1341 = vmatprep.mubr.bf16.mxu0 0
      %1342 = vmatmul.mubr.bf16.gmra.mrb[0].mxu0 %v1241
      %v1343 = vpop.f32.mrb[0].mxu0
      %v1344 = vadd.f32 0.0, %v1343
      %v1345 = vpop.f32.mrb[0].mxu0
      %v1346 = vpop.f32.mrb[0].mxu0
      %v1347 = vadd.f32 0.0, %v1346
      %v1348 = vpop.f32.mrb[0].mxu0
      %1349 = vmatprep.mubr.bf16.mxu0 0
      %1350 = vmatmul.mubr.bf16.gmra.mrb[0].mxu0 %v1243
      %v1351 = vpop.f32.mrb[0].mxu0
      %v1352 = vadd.f32 0.0, %v1351
      %v1353 = vpop.f32.mrb[0].mxu0
      %v1354 = vpop.f32.mrb[0].mxu0
      %v1355 = vadd.f32 0.0, %v1354
      %v1356 = vpop.f32.mrb[0].mxu0
      %1357 = vmatprep.mubr.bf16.mxu0 0
      %1358 = vmatmul.mubr.bf16.gmra.mrb[0].mxu0 %v1245
      %v1359 = vpop.f32.mrb[0].mxu0
      %v1360 = vadd.f32 0.0, %v1359
      %v1361 = vpop.f32.mrb[0].mxu0
      %v1362 = vpop.f32.mrb[0].mxu0
      %v1363 = vadd.f32 0.0, %v1362
      %v1364 = vpop.f32.mrb[0].mxu0
      %1365 = vmatprep.mubr.bf16.mxu0 0
      %1366 = vmatmul.mubr.bf16.gmra.mrb[0].mxu0 %v1247
      %v1367 = vpop.f32.mrb[0].mxu0
      %v1368 = vadd.f32 0.0, %v1367
      %v1369 = vpop.f32.mrb[0].mxu0
      %v1370 = vpop.f32.mrb[0].mxu0
      %v1371 = vadd.f32 0.0, %v1370
      %v1372 = vpop.f32.mrb[0].mxu0
      %1373 = vdwg.mxu0
      %v1374 = vadd.f32 %v1205, %v1336
      %v1375 = vadd.f32 %v1206, %v1339
      %v1376 = vadd.f32 %v1207, %v1344
      %v1377 = vadd.f32 %v1208, %v1347
      %v1378 = vadd.f32 %v1209, %v1352
      %v1379 = vadd.f32 %v1210, %v1355
      %v1380 = vadd.f32 %v1211, %v1360
      %v1381 = vadd.f32 %v1212, %v1363
      %v1382 = vadd.f32 %v1213, %v1368
      %v1383 = vadd.f32 %v1214, %v1371
      %v1384 = vld [vmem:[%s246 + $0x8] sm:$0xc]
      %v1385 = vld [vmem:[%s246 + $0xc] sm:$0xf]
      %v1386 = vld [vmem:[%s246 + $0x10] sm:$0xf]
      %v1387 = vld [vmem:[%s246 + $0x14] sm:$0xf]
      %v1388 = vld [vmem:[%s246 + $0x18] sm:$0xf]
      %v1389 = vld [vmem:[%s246 + $0x1c] sm:$0xf]
      %v1390 = vld [vmem:[%s246 + $0x20] sm:$0xf]
      %v1391 = vld [vmem:[%s246 + $0x24] sm:$0xf]
      %v1392 = vld [vmem:[%s246 + $0x28] sm:$0xf]
      %v1393 = vld [vmem:[%s246 + $0x2c] sm:$0xf]
      %v1394 = vld [vmem:[%s246 + $0x30] sm:$0x3]
      %s1395 = scalar_lea.vmem %s1, 384
      %v1396 = vld [vmem:[%s1395] sm:$0xf]
      %v1397 = vld [vmem:[%s1395 + $0x4] sm:$0xf]
      %v1398 = vld [vmem:[%s1395 + $0x8] sm:$0xf]
      %v1399 = vld [vmem:[%s1395 + $0xc] sm:$0xf]
      %v1400 = vld [vmem:[%s1395 + $0x10] sm:$0xf]
      %v1401 = vld [vmem:[%s1395 + $0x14] sm:$0xf]
      %v1402 = vld [vmem:[%s1395 + $0x18] sm:$0xf]
      %v1403 = vld [vmem:[%s1395 + $0x1c] sm:$0xf]
      %v1404 = vld [vmem:[%s1395 + $0x20] sm:$0xf]
      %v1405 = vld [vmem:[%s1395 + $0x24] sm:$0xf]
      %v1406 = vld [vmem:[%s1395 + $0x28] sm:$0xf]
      %v1407 = vld [vmem:[%s1395 + $0x2c] sm:$0xf]
      %v1408 = vld [vmem:[%s1395 + $0x30] sm:$0xf]
      %v1409 = vld [vmem:[%s1395 + $0x34] sm:$0xf]
      %v1410 = vld [vmem:[%s1395 + $0x38] sm:$0xf]
      %v1411 = vld [vmem:[%s1395 + $0x3c] sm:$0xf]
      %v1423 = vunpack.c.l.b16 %v1384
      %v1424 = vunpack.c.l.b16 %v1385
      %v1425 = vunpack.c.l.b16 %v1386
      %v1426 = vunpack.c.l.b16 %v1387
      %v1427 = vunpack.c.l.b16 %v1388
      %v1428 = vunpack.c.l.b16 %v1389
      %v1429 = vunpack.c.l.b16 %v1390
      %v1430 = vunpack.c.l.b16 %v1391
      %v1431 = vunpack.c.l.b16 %v1392
      %v1432 = vunpack.c.l.b16 %v1393
      %v1433 = vunpack.c.l.b16 %v1394
      %v1434 = vpack.c.b16 %v1424, %v1423
      %v1435 = vpack.c.b16 %v1426, %v1425
      %v1436 = vpack.c.b16 %v1428, %v1427
      %v1437 = vpack.c.b16 %v1430, %v1429
      %v1438 = vpack.c.b16 %v1432, %v1431
      %v1439 = vpack.c.b16 %v1433, %v1433
      %v1440 = vrot.slane %v1434, 2
      %v1441 = vrot.slane %v1435, 2
      %v1442 = vsel %vm1236, %v1440, %v1441
      %v1443 = vrot.slane %v1436, 2
      %v1444 = vsel %vm1236, %v1441, %v1443
      %v1445 = vrot.slane %v1437, 2
      %v1446 = vsel %vm1236, %v1443, %v1445
      %v1447 = vrot.slane %v1438, 2
      %v1448 = vsel %vm1236, %v1445, %v1447
      %v1449 = vrot.slane %v1439, 2
      %v1450 = vsel %vm1236, %v1447, %v1449
      %v1472 = vunpack.c.l.b16 %v1396
      %v1473 = vunpack.c.l.b16 %v1397
      %v1474 = vunpack.c.l.b16 %v1398
      %v1475 = vunpack.c.l.b16 %v1399
      %v1476 = vunpack.c.l.b16 %v1400
      %v1477 = vunpack.c.l.b16 %v1401
      %v1478 = vunpack.c.l.b16 %v1402
      %v1479 = vunpack.c.l.b16 %v1403
      %v1480 = vunpack.c.l.b16 %v1404
      %v1481 = vunpack.c.l.b16 %v1405
      %v1482 = vunpack.c.l.b16 %v1406
      %v1483 = vunpack.c.l.b16 %v1407
      %v1484 = vunpack.c.l.b16 %v1408
      %v1485 = vunpack.c.l.b16 %v1409
      %v1486 = vunpack.c.l.b16 %v1410
      %v1487 = vunpack.c.l.b16 %v1411
      %v1488 = vpack.c.b16 %v1473, %v1472
      %v1489 = vpack.c.b16 %v1475, %v1474
      %v1490 = vpack.c.b16 %v1477, %v1476
      %v1491 = vpack.c.b16 %v1479, %v1478
      %v1492 = vpack.c.b16 %v1481, %v1480
      %v1493 = vpack.c.b16 %v1483, %v1482
      %v1494 = vpack.c.b16 %v1485, %v1484
      %v1495 = vpack.c.b16 %v1487, %v1486
      %1504 = vmatprep.subr.bf16.mxu0 0
      %1505 = vmatpush1.bf16.msra.mxu0 %v1488
      %1506 = vmatprep.subr.bf16.mxu0 0
      %1507 = vmatpush1.bf16.msra.mxu0 %v1489
      %1508 = vmatprep.subr.bf16.mxu0 0
      %1509 = vmatpush1.bf16.msra.mxu0 %v1490
      %1510 = vmatprep.subr.bf16.mxu0 0
      %1511 = vmatpush1.bf16.msra.mxu0 %v1491
      %1512 = vmatprep.subr.bf16.mxu0 0
      %1513 = vmatpush1.bf16.msra.mxu0 %v1492
      %1514 = vmatprep.subr.bf16.mxu0 0
      %1515 = vmatpush1.bf16.msra.mxu0 %v1493
      %1516 = vmatprep.subr.bf16.mxu0 0
      %1517 = vmatpush1.bf16.msra.mxu0 %v1494
      %1518 = vmatprep.subr.bf16.mxu0 0
      %1519 = vmatpush1.bf16.msra.mxu0 %v1495
      %1520 = vmatprep.subr.bf16.mxu0 0
      %1521 = vmatpush1.bf16.msra.mxu0 0
      %1522 = vmatprep.subr.bf16.mxu0 0
      %1523 = vmatpush1.bf16.msra.mxu0 0
      %1524 = vmatprep.subr.bf16.mxu0 0
      %1525 = vmatpush1.bf16.msra.mxu0 0
      %1526 = vmatprep.subr.bf16.mxu0 0
      %1527 = vmatpush1.bf16.msra.mxu0 0
      %1528 = vmatprep.subr.bf16.mxu0 0
      %1529 = vmatpush1.bf16.msra.mxu0 0
      %1530 = vmatprep.subr.bf16.mxu0 0
      %1531 = vmatpush1.bf16.msra.mxu0 0
      %1532 = vmatprep.subr.bf16.mxu0 0
      %1533 = vmatpush1.bf16.msra.mxu0 0
      %1534 = vmatprep.subr.bf16.mxu0 0
      %1535 = vmatpush1.bf16.msra.mxu0 0
      %1536 = vmatprep.mubr.bf16.mxu0 0
      %1537 = vmatmul.mubr.bf16.gmra.mrb[0].mxu0 %v1442
      %v1538 = vpop.f32.mrb[0].mxu0
      %v1539 = vadd.f32 0.0, %v1538
      %v1540 = vpop.f32.mrb[0].mxu0
      %v1541 = vpop.f32.mrb[0].mxu0
      %v1542 = vadd.f32 0.0, %v1541
      %v1543 = vpop.f32.mrb[0].mxu0
      %1544 = vmatprep.mubr.bf16.mxu0 0
      %1545 = vmatmul.mubr.bf16.gmra.mrb[0].mxu0 %v1444
      %v1546 = vpop.f32.mrb[0].mxu0
      %v1547 = vadd.f32 0.0, %v1546
      %v1548 = vpop.f32.mrb[0].mxu0
      %v1549 = vpop.f32.mrb[0].mxu0
      %v1550 = vadd.f32 0.0, %v1549
      %v1551 = vpop.f32.mrb[0].mxu0
      %1552 = vmatprep.mubr.bf16.mxu0 0
      %1553 = vmatmul.mubr.bf16.gmra.mrb[0].mxu0 %v1446
      %v1554 = vpop.f32.mrb[0].mxu0
      %v1555 = vadd.f32 0.0, %v1554
      %v1556 = vpop.f32.mrb[0].mxu0
      %v1557 = vpop.f32.mrb[0].mxu0
      %v1558 = vadd.f32 0.0, %v1557
      %v1559 = vpop.f32.mrb[0].mxu0
      %1560 = vmatprep.mubr.bf16.mxu0 0
      %1561 = vmatmul.mubr.bf16.gmra.mrb[0].mxu0 %v1448
      %v1562 = vpop.f32.mrb[0].mxu0
      %v1563 = vadd.f32 0.0, %v1562
      %v1564 = vpop.f32.mrb[0].mxu0
      %v1565 = vpop.f32.mrb[0].mxu0
      %v1566 = vadd.f32 0.0, %v1565
      %v1567 = vpop.f32.mrb[0].mxu0
      %1568 = vmatprep.mubr.bf16.mxu0 0
      %1569 = vmatmul.mubr.bf16.gmra.mrb[0].mxu0 %v1450
      %v1570 = vpop.f32.mrb[0].mxu0
      %v1571 = vadd.f32 0.0, %v1570
      %v1572 = vpop.f32.mrb[0].mxu0
      %v1573 = vpop.f32.mrb[0].mxu0
      %v1574 = vadd.f32 0.0, %v1573
      %v1575 = vpop.f32.mrb[0].mxu0
      %1576 = vdwg.mxu0
      %v1577 = vadd.f32 %v1374, %v1539
      %v1578 = vadd.f32 %v1375, %v1542
      %v1579 = vadd.f32 %v1376, %v1547
      %v1580 = vadd.f32 %v1377, %v1550
      %v1581 = vadd.f32 %v1378, %v1555
      %v1582 = vadd.f32 %v1379, %v1558
      %v1583 = vadd.f32 %v1380, %v1563
      %v1584 = vadd.f32 %v1381, %v1566
      %v1585 = vadd.f32 %v1382, %v1571
      %v1586 = vadd.f32 %v1383, %v1574
      %v1587 = vld [vmem:[%s246 + $0x30] sm:$0x7]
      %s1588 = scalar_lea.vmem %s1, 448
      %v1589 = vld [vmem:[%s1588] sm:$0xf]
      %v1590 = vld [vmem:[%s1588 + $0x4] sm:$0xf]
      %v1591 = vld [vmem:[%s1588 + $0x8] sm:$0xf]
      %v1592 = vld [vmem:[%s1588 + $0xc] sm:$0xf]
      %v1593 = vld [vmem:[%s1588 + $0x10] sm:$0xf]
      %v1594 = vld [vmem:[%s1588 + $0x14] sm:$0xf]
      %v1595 = vld [vmem:[%s1588 + $0x18] sm:$0xf]
      %v1596 = vld [vmem:[%s1588 + $0x1c] sm:$0xf]
      %v1597 = vld [vmem:[%s1588 + $0x20] sm:$0xf]
      %v1598 = vld [vmem:[%s1588 + $0x24] sm:$0xf]
      %v1599 = vld [vmem:[%s1588 + $0x28] sm:$0xf]
      %v1600 = vld [vmem:[%s1588 + $0x2c] sm:$0xf]
      %v1601 = vld [vmem:[%s1588 + $0x30] sm:$0xf]
      %v1602 = vld [vmem:[%s1588 + $0x34] sm:$0xf]
      %v1603 = vld [vmem:[%s1588 + $0x38] sm:$0xf]
      %v1604 = vld [vmem:[%s1588 + $0x3c] sm:$0xf]
      %v1606 = vunpack.c.l.b16 %v1587
      %v1607 = vpack.c.b16 %v1606, %v1606
      %vm1608 = vsmask.f32 5376
      %v1610 = vshrl.u32 %v1434, 16
      %v1612 = vrot.slane %v1610, 2
      %v1613 = vshll.u32 %v1434, 16
      %v1615 = vrot.slane %v1613, 3
      %v1616 = vor.u32 %v1612, %v1615
      %v1618 = vshrl.u32 %v1435, 16
      %v1620 = vrot.slane %v1618, 2
      %v1621 = vshll.u32 %v1435, 16
      %v1623 = vrot.slane %v1621, 3
      %v1624 = vor.u32 %v1620, %v1623
      %v1625 = vsel %vm1608, %v1616, %v1624
      %v1627 = vshrl.u32 %v1436, 16
      %v1629 = vrot.slane %v1627, 2
      %v1630 = vshll.u32 %v1436, 16
      %v1632 = vrot.slane %v1630, 3
      %v1633 = vor.u32 %v1629, %v1632
      %v1634 = vsel %vm1608, %v1624, %v1633
      %v1636 = vshrl.u32 %v1437, 16
      %v1638 = vrot.slane %v1636, 2
      %v1639 = vshll.u32 %v1437, 16
      %v1641 = vrot.slane %v1639, 3
      %v1642 = vor.u32 %v1638, %v1641
      %v1643 = vsel %vm1608, %v1633, %v1642
      %v1645 = vshrl.u32 %v1438, 16
      %v1647 = vrot.slane %v1645, 2
      %v1648 = vshll.u32 %v1438, 16
      %v1650 = vrot.slane %v1648, 3
      %v1651 = vor.u32 %v1647, %v1650
      %v1652 = vsel %vm1608, %v1642, %v1651
      %v1654 = vshrl.u32 %v1607, 16
      %v1656 = vrot.slane %v1654, 2
      %v1657 = vshll.u32 %v1607, 16
      %v1659 = vrot.slane %v1657, 3
      %v1660 = vor.u32 %v1656, %v1659
      %v1661 = vsel %vm1608, %v1651, %v1660
      %v1683 = vunpack.c.l.b16 %v1589
      %v1684 = vunpack.c.l.b16 %v1590
      %v1685 = vunpack.c.l.b16 %v1591
      %v1686 = vunpack.c.l.b16 %v1592
      %v1687 = vunpack.c.l.b16 %v1593
      %v1688 = vunpack.c.l.b16 %v1594
      %v1689 = vunpack.c.l.b16 %v1595
      %v1690 = vunpack.c.l.b16 %v1596
      %v1691 = vunpack.c.l.b16 %v1597
      %v1692 = vunpack.c.l.b16 %v1598
      %v1693 = vunpack.c.l.b16 %v1599
      %v1694 = vunpack.c.l.b16 %v1600
      %v1695 = vunpack.c.l.b16 %v1601
      %v1696 = vunpack.c.l.b16 %v1602
      %v1697 = vunpack.c.l.b16 %v1603
      %v1698 = vunpack.c.l.b16 %v1604
      %v1699 = vpack.c.b16 %v1684, %v1683
      %v1700 = vpack.c.b16 %v1686, %v1685
      %v1701 = vpack.c.b16 %v1688, %v1687
      %v1702 = vpack.c.b16 %v1690, %v1689
      %v1703 = vpack.c.b16 %v1692, %v1691
      %v1704 = vpack.c.b16 %v1694, %v1693
      %v1705 = vpack.c.b16 %v1696, %v1695
      %v1706 = vpack.c.b16 %v1698, %v1697
      %1715 = vmatprep.subr.bf16.mxu0 0
      %1716 = vmatpush1.bf16.msra.mxu0 %v1699
      %1717 = vmatprep.subr.bf16.mxu0 0
      %1718 = vmatpush1.bf16.msra.mxu0 %v1700
      %1719 = vmatprep.subr.bf16.mxu0 0
      %1720 = vmatpush1.bf16.msra.mxu0 %v1701
      %1721 = vmatprep.subr.bf16.mxu0 0
      %1722 = vmatpush1.bf16.msra.mxu0 %v1702
      %1723 = vmatprep.subr.bf16.mxu0 0
      %1724 = vmatpush1.bf16.msra.mxu0 %v1703
      %1725 = vmatprep.subr.bf16.mxu0 0
      %1726 = vmatpush1.bf16.msra.mxu0 %v1704
      %1727 = vmatprep.subr.bf16.mxu0 0
      %1728 = vmatpush1.bf16.msra.mxu0 %v1705
      %1729 = vmatprep.subr.bf16.mxu0 0
      %1730 = vmatpush1.bf16.msra.mxu0 %v1706
      %1731 = vmatprep.subr.bf16.mxu0 0
      %1732 = vmatpush1.bf16.msra.mxu0 0
      %1733 = vmatprep.subr.bf16.mxu0 0
      %1734 = vmatpush1.bf16.msra.mxu0 0
      %1735 = vmatprep.subr.bf16.mxu0 0
      %1736 = vmatpush1.bf16.msra.mxu0 0
      %1737 = vmatprep.subr.bf16.mxu0 0
      %1738 = vmatpush1.bf16.msra.mxu0 0
      %1739 = vmatprep.subr.bf16.mxu0 0
      %1740 = vmatpush1.bf16.msra.mxu0 0
      %1741 = vmatprep.subr.bf16.mxu0 0
      %1742 = vmatpush1.bf16.msra.mxu0 0
      %1743 = vmatprep.subr.bf16.mxu0 0
      %1744 = vmatpush1.bf16.msra.mxu0 0
      %1745 = vmatprep.subr.bf16.mxu0 0
      %1746 = vmatpush1.bf16.msra.mxu0 0
      %1747 = vmatprep.mubr.bf16.mxu0 0
      %1748 = vmatmul.mubr.bf16.gmra.mrb[0].mxu0 %v1625
      %v1749 = vpop.f32.mrb[0].mxu0
      %v1750 = vadd.f32 0.0, %v1749
      %v1751 = vpop.f32.mrb[0].mxu0
      %v1752 = vpop.f32.mrb[0].mxu0
      %v1753 = vadd.f32 0.0, %v1752
      %v1754 = vpop.f32.mrb[0].mxu0
      %1755 = vmatprep.mubr.bf16.mxu0 0
      %1756 = vmatmul.mubr.bf16.gmra.mrb[0].mxu0 %v1634
      %v1757 = vpop.f32.mrb[0].mxu0
      %v1758 = vadd.f32 0.0, %v1757
      %v1759 = vpop.f32.mrb[0].mxu0
      %v1760 = vpop.f32.mrb[0].mxu0
      %v1761 = vadd.f32 0.0, %v1760
      %v1762 = vpop.f32.mrb[0].mxu0
      %1763 = vmatprep.mubr.bf16.mxu0 0
      %1764 = vmatmul.mubr.bf16.gmra.mrb[0].mxu0 %v1643
      %v1765 = vpop.f32.mrb[0].mxu0
      %v1766 = vadd.f32 0.0, %v1765
      %v1767 = vpop.f32.mrb[0].mxu0
      %v1768 = vpop.f32.mrb[0].mxu0
      %v1769 = vadd.f32 0.0, %v1768
      %v1770 = vpop.f32.mrb[0].mxu0
      %1771 = vmatprep.mubr.bf16.mxu0 0
      %1772 = vmatmul.mubr.bf16.gmra.mrb[0].mxu0 %v1652
      %v1773 = vpop.f32.mrb[0].mxu0
      %v1774 = vadd.f32 0.0, %v1773
      %v1775 = vpop.f32.mrb[0].mxu0
      %v1776 = vpop.f32.mrb[0].mxu0
      %v1777 = vadd.f32 0.0, %v1776
      %v1778 = vpop.f32.mrb[0].mxu0
      %1779 = vmatprep.mubr.bf16.mxu0 0
      %1780 = vmatmul.mubr.bf16.gmra.mrb[0].mxu0 %v1661
      %v1781 = vpop.f32.mrb[0].mxu0
      %v1782 = vadd.f32 0.0, %v1781
      %v1783 = vpop.f32.mrb[0].mxu0
      %v1784 = vpop.f32.mrb[0].mxu0
      %v1785 = vadd.f32 0.0, %v1784
      %v1786 = vpop.f32.mrb[0].mxu0
      %1787 = vdwg.mxu0
      %v1788 = vadd.f32 %v1577, %v1750
      %v1789 = vadd.f32 %v1578, %v1753
      %v1790 = vadd.f32 %v1579, %v1758
      %v1791 = vadd.f32 %v1580, %v1761
      %v1792 = vadd.f32 %v1581, %v1766
      %v1793 = vadd.f32 %v1582, %v1769
      %v1794 = vadd.f32 %v1583, %v1774
      %v1795 = vadd.f32 %v1584, %v1777
      %v1796 = vadd.f32 %v1585, %v1782
      %v1797 = vadd.f32 %v1586, %v1785
      %v1798 = vld [vmem:[%s246 + $0x8] sm:$0x8]
      %s1799 = scalar_lea.vmem %s1, 512
      %v1800 = vld [vmem:[%s1799] sm:$0xf]
      %v1801 = vld [vmem:[%s1799 + $0x4] sm:$0xf]
      %v1802 = vld [vmem:[%s1799 + $0x8] sm:$0xf]
      %v1803 = vld [vmem:[%s1799 + $0xc] sm:$0xf]
      %v1804 = vld [vmem:[%s1799 + $0x10] sm:$0xf]
      %v1805 = vld [vmem:[%s1799 + $0x14] sm:$0xf]
      %v1806 = vld [vmem:[%s1799 + $0x18] sm:$0xf]
      %v1807 = vld [vmem:[%s1799 + $0x1c] sm:$0xf]
      %v1808 = vld [vmem:[%s1799 + $0x20] sm:$0xf]
      %v1809 = vld [vmem:[%s1799 + $0x24] sm:$0xf]
      %v1810 = vld [vmem:[%s1799 + $0x28] sm:$0xf]
      %v1811 = vld [vmem:[%s1799 + $0x2c] sm:$0xf]
      %v1812 = vld [vmem:[%s1799 + $0x30] sm:$0xf]
      %v1813 = vld [vmem:[%s1799 + $0x34] sm:$0xf]
      %v1814 = vld [vmem:[%s1799 + $0x38] sm:$0xf]
      %v1815 = vld [vmem:[%s1799 + $0x3c] sm:$0xf]
      %v1817 = vunpack.c.l.b16 %v1798
      %v1818 = vpack.c.b16 %v1424, %v1817
      %vm1819 = vcmask 1044480
      %v1820 = vrot.slane %v1818, 3
      %v1821 = vrot.slane %v1435, 3
      %v1822 = vsel %vm1819, %v1820, %v1821
      %v1823 = vrot.slane %v1436, 3
      %v1824 = vsel %vm1819, %v1821, %v1823
      %v1825 = vrot.slane %v1437, 3
      %v1826 = vsel %vm1819, %v1823, %v1825
      %v1827 = vrot.slane %v1438, 3
      %v1828 = vsel %vm1819, %v1825, %v1827
      %v1829 = vrot.slane %v1607, 3
      %v1830 = vsel %vm1819, %v1827, %v1829
      %v1852 = vunpack.c.l.b16 %v1800
      %v1853 = vunpack.c.l.b16 %v1801
      %v1854 = vunpack.c.l.b16 %v1802
      %v1855 = vunpack.c.l.b16 %v1803
      %v1856 = vunpack.c.l.b16 %v1804
      %v1857 = vunpack.c.l.b16 %v1805
      %v1858 = vunpack.c.l.b16 %v1806
      %v1859 = vunpack.c.l.b16 %v1807
      %v1860 = vunpack.c.l.b16 %v1808
      %v1861 = vunpack.c.l.b16 %v1809
      %v1862 = vunpack.c.l.b16 %v1810
      %v1863 = vunpack.c.l.b16 %v1811
      %v1864 = vunpack.c.l.b16 %v1812
      %v1865 = vunpack.c.l.b16 %v1813
      %v1866 = vunpack.c.l.b16 %v1814
      %v1867 = vunpack.c.l.b16 %v1815
      %v1868 = vpack.c.b16 %v1853, %v1852
      %v1869 = vpack.c.b16 %v1855, %v1854
      %v1870 = vpack.c.b16 %v1857, %v1856
      %v1871 = vpack.c.b16 %v1859, %v1858
      %v1872 = vpack.c.b16 %v1861, %v1860
      %v1873 = vpack.c.b16 %v1863, %v1862
      %v1874 = vpack.c.b16 %v1865, %v1864
      %v1875 = vpack.c.b16 %v1867, %v1866
      %1884 = vmatprep.subr.bf16.mxu0 0
      %1885 = vmatpush1.bf16.msra.mxu0 %v1868
      %1886 = vmatprep.subr.bf16.mxu0 0
      %1887 = vmatpush1.bf16.msra.mxu0 %v1869
      %1888 = vmatprep.subr.bf16.mxu0 0
      %1889 = vmatpush1.bf16.msra.mxu0 %v1870
      %1890 = vmatprep.subr.bf16.mxu0 0
      %1891 = vmatpush1.bf16.msra.mxu0 %v1871
      %1892 = vmatprep.subr.bf16.mxu0 0
      %1893 = vmatpush1.bf16.msra.mxu0 %v1872
      %1894 = vmatprep.subr.bf16.mxu0 0
      %1895 = vmatpush1.bf16.msra.mxu0 %v1873
      %1896 = vmatprep.subr.bf16.mxu0 0
      %1897 = vmatpush1.bf16.msra.mxu0 %v1874
      %1898 = vmatprep.subr.bf16.mxu0 0
      %1899 = vmatpush1.bf16.msra.mxu0 %v1875
      %1900 = vmatprep.subr.bf16.mxu0 0
      %1901 = vmatpush1.bf16.msra.mxu0 0
      %1902 = vmatprep.subr.bf16.mxu0 0
      %1903 = vmatpush1.bf16.msra.mxu0 0
      %1904 = vmatprep.subr.bf16.mxu0 0
      %1905 = vmatpush1.bf16.msra.mxu0 0
      %1906 = vmatprep.subr.bf16.mxu0 0
      %1907 = vmatpush1.bf16.msra.mxu0 0
      %1908 = vmatprep.subr.bf16.mxu0 0
      %1909 = vmatpush1.bf16.msra.mxu0 0
      %1910 = vmatprep.subr.bf16.mxu0 0
      %1911 = vmatpush1.bf16.msra.mxu0 0
      %1912 = vmatprep.subr.bf16.mxu0 0
      %1913 = vmatpush1.bf16.msra.mxu0 0
      %1914 = vmatprep.subr.bf16.mxu0 0
      %1915 = vmatpush1.bf16.msra.mxu0 0
      %1916 = vmatprep.mubr.bf16.mxu0 0
      %1917 = vmatmul.mubr.bf16.gmra.mrb[0].mxu0 %v1822
      %v1918 = vpop.f32.mrb[0].mxu0
      %v1919 = vadd.f32 0.0, %v1918
      %v1920 = vpop.f32.mrb[0].mxu0
      %v1921 = vpop.f32.mrb[0].mxu0
      %v1922 = vadd.f32 0.0, %v1921
      %v1923 = vpop.f32.mrb[0].mxu0
      %1924 = vmatprep.mubr.bf16.mxu0 0
      %1925 = vmatmul.mubr.bf16.gmra.mrb[0].mxu0 %v1824
      %v1926 = vpop.f32.mrb[0].mxu0
      %v1927 = vadd.f32 0.0, %v1926
      %v1928 = vpop.f32.mrb[0].mxu0
      %v1929 = vpop.f32.mrb[0].mxu0
      %v1930 = vadd.f32 0.0, %v1929
      %v1931 = vpop.f32.mrb[0].mxu0
      %1932 = vmatprep.mubr.bf16.mxu0 0
      %1933 = vmatmul.mubr.bf16.gmra.mrb[0].mxu0 %v1826
      %v1934 = vpop.f32.mrb[0].mxu0
      %v1935 = vadd.f32 0.0, %v1934
      %v1936 = vpop.f32.mrb[0].mxu0
      %v1937 = vpop.f32.mrb[0].mxu0
      %v1938 = vadd.f32 0.0, %v1937
      %v1939 = vpop.f32.mrb[0].mxu0
      %1940 = vmatprep.mubr.bf16.mxu0 0
      %1941 = vmatmul.mubr.bf16.gmra.mrb[0].mxu0 %v1828
      %v1942 = vpop.f32.mrb[0].mxu0
      %v1943 = vadd.f32 0.0, %v1942
      %v1944 = vpop.f32.mrb[0].mxu0
      %v1945 = vpop.f32.mrb[0].mxu0
      %v1946 = vadd.f32 0.0, %v1945
      %v1947 = vpop.f32.mrb[0].mxu0
      %1948 = vmatprep.mubr.bf16.mxu0 0
      %1949 = vmatmul.mubr.bf16.gmra.mrb[0].mxu0 %v1830
      %v1950 = vpop.f32.mrb[0].mxu0
      %v1951 = vadd.f32 0.0, %v1950
      %v1952 = vpop.f32.mrb[0].mxu0
      %v1953 = vpop.f32.mrb[0].mxu0
      %v1954 = vadd.f32 0.0, %v1953
      %v1955 = vpop.f32.mrb[0].mxu0
      %1956 = vdwg.mxu0
      %v1957 = vadd.f32 %v1788, %v1919
      %v1958 = vadd.f32 %v1789, %v1922
      %v1959 = vadd.f32 %v1790, %v1927
      %v1960 = vadd.f32 %v1791, %v1930
      %v1961 = vadd.f32 %v1792, %v1935
      %v1962 = vadd.f32 %v1793, %v1938
      %v1963 = vadd.f32 %v1794, %v1943
      %v1964 = vadd.f32 %v1795, %v1946
      %v1965 = vadd.f32 %v1796, %v1951
      %v1966 = vadd.f32 %v1797, %v1954
      %v1967 = vld [vmem:[%s3] sm:$0x1]
      %v1969 = vlaneseq
      %v1970 = vshrl.u32 %v1969, 7
      %v1971 = vsub.s32 0, %v1970
      %v1972 = vrot.slane %v1967, %v1971
      %v1974 = vadd.f32 %v1957, %v1972
      %v1975 = vadd.f32 %v1958, %v1972
      %v1976 = vadd.f32 %v1959, %v1972
      %v1977 = vadd.f32 %v1960, %v1972
      %v1978 = vadd.f32 %v1961, %v1972
      %v1979 = vadd.f32 %v1962, %v1972
      %v1980 = vadd.f32 %v1963, %v1972
      %v1981 = vadd.f32 %v1964, %v1972
      %v1982 = vadd.f32 %v1965, %v1972
      %v1983 = vadd.f32 %v1966, %v1972
      %v1984 = vmax.f32 %v1974, 0.0
      %v1985 = vmax.f32 %v1975, 0.0
      %v1986 = vmax.f32 %v1976, 0.0
      %v1987 = vmax.f32 %v1977, 0.0
      %v1988 = vmax.f32 %v1978, 0.0
      %v1989 = vmax.f32 %v1979, 0.0
      %v1990 = vmax.f32 %v1980, 0.0
      %v1991 = vmax.f32 %v1981, 0.0
      %v1992 = vmax.f32 %v1982, 0.0
      %v1993 = vmax.f32 %v1983, 0.0
      %1995 = vset.pattern.permute.xlu0 0
      %1996 = vperm.xlu0 %1995, %v253
      %v1997 = vpop.permute.xlu0 %1996
      %2000 = vset.pattern.permute.xlu0 0
      %2001 = vperm.xlu0 %2000, %v254
      %v2002 = vpop.permute.xlu0 %2001
      %2005 = vset.pattern.permute.xlu0 0
      %2006 = vperm.xlu0 %2005, %v255
      %v2007 = vpop.permute.xlu0 %2006
      %2010 = vset.pattern.permute.xlu0 0
      %2011 = vperm.xlu0 %2010, %v256
      %v2012 = vpop.permute.xlu0 %2011
      %2015 = vset.pattern.permute.xlu0 0
      %2016 = vperm.xlu0 %2015, %v257
      %v2017 = vpop.permute.xlu0 %2016
      %2020 = vset.pattern.permute.xlu0 0
      %2021 = vperm.xlu0 %2020, %v258
      %v2022 = vpop.permute.xlu0 %2021
      %2025 = vset.pattern.permute.xlu0 0
      %2026 = vperm.xlu0 %2025, %v259
      %v2027 = vpop.permute.xlu0 %2026
      %2030 = vset.pattern.permute.xlu0 0
      %2031 = vperm.xlu0 %2030, %v260
      %v2032 = vpop.permute.xlu0 %2031
      %2035 = vset.pattern.permute.xlu0 0
      %2036 = vperm.xlu0 %2035, %v261
      %v2037 = vpop.permute.xlu0 %2036
      %2040 = vset.pattern.permute.xlu0 0
      %2041 = vperm.xlu0 %2040, %v262
      %v2042 = vpop.permute.xlu0 %2041
      %v2044 = vmul.f32 %v1984, %v1997
      %v2045 = vmul.f32 %v1985, %v2002
      %v2046 = vmul.f32 %v1986, %v2007
      %v2047 = vmul.f32 %v1987, %v2012
      %v2048 = vmul.f32 %v1988, %v2017
      %v2049 = vmul.f32 %v1989, %v2022
      %v2050 = vmul.f32 %v1990, %v2027
      %v2051 = vmul.f32 %v1991, %v2032
      %v2052 = vmul.f32 %v1992, %v2037
      %v2053 = vmul.f32 %v1993, %v2042
      %2054 = vst [vmem:[#allocation2] sm:$0xff] 0
      %2055 = vst [vmem:[#allocation2 + $0x8] sm:$0xff] 0
      %2056 = vst [vmem:[#allocation2 + $0x10] sm:$0xff] 0
      %2057 = vst [vmem:[#allocation2 + $0x18] sm:$0xff] 0
      %2058 = vst [vmem:[#allocation2 + $0x20] sm:$0xff] 0
      %2059 = vst [vmem:[#allocation2 + $0x28] sm:$0xff] 0
      %2060 = vst [vmem:[#allocation2 + $0x30] sm:$0xff] 0
      %v2061 = vpack.c.bf16 %v2045, %v2044
      %v2062 = vpack.c.bf16 %v2047, %v2046
      %v2063 = vpack.c.bf16 %v2049, %v2048
      %v2064 = vpack.c.bf16 %v2051, %v2050
      %v2065 = vpack.c.bf16 %v2053, %v2052
      %v2067 = vshrl.u32 %v2061, 16
      %v2069 = vrot.slane %v2067, 2
      %v2070 = vshll.u32 %v2061, 16
      %v2072 = vrot.slane %v2070, 3
      %v2073 = vor.u32 %v2069, %v2072
      %v2075 = vshrl.u32 %v2062, 16
      %v2077 = vrot.slane %v2075, 2
      %v2078 = vshll.u32 %v2062, 16
      %v2080 = vrot.slane %v2078, 3
      %v2081 = vor.u32 %v2077, %v2080
      %v2082 = vsel %vm1608, %v2073, %v2081
      %v2084 = vshrl.u32 %v2063, 16
      %v2086 = vrot.slane %v2084, 2
      %v2087 = vshll.u32 %v2063, 16
      %v2089 = vrot.slane %v2087, 3
      %v2090 = vor.u32 %v2086, %v2089
      %v2091 = vsel %vm1608, %v2081, %v2090
      %v2093 = vshrl.u32 %v2064, 16
      %v2095 = vrot.slane %v2093, 2
      %v2096 = vshll.u32 %v2064, 16
      %v2098 = vrot.slane %v2096, 3
      %v2099 = vor.u32 %v2095, %v2098
      %v2100 = vsel %vm1608, %v2090, %v2099
      %v2102 = vshrl.u32 %v2065, 16
      %v2104 = vrot.slane %v2102, 2
      %v2105 = vshll.u32 %v2065, 16
      %v2107 = vrot.slane %v2105, 3
      %v2108 = vor.u32 %v2104, %v2107
      %v2109 = vsel %vm1608, %v2099, %v2108
      %vm2116 = vcmask 1047557
      %vm2117 = vsmask.f32 7958
      %vm2118 = vmand %vm2116, %vm2117
      %v2119 = vld [vmem:[#allocation2] sm:$0xe0]
      %v2120 = vsel %vm2118, %v2073, %v2119
      %2121 = vst [vmem:[#allocation2] sm:$0xe0] %v2120
      %2122 = vst [vmem:[#allocation2 + $0x8] sm:$0xff] %v2082
      %2123 = vst [vmem:[#allocation2 + $0x10] sm:$0xff] %v2091
      %2124 = vst [vmem:[#allocation2 + $0x18] sm:$0xff] %v2100
      %2125 = vst [vmem:[#allocation2 + $0x20] sm:$0xff] %v2109
      %vm2126 = vmand %vm1236, %vm1608
      %v2127 = vld [vmem:[#allocation2 + $0x28] sm:$0x3f]
      %v2128 = vsel %vm2126, %v2108, %v2127
      %2129 = vst [vmem:[#allocation2 + $0x28] sm:$0x3f] %v2128
      %v2130 = vld [vmem:[#allocation2] sm:$0xff]
      %v2131 = vld [vmem:[#allocation2 + $0x8] sm:$0xff]
      %v2132 = vld [vmem:[#allocation2 + $0x10] sm:$0xff]
      %v2133 = vld [vmem:[#allocation2 + $0x18] sm:$0xff]
      %v2134 = vld [vmem:[#allocation2 + $0x20] sm:$0xff]
      %v2135 = vld [vmem:[%s2] sm:$0xf]
      %v2136 = vld [vmem:[%s2 + $0x4] sm:$0xf]
      %v2137 = vld [vmem:[%s2 + $0x8] sm:$0xf]
      %v2138 = vld [vmem:[%s2 + $0xc] sm:$0xf]
      %v2139 = vld [vmem:[%s2 + $0x10] sm:$0xf]
      %v2140 = vld [vmem:[%s2 + $0x14] sm:$0xf]
      %v2141 = vld [vmem:[%s2 + $0x18] sm:$0xf]
      %v2142 = vld [vmem:[%s2 + $0x1c] sm:$0xf]
      %v2143 = vld [vmem:[%s2 + $0x20] sm:$0xf]
      %v2144 = vld [vmem:[%s2 + $0x24] sm:$0xf]
      %v2145 = vld [vmem:[%s2 + $0x28] sm:$0xf]
      %v2146 = vld [vmem:[%s2 + $0x2c] sm:$0xf]
      %v2147 = vld [vmem:[%s2 + $0x30] sm:$0xf]
      %v2148 = vld [vmem:[%s2 + $0x34] sm:$0xf]
      %v2149 = vld [vmem:[%s2 + $0x38] sm:$0xf]
      %v2150 = vld [vmem:[%s2 + $0x3c] sm:$0xf]
      %v2151 = vld [vmem:[#allocation2 + $0x28] sm:$0x1]
      %s2152 = scalar_lea.vmem %s2, 64
      %v2153 = vld [vmem:[%s2152] sm:$0xf]
      %v2154 = vld [vmem:[%s2152 + $0x4] sm:$0xf]
      %v2155 = vld [vmem:[%s2152 + $0x8] sm:$0xf]
      %v2156 = vld [vmem:[%s2152 + $0xc] sm:$0xf]
      %v2157 = vld [vmem:[%s2152 + $0x10] sm:$0xf]
      %v2158 = vld [vmem:[%s2152 + $0x14] sm:$0xf]
      %v2159 = vld [vmem:[%s2152 + $0x18] sm:$0xf]
      %v2160 = vld [vmem:[%s2152 + $0x1c] sm:$0xf]
      %v2161 = vld [vmem:[%s2152 + $0x20] sm:$0xf]
      %v2162 = vld [vmem:[%s2152 + $0x24] sm:$0xf]
      %v2163 = vld [vmem:[%s2152 + $0x28] sm:$0xf]
      %v2164 = vld [vmem:[%s2152 + $0x2c] sm:$0xf]
      %v2165 = vld [vmem:[%s2152 + $0x30] sm:$0xf]
      %v2166 = vld [vmem:[%s2152 + $0x34] sm:$0xf]
      %v2167 = vld [vmem:[%s2152 + $0x38] sm:$0xf]
      %v2168 = vld [vmem:[%s2152 + $0x3c] sm:$0xf]
      %v2170 = vshrl.u32 %v2130, 16
      %v2172 = vshll.u32 %v2130, 16
      %v2174 = vrot.slane %v2172, 1
      %v2175 = vor.u32 %v2170, %v2174
      %v2177 = vshll.u32 %v2131, 16
      %v2179 = vrot.slane %v2177, 1
      %v2180 = vsel %vm335, %v2175, %v2179
      %v2181 = vshrl.u32 %v2131, 16
      %v2183 = vor.u32 %v2181, %v2179
      %v2185 = vshll.u32 %v2132, 16
      %v2187 = vrot.slane %v2185, 1
      %v2188 = vsel %vm335, %v2183, %v2187
      %v2189 = vshrl.u32 %v2132, 16
      %v2191 = vor.u32 %v2189, %v2187
      %v2193 = vshll.u32 %v2133, 16
      %v2195 = vrot.slane %v2193, 1
      %v2196 = vsel %vm335, %v2191, %v2195
      %v2197 = vshrl.u32 %v2133, 16
      %v2199 = vor.u32 %v2197, %v2195
      %v2201 = vshll.u32 %v2134, 16
      %v2203 = vrot.slane %v2201, 1
      %v2204 = vsel %vm335, %v2199, %v2203
      %v2205 = vshrl.u32 %v2134, 16
      %v2207 = vor.u32 %v2205, %v2203
      %v2209 = vshll.u32 %v2151, 16
      %v2211 = vrot.slane %v2209, 1
      %v2212 = vsel %vm335, %v2207, %v2211
      %v2234 = vunpack.c.l.b16 %v2153
      %v2235 = vunpack.c.l.b16 %v2154
      %v2236 = vunpack.c.l.b16 %v2155
      %v2237 = vunpack.c.l.b16 %v2156
      %v2238 = vunpack.c.l.b16 %v2157
      %v2239 = vunpack.c.l.b16 %v2158
      %v2240 = vunpack.c.l.b16 %v2159
      %v2241 = vunpack.c.l.b16 %v2160
      %v2242 = vunpack.c.l.b16 %v2161
      %v2243 = vunpack.c.l.b16 %v2162
      %v2244 = vunpack.c.l.b16 %v2163
      %v2245 = vunpack.c.l.b16 %v2164
      %v2246 = vunpack.c.l.b16 %v2165
      %v2247 = vunpack.c.l.b16 %v2166
      %v2248 = vunpack.c.l.b16 %v2167
      %v2249 = vunpack.c.l.b16 %v2168
      %v2250 = vpack.c.b16 %v2235, %v2234
      %v2251 = vpack.c.b16 %v2237, %v2236
      %v2252 = vpack.c.b16 %v2239, %v2238
      %v2253 = vpack.c.b16 %v2241, %v2240
      %v2254 = vpack.c.b16 %v2243, %v2242
      %v2255 = vpack.c.b16 %v2245, %v2244
      %v2256 = vpack.c.b16 %v2247, %v2246
      %v2257 = vpack.c.b16 %v2249, %v2248
      %2266 = vmatprep.subr.bf16.mxu0 0
      %2267 = vmatpush1.bf16.msra.mxu0 %v2250
      %2268 = vmatprep.subr.bf16.mxu0 0
      %2269 = vmatpush1.bf16.msra.mxu0 %v2251
      %2270 = vmatprep.subr.bf16.mxu0 0
      %2271 = vmatpush1.bf16.msra.mxu0 %v2252
      %2272 = vmatprep.subr.bf16.mxu0 0
      %2273 = vmatpush1.bf16.msra.mxu0 %v2253
      %2274 = vmatprep.subr.bf16.mxu0 0
      %2275 = vmatpush1.bf16.msra.mxu0 %v2254
      %2276 = vmatprep.subr.bf16.mxu0 0
      %2277 = vmatpush1.bf16.msra.mxu0 %v2255
      %2278 = vmatprep.subr.bf16.mxu0 0
      %2279 = vmatpush1.bf16.msra.mxu0 %v2256
      %2280 = vmatprep.subr.bf16.mxu0 0
      %2281 = vmatpush1.bf16.msra.mxu0 %v2257
      %2282 = vmatprep.subr.bf16.mxu0 0
      %2283 = vmatpush1.bf16.msra.mxu0 0
      %2284 = vmatprep.subr.bf16.mxu0 0
      %2285 = vmatpush1.bf16.msra.mxu0 0
      %2286 = vmatprep.subr.bf16.mxu0 0
      %2287 = vmatpush1.bf16.msra.mxu0 0
      %2288 = vmatprep.subr.bf16.mxu0 0
      %2289 = vmatpush1.bf16.msra.mxu0 0
      %2290 = vmatprep.subr.bf16.mxu0 0
      %2291 = vmatpush1.bf16.msra.mxu0 0
      %2292 = vmatprep.subr.bf16.mxu0 0
      %2293 = vmatpush1.bf16.msra.mxu0 0
      %2294 = vmatprep.subr.bf16.mxu0 0
      %2295 = vmatpush1.bf16.msra.mxu0 0
      %2296 = vmatprep.subr.bf16.mxu0 0
      %2297 = vmatpush1.bf16.msra.mxu0 0
      %2298 = vmatprep.mubr.bf16.mxu0 0
      %2299 = vmatmul.mubr.bf16.gmra.mrb[0].mxu0 %v2180
      %v2300 = vpop.f32.mrb[0].mxu0
      %v2301 = vadd.f32 0.0, %v2300
      %v2302 = vpop.f32.mrb[0].mxu0
      %v2303 = vpop.f32.mrb[0].mxu0
      %v2304 = vadd.f32 0.0, %v2303
      %v2305 = vpop.f32.mrb[0].mxu0
      %2306 = vmatprep.mubr.bf16.mxu0 0
      %2307 = vmatmul.mubr.bf16.gmra.mrb[0].mxu0 %v2188
      %v2308 = vpop.f32.mrb[0].mxu0
      %v2309 = vadd.f32 0.0, %v2308
      %v2310 = vpop.f32.mrb[0].mxu0
      %v2311 = vpop.f32.mrb[0].mxu0
      %v2312 = vadd.f32 0.0, %v2311
      %v2313 = vpop.f32.mrb[0].mxu0
      %2314 = vmatprep.mubr.bf16.mxu0 0
      %2315 = vmatmul.mubr.bf16.gmra.mrb[0].mxu0 %v2196
      %v2316 = vpop.f32.mrb[0].mxu0
      %v2317 = vadd.f32 0.0, %v2316
      %v2318 = vpop.f32.mrb[0].mxu0
      %v2319 = vpop.f32.mrb[0].mxu0
      %v2320 = vadd.f32 0.0, %v2319
      %v2321 = vpop.f32.mrb[0].mxu0
      %2322 = vmatprep.mubr.bf16.mxu0 0
      %2323 = vmatmul.mubr.bf16.gmra.mrb[0].mxu0 %v2204
      %v2324 = vpop.f32.mrb[0].mxu0
      %v2325 = vadd.f32 0.0, %v2324
      %v2326 = vpop.f32.mrb[0].mxu0
      %v2327 = vpop.f32.mrb[0].mxu0
      %v2328 = vadd.f32 0.0, %v2327
      %v2329 = vpop.f32.mrb[0].mxu0
      %2330 = vmatprep.mubr.bf16.mxu0 0
      %2331 = vmatmul.mubr.bf16.gmra.mrb[0].mxu0 %v2212
      %v2332 = vpop.f32.mrb[0].mxu0
      %v2333 = vadd.f32 0.0, %v2332
      %v2334 = vpop.f32.mrb[0].mxu0
      %v2335 = vpop.f32.mrb[0].mxu0
      %v2336 = vadd.f32 0.0, %v2335
      %v2337 = vpop.f32.mrb[0].mxu0
      %2338 = vdwg.mxu0
      %v2355 = vunpack.c.l.b16 %v2135
      %v2356 = vunpack.c.l.b16 %v2136
      %v2357 = vunpack.c.l.b16 %v2137
      %v2358 = vunpack.c.l.b16 %v2138
      %v2359 = vunpack.c.l.b16 %v2139
      %v2360 = vunpack.c.l.b16 %v2140
      %v2361 = vunpack.c.l.b16 %v2141
      %v2362 = vunpack.c.l.b16 %v2142
      %v2363 = vunpack.c.l.b16 %v2143
      %v2364 = vunpack.c.l.b16 %v2144
      %v2365 = vunpack.c.l.b16 %v2145
      %v2366 = vunpack.c.l.b16 %v2146
      %v2367 = vunpack.c.l.b16 %v2147
      %v2368 = vunpack.c.l.b16 %v2148
      %v2369 = vunpack.c.l.b16 %v2149
      %v2370 = vunpack.c.l.b16 %v2150
      %v2371 = vpack.c.b16 %v2356, %v2355
      %v2372 = vpack.c.b16 %v2358, %v2357
      %v2373 = vpack.c.b16 %v2360, %v2359
      %v2374 = vpack.c.b16 %v2362, %v2361
      %v2375 = vpack.c.b16 %v2364, %v2363
      %v2376 = vpack.c.b16 %v2366, %v2365
      %v2377 = vpack.c.b16 %v2368, %v2367
      %v2378 = vpack.c.b16 %v2370, %v2369
      %2387 = vmatprep.subr.bf16.mxu0 0
      %2388 = vmatpush1.bf16.msra.mxu0 %v2371
      %2389 = vmatprep.subr.bf16.mxu0 0
      %2390 = vmatpush1.bf16.msra.mxu0 %v2372
      %2391 = vmatprep.subr.bf16.mxu0 0
      %2392 = vmatpush1.bf16.msra.mxu0 %v2373
      %2393 = vmatprep.subr.bf16.mxu0 0
      %2394 = vmatpush1.bf16.msra.mxu0 %v2374
      %2395 = vmatprep.subr.bf16.mxu0 0
      %2396 = vmatpush1.bf16.msra.mxu0 %v2375
      %2397 = vmatprep.subr.bf16.mxu0 0
      %2398 = vmatpush1.bf16.msra.mxu0 %v2376
      %2399 = vmatprep.subr.bf16.mxu0 0
      %2400 = vmatpush1.bf16.msra.mxu0 %v2377
      %2401 = vmatprep.subr.bf16.mxu0 0
      %2402 = vmatpush1.bf16.msra.mxu0 %v2378
      %2403 = vmatprep.subr.bf16.mxu0 0
      %2404 = vmatpush1.bf16.msra.mxu0 0
      %2405 = vmatprep.subr.bf16.mxu0 0
      %2406 = vmatpush1.bf16.msra.mxu0 0
      %2407 = vmatprep.subr.bf16.mxu0 0
      %2408 = vmatpush1.bf16.msra.mxu0 0
      %2409 = vmatprep.subr.bf16.mxu0 0
      %2410 = vmatpush1.bf16.msra.mxu0 0
      %2411 = vmatprep.subr.bf16.mxu0 0
      %2412 = vmatpush1.bf16.msra.mxu0 0
      %2413 = vmatprep.subr.bf16.mxu0 0
      %2414 = vmatpush1.bf16.msra.mxu0 0
      %2415 = vmatprep.subr.bf16.mxu0 0
      %2416 = vmatpush1.bf16.msra.mxu0 0
      %2417 = vmatprep.subr.bf16.mxu0 0
      %2418 = vmatpush1.bf16.msra.mxu0 0
      %2419 = vmatprep.mubr.bf16.mxu0 0
      %2420 = vmatmul.mubr.bf16.gmra.mrb[0].mxu0 %v2130
      %v2421 = vpop.f32.mrb[0].mxu0
      %v2422 = vadd.f32 %v2301, %v2421
      %v2423 = vpop.f32.mrb[0].mxu0
      %v2424 = vpop.f32.mrb[0].mxu0
      %v2425 = vadd.f32 %v2304, %v2424
      %v2426 = vpop.f32.mrb[0].mxu0
      %2427 = vmatprep.mubr.bf16.mxu0 0
      %2428 = vmatmul.mubr.bf16.gmra.mrb[0].mxu0 %v2131
      %v2429 = vpop.f32.mrb[0].mxu0
      %v2430 = vadd.f32 %v2309, %v2429
      %v2431 = vpop.f32.mrb[0].mxu0
      %v2432 = vpop.f32.mrb[0].mxu0
      %v2433 = vadd.f32 %v2312, %v2432
      %v2434 = vpop.f32.mrb[0].mxu0
      %2435 = vmatprep.mubr.bf16.mxu0 0
      %2436 = vmatmul.mubr.bf16.gmra.mrb[0].mxu0 %v2132
      %v2437 = vpop.f32.mrb[0].mxu0
      %v2438 = vadd.f32 %v2317, %v2437
      %v2439 = vpop.f32.mrb[0].mxu0
      %v2440 = vpop.f32.mrb[0].mxu0
      %v2441 = vadd.f32 %v2320, %v2440
      %v2442 = vpop.f32.mrb[0].mxu0
      %2443 = vmatprep.mubr.bf16.mxu0 0
      %2444 = vmatmul.mubr.bf16.gmra.mrb[0].mxu0 %v2133
      %v2445 = vpop.f32.mrb[0].mxu0
      %v2446 = vadd.f32 %v2325, %v2445
      %v2447 = vpop.f32.mrb[0].mxu0
      %v2448 = vpop.f32.mrb[0].mxu0
      %v2449 = vadd.f32 %v2328, %v2448
      %v2450 = vpop.f32.mrb[0].mxu0
      %2451 = vmatprep.mubr.bf16.mxu0 0
      %2452 = vmatmul.mubr.bf16.gmra.mrb[0].mxu0 %v2134
      %v2453 = vpop.f32.mrb[0].mxu0
      %v2454 = vadd.f32 %v2333, %v2453
      %v2455 = vpop.f32.mrb[0].mxu0
      %v2456 = vpop.f32.mrb[0].mxu0
      %v2457 = vadd.f32 %v2336, %v2456
      %v2458 = vpop.f32.mrb[0].mxu0
      %2459 = vdwg.mxu0
      %v2460 = vld [vmem:[#allocation2] sm:$0xfe]
      %s2461 = scalar_lea.vmem %s2, 128
      %v2462 = vld [vmem:[%s2461] sm:$0xf]
      %v2463 = vld [vmem:[%s2461 + $0x4] sm:$0xf]
      %v2464 = vld [vmem:[%s2461 + $0x8] sm:$0xf]
      %v2465 = vld [vmem:[%s2461 + $0xc] sm:$0xf]
      %v2466 = vld [vmem:[%s2461 + $0x10] sm:$0xf]
      %v2467 = vld [vmem:[%s2461 + $0x14] sm:$0xf]
      %v2468 = vld [vmem:[%s2461 + $0x18] sm:$0xf]
      %v2469 = vld [vmem:[%s2461 + $0x1c] sm:$0xf]
      %v2470 = vld [vmem:[%s2461 + $0x20] sm:$0xf]
      %v2471 = vld [vmem:[%s2461 + $0x24] sm:$0xf]
      %v2472 = vld [vmem:[%s2461 + $0x28] sm:$0xf]
      %v2473 = vld [vmem:[%s2461 + $0x2c] sm:$0xf]
      %v2474 = vld [vmem:[%s2461 + $0x30] sm:$0xf]
      %v2475 = vld [vmem:[%s2461 + $0x34] sm:$0xf]
      %v2476 = vld [vmem:[%s2461 + $0x38] sm:$0xf]
      %v2477 = vld [vmem:[%s2461 + $0x3c] sm:$0xf]
      %v2484 = vrot.slane %v2460, 1
      %v2485 = vrot.slane %v2131, 1
      %v2486 = vsel %vm653, %v2484, %v2485
      %v2487 = vrot.slane %v2132, 1
      %v2488 = vsel %vm653, %v2485, %v2487
      %v2489 = vrot.slane %v2133, 1
      %v2490 = vsel %vm653, %v2487, %v2489
      %v2491 = vrot.slane %v2134, 1
      %v2492 = vsel %vm653, %v2489, %v2491
      %v2493 = vrot.slane %v2151, 1
      %v2494 = vsel %vm653, %v2491, %v2493
      %v2516 = vunpack.c.l.b16 %v2462
      %v2517 = vunpack.c.l.b16 %v2463
      %v2518 = vunpack.c.l.b16 %v2464
      %v2519 = vunpack.c.l.b16 %v2465
      %v2520 = vunpack.c.l.b16 %v2466
      %v2521 = vunpack.c.l.b16 %v2467
      %v2522 = vunpack.c.l.b16 %v2468
      %v2523 = vunpack.c.l.b16 %v2469
      %v2524 = vunpack.c.l.b16 %v2470
      %v2525 = vunpack.c.l.b16 %v2471
      %v2526 = vunpack.c.l.b16 %v2472
      %v2527 = vunpack.c.l.b16 %v2473
      %v2528 = vunpack.c.l.b16 %v2474
      %v2529 = vunpack.c.l.b16 %v2475
      %v2530 = vunpack.c.l.b16 %v2476
      %v2531 = vunpack.c.l.b16 %v2477
      %v2532 = vpack.c.b16 %v2517, %v2516
      %v2533 = vpack.c.b16 %v2519, %v2518
      %v2534 = vpack.c.b16 %v2521, %v2520
      %v2535 = vpack.c.b16 %v2523, %v2522
      %v2536 = vpack.c.b16 %v2525, %v2524
      %v2537 = vpack.c.b16 %v2527, %v2526
      %v2538 = vpack.c.b16 %v2529, %v2528
      %v2539 = vpack.c.b16 %v2531, %v2530
      %2548 = vmatprep.subr.bf16.mxu0 0
      %2549 = vmatpush1.bf16.msra.mxu0 %v2532
      %2550 = vmatprep.subr.bf16.mxu0 0
      %2551 = vmatpush1.bf16.msra.mxu0 %v2533
      %2552 = vmatprep.subr.bf16.mxu0 0
      %2553 = vmatpush1.bf16.msra.mxu0 %v2534
      %2554 = vmatprep.subr.bf16.mxu0 0
      %2555 = vmatpush1.bf16.msra.mxu0 %v2535
      %2556 = vmatprep.subr.bf16.mxu0 0
      %2557 = vmatpush1.bf16.msra.mxu0 %v2536
      %2558 = vmatprep.subr.bf16.mxu0 0
      %2559 = vmatpush1.bf16.msra.mxu0 %v2537
      %2560 = vmatprep.subr.bf16.mxu0 0
      %2561 = vmatpush1.bf16.msra.mxu0 %v2538
      %2562 = vmatprep.subr.bf16.mxu0 0
      %2563 = vmatpush1.bf16.msra.mxu0 %v2539
      %2564 = vmatprep.subr.bf16.mxu0 0
      %2565 = vmatpush1.bf16.msra.mxu0 0
      %2566 = vmatprep.subr.bf16.mxu0 0
      %2567 = vmatpush1.bf16.msra.mxu0 0
      %2568 = vmatprep.subr.bf16.mxu0 0
      %2569 = vmatpush1.bf16.msra.mxu0 0
      %2570 = vmatprep.subr.bf16.mxu0 0
      %2571 = vmatpush1.bf16.msra.mxu0 0
      %2572 = vmatprep.subr.bf16.mxu0 0
      %2573 = vmatpush1.bf16.msra.mxu0 0
      %2574 = vmatprep.subr.bf16.mxu0 0
      %2575 = vmatpush1.bf16.msra.mxu0 0
      %2576 = vmatprep.subr.bf16.mxu0 0
      %2577 = vmatpush1.bf16.msra.mxu0 0
      %2578 = vmatprep.subr.bf16.mxu0 0
      %2579 = vmatpush1.bf16.msra.mxu0 0
      %2580 = vmatprep.mubr.bf16.mxu0 0
      %2581 = vmatmul.mubr.bf16.gmra.mrb[0].mxu0 %v2486
      %v2582 = vpop.f32.mrb[0].mxu0
      %v2583 = vadd.f32 0.0, %v2582
      %v2584 = vpop.f32.mrb[0].mxu0
      %v2585 = vpop.f32.mrb[0].mxu0
      %v2586 = vadd.f32 0.0, %v2585
      %v2587 = vpop.f32.mrb[0].mxu0
      %2588 = vmatprep.mubr.bf16.mxu0 0
      %2589 = vmatmul.mubr.bf16.gmra.mrb[0].mxu0 %v2488
      %v2590 = vpop.f32.mrb[0].mxu0
      %v2591 = vadd.f32 0.0, %v2590
      %v2592 = vpop.f32.mrb[0].mxu0
      %v2593 = vpop.f32.mrb[0].mxu0
      %v2594 = vadd.f32 0.0, %v2593
      %v2595 = vpop.f32.mrb[0].mxu0
      %2596 = vmatprep.mubr.bf16.mxu0 0
      %2597 = vmatmul.mubr.bf16.gmra.mrb[0].mxu0 %v2490
      %v2598 = vpop.f32.mrb[0].mxu0
      %v2599 = vadd.f32 0.0, %v2598
      %v2600 = vpop.f32.mrb[0].mxu0
      %v2601 = vpop.f32.mrb[0].mxu0
      %v2602 = vadd.f32 0.0, %v2601
      %v2603 = vpop.f32.mrb[0].mxu0
      %2604 = vmatprep.mubr.bf16.mxu0 0
      %2605 = vmatmul.mubr.bf16.gmra.mrb[0].mxu0 %v2492
      %v2606 = vpop.f32.mrb[0].mxu0
      %v2607 = vadd.f32 0.0, %v2606
      %v2608 = vpop.f32.mrb[0].mxu0
      %v2609 = vpop.f32.mrb[0].mxu0
      %v2610 = vadd.f32 0.0, %v2609
      %v2611 = vpop.f32.mrb[0].mxu0
      %2612 = vmatprep.mubr.bf16.mxu0 0
      %2613 = vmatmul.mubr.bf16.gmra.mrb[0].mxu0 %v2494
      %v2614 = vpop.f32.mrb[0].mxu0
      %v2615 = vadd.f32 0.0, %v2614
      %v2616 = vpop.f32.mrb[0].mxu0
      %v2617 = vpop.f32.mrb[0].mxu0
      %v2618 = vadd.f32 0.0, %v2617
      %v2619 = vpop.f32.mrb[0].mxu0
      %2620 = vdwg.mxu0
      %v2621 = vadd.f32 %v2422, %v2583
      %v2622 = vadd.f32 %v2425, %v2586
      %v2623 = vadd.f32 %v2430, %v2591
      %v2624 = vadd.f32 %v2433, %v2594
      %v2625 = vadd.f32 %v2438, %v2599
      %v2626 = vadd.f32 %v2441, %v2602
      %v2627 = vadd.f32 %v2446, %v2607
      %v2628 = vadd.f32 %v2449, %v2610
      %v2629 = vadd.f32 %v2454, %v2615
      %v2630 = vadd.f32 %v2457, %v2618
      %v2631 = vld [vmem:[#allocation2] sm:$0xe0]
      %v2632 = vld [vmem:[#allocation2 + $0x28] sm:$0x1f]
      %s2633 = scalar_lea.vmem %s2, 192
      %v2634 = vld [vmem:[%s2633] sm:$0xf]
      %v2635 = vld [vmem:[%s2633 + $0x4] sm:$0xf]
      %v2636 = vld [vmem:[%s2633 + $0x8] sm:$0xf]
      %v2637 = vld [vmem:[%s2633 + $0xc] sm:$0xf]
      %v2638 = vld [vmem:[%s2633 + $0x10] sm:$0xf]
      %v2639 = vld [vmem:[%s2633 + $0x14] sm:$0xf]
      %v2640 = vld [vmem:[%s2633 + $0x18] sm:$0xf]
      %v2641 = vld [vmem:[%s2633 + $0x1c] sm:$0xf]
      %v2642 = vld [vmem:[%s2633 + $0x20] sm:$0xf]
      %v2643 = vld [vmem:[%s2633 + $0x24] sm:$0xf]
      %v2644 = vld [vmem:[%s2633 + $0x28] sm:$0xf]
      %v2645 = vld [vmem:[%s2633 + $0x2c] sm:$0xf]
      %v2646 = vld [vmem:[%s2633 + $0x30] sm:$0xf]
      %v2647 = vld [vmem:[%s2633 + $0x34] sm:$0xf]
      %v2648 = vld [vmem:[%s2633 + $0x38] sm:$0xf]
      %v2649 = vld [vmem:[%s2633 + $0x3c] sm:$0xf]
      %vm2652 = vcmask 1042432
      %v2653 = vrot.slane %v2631, 5
      %v2654 = vrot.slane %v2131, 5
      %v2655 = vsel %vm2652, %v2653, %v2654
      %v2656 = vrot.slane %v2132, 5
      %v2657 = vsel %vm2652, %v2654, %v2656
      %v2658 = vrot.slane %v2133, 5
      %v2659 = vsel %vm2652, %v2656, %v2658
      %v2660 = vrot.slane %v2134, 5
      %v2661 = vsel %vm2652, %v2658, %v2660
      %v2662 = vrot.slane %v2632, 5
      %v2663 = vsel %vm2652, %v2660, %v2662
      %v2685 = vunpack.c.l.b16 %v2634
      %v2686 = vunpack.c.l.b16 %v2635
      %v2687 = vunpack.c.l.b16 %v2636
      %v2688 = vunpack.c.l.b16 %v2637
      %v2689 = vunpack.c.l.b16 %v2638
      %v2690 = vunpack.c.l.b16 %v2639
      %v2691 = vunpack.c.l.b16 %v2640
      %v2692 = vunpack.c.l.b16 %v2641
      %v2693 = vunpack.c.l.b16 %v2642
      %v2694 = vunpack.c.l.b16 %v2643
      %v2695 = vunpack.c.l.b16 %v2644
      %v2696 = vunpack.c.l.b16 %v2645
      %v2697 = vunpack.c.l.b16 %v2646
      %v2698 = vunpack.c.l.b16 %v2647
      %v2699 = vunpack.c.l.b16 %v2648
      %v2700 = vunpack.c.l.b16 %v2649
      %v2701 = vpack.c.b16 %v2686, %v2685
      %v2702 = vpack.c.b16 %v2688, %v2687
      %v2703 = vpack.c.b16 %v2690, %v2689
      %v2704 = vpack.c.b16 %v2692, %v2691
      %v2705 = vpack.c.b16 %v2694, %v2693
      %v2706 = vpack.c.b16 %v2696, %v2695
      %v2707 = vpack.c.b16 %v2698, %v2697
      %v2708 = vpack.c.b16 %v2700, %v2699
      %2717 = vmatprep.subr.bf16.mxu0 0
      %2718 = vmatpush1.bf16.msra.mxu0 %v2701
      %2719 = vmatprep.subr.bf16.mxu0 0
      %2720 = vmatpush1.bf16.msra.mxu0 %v2702
      %2721 = vmatprep.subr.bf16.mxu0 0
      %2722 = vmatpush1.bf16.msra.mxu0 %v2703
      %2723 = vmatprep.subr.bf16.mxu0 0
      %2724 = vmatpush1.bf16.msra.mxu0 %v2704
      %2725 = vmatprep.subr.bf16.mxu0 0
      %2726 = vmatpush1.bf16.msra.mxu0 %v2705
      %2727 = vmatprep.subr.bf16.mxu0 0
      %2728 = vmatpush1.bf16.msra.mxu0 %v2706
      %2729 = vmatprep.subr.bf16.mxu0 0
      %2730 = vmatpush1.bf16.msra.mxu0 %v2707
      %2731 = vmatprep.subr.bf16.mxu0 0
      %2732 = vmatpush1.bf16.msra.mxu0 %v2708
      %2733 = vmatprep.subr.bf16.mxu0 0
      %2734 = vmatpush1.bf16.msra.mxu0 0
      %2735 = vmatprep.subr.bf16.mxu0 0
      %2736 = vmatpush1.bf16.msra.mxu0 0
      %2737 = vmatprep.subr.bf16.mxu0 0
      %2738 = vmatpush1.bf16.msra.mxu0 0
      %2739 = vmatprep.subr.bf16.mxu0 0
      %2740 = vmatpush1.bf16.msra.mxu0 0
      %2741 = vmatprep.subr.bf16.mxu0 0
      %2742 = vmatpush1.bf16.msra.mxu0 0
      %2743 = vmatprep.subr.bf16.mxu0 0
      %2744 = vmatpush1.bf16.msra.mxu0 0
      %2745 = vmatprep.subr.bf16.mxu0 0
      %2746 = vmatpush1.bf16.msra.mxu0 0
      %2747 = vmatprep.subr.bf16.mxu0 0
      %2748 = vmatpush1.bf16.msra.mxu0 0
      %2749 = vmatprep.mubr.bf16.mxu0 0
      %2750 = vmatmul.mubr.bf16.gmra.mrb[0].mxu0 %v2655
      %v2751 = vpop.f32.mrb[0].mxu0
      %v2752 = vadd.f32 0.0, %v2751
      %v2753 = vpop.f32.mrb[0].mxu0
      %v2754 = vpop.f32.mrb[0].mxu0
      %v2755 = vadd.f32 0.0, %v2754
      %v2756 = vpop.f32.mrb[0].mxu0
      %2757 = vmatprep.mubr.bf16.mxu0 0
      %2758 = vmatmul.mubr.bf16.gmra.mrb[0].mxu0 %v2657
      %v2759 = vpop.f32.mrb[0].mxu0
      %v2760 = vadd.f32 0.0, %v2759
      %v2761 = vpop.f32.mrb[0].mxu0
      %v2762 = vpop.f32.mrb[0].mxu0
      %v2763 = vadd.f32 0.0, %v2762
      %v2764 = vpop.f32.mrb[0].mxu0
      %2765 = vmatprep.mubr.bf16.mxu0 0
      %2766 = vmatmul.mubr.bf16.gmra.mrb[0].mxu0 %v2659
      %v2767 = vpop.f32.mrb[0].mxu0
      %v2768 = vadd.f32 0.0, %v2767
      %v2769 = vpop.f32.mrb[0].mxu0
      %v2770 = vpop.f32.mrb[0].mxu0
      %v2771 = vadd.f32 0.0, %v2770
      %v2772 = vpop.f32.mrb[0].mxu0
      %2773 = vmatprep.mubr.bf16.mxu0 0
      %2774 = vmatmul.mubr.bf16.gmra.mrb[0].mxu0 %v2661
      %v2775 = vpop.f32.mrb[0].mxu0
      %v2776 = vadd.f32 0.0, %v2775
      %v2777 = vpop.f32.mrb[0].mxu0
      %v2778 = vpop.f32.mrb[0].mxu0
      %v2779 = vadd.f32 0.0, %v2778
      %v2780 = vpop.f32.mrb[0].mxu0
      %2781 = vmatprep.mubr.bf16.mxu0 0
      %2782 = vmatmul.mubr.bf16.gmra.mrb[0].mxu0 %v2663
      %v2783 = vpop.f32.mrb[0].mxu0
      %v2784 = vadd.f32 0.0, %v2783
      %v2785 = vpop.f32.mrb[0].mxu0
      %v2786 = vpop.f32.mrb[0].mxu0
      %v2787 = vadd.f32 0.0, %v2786
      %v2788 = vpop.f32.mrb[0].mxu0
      %2789 = vdwg.mxu0
      %v2790 = vadd.f32 %v2621, %v2752
      %v2791 = vadd.f32 %v2622, %v2755
      %v2792 = vadd.f32 %v2623, %v2760
      %v2793 = vadd.f32 %v2624, %v2763
      %v2794 = vadd.f32 %v2625, %v2768
      %v2795 = vadd.f32 %v2626, %v2771
      %v2796 = vadd.f32 %v2627, %v2776
      %v2797 = vadd.f32 %v2628, %v2779
      %v2798 = vadd.f32 %v2629, %v2784
      %v2799 = vadd.f32 %v2630, %v2787
      %v2800 = vld [vmem:[#allocation2 + $0x28] sm:$0x3f]
      %s2801 = scalar_lea.vmem %s2, 256
      %v2802 = vld [vmem:[%s2801] sm:$0xf]
      %v2803 = vld [vmem:[%s2801 + $0x4] sm:$0xf]
      %v2804 = vld [vmem:[%s2801 + $0x8] sm:$0xf]
      %v2805 = vld [vmem:[%s2801 + $0xc] sm:$0xf]
      %v2806 = vld [vmem:[%s2801 + $0x10] sm:$0xf]
      %v2807 = vld [vmem:[%s2801 + $0x14] sm:$0xf]
      %v2808 = vld [vmem:[%s2801 + $0x18] sm:$0xf]
      %v2809 = vld [vmem:[%s2801 + $0x1c] sm:$0xf]
      %v2810 = vld [vmem:[%s2801 + $0x20] sm:$0xf]
      %v2811 = vld [vmem:[%s2801 + $0x24] sm:$0xf]
      %v2812 = vld [vmem:[%s2801 + $0x28] sm:$0xf]
      %v2813 = vld [vmem:[%s2801 + $0x2c] sm:$0xf]
      %v2814 = vld [vmem:[%s2801 + $0x30] sm:$0xf]
      %v2815 = vld [vmem:[%s2801 + $0x34] sm:$0xf]
      %v2816 = vld [vmem:[%s2801 + $0x38] sm:$0xf]
      %v2817 = vld [vmem:[%s2801 + $0x3c] sm:$0xf]
      %vm2818 = vsmask.f32 2304
      %v2820 = vshrl.u32 %v2631, 16
      %v2822 = vrot.slane %v2820, 5
      %v2823 = vshll.u32 %v2631, 16
      %v2825 = vrot.slane %v2823, 6
      %v2826 = vor.u32 %v2822, %v2825
      %v2827 = vrot.slane %v2181, 5
      %v2828 = vrot.slane %v2177, 6
      %v2829 = vor.u32 %v2827, %v2828
      %v2830 = vsel %vm2818, %v2826, %v2829
      %v2831 = vrot.slane %v2189, 5
      %v2832 = vrot.slane %v2185, 6
      %v2833 = vor.u32 %v2831, %v2832
      %v2834 = vsel %vm2818, %v2829, %v2833
      %v2835 = vrot.slane %v2197, 5
      %v2836 = vrot.slane %v2193, 6
      %v2837 = vor.u32 %v2835, %v2836
      %v2838 = vsel %vm2818, %v2833, %v2837
      %v2839 = vrot.slane %v2205, 5
      %v2840 = vrot.slane %v2201, 6
      %v2841 = vor.u32 %v2839, %v2840
      %v2842 = vsel %vm2818, %v2837, %v2841
      %v2844 = vshrl.u32 %v2800, 16
      %v2846 = vrot.slane %v2844, 5
      %v2847 = vshll.u32 %v2800, 16
      %v2849 = vrot.slane %v2847, 6
      %v2850 = vor.u32 %v2846, %v2849
      %v2851 = vsel %vm2818, %v2841, %v2850
      %v2873 = vunpack.c.l.b16 %v2802
      %v2874 = vunpack.c.l.b16 %v2803
      %v2875 = vunpack.c.l.b16 %v2804
      %v2876 = vunpack.c.l.b16 %v2805
      %v2877 = vunpack.c.l.b16 %v2806
      %v2878 = vunpack.c.l.b16 %v2807
      %v2879 = vunpack.c.l.b16 %v2808
      %v2880 = vunpack.c.l.b16 %v2809
      %v2881 = vunpack.c.l.b16 %v2810
      %v2882 = vunpack.c.l.b16 %v2811
      %v2883 = vunpack.c.l.b16 %v2812
      %v2884 = vunpack.c.l.b16 %v2813
      %v2885 = vunpack.c.l.b16 %v2814
      %v2886 = vunpack.c.l.b16 %v2815
      %v2887 = vunpack.c.l.b16 %v2816
      %v2888 = vunpack.c.l.b16 %v2817
      %v2889 = vpack.c.b16 %v2874, %v2873
      %v2890 = vpack.c.b16 %v2876, %v2875
      %v2891 = vpack.c.b16 %v2878, %v2877
      %v2892 = vpack.c.b16 %v2880, %v2879
      %v2893 = vpack.c.b16 %v2882, %v2881
      %v2894 = vpack.c.b16 %v2884, %v2883
      %v2895 = vpack.c.b16 %v2886, %v2885
      %v2896 = vpack.c.b16 %v2888, %v2887
      %2905 = vmatprep.subr.bf16.mxu0 0
      %2906 = vmatpush1.bf16.msra.mxu0 %v2889
      %2907 = vmatprep.subr.bf16.mxu0 0
      %2908 = vmatpush1.bf16.msra.mxu0 %v2890
      %2909 = vmatprep.subr.bf16.mxu0 0
      %2910 = vmatpush1.bf16.msra.mxu0 %v2891
      %2911 = vmatprep.subr.bf16.mxu0 0
      %2912 = vmatpush1.bf16.msra.mxu0 %v2892
      %2913 = vmatprep.subr.bf16.mxu0 0
      %2914 = vmatpush1.bf16.msra.mxu0 %v2893
      %2915 = vmatprep.subr.bf16.mxu0 0
      %2916 = vmatpush1.bf16.msra.mxu0 %v2894
      %2917 = vmatprep.subr.bf16.mxu0 0
      %2918 = vmatpush1.bf16.msra.mxu0 %v2895
      %2919 = vmatprep.subr.bf16.mxu0 0
      %2920 = vmatpush1.bf16.msra.mxu0 %v2896
      %2921 = vmatprep.subr.bf16.mxu0 0
      %2922 = vmatpush1.bf16.msra.mxu0 0
      %2923 = vmatprep.subr.bf16.mxu0 0
      %2924 = vmatpush1.bf16.msra.mxu0 0
      %2925 = vmatprep.subr.bf16.mxu0 0
      %2926 = vmatpush1.bf16.msra.mxu0 0
      %2927 = vmatprep.subr.bf16.mxu0 0
      %2928 = vmatpush1.bf16.msra.mxu0 0
      %2929 = vmatprep.subr.bf16.mxu0 0
      %2930 = vmatpush1.bf16.msra.mxu0 0
      %2931 = vmatprep.subr.bf16.mxu0 0
      %2932 = vmatpush1.bf16.msra.mxu0 0
      %2933 = vmatprep.subr.bf16.mxu0 0
      %2934 = vmatpush1.bf16.msra.mxu0 0
      %2935 = vmatprep.subr.bf16.mxu0 0
      %2936 = vmatpush1.bf16.msra.mxu0 0
      %2937 = vmatprep.mubr.bf16.mxu0 0
      %2938 = vmatmul.mubr.bf16.gmra.mrb[0].mxu0 %v2830
      %v2939 = vpop.f32.mrb[0].mxu0
      %v2940 = vadd.f32 0.0, %v2939
      %v2941 = vpop.f32.mrb[0].mxu0
      %v2942 = vpop.f32.mrb[0].mxu0
      %v2943 = vadd.f32 0.0, %v2942
      %v2944 = vpop.f32.mrb[0].mxu0
      %2945 = vmatprep.mubr.bf16.mxu0 0
      %2946 = vmatmul.mubr.bf16.gmra.mrb[0].mxu0 %v2834
      %v2947 = vpop.f32.mrb[0].mxu0
      %v2948 = vadd.f32 0.0, %v2947
      %v2949 = vpop.f32.mrb[0].mxu0
      %v2950 = vpop.f32.mrb[0].mxu0
      %v2951 = vadd.f32 0.0, %v2950
      %v2952 = vpop.f32.mrb[0].mxu0
      %2953 = vmatprep.mubr.bf16.mxu0 0
      %2954 = vmatmul.mubr.bf16.gmra.mrb[0].mxu0 %v2838
      %v2955 = vpop.f32.mrb[0].mxu0
      %v2956 = vadd.f32 0.0, %v2955
      %v2957 = vpop.f32.mrb[0].mxu0
      %v2958 = vpop.f32.mrb[0].mxu0
      %v2959 = vadd.f32 0.0, %v2958
      %v2960 = vpop.f32.mrb[0].mxu0
      %2961 = vmatprep.mubr.bf16.mxu0 0
      %2962 = vmatmul.mubr.bf16.gmra.mrb[0].mxu0 %v2842
      %v2963 = vpop.f32.mrb[0].mxu0
      %v2964 = vadd.f32 0.0, %v2963
      %v2965 = vpop.f32.mrb[0].mxu0
      %v2966 = vpop.f32.mrb[0].mxu0
      %v2967 = vadd.f32 0.0, %v2966
      %v2968 = vpop.f32.mrb[0].mxu0
      %2969 = vmatprep.mubr.bf16.mxu0 0
      %2970 = vmatmul.mubr.bf16.gmra.mrb[0].mxu0 %v2851
      %v2971 = vpop.f32.mrb[0].mxu0
      %v2972 = vadd.f32 0.0, %v2971
      %v2973 = vpop.f32.mrb[0].mxu0
      %v2974 = vpop.f32.mrb[0].mxu0
      %v2975 = vadd.f32 0.0, %v2974
      %v2976 = vpop.f32.mrb[0].mxu0
      %2977 = vdwg.mxu0
      %v2978 = vadd.f32 %v2790, %v2940
      %v2979 = vadd.f32 %v2791, %v2943
      %v2980 = vadd.f32 %v2792, %v2948
      %v2981 = vadd.f32 %v2793, %v2951
      %v2982 = vadd.f32 %v2794, %v2956
      %v2983 = vadd.f32 %v2795, %v2959
      %v2984 = vadd.f32 %v2796, %v2964
      %v2985 = vadd.f32 %v2797, %v2967
      %v2986 = vadd.f32 %v2798, %v2972
      %v2987 = vadd.f32 %v2799, %v2975
      %v2988 = vld [vmem:[#allocation2] sm:$0xc0]
      %s2989 = scalar_lea.vmem %s2, 320
      %v2990 = vld [vmem:[%s2989] sm:$0xf]
      %v2991 = vld [vmem:[%s2989 + $0x4] sm:$0xf]
      %v2992 = vld [vmem:[%s2989 + $0x8] sm:$0xf]
      %v2993 = vld [vmem:[%s2989 + $0xc] sm:$0xf]
      %v2994 = vld [vmem:[%s2989 + $0x10] sm:$0xf]
      %v2995 = vld [vmem:[%s2989 + $0x14] sm:$0xf]
      %v2996 = vld [vmem:[%s2989 + $0x18] sm:$0xf]
      %v2997 = vld [vmem:[%s2989 + $0x1c] sm:$0xf]
      %v2998 = vld [vmem:[%s2989 + $0x20] sm:$0xf]
      %v2999 = vld [vmem:[%s2989 + $0x24] sm:$0xf]
      %v3000 = vld [vmem:[%s2989 + $0x28] sm:$0xf]
      %v3001 = vld [vmem:[%s2989 + $0x2c] sm:$0xf]
      %v3002 = vld [vmem:[%s2989 + $0x30] sm:$0xf]
      %v3003 = vld [vmem:[%s2989 + $0x34] sm:$0xf]
      %v3004 = vld [vmem:[%s2989 + $0x38] sm:$0xf]
      %v3005 = vld [vmem:[%s2989 + $0x3c] sm:$0xf]
      %vm3008 = vcmask 1041408
      %v3009 = vrot.slane %v2988, 6
      %v3010 = vrot.slane %v2131, 6
      %v3011 = vsel %vm3008, %v3009, %v3010
      %v3012 = vrot.slane %v2132, 6
      %v3013 = vsel %vm3008, %v3010, %v3012
      %v3014 = vrot.slane %v2133, 6
      %v3015 = vsel %vm3008, %v3012, %v3014
      %v3016 = vrot.slane %v2134, 6
      %v3017 = vsel %vm3008, %v3014, %v3016
      %v3018 = vrot.slane %v2800, 6
      %v3019 = vsel %vm3008, %v3016, %v3018
      %v3041 = vunpack.c.l.b16 %v2990
      %v3042 = vunpack.c.l.b16 %v2991
      %v3043 = vunpack.c.l.b16 %v2992
      %v3044 = vunpack.c.l.b16 %v2993
      %v3045 = vunpack.c.l.b16 %v2994
      %v3046 = vunpack.c.l.b16 %v2995
      %v3047 = vunpack.c.l.b16 %v2996
      %v3048 = vunpack.c.l.b16 %v2997
      %v3049 = vunpack.c.l.b16 %v2998
      %v3050 = vunpack.c.l.b16 %v2999
      %v3051 = vunpack.c.l.b16 %v3000
      %v3052 = vunpack.c.l.b16 %v3001
      %v3053 = vunpack.c.l.b16 %v3002
      %v3054 = vunpack.c.l.b16 %v3003
      %v3055 = vunpack.c.l.b16 %v3004
      %v3056 = vunpack.c.l.b16 %v3005
      %v3057 = vpack.c.b16 %v3042, %v3041
      %v3058 = vpack.c.b16 %v3044, %v3043
      %v3059 = vpack.c.b16 %v3046, %v3045
      %v3060 = vpack.c.b16 %v3048, %v3047
      %v3061 = vpack.c.b16 %v3050, %v3049
      %v3062 = vpack.c.b16 %v3052, %v3051
      %v3063 = vpack.c.b16 %v3054, %v3053
      %v3064 = vpack.c.b16 %v3056, %v3055
      %3073 = vmatprep.subr.bf16.mxu0 0
      %3074 = vmatpush1.bf16.msra.mxu0 %v3057
      %3075 = vmatprep.subr.bf16.mxu0 0
      %3076 = vmatpush1.bf16.msra.mxu0 %v3058
      %3077 = vmatprep.subr.bf16.mxu0 0
      %3078 = vmatpush1.bf16.msra.mxu0 %v3059
      %3079 = vmatprep.subr.bf16.mxu0 0
      %3080 = vmatpush1.bf16.msra.mxu0 %v3060
      %3081 = vmatprep.subr.bf16.mxu0 0
      %3082 = vmatpush1.bf16.msra.mxu0 %v3061
      %3083 = vmatprep.subr.bf16.mxu0 0
      %3084 = vmatpush1.bf16.msra.mxu0 %v3062
      %3085 = vmatprep.subr.bf16.mxu0 0
      %3086 = vmatpush1.bf16.msra.mxu0 %v3063
      %3087 = vmatprep.subr.bf16.mxu0 0
      %3088 = vmatpush1.bf16.msra.mxu0 %v3064
      %3089 = vmatprep.subr.bf16.mxu0 0
      %3090 = vmatpush1.bf16.msra.mxu0 0
      %3091 = vmatprep.subr.bf16.mxu0 0
      %3092 = vmatpush1.bf16.msra.mxu0 0
      %3093 = vmatprep.subr.bf16.mxu0 0
      %3094 = vmatpush1.bf16.msra.mxu0 0
      %3095 = vmatprep.subr.bf16.mxu0 0
      %3096 = vmatpush1.bf16.msra.mxu0 0
      %3097 = vmatprep.subr.bf16.mxu0 0
      %3098 = vmatpush1.bf16.msra.mxu0 0
      %3099 = vmatprep.subr.bf16.mxu0 0
      %3100 = vmatpush1.bf16.msra.mxu0 0
      %3101 = vmatprep.subr.bf16.mxu0 0
      %3102 = vmatpush1.bf16.msra.mxu0 0
      %3103 = vmatprep.subr.bf16.mxu0 0
      %3104 = vmatpush1.bf16.msra.mxu0 0
      %3105 = vmatprep.mubr.bf16.mxu0 0
      %3106 = vmatmul.mubr.bf16.gmra.mrb[0].mxu0 %v3011
      %v3107 = vpop.f32.mrb[0].mxu0
      %v3108 = vadd.f32 0.0, %v3107
      %v3109 = vpop.f32.mrb[0].mxu0
      %v3110 = vpop.f32.mrb[0].mxu0
      %v3111 = vadd.f32 0.0, %v3110
      %v3112 = vpop.f32.mrb[0].mxu0
      %3113 = vmatprep.mubr.bf16.mxu0 0
      %3114 = vmatmul.mubr.bf16.gmra.mrb[0].mxu0 %v3013
      %v3115 = vpop.f32.mrb[0].mxu0
      %v3116 = vadd.f32 0.0, %v3115
      %v3117 = vpop.f32.mrb[0].mxu0
      %v3118 = vpop.f32.mrb[0].mxu0
      %v3119 = vadd.f32 0.0, %v3118
      %v3120 = vpop.f32.mrb[0].mxu0
      %3121 = vmatprep.mubr.bf16.mxu0 0
      %3122 = vmatmul.mubr.bf16.gmra.mrb[0].mxu0 %v3015
      %v3123 = vpop.f32.mrb[0].mxu0
      %v3124 = vadd.f32 0.0, %v3123
      %v3125 = vpop.f32.mrb[0].mxu0
      %v3126 = vpop.f32.mrb[0].mxu0
      %v3127 = vadd.f32 0.0, %v3126
      %v3128 = vpop.f32.mrb[0].mxu0
      %3129 = vmatprep.mubr.bf16.mxu0 0
      %3130 = vmatmul.mubr.bf16.gmra.mrb[0].mxu0 %v3017
      %v3131 = vpop.f32.mrb[0].mxu0
      %v3132 = vadd.f32 0.0, %v3131
      %v3133 = vpop.f32.mrb[0].mxu0
      %v3134 = vpop.f32.mrb[0].mxu0
      %v3135 = vadd.f32 0.0, %v3134
      %v3136 = vpop.f32.mrb[0].mxu0
      %3137 = vmatprep.mubr.bf16.mxu0 0
      %3138 = vmatmul.mubr.bf16.gmra.mrb[0].mxu0 %v3019
      %v3139 = vpop.f32.mrb[0].mxu0
      %v3140 = vadd.f32 0.0, %v3139
      %v3141 = vpop.f32.mrb[0].mxu0
      %v3142 = vpop.f32.mrb[0].mxu0
      %v3143 = vadd.f32 0.0, %v3142
      %v3144 = vpop.f32.mrb[0].mxu0
      %3145 = vdwg.mxu0
      %v3146 = vadd.f32 %v2978, %v3108
      %v3147 = vadd.f32 %v2979, %v3111
      %v3148 = vadd.f32 %v2980, %v3116
      %v3149 = vadd.f32 %v2981, %v3119
      %v3150 = vadd.f32 %v2982, %v3124
      %v3151 = vadd.f32 %v2983, %v3127
      %v3152 = vadd.f32 %v2984, %v3132
      %v3153 = vadd.f32 %v2985, %v3135
      %v3154 = vadd.f32 %v2986, %v3140
      %v3155 = vadd.f32 %v2987, %v3143
      %v3156 = vld [vmem:[#allocation2 + $0x8] sm:$0xfc]
      %v3157 = vld [vmem:[#allocation2 + $0x10] sm:$0xff]
      %v3158 = vld [vmem:[#allocation2 + $0x18] sm:$0xff]
      %v3159 = vld [vmem:[#allocation2 + $0x20] sm:$0xff]
      %v3160 = vld [vmem:[#allocation2 + $0x28] sm:$0xff]
      %v3161 = vld [vmem:[#allocation2 + $0x30] sm:$0x3]
      %s3162 = scalar_lea.vmem %s2, 384
      %v3163 = vld [vmem:[%s3162] sm:$0xf]
      %v3164 = vld [vmem:[%s3162 + $0x4] sm:$0xf]
      %v3165 = vld [vmem:[%s3162 + $0x8] sm:$0xf]
      %v3166 = vld [vmem:[%s3162 + $0xc] sm:$0xf]
      %v3167 = vld [vmem:[%s3162 + $0x10] sm:$0xf]
      %v3168 = vld [vmem:[%s3162 + $0x14] sm:$0xf]
      %v3169 = vld [vmem:[%s3162 + $0x18] sm:$0xf]
      %v3170 = vld [vmem:[%s3162 + $0x1c] sm:$0xf]
      %v3171 = vld [vmem:[%s3162 + $0x20] sm:$0xf]
      %v3172 = vld [vmem:[%s3162 + $0x24] sm:$0xf]
      %v3173 = vld [vmem:[%s3162 + $0x28] sm:$0xf]
      %v3174 = vld [vmem:[%s3162 + $0x2c] sm:$0xf]
      %v3175 = vld [vmem:[%s3162 + $0x30] sm:$0xf]
      %v3176 = vld [vmem:[%s3162 + $0x34] sm:$0xf]
      %v3177 = vld [vmem:[%s3162 + $0x38] sm:$0xf]
      %v3178 = vld [vmem:[%s3162 + $0x3c] sm:$0xf]
      %v3185 = vrot.slane %v3156, 2
      %v3186 = vrot.slane %v3157, 2
      %v3187 = vsel %vm1236, %v3185, %v3186
      %v3188 = vrot.slane %v3158, 2
      %v3189 = vsel %vm1236, %v3186, %v3188
      %v3190 = vrot.slane %v3159, 2
      %v3191 = vsel %vm1236, %v3188, %v3190
      %v3192 = vrot.slane %v3160, 2
      %v3193 = vsel %vm1236, %v3190, %v3192
      %v3194 = vrot.slane %v3161, 2
      %v3195 = vsel %vm1236, %v3192, %v3194
      %v3217 = vunpack.c.l.b16 %v3163
      %v3218 = vunpack.c.l.b16 %v3164
      %v3219 = vunpack.c.l.b16 %v3165
      %v3220 = vunpack.c.l.b16 %v3166
      %v3221 = vunpack.c.l.b16 %v3167
      %v3222 = vunpack.c.l.b16 %v3168
      %v3223 = vunpack.c.l.b16 %v3169
      %v3224 = vunpack.c.l.b16 %v3170
      %v3225 = vunpack.c.l.b16 %v3171
      %v3226 = vunpack.c.l.b16 %v3172
      %v3227 = vunpack.c.l.b16 %v3173
      %v3228 = vunpack.c.l.b16 %v3174
      %v3229 = vunpack.c.l.b16 %v3175
      %v3230 = vunpack.c.l.b16 %v3176
      %v3231 = vunpack.c.l.b16 %v3177
      %v3232 = vunpack.c.l.b16 %v3178
      %v3233 = vpack.c.b16 %v3218, %v3217
      %v3234 = vpack.c.b16 %v3220, %v3219
      %v3235 = vpack.c.b16 %v3222, %v3221
      %v3236 = vpack.c.b16 %v3224, %v3223
      %v3237 = vpack.c.b16 %v3226, %v3225
      %v3238 = vpack.c.b16 %v3228, %v3227
      %v3239 = vpack.c.b16 %v3230, %v3229
      %v3240 = vpack.c.b16 %v3232, %v3231
      %3249 = vmatprep.subr.bf16.mxu0 0
      %3250 = vmatpush1.bf16.msra.mxu0 %v3233
      %3251 = vmatprep.subr.bf16.mxu0 0
      %3252 = vmatpush1.bf16.msra.mxu0 %v3234
      %3253 = vmatprep.subr.bf16.mxu0 0
      %3254 = vmatpush1.bf16.msra.mxu0 %v3235
      %3255 = vmatprep.subr.bf16.mxu0 0
      %3256 = vmatpush1.bf16.msra.mxu0 %v3236
      %3257 = vmatprep.subr.bf16.mxu0 0
      %3258 = vmatpush1.bf16.msra.mxu0 %v3237
      %3259 = vmatprep.subr.bf16.mxu0 0
      %3260 = vmatpush1.bf16.msra.mxu0 %v3238
      %3261 = vmatprep.subr.bf16.mxu0 0
      %3262 = vmatpush1.bf16.msra.mxu0 %v3239
      %3263 = vmatprep.subr.bf16.mxu0 0
      %3264 = vmatpush1.bf16.msra.mxu0 %v3240
      %3265 = vmatprep.subr.bf16.mxu0 0
      %3266 = vmatpush1.bf16.msra.mxu0 0
      %3267 = vmatprep.subr.bf16.mxu0 0
      %3268 = vmatpush1.bf16.msra.mxu0 0
      %3269 = vmatprep.subr.bf16.mxu0 0
      %3270 = vmatpush1.bf16.msra.mxu0 0
      %3271 = vmatprep.subr.bf16.mxu0 0
      %3272 = vmatpush1.bf16.msra.mxu0 0
      %3273 = vmatprep.subr.bf16.mxu0 0
      %3274 = vmatpush1.bf16.msra.mxu0 0
      %3275 = vmatprep.subr.bf16.mxu0 0
      %3276 = vmatpush1.bf16.msra.mxu0 0
      %3277 = vmatprep.subr.bf16.mxu0 0
      %3278 = vmatpush1.bf16.msra.mxu0 0
      %3279 = vmatprep.subr.bf16.mxu0 0
      %3280 = vmatpush1.bf16.msra.mxu0 0
      %3281 = vmatprep.mubr.bf16.mxu0 0
      %3282 = vmatmul.mubr.bf16.gmra.mrb[0].mxu0 %v3187
      %v3283 = vpop.f32.mrb[0].mxu0
      %v3284 = vadd.f32 0.0, %v3283
      %v3285 = vpop.f32.mrb[0].mxu0
      %v3286 = vpop.f32.mrb[0].mxu0
      %v3287 = vadd.f32 0.0, %v3286
      %v3288 = vpop.f32.mrb[0].mxu0
      %3289 = vmatprep.mubr.bf16.mxu0 0
      %3290 = vmatmul.mubr.bf16.gmra.mrb[0].mxu0 %v3189
      %v3291 = vpop.f32.mrb[0].mxu0
      %v3292 = vadd.f32 0.0, %v3291
      %v3293 = vpop.f32.mrb[0].mxu0
      %v3294 = vpop.f32.mrb[0].mxu0
      %v3295 = vadd.f32 0.0, %v3294
      %v3296 = vpop.f32.mrb[0].mxu0
      %3297 = vmatprep.mubr.bf16.mxu0 0
      %3298 = vmatmul.mubr.bf16.gmra.mrb[0].mxu0 %v3191
      %v3299 = vpop.f32.mrb[0].mxu0
      %v3300 = vadd.f32 0.0, %v3299
      %v3301 = vpop.f32.mrb[0].mxu0
      %v3302 = vpop.f32.mrb[0].mxu0
      %v3303 = vadd.f32 0.0, %v3302
      %v3304 = vpop.f32.mrb[0].mxu0
      %3305 = vmatprep.mubr.bf16.mxu0 0
      %3306 = vmatmul.mubr.bf16.gmra.mrb[0].mxu0 %v3193
      %v3307 = vpop.f32.mrb[0].mxu0
      %v3308 = vadd.f32 0.0, %v3307
      %v3309 = vpop.f32.mrb[0].mxu0
      %v3310 = vpop.f32.mrb[0].mxu0
      %v3311 = vadd.f32 0.0, %v3310
      %v3312 = vpop.f32.mrb[0].mxu0
      %3313 = vmatprep.mubr.bf16.mxu0 0
      %3314 = vmatmul.mubr.bf16.gmra.mrb[0].mxu0 %v3195
      %v3315 = vpop.f32.mrb[0].mxu0
      %v3316 = vadd.f32 0.0, %v3315
      %v3317 = vpop.f32.mrb[0].mxu0
      %v3318 = vpop.f32.mrb[0].mxu0
      %v3319 = vadd.f32 0.0, %v3318
      %v3320 = vpop.f32.mrb[0].mxu0
      %3321 = vdwg.mxu0
      %v3322 = vadd.f32 %v3146, %v3284
      %v3323 = vadd.f32 %v3147, %v3287
      %v3324 = vadd.f32 %v3148, %v3292
      %v3325 = vadd.f32 %v3149, %v3295
      %v3326 = vadd.f32 %v3150, %v3300
      %v3327 = vadd.f32 %v3151, %v3303
      %v3328 = vadd.f32 %v3152, %v3308
      %v3329 = vadd.f32 %v3153, %v3311
      %v3330 = vadd.f32 %v3154, %v3316
      %v3331 = vadd.f32 %v3155, %v3319
      %v3332 = vld [vmem:[#allocation2 + $0x30] sm:$0x7]
      %s3333 = scalar_lea.vmem %s2, 448
      %v3334 = vld [vmem:[%s3333] sm:$0xf]
      %v3335 = vld [vmem:[%s3333 + $0x4] sm:$0xf]
      %v3336 = vld [vmem:[%s3333 + $0x8] sm:$0xf]
      %v3337 = vld [vmem:[%s3333 + $0xc] sm:$0xf]
      %v3338 = vld [vmem:[%s3333 + $0x10] sm:$0xf]
      %v3339 = vld [vmem:[%s3333 + $0x14] sm:$0xf]
      %v3340 = vld [vmem:[%s3333 + $0x18] sm:$0xf]
      %v3341 = vld [vmem:[%s3333 + $0x1c] sm:$0xf]
      %v3342 = vld [vmem:[%s3333 + $0x20] sm:$0xf]
      %v3343 = vld [vmem:[%s3333 + $0x24] sm:$0xf]
      %v3344 = vld [vmem:[%s3333 + $0x28] sm:$0xf]
      %v3345 = vld [vmem:[%s3333 + $0x2c] sm:$0xf]
      %v3346 = vld [vmem:[%s3333 + $0x30] sm:$0xf]
      %v3347 = vld [vmem:[%s3333 + $0x34] sm:$0xf]
      %v3348 = vld [vmem:[%s3333 + $0x38] sm:$0xf]
      %v3349 = vld [vmem:[%s3333 + $0x3c] sm:$0xf]
      %v3351 = vshrl.u32 %v3156, 16
      %v3353 = vrot.slane %v3351, 2
      %v3354 = vshll.u32 %v3156, 16
      %v3356 = vrot.slane %v3354, 3
      %v3357 = vor.u32 %v3353, %v3356
      %v3359 = vshrl.u32 %v3157, 16
      %v3361 = vrot.slane %v3359, 2
      %v3362 = vshll.u32 %v3157, 16
      %v3364 = vrot.slane %v3362, 3
      %v3365 = vor.u32 %v3361, %v3364
      %v3366 = vsel %vm1608, %v3357, %v3365
      %v3368 = vshrl.u32 %v3158, 16
      %v3370 = vrot.slane %v3368, 2
      %v3371 = vshll.u32 %v3158, 16
      %v3373 = vrot.slane %v3371, 3
      %v3374 = vor.u32 %v3370, %v3373
      %v3375 = vsel %vm1608, %v3365, %v3374
      %v3377 = vshrl.u32 %v3159, 16
      %v3379 = vrot.slane %v3377, 2
      %v3380 = vshll.u32 %v3159, 16
      %v3382 = vrot.slane %v3380, 3
      %v3383 = vor.u32 %v3379, %v3382
      %v3384 = vsel %vm1608, %v3374, %v3383
      %v3386 = vshrl.u32 %v3160, 16
      %v3388 = vrot.slane %v3386, 2
      %v3389 = vshll.u32 %v3160, 16
      %v3391 = vrot.slane %v3389, 3
      %v3392 = vor.u32 %v3388, %v3391
      %v3393 = vsel %vm1608, %v3383, %v3392
      %v3395 = vshrl.u32 %v3332, 16
      %v3397 = vrot.slane %v3395, 2
      %v3398 = vshll.u32 %v3332, 16
      %v3400 = vrot.slane %v3398, 3
      %v3401 = vor.u32 %v3397, %v3400
      %v3402 = vsel %vm1608, %v3392, %v3401
      %v3424 = vunpack.c.l.b16 %v3334
      %v3425 = vunpack.c.l.b16 %v3335
      %v3426 = vunpack.c.l.b16 %v3336
      %v3427 = vunpack.c.l.b16 %v3337
      %v3428 = vunpack.c.l.b16 %v3338
      %v3429 = vunpack.c.l.b16 %v3339
      %v3430 = vunpack.c.l.b16 %v3340
      %v3431 = vunpack.c.l.b16 %v3341
      %v3432 = vunpack.c.l.b16 %v3342
      %v3433 = vunpack.c.l.b16 %v3343
      %v3434 = vunpack.c.l.b16 %v3344
      %v3435 = vunpack.c.l.b16 %v3345
      %v3436 = vunpack.c.l.b16 %v3346
      %v3437 = vunpack.c.l.b16 %v3347
      %v3438 = vunpack.c.l.b16 %v3348
      %v3439 = vunpack.c.l.b16 %v3349
      %v3440 = vpack.c.b16 %v3425, %v3424
      %v3441 = vpack.c.b16 %v3427, %v3426
      %v3442 = vpack.c.b16 %v3429, %v3428
      %v3443 = vpack.c.b16 %v3431, %v3430
      %v3444 = vpack.c.b16 %v3433, %v3432
      %v3445 = vpack.c.b16 %v3435, %v3434
      %v3446 = vpack.c.b16 %v3437, %v3436
      %v3447 = vpack.c.b16 %v3439, %v3438
      %3456 = vmatprep.subr.bf16.mxu0 0
      %3457 = vmatpush1.bf16.msra.mxu0 %v3440
      %3458 = vmatprep.subr.bf16.mxu0 0
      %3459 = vmatpush1.bf16.msra.mxu0 %v3441
      %3460 = vmatprep.subr.bf16.mxu0 0
      %3461 = vmatpush1.bf16.msra.mxu0 %v3442
      %3462 = vmatprep.subr.bf16.mxu0 0
      %3463 = vmatpush1.bf16.msra.mxu0 %v3443
      %3464 = vmatprep.subr.bf16.mxu0 0
      %3465 = vmatpush1.bf16.msra.mxu0 %v3444
      %3466 = vmatprep.subr.bf16.mxu0 0
      %3467 = vmatpush1.bf16.msra.mxu0 %v3445
      %3468 = vmatprep.subr.bf16.mxu0 0
      %3469 = vmatpush1.bf16.msra.mxu0 %v3446
      %3470 = vmatprep.subr.bf16.mxu0 0
      %3471 = vmatpush1.bf16.msra.mxu0 %v3447
      %3472 = vmatprep.subr.bf16.mxu0 0
      %3473 = vmatpush1.bf16.msra.mxu0 0
      %3474 = vmatprep.subr.bf16.mxu0 0
      %3475 = vmatpush1.bf16.msra.mxu0 0
      %3476 = vmatprep.subr.bf16.mxu0 0
      %3477 = vmatpush1.bf16.msra.mxu0 0
      %3478 = vmatprep.subr.bf16.mxu0 0
      %3479 = vmatpush1.bf16.msra.mxu0 0
      %3480 = vmatprep.subr.bf16.mxu0 0
      %3481 = vmatpush1.bf16.msra.mxu0 0
      %3482 = vmatprep.subr.bf16.mxu0 0
      %3483 = vmatpush1.bf16.msra.mxu0 0
      %3484 = vmatprep.subr.bf16.mxu0 0
      %3485 = vmatpush1.bf16.msra.mxu0 0
      %3486 = vmatprep.subr.bf16.mxu0 0
      %3487 = vmatpush1.bf16.msra.mxu0 0
      %3488 = vmatprep.mubr.bf16.mxu0 0
      %3489 = vmatmul.mubr.bf16.gmra.mrb[0].mxu0 %v3366
      %v3490 = vpop.f32.mrb[0].mxu0
      %v3491 = vadd.f32 0.0, %v3490
      %v3492 = vpop.f32.mrb[0].mxu0
      %v3493 = vpop.f32.mrb[0].mxu0
      %v3494 = vadd.f32 0.0, %v3493
      %v3495 = vpop.f32.mrb[0].mxu0
      %3496 = vmatprep.mubr.bf16.mxu0 0
      %3497 = vmatmul.mubr.bf16.gmra.mrb[0].mxu0 %v3375
      %v3498 = vpop.f32.mrb[0].mxu0
      %v3499 = vadd.f32 0.0, %v3498
      %v3500 = vpop.f32.mrb[0].mxu0
      %v3501 = vpop.f32.mrb[0].mxu0
      %v3502 = vadd.f32 0.0, %v3501
      %v3503 = vpop.f32.mrb[0].mxu0
      %3504 = vmatprep.mubr.bf16.mxu0 0
      %3505 = vmatmul.mubr.bf16.gmra.mrb[0].mxu0 %v3384
      %v3506 = vpop.f32.mrb[0].mxu0
      %v3507 = vadd.f32 0.0, %v3506
      %v3508 = vpop.f32.mrb[0].mxu0
      %v3509 = vpop.f32.mrb[0].mxu0
      %v3510 = vadd.f32 0.0, %v3509
      %v3511 = vpop.f32.mrb[0].mxu0
      %3512 = vmatprep.mubr.bf16.mxu0 0
      %3513 = vmatmul.mubr.bf16.gmra.mrb[0].mxu0 %v3393
      %v3514 = vpop.f32.mrb[0].mxu0
      %v3515 = vadd.f32 0.0, %v3514
      %v3516 = vpop.f32.mrb[0].mxu0
      %v3517 = vpop.f32.mrb[0].mxu0
      %v3518 = vadd.f32 0.0, %v3517
      %v3519 = vpop.f32.mrb[0].mxu0
      %3520 = vmatprep.mubr.bf16.mxu0 0
      %3521 = vmatmul.mubr.bf16.gmra.mrb[0].mxu0 %v3402
      %v3522 = vpop.f32.mrb[0].mxu0
      %v3523 = vadd.f32 0.0, %v3522
      %v3524 = vpop.f32.mrb[0].mxu0
      %v3525 = vpop.f32.mrb[0].mxu0
      %v3526 = vadd.f32 0.0, %v3525
      %v3527 = vpop.f32.mrb[0].mxu0
      %3528 = vdwg.mxu0
      %v3529 = vadd.f32 %v3322, %v3491
      %v3530 = vadd.f32 %v3323, %v3494
      %v3531 = vadd.f32 %v3324, %v3499
      %v3532 = vadd.f32 %v3325, %v3502
      %v3533 = vadd.f32 %v3326, %v3507
      %v3534 = vadd.f32 %v3327, %v3510
      %v3535 = vadd.f32 %v3328, %v3515
      %v3536 = vadd.f32 %v3329, %v3518
      %v3537 = vadd.f32 %v3330, %v3523
      %v3538 = vadd.f32 %v3331, %v3526
      %v3539 = vld [vmem:[#allocation2 + $0x8] sm:$0xf8]
      %s3540 = scalar_lea.vmem %s2, 512
      %v3541 = vld [vmem:[%s3540] sm:$0xf]
      %v3542 = vld [vmem:[%s3540 + $0x4] sm:$0xf]
      %v3543 = vld [vmem:[%s3540 + $0x8] sm:$0xf]
      %v3544 = vld [vmem:[%s3540 + $0xc] sm:$0xf]
      %v3545 = vld [vmem:[%s3540 + $0x10] sm:$0xf]
      %v3546 = vld [vmem:[%s3540 + $0x14] sm:$0xf]
      %v3547 = vld [vmem:[%s3540 + $0x18] sm:$0xf]
      %v3548 = vld [vmem:[%s3540 + $0x1c] sm:$0xf]
      %v3549 = vld [vmem:[%s3540 + $0x20] sm:$0xf]
      %v3550 = vld [vmem:[%s3540 + $0x24] sm:$0xf]
      %v3551 = vld [vmem:[%s3540 + $0x28] sm:$0xf]
      %v3552 = vld [vmem:[%s3540 + $0x2c] sm:$0xf]
      %v3553 = vld [vmem:[%s3540 + $0x30] sm:$0xf]
      %v3554 = vld [vmem:[%s3540 + $0x34] sm:$0xf]
      %v3555 = vld [vmem:[%s3540 + $0x38] sm:$0xf]
      %v3556 = vld [vmem:[%s3540 + $0x3c] sm:$0xf]
      %v3559 = vrot.slane %v3539, 3
      %v3560 = vrot.slane %v3157, 3
      %v3561 = vsel %vm1819, %v3559, %v3560
      %v3562 = vrot.slane %v3158, 3
      %v3563 = vsel %vm1819, %v3560, %v3562
      %v3564 = vrot.slane %v3159, 3
      %v3565 = vsel %vm1819, %v3562, %v3564
      %v3566 = vrot.slane %v3160, 3
      %v3567 = vsel %vm1819, %v3564, %v3566
      %v3568 = vrot.slane %v3332, 3
      %v3569 = vsel %vm1819, %v3566, %v3568
      %v3591 = vunpack.c.l.b16 %v3541
      %v3592 = vunpack.c.l.b16 %v3542
      %v3593 = vunpack.c.l.b16 %v3543
      %v3594 = vunpack.c.l.b16 %v3544
      %v3595 = vunpack.c.l.b16 %v3545
      %v3596 = vunpack.c.l.b16 %v3546
      %v3597 = vunpack.c.l.b16 %v3547
      %v3598 = vunpack.c.l.b16 %v3548
      %v3599 = vunpack.c.l.b16 %v3549
      %v3600 = vunpack.c.l.b16 %v3550
      %v3601 = vunpack.c.l.b16 %v3551
      %v3602 = vunpack.c.l.b16 %v3552
      %v3603 = vunpack.c.l.b16 %v3553
      %v3604 = vunpack.c.l.b16 %v3554
      %v3605 = vunpack.c.l.b16 %v3555
      %v3606 = vunpack.c.l.b16 %v3556
      %v3607 = vpack.c.b16 %v3592, %v3591
      %v3608 = vpack.c.b16 %v3594, %v3593
      %v3609 = vpack.c.b16 %v3596, %v3595
      %v3610 = vpack.c.b16 %v3598, %v3597
      %v3611 = vpack.c.b16 %v3600, %v3599
      %v3612 = vpack.c.b16 %v3602, %v3601
      %v3613 = vpack.c.b16 %v3604, %v3603
      %v3614 = vpack.c.b16 %v3606, %v3605
      %3623 = vmatprep.subr.bf16.mxu0 0
      %3624 = vmatpush1.bf16.msra.mxu0 %v3607
      %3625 = vmatprep.subr.bf16.mxu0 0
      %3626 = vmatpush1.bf16.msra.mxu0 %v3608
      %3627 = vmatprep.subr.bf16.mxu0 0
      %3628 = vmatpush1.bf16.msra.mxu0 %v3609
      %3629 = vmatprep.subr.bf16.mxu0 0
      %3630 = vmatpush1.bf16.msra.mxu0 %v3610
      %3631 = vmatprep.subr.bf16.mxu0 0
      %3632 = vmatpush1.bf16.msra.mxu0 %v3611
      %3633 = vmatprep.subr.bf16.mxu0 0
      %3634 = vmatpush1.bf16.msra.mxu0 %v3612
      %3635 = vmatprep.subr.bf16.mxu0 0
      %3636 = vmatpush1.bf16.msra.mxu0 %v3613
      %3637 = vmatprep.subr.bf16.mxu0 0
      %3638 = vmatpush1.bf16.msra.mxu0 %v3614
      %3639 = vmatprep.subr.bf16.mxu0 0
      %3640 = vmatpush1.bf16.msra.mxu0 0
      %3641 = vmatprep.subr.bf16.mxu0 0
      %3642 = vmatpush1.bf16.msra.mxu0 0
      %3643 = vmatprep.subr.bf16.mxu0 0
      %3644 = vmatpush1.bf16.msra.mxu0 0
      %3645 = vmatprep.subr.bf16.mxu0 0
      %3646 = vmatpush1.bf16.msra.mxu0 0
      %3647 = vmatprep.subr.bf16.mxu0 0
      %3648 = vmatpush1.bf16.msra.mxu0 0
      %3649 = vmatprep.subr.bf16.mxu0 0
      %3650 = vmatpush1.bf16.msra.mxu0 0
      %3651 = vmatprep.subr.bf16.mxu0 0
      %3652 = vmatpush1.bf16.msra.mxu0 0
      %3653 = vmatprep.subr.bf16.mxu0 0
      %3654 = vmatpush1.bf16.msra.mxu0 0
      %3655 = vmatprep.mubr.bf16.mxu0 0
      %3656 = vmatmul.mubr.bf16.gmra.mrb[0].mxu0 %v3561
      %v3657 = vpop.f32.mrb[0].mxu0
      %v3658 = vadd.f32 0.0, %v3657
      %v3659 = vpop.f32.mrb[0].mxu0
      %v3660 = vpop.f32.mrb[0].mxu0
      %v3661 = vadd.f32 0.0, %v3660
      %v3662 = vpop.f32.mrb[0].mxu0
      %3663 = vmatprep.mubr.bf16.mxu0 0
      %3664 = vmatmul.mubr.bf16.gmra.mrb[0].mxu0 %v3563
      %v3665 = vpop.f32.mrb[0].mxu0
      %v3666 = vadd.f32 0.0, %v3665
      %v3667 = vpop.f32.mrb[0].mxu0
      %v3668 = vpop.f32.mrb[0].mxu0
      %v3669 = vadd.f32 0.0, %v3668
      %v3670 = vpop.f32.mrb[0].mxu0
      %3671 = vmatprep.mubr.bf16.mxu0 0
      %3672 = vmatmul.mubr.bf16.gmra.mrb[0].mxu0 %v3565
      %v3673 = vpop.f32.mrb[0].mxu0
      %v3674 = vadd.f32 0.0, %v3673
      %v3675 = vpop.f32.mrb[0].mxu0
      %v3676 = vpop.f32.mrb[0].mxu0
      %v3677 = vadd.f32 0.0, %v3676
      %v3678 = vpop.f32.mrb[0].mxu0
      %3679 = vmatprep.mubr.bf16.mxu0 0
      %3680 = vmatmul.mubr.bf16.gmra.mrb[0].mxu0 %v3567
      %v3681 = vpop.f32.mrb[0].mxu0
      %v3682 = vadd.f32 0.0, %v3681
      %v3683 = vpop.f32.mrb[0].mxu0
      %v3684 = vpop.f32.mrb[0].mxu0
      %v3685 = vadd.f32 0.0, %v3684
      %v3686 = vpop.f32.mrb[0].mxu0
      %3687 = vmatprep.mubr.bf16.mxu0 0
      %3688 = vmatmul.mubr.bf16.gmra.mrb[0].mxu0 %v3569
      %v3689 = vpop.f32.mrb[0].mxu0
      %v3690 = vadd.f32 0.0, %v3689
      %v3691 = vpop.f32.mrb[0].mxu0
      %v3692 = vpop.f32.mrb[0].mxu0
      %v3693 = vadd.f32 0.0, %v3692
      %v3694 = vpop.f32.mrb[0].mxu0
      %3695 = vdwg.mxu0
      %v3696 = vadd.f32 %v3529, %v3658
      %v3697 = vadd.f32 %v3530, %v3661
      %v3698 = vadd.f32 %v3531, %v3666
      %v3699 = vadd.f32 %v3532, %v3669
      %v3700 = vadd.f32 %v3533, %v3674
      %v3701 = vadd.f32 %v3534, %v3677
      %v3702 = vadd.f32 %v3535, %v3682
      %v3703 = vadd.f32 %v3536, %v3685
      %v3704 = vadd.f32 %v3537, %v3690
      %v3705 = vadd.f32 %v3538, %v3693
      %v3706 = vld [vmem:[%s246 + $0x4] sm:$0xe]
      %v3707 = vld [vmem:[%s246 + $0x8] sm:$0xf]
      %v3708 = vld [vmem:[%s246 + $0xc] sm:$0xf]
      %v3709 = vld [vmem:[%s246 + $0x10] sm:$0xf]
      %v3710 = vld [vmem:[%s246 + $0x14] sm:$0xf]
      %v3711 = vld [vmem:[%s246 + $0x18] sm:$0xf]
      %v3712 = vld [vmem:[%s246 + $0x1c] sm:$0xf]
      %v3713 = vld [vmem:[%s246 + $0x20] sm:$0xf]
      %v3714 = vld [vmem:[%s246 + $0x24] sm:$0xf]
      %v3715 = vld [vmem:[%s246 + $0x28] sm:$0xf]
      %v3716 = vld [vmem:[%s246 + $0x2c] sm:$0x3]
      %v3717 = vunpack.c.l.bf16 %v3706
      %v3718 = vunpack.c.l.bf16 %v3707
      %v3719 = vunpack.c.l.bf16 %v3708
      %v3720 = vunpack.c.l.bf16 %v3709
      %v3721 = vunpack.c.l.bf16 %v3710
      %v3722 = vunpack.c.l.bf16 %v3711
      %v3723 = vunpack.c.l.bf16 %v3712
      %v3724 = vunpack.c.l.bf16 %v3713
      %v3725 = vunpack.c.l.bf16 %v3714
      %v3726 = vunpack.c.l.bf16 %v3715
      %v3727 = vunpack.c.l.bf16 %v3716
      %v3728 = vld [vmem:[%s4] sm:$0x1]
      %v3730 = vlaneseq
      %v3731 = vshrl.u32 %v3730, 7
      %v3732 = vsub.s32 0, %v3731
      %v3733 = vrot.slane %v3728, %v3732
      %v3735 = vadd.f32 %v3696, %v3733
      %v3736 = vadd.f32 %v3697, %v3733
      %v3737 = vadd.f32 %v3698, %v3733
      %v3738 = vadd.f32 %v3699, %v3733
      %v3739 = vadd.f32 %v3700, %v3733
      %v3740 = vadd.f32 %v3701, %v3733
      %v3741 = vadd.f32 %v3702, %v3733
      %v3742 = vadd.f32 %v3703, %v3733
      %v3743 = vadd.f32 %v3704, %v3733
      %v3744 = vadd.f32 %v3705, %v3733
      %vm3756 = vcmask 1044480
      %v3757 = vrot.slane %v3717, 3
      %v3758 = vrot.slane %v3718, 3
      %v3759 = vsel %vm3756, %v3757, %v3758
      %v3760 = vrot.slane %v3719, 3
      %v3761 = vsel %vm3756, %v3758, %v3760
      %v3762 = vrot.slane %v3720, 3
      %v3763 = vsel %vm3756, %v3760, %v3762
      %v3764 = vrot.slane %v3721, 3
      %v3765 = vsel %vm3756, %v3762, %v3764
      %v3766 = vrot.slane %v3722, 3
      %v3767 = vsel %vm3756, %v3764, %v3766
      %v3768 = vrot.slane %v3723, 3
      %v3769 = vsel %vm3756, %v3766, %v3768
      %v3770 = vrot.slane %v3724, 3
      %v3771 = vsel %vm3756, %v3768, %v3770
      %v3772 = vrot.slane %v3725, 3
      %v3773 = vsel %vm3756, %v3770, %v3772
      %v3774 = vrot.slane %v3726, 3
      %v3775 = vsel %vm3756, %v3772, %v3774
      %v3776 = vrot.slane %v3727, 3
      %v3777 = vsel %vm3756, %v3774, %v3776
      %v3788 = vadd.f32 %v3735, %v3759
      %v3789 = vadd.f32 %v3736, %v3761
      %v3790 = vadd.f32 %v3737, %v3763
      %v3791 = vadd.f32 %v3738, %v3765
      %v3792 = vadd.f32 %v3739, %v3767
      %v3793 = vadd.f32 %v3740, %v3769
      %v3794 = vadd.f32 %v3741, %v3771
      %v3795 = vadd.f32 %v3742, %v3773
      %v3796 = vadd.f32 %v3743, %v3775
      %v3797 = vadd.f32 %v3744, %v3777
      %v3798 = vmax.f32 %v3788, 0.0
      %v3799 = vmax.f32 %v3789, 0.0
      %v3800 = vmax.f32 %v3790, 0.0
      %v3801 = vmax.f32 %v3791, 0.0
      %v3802 = vmax.f32 %v3792, 0.0
      %v3803 = vmax.f32 %v3793, 0.0
      %v3804 = vmax.f32 %v3794, 0.0
      %v3805 = vmax.f32 %v3795, 0.0
      %v3806 = vmax.f32 %v3796, 0.0
      %v3807 = vmax.f32 %v3797, 0.0
      %v3808 = vmul.f32 %v3798, %v1997
      %v3809 = vmul.f32 %v3799, %v2002
      %v3810 = vmul.f32 %v3800, %v2007
      %v3811 = vmul.f32 %v3801, %v2012
      %v3812 = vmul.f32 %v3802, %v2017
      %v3813 = vmul.f32 %v3803, %v2022
      %v3814 = vmul.f32 %v3804, %v2027
      %v3815 = vmul.f32 %v3805, %v2032
      %v3816 = vmul.f32 %v3806, %v2037
      %v3817 = vmul.f32 %v3807, %v2042
      %3818 = vst [vmem:[%s251] sm:$0xf] 0
      %3819 = vst [vmem:[%s251 + $0x4] sm:$0xf] 0
      %3820 = vst [vmem:[%s251 + $0x8] sm:$0xf] 0
      %3821 = vst [vmem:[%s251 + $0xc] sm:$0xf] 0
      %3822 = vst [vmem:[%s251 + $0x10] sm:$0xf] 0
      %3823 = vst [vmem:[%s251 + $0x14] sm:$0xf] 0
      %3824 = vst [vmem:[%s251 + $0x18] sm:$0xf] 0
      %3825 = vst [vmem:[%s251 + $0x1c] sm:$0xf] 0
      %3826 = vst [vmem:[%s251 + $0x20] sm:$0xf] 0
      %3827 = vst [vmem:[%s251 + $0x24] sm:$0xf] 0
      %3828 = vst [vmem:[%s251 + $0x28] sm:$0xf] 0
      %3829 = vst [vmem:[%s251 + $0x2c] sm:$0xf] 0
      %3830 = vst [vmem:[%s251 + $0x30] sm:$0xf] 0
      %3831 = vst [vmem:[%s251 + $0x34] sm:$0xf] 0
      %v3832 = vpack.c.bf16 %v3809, %v3808
      %v3833 = vpack.c.bf16 %v3811, %v3810
      %v3834 = vpack.c.bf16 %v3813, %v3812
      %v3835 = vpack.c.bf16 %v3815, %v3814
      %v3836 = vpack.c.bf16 %v3817, %v3816
      %v3842 = vunpack.c.l.b16 %v3832
      %v3843 = vunpack.c.h.b16 %v3832
      %v3844 = vunpack.c.l.b16 %v3833
      %v3845 = vunpack.c.h.b16 %v3833
      %v3846 = vunpack.c.l.b16 %v3834
      %v3847 = vunpack.c.h.b16 %v3834
      %v3848 = vunpack.c.l.b16 %v3835
      %v3849 = vunpack.c.h.b16 %v3835
      %v3850 = vunpack.c.l.b16 %v3836
      %v3851 = vunpack.c.h.b16 %v3836
      %v3852 = vpack.c.b16 %v3842, %v3842
      %v3853 = vpack.c.b16 %v3843, %v3843
      %v3854 = vpack.c.b16 %v3844, %v3844
      %v3855 = vpack.c.b16 %v3845, %v3845
      %v3856 = vpack.c.b16 %v3846, %v3846
      %v3857 = vpack.c.b16 %v3847, %v3847
      %v3858 = vpack.c.b16 %v3848, %v3848
      %v3859 = vpack.c.b16 %v3849, %v3849
      %v3860 = vpack.c.b16 %v3850, %v3850
      %v3861 = vpack.c.b16 %v3851, %v3851
      %vm3862 = vsmask.f32 1280
      %vm3863 = vsmask.f32 5392
      %vm3864 = vmor %vm3862, %vm3863
      %v3866 = vshrl.u32 %v3852, 16
      %v3868 = vrot.slane %v3866, 6
      %v3869 = vshll.u32 %v3852, 16
      %v3871 = vrot.slane %v3869, 7
      %v3872 = vor.u32 %v3868, %v3871
      %v3873 = vrot.slane %v3872, 4
      %v3875 = vshrl.u32 %v3853, 16
      %v3877 = vrot.slane %v3875, 6
      %v3878 = vshll.u32 %v3853, 16
      %v3880 = vrot.slane %v3878, 7
      %v3881 = vor.u32 %v3877, %v3880
      %v3882 = vsel %vm3864, %v3873, %v3881
      %v3883 = vrot.slane %v3881, 4
      %v3885 = vshrl.u32 %v3854, 16
      %v3887 = vrot.slane %v3885, 6
      %v3888 = vshll.u32 %v3854, 16
      %v3890 = vrot.slane %v3888, 7
      %v3891 = vor.u32 %v3887, %v3890
      %v3892 = vsel %vm3864, %v3883, %v3891
      %v3893 = vrot.slane %v3891, 4
      %v3895 = vshrl.u32 %v3855, 16
      %v3897 = vrot.slane %v3895, 6
      %v3898 = vshll.u32 %v3855, 16
      %v3900 = vrot.slane %v3898, 7
      %v3901 = vor.u32 %v3897, %v3900
      %v3902 = vsel %vm3864, %v3893, %v3901
      %v3903 = vrot.slane %v3901, 4
      %v3905 = vshrl.u32 %v3856, 16
      %v3907 = vrot.slane %v3905, 6
      %v3908 = vshll.u32 %v3856, 16
      %v3910 = vrot.slane %v3908, 7
      %v3911 = vor.u32 %v3907, %v3910
      %v3912 = vsel %vm3864, %v3903, %v3911
      %v3913 = vrot.slane %v3911, 4
      %v3915 = vshrl.u32 %v3857, 16
      %v3917 = vrot.slane %v3915, 6
      %v3918 = vshll.u32 %v3857, 16
      %v3920 = vrot.slane %v3918, 7
      %v3921 = vor.u32 %v3917, %v3920
      %v3922 = vsel %vm3864, %v3913, %v3921
      %v3923 = vrot.slane %v3921, 4
      %v3925 = vshrl.u32 %v3858, 16
      %v3927 = vrot.slane %v3925, 6
      %v3928 = vshll.u32 %v3858, 16
      %v3930 = vrot.slane %v3928, 7
      %v3931 = vor.u32 %v3927, %v3930
      %v3932 = vsel %vm3864, %v3923, %v3931
      %v3933 = vrot.slane %v3931, 4
      %v3935 = vshrl.u32 %v3859, 16
      %v3937 = vrot.slane %v3935, 6
      %v3938 = vshll.u32 %v3859, 16
      %v3940 = vrot.slane %v3938, 7
      %v3941 = vor.u32 %v3937, %v3940
      %v3942 = vsel %vm3864, %v3933, %v3941
      %v3943 = vrot.slane %v3941, 4
      %v3945 = vshrl.u32 %v3860, 16
      %v3947 = vrot.slane %v3945, 6
      %v3948 = vshll.u32 %v3860, 16
      %v3950 = vrot.slane %v3948, 7
      %v3951 = vor.u32 %v3947, %v3950
      %v3952 = vsel %vm3864, %v3943, %v3951
      %v3953 = vrot.slane %v3951, 4
      %v3955 = vshrl.u32 %v3861, 16
      %v3957 = vrot.slane %v3955, 6
      %v3958 = vshll.u32 %v3861, 16
      %v3960 = vrot.slane %v3958, 7
      %v3961 = vor.u32 %v3957, %v3960
      %v3962 = vsel %vm3864, %v3953, %v3961
      %v3963 = vrot.slane %v3961, 4
      %vm3975 = vcmask 1043457
      %vm3976 = vsmask.f32 7942
      %vm3977 = vmand %vm3975, %vm3976
      %v3978 = vld [vmem:[%s251 + $0x4] sm:$0xe]
      %v3979 = vsel %vm3977, %v3872, %v3978
      %3980 = vst [vmem:[%s251 + $0x4] sm:$0xe] %v3979
      %3981 = vst [vmem:[%s251 + $0x8] sm:$0xf] %v3882
      %3982 = vst [vmem:[%s251 + $0xc] sm:$0xf] %v3892
      %3983 = vst [vmem:[%s251 + $0x10] sm:$0xf] %v3902
      %3984 = vst [vmem:[%s251 + $0x14] sm:$0xf] %v3912
      %3985 = vst [vmem:[%s251 + $0x18] sm:$0xf] %v3922
      %3986 = vst [vmem:[%s251 + $0x1c] sm:$0xf] %v3932
      %3987 = vst [vmem:[%s251 + $0x20] sm:$0xf] %v3942
      %3988 = vst [vmem:[%s251 + $0x24] sm:$0xf] %v3952
      %3989 = vst [vmem:[%s251 + $0x28] sm:$0xf] %v3962
      %vm3990 = vmand %vm3008, %vm3862
      %v3991 = vld [vmem:[%s251 + $0x2c] sm:$0x3]
      %v3992 = vsel %vm3990, %v3963, %v3991
      %3993 = vst [vmem:[%s251 + $0x2c] sm:$0x3] %v3992
      %p3994 = scmp.lt.s32.totalorder %s17, 1
      %s3995 = scalar_select %p3994, %s17, 1
      %s3996 = smul.addr %s3995, 14
      %s3997 = smul.addr %s3996, 4
      %s3998 = scalar_lea.vmem %s6, %s3997
      // Predicated region
      $region45: #{resnet_matching_encoder_forward.5} parent=43 // pred_check
        %p3999 = pneg %p166
      $region46: #{resnet_matching_encoder_forward.5} parent=43 // pred_check_branch
        %4001 = sbr.rel (%p3999) target = $region48
      $region47: #{resnet_matching_encoder_forward.5} parent=43 // pred_region
        _
      $region48: #{resnet_matching_encoder_forward.5} parent=43 // pred_fallthru
        _
    $region44: #{resnet_matching_encoder_forward.5} parent=5 // pred_fallthru
      _
    %p4002 = scmp.le.s32.totalorder 2, %s12
    // Predicated region
    $region49: #{resnet_matching_encoder_forward.5} parent=5 // pred_check
      %p4003 = pneg %p4002
    $region50: #{resnet_matching_encoder_forward.5} parent=5 // pred_check_branch
      %4005 = sbr.rel (%p4003) target = $region52
    $region51: #{resnet_matching_encoder_forward.5} parent=5 // pred_region
      %s4006 = ssub.s32 %s12, 2
      // Predicated region
      $region53: #{resnet_matching_encoder_forward.5} parent=51 // pred_check
        %p4007 = pneg %p172
      $region54: #{resnet_matching_encoder_forward.5} parent=51 // pred_check_branch
        %4009 = sbr.rel (%p4007) target = $region56
      $region55: #{resnet_matching_encoder_forward.5} parent=51 // pred_region
        %p4010 = scmp.lt.s32.totalorder %s18, 1
        %s4011 = scalar_select %p4010, %s18, 1
        %s4012 = smul.addr %s4011, 14
        %s4013 = smul.addr %s4012, 4
        %s4014 = scalar_lea.vmem %s6, %s4013
      $region56: #{resnet_matching_encoder_forward.5} parent=51 // pred_fallthru
        _
    $region52: #{resnet_matching_encoder_forward.5} parent=5 // pred_fallthru
      _
  $region6: #{resnet_matching_encoder_forward.5} parent=0 // loop_footer
    %s16 = sadd.s32 1, %s12
  $region7: #{resnet_matching_encoder_forward.5} parent=0 // loop_footer_branch
    %11 = sbr.rel target = $region3
  $region8: #{resnet_matching_encoder_forward.5} parent=0 // loop_exit
    _

</llo_original>
